<compile_context>
chip_gen: v6e
topology: v6e:2x2x1
jax: 0.10.0
libtpu: 0.0.40
codegen_flags: <defaults>
</compile_context>

<pallas_src>
import functools

import jax
import jax.numpy as jnp
from jax import lax
from jax.experimental import pallas as pl
from jax.experimental.pallas import tpu as pltpu


# ---------------------------------------------------------------------------
# Shared conv-tile computation for one image of the batch block.
#   packed=True : build (T_Q, KH*KW*Cin) patch in VMEM scratch, single deep dot.
#   packed=False: per-tap dots (Cin already >= 128).
#   channels_minor=True  -> returns (T_Q, CT)  (used by the stats pass)
#   channels_minor=False -> returns (CT, T_Q)  (used by the activation pass)
# ---------------------------------------------------------------------------
def _conv_tile(x_ref, w_ref, patch_ref, b, oh0, *,
               KH, KW, Cin, T_OH, OW, packed, channels_minor):
    T_Q = T_OH * OW
    CT = w_ref.shape[0]

    def window(kh, kw):
        # x_ref: (Nb, Hp, Wp, Cin) bf16 (padded NHWC); stride==1 only.
        v = x_ref[b, pl.ds(oh0 + kh, T_OH), pl.ds(kw, OW), :]        # (T_OH, OW, Cin)
        return v.reshape(T_Q, Cin)

    dims = (((1,), (1,)), ((), ()))  # contract the minor (K) dims of both operands

    if packed:
        for kh in range(KH):
            for kw in range(KW):
                t = kh * KW + kw
                patch_ref[:, t * Cin:(t + 1) * Cin] = window(kh, kw)
        p = patch_ref[...]                                            # (T_Q, KH*KW*Cin)
        if channels_minor:
            return lax.dot_general(p, w_ref[...], dims,
                                   preferred_element_type=jnp.float32)   # (T_Q, CT)
        return lax.dot_general(w_ref[...], p, dims,
                               preferred_element_type=jnp.float32)       # (CT, T_Q)

    acc = jnp.zeros((T_Q, CT) if channels_minor else (CT, T_Q), jnp.float32)
    for kh in range(KH):
        for kw in range(KW):
            t = kh * KW + kw
            wt = w_ref[:, t * Cin:(t + 1) * Cin]                      # (CT, Cin)
            wv = window(kh, kw)                                       # (T_Q, Cin)
            if channels_minor:
                acc = acc + lax.dot_general(wv, wt, dims,
                                            preferred_element_type=jnp.float32)
            else:
                acc = acc + lax.dot_general(wt, wv, dims,
                                            preferred_element_type=jnp.float32)
    return acc


# ---------------------------------------------------------------------------
# Pass A: conv -> per-block per-channel (mean, M2) with Chan/Welford merging over the
# Nb images of the block.  No conv output to HBM; stats block is lane-dense (2, CT).
# ---------------------------------------------------------------------------
def _stats_kernel(x_ref, w_ref, st_ref, *scratch,
                  Nb, KH, KW, Cin, T_OH, OW, packed):
    patch_ref = scratch[0] if packed else None
    oh0 = pl.program_id(2) * T_OH
    if T_OH % 8 == 0:
        oh0 = pl.multiple_of(oh0, 8)
    cnt = float(T_OH * OW)

    mean_run = None
    m2_run = None
    n_run = 0.0
    for b in range(Nb):
        acc = _conv_tile(x_ref, w_ref, patch_ref, b, oh0,
                         KH=KH, KW=KW, Cin=Cin, T_OH=T_OH, OW=OW,
                         packed=packed, channels_minor=True)          # (T_Q, CT)
        mu_b = jnp.sum(acc, axis=0, keepdims=True) * (1.0 / cnt)      # (1, CT)
        d = acc - mu_b
        m2_b = jnp.sum(d * d, axis=0, keepdims=True)                  # (1, CT)
        if b == 0:
            mean_run, m2_run, n_run = mu_b, m2_b, cnt
        else:
            n_new = n_run + cnt
            delta = mu_b - mean_run
            mean_run = mean_run + delta * (cnt / n_new)
            m2_run = m2_run + m2_b + (delta * delta) * (n_run * cnt / n_new)
            n_run = n_new

    st_ref[0, 0, 0, :] = mean_run[0]
    st_ref[0, 0, 1, :] = m2_run[0]


# ---------------------------------------------------------------------------
# Pass B: recompute the conv tile, fuse BN scale/shift + LeakyReLU, write the
# NCHW-flat activation directly (lane dim = flattened spatial tile).
# TODO(synk): for deep layers (Cin >= Cout) storing a bf16 conv result from pass A and
# making pass B a pure elementwise pass is cheaper than recompute; not implemented.
# ---------------------------------------------------------------------------
def _bn_lrelu_kernel(x_ref, w_ref, scale_ref, shift_ref, o_ref, *scratch,
                     Nb, KH, KW, Cin, T_OH, OW, packed, slope):
    patch_ref = scratch[0] if packed else None
    oh0 = pl.program_id(2) * T_OH
    if T_OH % 8 == 0:
        oh0 = pl.multiple_of(oh0, 8)
    for b in range(Nb):
        acc = _conv_tile(x_ref, w_ref, patch_ref, b, oh0,
                         KH=KH, KW=KW, Cin=Cin, T_OH=T_OH, OW=OW,
                         packed=packed, channels_minor=False)         # (CT, T_Q)
        z = acc * scale_ref[...] + shift_ref[...]                     # (CT,1) broadcast
        o_ref[b] = jnp.where(z > 0, z, slope * z).astype(o_ref.dtype)


# ---------------------------------------------------------------------------
# Tiling helpers
# ---------------------------------------------------------------------------
def _round_up(a, b):
    return (a + b - 1) // b * b


def _choose_cout_tile(Cout):
    if Cout <= 256:
        return Cout
    # NOTE: on v5e (4x128 MXU) 128 is the better tile; 256 suits v6e/v7x.
    for ct in (256, 128):
        if Cout % ct == 0:
            return ct
    return Cout


def _choose_batch_tile(N, img_bytes, budget=4 << 20, max_nb=8):
    nb = 1
    for d in range(1, N + 1):
        if N % d == 0 and d <= max_nb and d * img_bytes <= budget:
            nb = d
    return nb


def _choose_row_tile(OH, OW, CT, Nb, acc_budget=512 << 10, blk_budget=2 << 20):
    cands = [d for d in range(1, OH + 1) if OH % d == 0 and (d * OW) % 128 == 0]
    if not cands:
        return OH  # full-extent final block dims are always legal
    ok = [d for d in cands
          if CT * d * OW * 4 <= acc_budget and Nb * CT * d * OW * 4 <= blk_budget]
    return max(ok) if ok else min(cands)


# ---------------------------------------------------------------------------
# Wrapper
# ---------------------------------------------------------------------------
@functools.partial(jax.jit, static_argnames=("stride", "padding", "eps", "slope"))
def cnn_block_forward(x, weight, gamma, beta, *, stride=1, padding=1,
                      eps=1e-5, slope=0.1):
    """x: (N, Cin, H, W) f32; weight: (Cout, Cin, KH, KW) f32; gamma/beta: (Cout,)."""
    N, Cin, H, W = x.shape
    Cout, _, KH, KW = weight.shape
    if stride != 1:
        # TODO(synk): stride>1 (YOLO downsampling convs) needs a strided-window path.
        raise NotImplementedError("Pallas CNNBlock kernel currently supports stride=1 only")
    OH = (H + 2 * padding - KH) // stride + 1
    OW = (W + 2 * padding - KW) // stride + 1
    Hp, Wp = H + 2 * padding, W + 2 * padding
    KP = KH * KW * Cin

    # One fused pad + NHWC + bf16-cast pass over the input (half the f32 HBM bytes).
    # TODO(synk): keeping activations padded-NHWC end-to-end across chained CNNBlocks
    # (padding handled in-kernel) would remove this extra HBM pass entirely.
    xp = jnp.pad(x, ((0, 0), (0, 0), (padding, padding), (padding, padding)))
    xp = xp.transpose(0, 2, 3, 1).astype(jnp.bfloat16)                  # (N, Hp, Wp, Cin)
    # Packed weights (Cout, KH*KW*Cin); K index = (kh*KW + kw)*Cin + c to match the patch.
    w2 = weight.transpose(0, 2, 3, 1).reshape(Cout, KP).astype(jnp.bfloat16)

    packed = Cin < 128
    CT = _choose_cout_tile(Cout)
    img_bytes = Hp * _round_up(Wp, 16) * _round_up(Cin, 128) * 2
    Nb = _choose_batch_tile(N, img_bytes)
    T_OH = _choose_row_tile(OH, OW, CT, Nb)
    T_Q = T_OH * OW
    NBg, n_co, n_j = N // Nb, Cout // CT, OH // T_OH
    grid = (NBg, n_co, n_j)

    # Generation-aware VMEM cap: ~7/8 of physical VMEM (56 MiB on v7x, ~112 MiB v5e/v6e).
    vmem_phys = None
    try:
        vmem_phys = getattr(pltpu.get_tpu_info(), "vmem_capacity_bytes", None)
    except Exception:
        vmem_phys = None
    if not vmem_phys:
        vmem_phys = 64 << 20
    vmem_cap = (int(vmem_phys) // 8) * 7

    x_blk = Nb * Hp * _round_up(Wp, 16) * _round_up(Cin, 128) * 2
    w_blk = _round_up(CT, 16) * _round_up(KP, 128) * 2
    o_blk = Nb * _round_up(CT, 8) * _round_up(T_Q, 128) * 4
    patch_blk = (_round_up(T_Q, 16) * _round_up(KP, 128) * 2) if packed else 0
    est = 2 * x_blk + 2 * w_blk + 2 * o_blk + patch_blk + (2 << 20)
    vmem_limit = int(min(max(2 * est, 32 << 20), vmem_cap))

    # TODO(synk): for very large images (Hp*Wp*Cin >> a few MB, v7x) the whole-image x
    # block should become a row-halo tile / manual DMA; here the block index is constant
    # across the inner (co, j) axes so the image is only DMA'd once per batch block.
    x_spec = pl.BlockSpec((Nb, Hp, Wp, Cin), lambda nb, co, j: (nb, 0, 0, 0))
    # NOTE: pipeline_mode=pl.Buffered(1) on the grid-invariant w/scale/shift specs would
    # skip their double buffering; omitted since the blocks are tiny at these shapes.
    w_spec = pl.BlockSpec((CT, KP), lambda nb, co, j: (co, 0))
    st_spec = pl.BlockSpec((1, 1, 2, CT), lambda nb, co, j: (nb, j, 0, co))
    sc_spec = pl.BlockSpec((CT, 1), lambda nb, co, j: (co, 0))
    o_spec = pl.BlockSpec((Nb, CT, T_Q), lambda nb, co, j: (nb, co, j))

    scratch = [pltpu.VMEM((T_Q, KP), jnp.bfloat16)] if packed else []
    flops = 2 * N * OH * OW * KP * Cout
    sem = ("parallel", "arbitrary", "arbitrary")   # only batch sharded across TCs

    # ---- Pass A: per-block (mean, M2) batch statistics -------------------------------
    stats = pl.pallas_call(
        functools.partial(_stats_kernel, Nb=Nb, KH=KH, KW=KW, Cin=Cin,
                          T_OH=T_OH, OW=OW, packed=packed),
        out_shape=jax.ShapeDtypeStruct((NBg, n_j, 2, Cout), jnp.float32),
        grid_spec=pltpu.PrefetchScalarGridSpec(
            num_scalar_prefetch=0, grid=grid,
            in_specs=[x_spec, w_spec],
            out_specs=st_spec,
            scratch_shapes=scratch),
        compiler_params=pltpu.CompilerParams(
            dimension_semantics=sem, vmem_limit_bytes=vmem_limit),
        cost_estimate=pl.CostEstimate(
            flops=flops, transcendentals=0,
            bytes_accessed=int(xp.size * 2 + w2.size * 2 + NBg * n_j * 2 * Cout * 4)),
    )(xp, w2)

    # ---- BatchNorm (training mode, biased batch var) via parallel-variance merge -----
    blk_mean = stats[:, :, 0, :]                                   # (NBg, n_j, Cout)
    blk_m2 = stats[:, :, 1, :]
    cnt_blk = float(Nb * T_Q)                                      # equal per block
    M = N * OH * OW
    mean = jnp.mean(blk_mean, axis=(0, 1))                         # (Cout,)
    m2 = jnp.sum(blk_m2, axis=(0, 1)) + cnt_blk * jnp.sum((blk_mean - mean) ** 2, axis=(0, 1))
    var = jnp.maximum(m2 / M, 0.0)
    inv_std = gamma / jnp.sqrt(var + eps)
    scale = inv_std.reshape(Cout, 1).astype(jnp.float32)
    shift = (beta - mean * inv_std).reshape(Cout, 1).astype(jnp.float32)
    # TODO(synk): BatchNorm running_mean/running_var buffer updates (training side
    # effect) are not emitted; the forward output does not depend on them.

    # ---- Pass B: recompute conv, fuse BN + LeakyReLU, write NCHW-flat output ---------
    out = pl.pallas_call(
        functools.partial(_bn_lrelu_kernel, Nb=Nb, KH=KH, KW=KW, Cin=Cin,
                          T_OH=T_OH, OW=OW, packed=packed, slope=slope),
        out_shape=jax.ShapeDtypeStruct((N, Cout, OH * OW), jnp.float32),
        grid_spec=pltpu.PrefetchScalarGridSpec(
            num_scalar_prefetch=0, grid=grid,
            in_specs=[x_spec, w_spec, sc_spec, sc_spec],
            out_specs=o_spec,
            scratch_shapes=scratch),
        compiler_params=pltpu.CompilerParams(
            dimension_semantics=sem, vmem_limit_bytes=vmem_limit),
        cost_estimate=pl.CostEstimate(
            flops=flops, transcendentals=0,
            bytes_accessed=int(xp.size * 2 + w2.size * 2 + N * Cout * OH * OW * 4)),
    )(xp, w2, scale, shift)

    return out.reshape(N, Cout, OH, OW)   # free reshape; kernel wrote NCHW-flat layout


# ---------------------------------------------------------------------------
# Pure-JAX reference (matches PyTorch training-mode CNNBlock forward)
# ---------------------------------------------------------------------------
def cnn_block_ref(x, weight, gamma, beta, *, stride=1, padding=1, eps=1e-5, slope=0.1):
    y = lax.conv_general_dilated(
        x, weight, (stride, stride), [(padding, padding), (padding, padding)],
        dimension_numbers=("NCHW", "OIHW", "NCHW"))
    mean = y.mean(axis=(0, 2, 3), keepdims=True)
    var = y.var(axis=(0, 2, 3), keepdims=True)   # biased, like BN training mode
    z = (y - mean) / jnp.sqrt(var + eps) * gamma.reshape(1, -1, 1, 1) + beta.reshape(1, -1, 1, 1)
    return jnp.where(z > 0, z, slope * z)


if __name__ == "__main__":
    # CNNBlock(in_channels=4, out_channels=8, kernel_size=3, stride=1, padding=1)
    N, Cin, H, W = 2, 4, 16, 16
    Cout, KH, KW = 8, 3, 3
    stride, padding = 1, 1

    key = jax.random.PRNGKey(0)
    kx, kw_, kg, kb = jax.random.split(key, 4)
    x = jax.random.normal(kx, (N, Cin, H, W), dtype=jnp.float32)
    weight = jax.random.normal(kw_, (Cout, Cin, KH, KW), dtype=jnp.float32) * 0.1
    gamma = 1.0 + 0.1 * jax.random.normal(kg, (Cout,), dtype=jnp.float32)
    beta = 0.1 * jax.random.normal(kb, (Cout,), dtype=jnp.float32)

    out = cnn_block_forward(x, weight, gamma, beta, stride=stride, padding=padding)
    out = jax.block_until_ready(out)
    assert out.shape == (N, Cout, H, W)

    # Tight check: same bf16 input quantization as the kernel's MXU path.
    xq = x.astype(jnp.bfloat16).astype(jnp.float32)
    wq = weight.astype(jnp.bfloat16).astype(jnp.float32)
    ref_q = cnn_block_ref(xq, wq, gamma, beta, stride=stride, padding=padding)
    err_q = float(jnp.max(jnp.abs(out - ref_q)))
    assert jnp.allclose(out, ref_q, atol=2e-3, rtol=2e-3), f"bf16-ref err {err_q}"

    # Semantics check vs the exact f32 module forward (bf16-MXU tolerance).
    ref = cnn_block_ref(x, weight, gamma, beta, stride=stride, padding=padding)
    err = float(jnp.max(jnp.abs(out - ref)))
    assert jnp.allclose(out, ref, atol=6e-2, rtol=6e-2), f"f32-ref err {err}"

    print("KERNEL_OK")
</pallas_src>

<mosaic_0001>
module attributes {stable_mosaic.version = 11 : i64} {
  func.func @_stats_kernel(%arg0: i32, %arg1: i32, %arg2: i32, %arg3: memref<2x18x18x4xbf16, #tpu.memory_space<vmem>>, %arg4: memref<8x36xbf16, #tpu.memory_space<vmem>>, %arg5: memref<1x1x2x8xf32, #tpu.memory_space<vmem>>, %arg6: memref<256x36xbf16, #tpu.memory_space<vmem>>) attributes {dimension_semantics = [#tpu.dimension_semantics<parallel>, #tpu.dimension_semantics<arbitrary>, #tpu.dimension_semantics<arbitrary>], iteration_bounds = array<i64: 1, 1, 1>, scalar_prefetch = 0 : i64, scratch_operands = 1 : i64, tpu.core_type = #tpu.core_type<tc>, window_params = [{transform_indices = @transform_0, window_bounds = array<i64: 2, 18, 18, 4>}, {transform_indices = @transform_1, window_bounds = array<i64: 8, 36>}, {transform_indices = @transform_2, window_bounds = array<i64: 1, 1, 2, 8>}]} {
    %c16_i32 = arith.constant 16 : i32
    %0 = arith.muli %arg2, %c16_i32 : i32
    %1 = tpu.assume_multiple %0, 8 : i32
    %c0_i32 = arith.constant 0 : i32
    %2 = arith.addi %1, %c0_i32 : i32
    %c0 = arith.constant 0 : index
    %3 = arith.index_cast %2 : i32 to index
    %c0_0 = arith.constant 0 : index
    %c0_1 = arith.constant 0 : index
    %4 = vector.load %arg3[%c0, %3, %c0_0, %c0_1] : memref<2x18x18x4xbf16, #tpu.memory_space<vmem>>, vector<1x16x16x4xbf16>
    %5 = vector.shape_cast %4 : vector<1x16x16x4xbf16> to vector<16x16x4xbf16>
    %6 = vector.shape_cast %5 : vector<16x16x4xbf16> to vector<256x4xbf16>
    %c0_2 = arith.constant 0 : index
    %c0_3 = arith.constant 0 : index
    %7 = vector.load %arg6[%c0_2, %c0_3] : memref<256x36xbf16, #tpu.memory_space<vmem>>, vector<256x4xbf16>
    tpu.vector_store %arg6[%c0_2, %c0_3], %6 {strides = array<i32>} : memref<256x36xbf16, #tpu.memory_space<vmem>>, vector<256x4xbf16>,
    %c0_i32_4 = arith.constant 0 : i32
    %8 = arith.addi %1, %c0_i32_4 : i32
    %c0_5 = arith.constant 0 : index
    %9 = arith.index_cast %8 : i32 to index
    %c1 = arith.constant 1 : index
    %c0_6 = arith.constant 0 : index
    %10 = vector.load %arg3[%c0_5, %9, %c1, %c0_6] : memref<2x18x18x4xbf16, #tpu.memory_space<vmem>>, vector<1x16x16x4xbf16>
    %11 = vector.shape_cast %10 : vector<1x16x16x4xbf16> to vector<16x16x4xbf16>
    %12 = vector.shape_cast %11 : vector<16x16x4xbf16> to vector<256x4xbf16>
    %c0_7 = arith.constant 0 : index
    %c4 = arith.constant 4 : index
    %13 = vector.load %arg6[%c0_7, %c4] : memref<256x36xbf16, #tpu.memory_space<vmem>>, vector<256x4xbf16>
    tpu.vector_store %arg6[%c0_7, %c4], %12 {strides = array<i32>} : memref<256x36xbf16, #tpu.memory_space<vmem>>, vector<256x4xbf16>,
    %c0_i32_8 = arith.constant 0 : i32
    %14 = arith.addi %1, %c0_i32_8 : i32
    %c0_9 = arith.constant 0 : index
    %15 = arith.index_cast %14 : i32 to index
    %c2 = arith.constant 2 : index
    %c0_10 = arith.constant 0 : index
    %16 = vector.load %arg3[%c0_9, %15, %c2, %c0_10] : memref<2x18x18x4xbf16, #tpu.memory_space<vmem>>, vector<1x16x16x4xbf16>
    %17 = vector.shape_cast %16 : vector<1x16x16x4xbf16> to vector<16x16x4xbf16>
    %18 = vector.shape_cast %17 : vector<16x16x4xbf16> to vector<256x4xbf16>
    %c0_11 = arith.constant 0 : index
    %c8 = arith.constant 8 : index
    %19 = vector.load %arg6[%c0_11, %c8] : memref<256x36xbf16, #tpu.memory_space<vmem>>, vector<256x4xbf16>
    tpu.vector_store %arg6[%c0_11, %c8], %18 {strides = array<i32>} : memref<256x36xbf16, #tpu.memory_space<vmem>>, vector<256x4xbf16>,
    %c1_i32 = arith.constant 1 : i32
    %20 = arith.addi %1, %c1_i32 : i32
    %c0_12 = arith.constant 0 : index
    %21 = arith.index_cast %20 : i32 to index
    %c0_13 = arith.constant 0 : index
    %c0_14 = arith.constant 0 : index
    %22 = vector.load %arg3[%c0_12, %21, %c0_13, %c0_14] : memref<2x18x18x4xbf16, #tpu.memory_space<vmem>>, vector<1x16x16x4xbf16>
    %23 = vector.shape_cast %22 : vector<1x16x16x4xbf16> to vector<16x16x4xbf16>
    %24 = vector.shape_cast %23 : vector<16x16x4xbf16> to vector<256x4xbf16>
    %c0_15 = arith.constant 0 : index
    %c12 = arith.constant 12 : index
    %25 = vector.load %arg6[%c0_15, %c12] : memref<256x36xbf16, #tpu.memory_space<vmem>>, vector<256x4xbf16>
    tpu.vector_store %arg6[%c0_15, %c12], %24 {strides = array<i32>} : memref<256x36xbf16, #tpu.memory_space<vmem>>, vector<256x4xbf16>,
    %c1_i32_16 = arith.constant 1 : i32
    %26 = arith.addi %1, %c1_i32_16 : i32
    %c0_17 = arith.constant 0 : index
    %27 = arith.index_cast %26 : i32 to index
    %c1_18 = arith.constant 1 : index
    %c0_19 = arith.constant 0 : index
    %28 = vector.load %arg3[%c0_17, %27, %c1_18, %c0_19] : memref<2x18x18x4xbf16, #tpu.memory_space<vmem>>, vector<1x16x16x4xbf16>
    %29 = vector.shape_cast %28 : vector<1x16x16x4xbf16> to vector<16x16x4xbf16>
    %30 = vector.shape_cast %29 : vector<16x16x4xbf16> to vector<256x4xbf16>
    %c0_20 = arith.constant 0 : index
    %c16 = arith.constant 16 : index
    %31 = vector.load %arg6[%c0_20, %c16] : memref<256x36xbf16, #tpu.memory_space<vmem>>, vector<256x4xbf16>
    tpu.vector_store %arg6[%c0_20, %c16], %30 {strides = array<i32>} : memref<256x36xbf16, #tpu.memory_space<vmem>>, vector<256x4xbf16>,
    %c1_i32_21 = arith.constant 1 : i32
    %32 = arith.addi %1, %c1_i32_21 : i32
    %c0_22 = arith.constant 0 : index
    %33 = arith.index_cast %32 : i32 to index
    %c2_23 = arith.constant 2 : index
    %c0_24 = arith.constant 0 : index
    %34 = vector.load %arg3[%c0_22, %33, %c2_23, %c0_24] : memref<2x18x18x4xbf16, #tpu.memory_space<vmem>>, vector<1x16x16x4xbf16>
    %35 = vector.shape_cast %34 : vector<1x16x16x4xbf16> to vector<16x16x4xbf16>
    %36 = vector.shape_cast %35 : vector<16x16x4xbf16> to vector<256x4xbf16>
    %c0_25 = arith.constant 0 : index
    %c20 = arith.constant 20 : index
    %37 = vector.load %arg6[%c0_25, %c20] : memref<256x36xbf16, #tpu.memory_space<vmem>>, vector<256x4xbf16>
    tpu.vector_store %arg6[%c0_25, %c20], %36 {strides = array<i32>} : memref<256x36xbf16, #tpu.memory_space<vmem>>, vector<256x4xbf16>,
    %c2_i32 = arith.constant 2 : i32
    %38 = arith.addi %1, %c2_i32 : i32
    %c0_26 = arith.constant 0 : index
    %39 = arith.index_cast %38 : i32 to index
    %c0_27 = arith.constant 0 : index
    %c0_28 = arith.constant 0 : index
    %40 = vector.load %arg3[%c0_26, %39, %c0_27, %c0_28] : memref<2x18x18x4xbf16, #tpu.memory_space<vmem>>, vector<1x16x16x4xbf16>
    %41 = vector.shape_cast %40 : vector<1x16x16x4xbf16> to vector<16x16x4xbf16>
    %42 = vector.shape_cast %41 : vector<16x16x4xbf16> to vector<256x4xbf16>
    %c0_29 = arith.constant 0 : index
    %c24 = arith.constant 24 : index
    %43 = vector.load %arg6[%c0_29, %c24] : memref<256x36xbf16, #tpu.memory_space<vmem>>, vector<256x4xbf16>
    tpu.vector_store %arg6[%c0_29, %c24], %42 {strides = array<i32>} : memref<256x36xbf16, #tpu.memory_space<vmem>>, vector<256x4xbf16>,
    %c2_i32_30 = arith.constant 2 : i32
    %44 = arith.addi %1, %c2_i32_30 : i32
    %c0_31 = arith.constant 0 : index
    %45 = arith.index_cast %44 : i32 to index
    %c1_32 = arith.constant 1 : index
    %c0_33 = arith.constant 0 : index
    %46 = vector.load %arg3[%c0_31, %45, %c1_32, %c0_33] : memref<2x18x18x4xbf16, #tpu.memory_space<vmem>>, vector<1x16x16x4xbf16>
    %47 = vector.shape_cast %46 : vector<1x16x16x4xbf16> to vector<16x16x4xbf16>
    %48 = vector.shape_cast %47 : vector<16x16x4xbf16> to vector<256x4xbf16>
    %c0_34 = arith.constant 0 : index
    %c28 = arith.constant 28 : index
    %49 = vector.load %arg6[%c0_34, %c28] : memref<256x36xbf16, #tpu.memory_space<vmem>>, vector<256x4xbf16>
    tpu.vector_store %arg6[%c0_34, %c28], %48 {strides = array<i32>} : memref<256x36xbf16, #tpu.memory_space<vmem>>, vector<256x4xbf16>,
    %c2_i32_35 = arith.constant 2 : i32
    %50 = arith.addi %1, %c2_i32_35 : i32
    %c0_36 = arith.constant 0 : index
    %51 = arith.index_cast %50 : i32 to index
    %c2_37 = arith.constant 2 : index
    %c0_38 = arith.constant 0 : index
    %52 = vector.load %arg3[%c0_36, %51, %c2_37, %c0_38] : memref<2x18x18x4xbf16, #tpu.memory_space<vmem>>, vector<1x16x16x4xbf16>
    %53 = vector.shape_cast %52 : vector<1x16x16x4xbf16> to vector<16x16x4xbf16>
    %54 = vector.shape_cast %53 : vector<16x16x4xbf16> to vector<256x4xbf16>
    %c0_39 = arith.constant 0 : index
    %c32 = arith.constant 32 : index
    %55 = vector.load %arg6[%c0_39, %c32] : memref<256x36xbf16, #tpu.memory_space<vmem>>, vector<256x4xbf16>
    tpu.vector_store %arg6[%c0_39, %c32], %54 {strides = array<i32>} : memref<256x36xbf16, #tpu.memory_space<vmem>>, vector<256x4xbf16>,
    %c0_40 = arith.constant 0 : index
    %c0_41 = arith.constant 0 : index
    %56 = vector.load %arg6[%c0_40, %c0_41] : memref<256x36xbf16, #tpu.memory_space<vmem>>, vector<256x36xbf16>
    %c0_42 = arith.constant 0 : index
    %c0_43 = arith.constant 0 : index
    %57 = vector.load %arg4[%c0_42, %c0_43] : memref<8x36xbf16, #tpu.memory_space<vmem>>, vector<8x36xbf16>
    %cst = arith.constant dense<0.000000e+00> : vector<256x8xf32>
    %58 = tpu.matmul %56, %57, %cst {dimension_numbers = #tpu.dot_dimension_numbers<[1], [1], [0], [0], [0, 0, 1, 0], [], []>} : vector<256x36xbf16>, vector<8x36xbf16>, vector<256x8xf32> -> vector<256x8xf32>
    %cst_44 = arith.constant dense<0.000000e+00> : vector<8xf32>
    %59 = vector.multi_reduction <add>, %58, %cst_44 [0] : vector<256x8xf32> to vector<8xf32>
    %60 = vector.shape_cast %59 : vector<8xf32> to vector<1x8xf32>
    %cst_45 = arith.constant 3.906250e-03 : f32
    %61 = vector.broadcast %cst_45 : f32 to vector<1x8xf32>
    %62 = arith.mulf %60, %61 : vector<1x8xf32>
    %63 = vector.broadcast %62 : vector<1x8xf32> to vector<256x8xf32>
    %64 = arith.subf %58, %63 : vector<256x8xf32>
    %65 = arith.mulf %64, %64 : vector<256x8xf32>
    %cst_46 = arith.constant dense<0.000000e+00> : vector<8xf32>
    %66 = vector.multi_reduction <add>, %65, %cst_46 [0] : vector<256x8xf32> to vector<8xf32>
    %67 = vector.shape_cast %66 : vector<8xf32> to vector<1x8xf32>
    %c0_i32_47 = arith.constant 0 : i32
    %68 = arith.addi %1, %c0_i32_47 : i32
    %c1_48 = arith.constant 1 : index
    %69 = arith.index_cast %68 : i32 to index
    %c0_49 = arith.constant 0 : index
    %c0_50 = arith.constant 0 : index
    %70 = vector.load %arg3[%c1_48, %69, %c0_49, %c0_50] : memref<2x18x18x4xbf16, #tpu.memory_space<vmem>>, vector<1x16x16x4xbf16>
    %71 = vector.shape_cast %70 : vector<1x16x16x4xbf16> to vector<16x16x4xbf16>
    %72 = vector.shape_cast %71 : vector<16x16x4xbf16> to vector<256x4xbf16>
    %c0_51 = arith.constant 0 : index
    %c0_52 = arith.constant 0 : index
    %73 = vector.load %arg6[%c0_51, %c0_52] : memref<256x36xbf16, #tpu.memory_space<vmem>>, vector<256x4xbf16>
    tpu.vector_store %arg6[%c0_51, %c0_52], %72 {strides = array<i32>} : memref<256x36xbf16, #tpu.memory_space<vmem>>, vector<256x4xbf16>,
    %c0_i32_53 = arith.constant 0 : i32
    %74 = arith.addi %1, %c0_i32_53 : i32
    %c1_54 = arith.constant 1 : index
    %75 = arith.index_cast %74 : i32 to index
    %c1_55 = arith.constant 1 : index
    %c0_56 = arith.constant 0 : index
    %76 = vector.load %arg3[%c1_54, %75, %c1_55, %c0_56] : memref<2x18x18x4xbf16, #tpu.memory_space<vmem>>, vector<1x16x16x4xbf16>
    %77 = vector.shape_cast %76 : vector<1x16x16x4xbf16> to vector<16x16x4xbf16>
    %78 = vector.shape_cast %77 : vector<16x16x4xbf16> to vector<256x4xbf16>
    %c0_57 = arith.constant 0 : index
    %c4_58 = arith.constant 4 : index
    %79 = vector.load %arg6[%c0_57, %c4_58] : memref<256x36xbf16, #tpu.memory_space<vmem>>, vector<256x4xbf16>
    tpu.vector_store %arg6[%c0_57, %c4_58], %78 {strides = array<i32>} : memref<256x36xbf16, #tpu.memory_space<vmem>>, vector<256x4xbf16>,
    %c0_i32_59 = arith.constant 0 : i32
    %80 = arith.addi %1, %c0_i32_59 : i32
    %c1_60 = arith.constant 1 : index
    %81 = arith.index_cast %80 : i32 to index
    %c2_61 = arith.constant 2 : index
    %c0_62 = arith.constant 0 : index
    %82 = vector.load %arg3[%c1_60, %81, %c2_61, %c0_62] : memref<2x18x18x4xbf16, #tpu.memory_space<vmem>>, vector<1x16x16x4xbf16>
    %83 = vector.shape_cast %82 : vector<1x16x16x4xbf16> to vector<16x16x4xbf16>
    %84 = vector.shape_cast %83 : vector<16x16x4xbf16> to vector<256x4xbf16>
    %c0_63 = arith.constant 0 : index
    %c8_64 = arith.constant 8 : index
    %85 = vector.load %arg6[%c0_63, %c8_64] : memref<256x36xbf16, #tpu.memory_space<vmem>>, vector<256x4xbf16>
    tpu.vector_store %arg6[%c0_63, %c8_64], %84 {strides = array<i32>} : memref<256x36xbf16, #tpu.memory_space<vmem>>, vector<256x4xbf16>,
    %c1_i32_65 = arith.constant 1 : i32
    %86 = arith.addi %1, %c1_i32_65 : i32
    %c1_66 = arith.constant 1 : index
    %87 = arith.index_cast %86 : i32 to index
    %c0_67 = arith.constant 0 : index
    %c0_68 = arith.constant 0 : index
    %88 = vector.load %arg3[%c1_66, %87, %c0_67, %c0_68] : memref<2x18x18x4xbf16, #tpu.memory_space<vmem>>, vector<1x16x16x4xbf16>
    %89 = vector.shape_cast %88 : vector<1x16x16x4xbf16> to vector<16x16x4xbf16>
    %90 = vector.shape_cast %89 : vector<16x16x4xbf16> to vector<256x4xbf16>
    %c0_69 = arith.constant 0 : index
    %c12_70 = arith.constant 12 : index
    %91 = vector.load %arg6[%c0_69, %c12_70] : memref<256x36xbf16, #tpu.memory_space<vmem>>, vector<256x4xbf16>
    tpu.vector_store %arg6[%c0_69, %c12_70], %90 {strides = array<i32>} : memref<256x36xbf16, #tpu.memory_space<vmem>>, vector<256x4xbf16>,
    %c1_i32_71 = arith.constant 1 : i32
    %92 = arith.addi %1, %c1_i32_71 : i32
    %c1_72 = arith.constant 1 : index
    %93 = arith.index_cast %92 : i32 to index
    %c1_73 = arith.constant 1 : index
    %c0_74 = arith.constant 0 : index
    %94 = vector.load %arg3[%c1_72, %93, %c1_73, %c0_74] : memref<2x18x18x4xbf16, #tpu.memory_space<vmem>>, vector<1x16x16x4xbf16>
    %95 = vector.shape_cast %94 : vector<1x16x16x4xbf16> to vector<16x16x4xbf16>
    %96 = vector.shape_cast %95 : vector<16x16x4xbf16> to vector<256x4xbf16>
    %c0_75 = arith.constant 0 : index
    %c16_76 = arith.constant 16 : index
    %97 = vector.load %arg6[%c0_75, %c16_76] : memref<256x36xbf16, #tpu.memory_space<vmem>>, vector<256x4xbf16>
    tpu.vector_store %arg6[%c0_75, %c16_76], %96 {strides = array<i32>} : memref<256x36xbf16, #tpu.memory_space<vmem>>, vector<256x4xbf16>,
    %c1_i32_77 = arith.constant 1 : i32
    %98 = arith.addi %1, %c1_i32_77 : i32
    %c1_78 = arith.constant 1 : index
    %99 = arith.index_cast %98 : i32 to index
    %c2_79 = arith.constant 2 : index
    %c0_80 = arith.constant 0 : index
    %100 = vector.load %arg3[%c1_78, %99, %c2_79, %c0_80] : memref<2x18x18x4xbf16, #tpu.memory_space<vmem>>, vector<1x16x16x4xbf16>
    %101 = vector.shape_cast %100 : vector<1x16x16x4xbf16> to vector<16x16x4xbf16>
    %102 = vector.shape_cast %101 : vector<16x16x4xbf16> to vector<256x4xbf16>
    %c0_81 = arith.constant 0 : index
    %c20_82 = arith.constant 20 : index
    %103 = vector.load %arg6[%c0_81, %c20_82] : memref<256x36xbf16, #tpu.memory_space<vmem>>, vector<256x4xbf16>
    tpu.vector_store %arg6[%c0_81, %c20_82], %102 {strides = array<i32>} : memref<256x36xbf16, #tpu.memory_space<vmem>>, vector<256x4xbf16>,
    %c2_i32_83 = arith.constant 2 : i32
    %104 = arith.addi %1, %c2_i32_83 : i32
    %c1_84 = arith.constant 1 : index
    %105 = arith.index_cast %104 : i32 to index
    %c0_85 = arith.constant 0 : index
    %c0_86 = arith.constant 0 : index
    %106 = vector.load %arg3[%c1_84, %105, %c0_85, %c0_86] : memref<2x18x18x4xbf16, #tpu.memory_space<vmem>>, vector<1x16x16x4xbf16>
    %107 = vector.shape_cast %106 : vector<1x16x16x4xbf16> to vector<16x16x4xbf16>
    %108 = vector.shape_cast %107 : vector<16x16x4xbf16> to vector<256x4xbf16>
    %c0_87 = arith.constant 0 : index
    %c24_88 = arith.constant 24 : index
    %109 = vector.load %arg6[%c0_87, %c24_88] : memref<256x36xbf16, #tpu.memory_space<vmem>>, vector<256x4xbf16>
    tpu.vector_store %arg6[%c0_87, %c24_88], %108 {strides = array<i32>} : memref<256x36xbf16, #tpu.memory_space<vmem>>, vector<256x4xbf16>,
    %c2_i32_89 = arith.constant 2 : i32
    %110 = arith.addi %1, %c2_i32_89 : i32
    %c1_90 = arith.constant 1 : index
    %111 = arith.index_cast %110 : i32 to index
    %c1_91 = arith.constant 1 : index
    %c0_92 = arith.constant 0 : index
    %112 = vector.load %arg3[%c1_90, %111, %c1_91, %c0_92] : memref<2x18x18x4xbf16, #tpu.memory_space<vmem>>, vector<1x16x16x4xbf16>
    %113 = vector.shape_cast %112 : vector<1x16x16x4xbf16> to vector<16x16x4xbf16>
    %114 = vector.shape_cast %113 : vector<16x16x4xbf16> to vector<256x4xbf16>
    %c0_93 = arith.constant 0 : index
    %c28_94 = arith.constant 28 : index
    %115 = vector.load %arg6[%c0_93, %c28_94] : memref<256x36xbf16, #tpu.memory_space<vmem>>, vector<256x4xbf16>
    tpu.vector_store %arg6[%c0_93, %c28_94], %114 {strides = array<i32>} : memref<256x36xbf16, #tpu.memory_space<vmem>>, vector<256x4xbf16>,
    %c2_i32_95 = arith.constant 2 : i32
    %116 = arith.addi %1, %c2_i32_95 : i32
    %c1_96 = arith.constant 1 : index
    %117 = arith.index_cast %116 : i32 to index
    %c2_97 = arith.constant 2 : index
    %c0_98 = arith.constant 0 : index
    %118 = vector.load %arg3[%c1_96, %117, %c2_97, %c0_98] : memref<2x18x18x4xbf16, #tpu.memory_space<vmem>>, vector<1x16x16x4xbf16>
    %119 = vector.shape_cast %118 : vector<1x16x16x4xbf16> to vector<16x16x4xbf16>
    %120 = vector.shape_cast %119 : vector<16x16x4xbf16> to vector<256x4xbf16>
    %c0_99 = arith.constant 0 : index
    %c32_100 = arith.constant 32 : index
    %121 = vector.load %arg6[%c0_99, %c32_100] : memref<256x36xbf16, #tpu.memory_space<vmem>>, vector<256x4xbf16>
    tpu.vector_store %arg6[%c0_99, %c32_100], %120 {strides = array<i32>} : memref<256x36xbf16, #tpu.memory_space<vmem>>, vector<256x4xbf16>,
    %c0_101 = arith.constant 0 : index
    %c0_102 = arith.constant 0 : index
    %122 = vector.load %arg6[%c0_101, %c0_102] : memref<256x36xbf16, #tpu.memory_space<vmem>>, vector<256x36xbf16>
    %c0_103 = arith.constant 0 : index
    %c0_104 = arith.constant 0 : index
    %123 = vector.load %arg4[%c0_103, %c0_104] : memref<8x36xbf16, #tpu.memory_space<vmem>>, vector<8x36xbf16>
    %cst_105 = arith.constant dense<0.000000e+00> : vector<256x8xf32>
    %124 = tpu.matmul %122, %123, %cst_105 {dimension_numbers = #tpu.dot_dimension_numbers<[1], [1], [0], [0], [0, 0, 1, 0], [], []>} : vector<256x36xbf16>, vector<8x36xbf16>, vector<256x8xf32> -> vector<256x8xf32>
    %cst_106 = arith.constant dense<0.000000e+00> : vector<8xf32>
    %125 = vector.multi_reduction <add>, %124, %cst_106 [0] : vector<256x8xf32> to vector<8xf32>
    %126 = vector.shape_cast %125 : vector<8xf32> to vector<1x8xf32>
    %cst_107 = arith.constant 3.906250e-03 : f32
    %127 = vector.broadcast %cst_107 : f32 to vector<1x8xf32>
    %128 = arith.mulf %126, %127 : vector<1x8xf32>
    %129 = vector.broadcast %128 : vector<1x8xf32> to vector<256x8xf32>
    %130 = arith.subf %124, %129 : vector<256x8xf32>
    %131 = arith.mulf %130, %130 : vector<256x8xf32>
    %cst_108 = arith.constant dense<0.000000e+00> : vector<8xf32>
    %132 = vector.multi_reduction <add>, %131, %cst_108 [0] : vector<256x8xf32> to vector<8xf32>
    %133 = vector.shape_cast %132 : vector<8xf32> to vector<1x8xf32>
    %134 = arith.subf %128, %62 : vector<1x8xf32>
    %cst_109 = arith.constant 5.000000e-01 : f32
    %135 = vector.broadcast %cst_109 : f32 to vector<1x8xf32>
    %136 = arith.mulf %134, %135 : vector<1x8xf32>
    %137 = arith.addf %62, %136 : vector<1x8xf32>
    %138 = arith.addf %67, %133 : vector<1x8xf32>
    %139 = arith.mulf %134, %134 : vector<1x8xf32>
    %cst_110 = arith.constant 1.280000e+02 : f32
    %140 = vector.broadcast %cst_110 : f32 to vector<1x8xf32>
    %141 = arith.mulf %139, %140 : vector<1x8xf32>
    %142 = arith.addf %138, %141 : vector<1x8xf32>
    %143 = vector.shape_cast %137 : vector<1x8xf32> to vector<8xf32>
    %c0_111 = arith.constant 0 : index
    %c0_112 = arith.constant 0 : index
    %c0_113 = arith.constant 0 : index
    %c0_114 = arith.constant 0 : index
    %144 = vector.load %arg5[%c0_111, %c0_112, %c0_113, %c0_114] : memref<1x1x2x8xf32, #tpu.memory_space<vmem>>, vector<1x1x1x8xf32>
    %145 = vector.shape_cast %144 : vector<1x1x1x8xf32> to vector<8xf32>
    %146 = vector.shape_cast %143 : vector<8xf32> to vector<1x1x1x8xf32>
    tpu.vector_store %arg5[%c0_111, %c0_112, %c0_113, %c0_114], %146 {strides = array<i32>} : memref<1x1x2x8xf32, #tpu.memory_space<vmem>>, vector<1x1x1x8xf32>,
    %147 = vector.shape_cast %142 : vector<1x8xf32> to vector<8xf32>
    %c0_115 = arith.constant 0 : index
    %c0_116 = arith.constant 0 : index
    %c1_117 = arith.constant 1 : index
    %c0_118 = arith.constant 0 : index
    %148 = vector.load %arg5[%c0_115, %c0_116, %c1_117, %c0_118] : memref<1x1x2x8xf32, #tpu.memory_space<vmem>>, vector<1x1x1x8xf32>
    %149 = vector.shape_cast %148 : vector<1x1x1x8xf32> to vector<8xf32>
    %150 = vector.shape_cast %147 : vector<8xf32> to vector<1x1x1x8xf32>
    tpu.vector_store %arg5[%c0_115, %c0_116, %c1_117, %c0_118], %150 {strides = array<i32>} : memref<1x1x2x8xf32, #tpu.memory_space<vmem>>, vector<1x1x1x8xf32>,
    return
  }
  func.func @transform_0(%arg0: i32, %arg1: i32, %arg2: i32) -> (i32, i32, i32, i32) {
    %c0_i32 = arith.constant 0 : i32
    %c0_i32_0 = arith.constant 0 : i32
    %c0_i32_1 = arith.constant 0 : i32
    %c0_i32_2 = arith.constant 0 : i32
    return %arg0, %c0_i32, %c0_i32_0, %c0_i32_1 : i32, i32, i32, i32
  }
  func.func @transform_1(%arg0: i32, %arg1: i32, %arg2: i32) -> (i32, i32) {
    %c0_i32 = arith.constant 0 : i32
    %c0_i32_0 = arith.constant 0 : i32
    return %arg1, %c0_i32 : i32, i32
  }
  func.func @transform_2(%arg0: i32, %arg1: i32, %arg2: i32) -> (i32, i32, i32, i32) {
    %c0_i32 = arith.constant 0 : i32
    %c0_i32_0 = arith.constant 0 : i32
    return %arg0, %arg2, %c0_i32, %arg1 : i32, i32, i32, i32
  }
}

module attributes {stable_mosaic.version = 11 : i64} {
  func.func @_bn_lrelu_kernel(%arg0: i32, %arg1: i32, %arg2: i32, %arg3: memref<2x18x18x4xbf16, #tpu.memory_space<vmem>>, %arg4: memref<8x36xbf16, #tpu.memory_space<vmem>>, %arg5: memref<8x1xf32, #tpu.memory_space<vmem>>, %arg6: memref<8x1xf32, #tpu.memory_space<vmem>>, %arg7: memref<2x8x256xf32, #tpu.memory_space<vmem>>, %arg8: memref<256x36xbf16, #tpu.memory_space<vmem>>) attributes {dimension_semantics = [#tpu.dimension_semantics<parallel>, #tpu.dimension_semantics<arbitrary>, #tpu.dimension_semantics<arbitrary>], iteration_bounds = array<i64: 1, 1, 1>, scalar_prefetch = 0 : i64, scratch_operands = 1 : i64, tpu.core_type = #tpu.core_type<tc>, window_params = [{transform_indices = @transform_0, window_bounds = array<i64: 2, 18, 18, 4>}, {transform_indices = @transform_1, window_bounds = array<i64: 8, 36>}, {transform_indices = @transform_2, window_bounds = array<i64: 8, 1>}, {transform_indices = @transform_3, window_bounds = array<i64: 8, 1>}, {transform_indices = @transform_4, window_bounds = array<i64: 2, 8, 256>}]} {
    %c16_i32 = arith.constant 16 : i32
    %0 = arith.muli %arg2, %c16_i32 : i32
    %1 = tpu.assume_multiple %0, 8 : i32
    %c0_i32 = arith.constant 0 : i32
    %2 = arith.addi %1, %c0_i32 : i32
    %c0 = arith.constant 0 : index
    %3 = arith.index_cast %2 : i32 to index
    %c0_0 = arith.constant 0 : index
    %c0_1 = arith.constant 0 : index
    %4 = vector.load %arg3[%c0, %3, %c0_0, %c0_1] : memref<2x18x18x4xbf16, #tpu.memory_space<vmem>>, vector<1x16x16x4xbf16>
    %5 = vector.shape_cast %4 : vector<1x16x16x4xbf16> to vector<16x16x4xbf16>
    %6 = vector.shape_cast %5 : vector<16x16x4xbf16> to vector<256x4xbf16>
    %c0_2 = arith.constant 0 : index
    %c0_3 = arith.constant 0 : index
    %7 = vector.load %arg8[%c0_2, %c0_3] : memref<256x36xbf16, #tpu.memory_space<vmem>>, vector<256x4xbf16>
    tpu.vector_store %arg8[%c0_2, %c0_3], %6 {strides = array<i32>} : memref<256x36xbf16, #tpu.memory_space<vmem>>, vector<256x4xbf16>,
    %c0_i32_4 = arith.constant 0 : i32
    %8 = arith.addi %1, %c0_i32_4 : i32
    %c0_5 = arith.constant 0 : index
    %9 = arith.index_cast %8 : i32 to index
    %c1 = arith.constant 1 : index
    %c0_6 = arith.constant 0 : index
    %10 = vector.load %arg3[%c0_5, %9, %c1, %c0_6] : memref<2x18x18x4xbf16, #tpu.memory_space<vmem>>, vector<1x16x16x4xbf16>
    %11 = vector.shape_cast %10 : vector<1x16x16x4xbf16> to vector<16x16x4xbf16>
    %12 = vector.shape_cast %11 : vector<16x16x4xbf16> to vector<256x4xbf16>
    %c0_7 = arith.constant 0 : index
    %c4 = arith.constant 4 : index
    %13 = vector.load %arg8[%c0_7, %c4] : memref<256x36xbf16, #tpu.memory_space<vmem>>, vector<256x4xbf16>
    tpu.vector_store %arg8[%c0_7, %c4], %12 {strides = array<i32>} : memref<256x36xbf16, #tpu.memory_space<vmem>>, vector<256x4xbf16>,
    %c0_i32_8 = arith.constant 0 : i32
    %14 = arith.addi %1, %c0_i32_8 : i32
    %c0_9 = arith.constant 0 : index
    %15 = arith.index_cast %14 : i32 to index
    %c2 = arith.constant 2 : index
    %c0_10 = arith.constant 0 : index
    %16 = vector.load %arg3[%c0_9, %15, %c2, %c0_10] : memref<2x18x18x4xbf16, #tpu.memory_space<vmem>>, vector<1x16x16x4xbf16>
    %17 = vector.shape_cast %16 : vector<1x16x16x4xbf16> to vector<16x16x4xbf16>
    %18 = vector.shape_cast %17 : vector<16x16x4xbf16> to vector<256x4xbf16>
    %c0_11 = arith.constant 0 : index
    %c8 = arith.constant 8 : index
    %19 = vector.load %arg8[%c0_11, %c8] : memref<256x36xbf16, #tpu.memory_space<vmem>>, vector<256x4xbf16>
    tpu.vector_store %arg8[%c0_11, %c8], %18 {strides = array<i32>} : memref<256x36xbf16, #tpu.memory_space<vmem>>, vector<256x4xbf16>,
    %c1_i32 = arith.constant 1 : i32
    %20 = arith.addi %1, %c1_i32 : i32
    %c0_12 = arith.constant 0 : index
    %21 = arith.index_cast %20 : i32 to index
    %c0_13 = arith.constant 0 : index
    %c0_14 = arith.constant 0 : index
    %22 = vector.load %arg3[%c0_12, %21, %c0_13, %c0_14] : memref<2x18x18x4xbf16, #tpu.memory_space<vmem>>, vector<1x16x16x4xbf16>
    %23 = vector.shape_cast %22 : vector<1x16x16x4xbf16> to vector<16x16x4xbf16>
    %24 = vector.shape_cast %23 : vector<16x16x4xbf16> to vector<256x4xbf16>
    %c0_15 = arith.constant 0 : index
    %c12 = arith.constant 12 : index
    %25 = vector.load %arg8[%c0_15, %c12] : memref<256x36xbf16, #tpu.memory_space<vmem>>, vector<256x4xbf16>
    tpu.vector_store %arg8[%c0_15, %c12], %24 {strides = array<i32>} : memref<256x36xbf16, #tpu.memory_space<vmem>>, vector<256x4xbf16>,
    %c1_i32_16 = arith.constant 1 : i32
    %26 = arith.addi %1, %c1_i32_16 : i32
    %c0_17 = arith.constant 0 : index
    %27 = arith.index_cast %26 : i32 to index
    %c1_18 = arith.constant 1 : index
    %c0_19 = arith.constant 0 : index
    %28 = vector.load %arg3[%c0_17, %27, %c1_18, %c0_19] : memref<2x18x18x4xbf16, #tpu.memory_space<vmem>>, vector<1x16x16x4xbf16>
    %29 = vector.shape_cast %28 : vector<1x16x16x4xbf16> to vector<16x16x4xbf16>
    %30 = vector.shape_cast %29 : vector<16x16x4xbf16> to vector<256x4xbf16>
    %c0_20 = arith.constant 0 : index
    %c16 = arith.constant 16 : index
    %31 = vector.load %arg8[%c0_20, %c16] : memref<256x36xbf16, #tpu.memory_space<vmem>>, vector<256x4xbf16>
    tpu.vector_store %arg8[%c0_20, %c16], %30 {strides = array<i32>} : memref<256x36xbf16, #tpu.memory_space<vmem>>, vector<256x4xbf16>,
    %c1_i32_21 = arith.constant 1 : i32
    %32 = arith.addi %1, %c1_i32_21 : i32
    %c0_22 = arith.constant 0 : index
    %33 = arith.index_cast %32 : i32 to index
    %c2_23 = arith.constant 2 : index
    %c0_24 = arith.constant 0 : index
    %34 = vector.load %arg3[%c0_22, %33, %c2_23, %c0_24] : memref<2x18x18x4xbf16, #tpu.memory_space<vmem>>, vector<1x16x16x4xbf16>
    %35 = vector.shape_cast %34 : vector<1x16x16x4xbf16> to vector<16x16x4xbf16>
    %36 = vector.shape_cast %35 : vector<16x16x4xbf16> to vector<256x4xbf16>
    %c0_25 = arith.constant 0 : index
    %c20 = arith.constant 20 : index
    %37 = vector.load %arg8[%c0_25, %c20] : memref<256x36xbf16, #tpu.memory_space<vmem>>, vector<256x4xbf16>
    tpu.vector_store %arg8[%c0_25, %c20], %36 {strides = array<i32>} : memref<256x36xbf16, #tpu.memory_space<vmem>>, vector<256x4xbf16>,
    %c2_i32 = arith.constant 2 : i32
    %38 = arith.addi %1, %c2_i32 : i32
    %c0_26 = arith.constant 0 : index
    %39 = arith.index_cast %38 : i32 to index
    %c0_27 = arith.constant 0 : index
    %c0_28 = arith.constant 0 : index
    %40 = vector.load %arg3[%c0_26, %39, %c0_27, %c0_28] : memref<2x18x18x4xbf16, #tpu.memory_space<vmem>>, vector<1x16x16x4xbf16>
    %41 = vector.shape_cast %40 : vector<1x16x16x4xbf16> to vector<16x16x4xbf16>
    %42 = vector.shape_cast %41 : vector<16x16x4xbf16> to vector<256x4xbf16>
    %c0_29 = arith.constant 0 : index
    %c24 = arith.constant 24 : index
    %43 = vector.load %arg8[%c0_29, %c24] : memref<256x36xbf16, #tpu.memory_space<vmem>>, vector<256x4xbf16>
    tpu.vector_store %arg8[%c0_29, %c24], %42 {strides = array<i32>} : memref<256x36xbf16, #tpu.memory_space<vmem>>, vector<256x4xbf16>,
    %c2_i32_30 = arith.constant 2 : i32
    %44 = arith.addi %1, %c2_i32_30 : i32
    %c0_31 = arith.constant 0 : index
    %45 = arith.index_cast %44 : i32 to index
    %c1_32 = arith.constant 1 : index
    %c0_33 = arith.constant 0 : index
    %46 = vector.load %arg3[%c0_31, %45, %c1_32, %c0_33] : memref<2x18x18x4xbf16, #tpu.memory_space<vmem>>, vector<1x16x16x4xbf16>
    %47 = vector.shape_cast %46 : vector<1x16x16x4xbf16> to vector<16x16x4xbf16>
    %48 = vector.shape_cast %47 : vector<16x16x4xbf16> to vector<256x4xbf16>
    %c0_34 = arith.constant 0 : index
    %c28 = arith.constant 28 : index
    %49 = vector.load %arg8[%c0_34, %c28] : memref<256x36xbf16, #tpu.memory_space<vmem>>, vector<256x4xbf16>
    tpu.vector_store %arg8[%c0_34, %c28], %48 {strides = array<i32>} : memref<256x36xbf16, #tpu.memory_space<vmem>>, vector<256x4xbf16>,
    %c2_i32_35 = arith.constant 2 : i32
    %50 = arith.addi %1, %c2_i32_35 : i32
    %c0_36 = arith.constant 0 : index
    %51 = arith.index_cast %50 : i32 to index
    %c2_37 = arith.constant 2 : index
    %c0_38 = arith.constant 0 : index
    %52 = vector.load %arg3[%c0_36, %51, %c2_37, %c0_38] : memref<2x18x18x4xbf16, #tpu.memory_space<vmem>>, vector<1x16x16x4xbf16>
    %53 = vector.shape_cast %52 : vector<1x16x16x4xbf16> to vector<16x16x4xbf16>
    %54 = vector.shape_cast %53 : vector<16x16x4xbf16> to vector<256x4xbf16>
    %c0_39 = arith.constant 0 : index
    %c32 = arith.constant 32 : index
    %55 = vector.load %arg8[%c0_39, %c32] : memref<256x36xbf16, #tpu.memory_space<vmem>>, vector<256x4xbf16>
    tpu.vector_store %arg8[%c0_39, %c32], %54 {strides = array<i32>} : memref<256x36xbf16, #tpu.memory_space<vmem>>, vector<256x4xbf16>,
    %c0_40 = arith.constant 0 : index
    %c0_41 = arith.constant 0 : index
    %56 = vector.load %arg8[%c0_40, %c0_41] : memref<256x36xbf16, #tpu.memory_space<vmem>>, vector<256x36xbf16>
    %c0_42 = arith.constant 0 : index
    %c0_43 = arith.constant 0 : index
    %57 = vector.load %arg4[%c0_42, %c0_43] : memref<8x36xbf16, #tpu.memory_space<vmem>>, vector<8x36xbf16>
    %cst = arith.constant dense<0.000000e+00> : vector<8x256xf32>
    %58 = tpu.matmul %57, %56, %cst {dimension_numbers = #tpu.dot_dimension_numbers<[1], [1], [0], [0], [0, 0, 1, 0], [], []>} : vector<8x36xbf16>, vector<256x36xbf16>, vector<8x256xf32> -> vector<8x256xf32>
    %c0_44 = arith.constant 0 : index
    %c0_45 = arith.constant 0 : index
    %59 = vector.load %arg5[%c0_44, %c0_45] : memref<8x1xf32, #tpu.memory_space<vmem>>, vector<8x1xf32>
    %60 = vector.broadcast %59 : vector<8x1xf32> to vector<8x256xf32>
    %61 = arith.mulf %58, %60 : vector<8x256xf32>
    %c0_46 = arith.constant 0 : index
    %c0_47 = arith.constant 0 : index
    %62 = vector.load %arg6[%c0_46, %c0_47] : memref<8x1xf32, #tpu.memory_space<vmem>>, vector<8x1xf32>
    %63 = vector.broadcast %62 : vector<8x1xf32> to vector<8x256xf32>
    %64 = arith.addf %61, %63 : vector<8x256xf32>
    %cst_48 = arith.constant 0.000000e+00 : f32
    %65 = vector.broadcast %cst_48 : f32 to vector<8x256xf32>
    %66 = arith.cmpf ogt, %64, %65 : vector<8x256xf32>
    %cst_49 = arith.constant 1.000000e-01 : f32
    %67 = vector.broadcast %cst_49 : f32 to vector<8x256xf32>
    %68 = arith.mulf %67, %64 : vector<8x256xf32>
    %69 = arith.select %66, %64, %68 : vector<8x256xi1>, vector<8x256xf32>
    %c0_50 = arith.constant 0 : index
    %c0_51 = arith.constant 0 : index
    %c0_52 = arith.constant 0 : index
    %70 = vector.load %arg7[%c0_50, %c0_51, %c0_52] : memref<2x8x256xf32, #tpu.memory_space<vmem>>, vector<1x8x256xf32>
    %71 = vector.shape_cast %70 : vector<1x8x256xf32> to vector<8x256xf32>
    %72 = vector.shape_cast %69 : vector<8x256xf32> to vector<1x8x256xf32>
    tpu.vector_store %arg7[%c0_50, %c0_51, %c0_52], %72 {strides = array<i32>} : memref<2x8x256xf32, #tpu.memory_space<vmem>>, vector<1x8x256xf32>,
    %c0_i32_53 = arith.constant 0 : i32
    %73 = arith.addi %1, %c0_i32_53 : i32
    %c1_54 = arith.constant 1 : index
    %74 = arith.index_cast %73 : i32 to index
    %c0_55 = arith.constant 0 : index
    %c0_56 = arith.constant 0 : index
    %75 = vector.load %arg3[%c1_54, %74, %c0_55, %c0_56] : memref<2x18x18x4xbf16, #tpu.memory_space<vmem>>, vector<1x16x16x4xbf16>
    %76 = vector.shape_cast %75 : vector<1x16x16x4xbf16> to vector<16x16x4xbf16>
    %77 = vector.shape_cast %76 : vector<16x16x4xbf16> to vector<256x4xbf16>
    %c0_57 = arith.constant 0 : index
    %c0_58 = arith.constant 0 : index
    %78 = vector.load %arg8[%c0_57, %c0_58] : memref<256x36xbf16, #tpu.memory_space<vmem>>, vector<256x4xbf16>
    tpu.vector_store %arg8[%c0_57, %c0_58], %77 {strides = array<i32>} : memref<256x36xbf16, #tpu.memory_space<vmem>>, vector<256x4xbf16>,
    %c0_i32_59 = arith.constant 0 : i32
    %79 = arith.addi %1, %c0_i32_59 : i32
    %c1_60 = arith.constant 1 : index
    %80 = arith.index_cast %79 : i32 to index
    %c1_61 = arith.constant 1 : index
    %c0_62 = arith.constant 0 : index
    %81 = vector.load %arg3[%c1_60, %80, %c1_61, %c0_62] : memref<2x18x18x4xbf16, #tpu.memory_space<vmem>>, vector<1x16x16x4xbf16>
    %82 = vector.shape_cast %81 : vector<1x16x16x4xbf16> to vector<16x16x4xbf16>
    %83 = vector.shape_cast %82 : vector<16x16x4xbf16> to vector<256x4xbf16>
    %c0_63 = arith.constant 0 : index
    %c4_64 = arith.constant 4 : index
    %84 = vector.load %arg8[%c0_63, %c4_64] : memref<256x36xbf16, #tpu.memory_space<vmem>>, vector<256x4xbf16>
    tpu.vector_store %arg8[%c0_63, %c4_64], %83 {strides = array<i32>} : memref<256x36xbf16, #tpu.memory_space<vmem>>, vector<256x4xbf16>,
    %c0_i32_65 = arith.constant 0 : i32
    %85 = arith.addi %1, %c0_i32_65 : i32
    %c1_66 = arith.constant 1 : index
    %86 = arith.index_cast %85 : i32 to index
    %c2_67 = arith.constant 2 : index
    %c0_68 = arith.constant 0 : index
    %87 = vector.load %arg3[%c1_66, %86, %c2_67, %c0_68] : memref<2x18x18x4xbf16, #tpu.memory_space<vmem>>, vector<1x16x16x4xbf16>
    %88 = vector.shape_cast %87 : vector<1x16x16x4xbf16> to vector<16x16x4xbf16>
    %89 = vector.shape_cast %88 : vector<16x16x4xbf16> to vector<256x4xbf16>
    %c0_69 = arith.constant 0 : index
    %c8_70 = arith.constant 8 : index
    %90 = vector.load %arg8[%c0_69, %c8_70] : memref<256x36xbf16, #tpu.memory_space<vmem>>, vector<256x4xbf16>
    tpu.vector_store %arg8[%c0_69, %c8_70], %89 {strides = array<i32>} : memref<256x36xbf16, #tpu.memory_space<vmem>>, vector<256x4xbf16>,
    %c1_i32_71 = arith.constant 1 : i32
    %91 = arith.addi %1, %c1_i32_71 : i32
    %c1_72 = arith.constant 1 : index
    %92 = arith.index_cast %91 : i32 to index
    %c0_73 = arith.constant 0 : index
    %c0_74 = arith.constant 0 : index
    %93 = vector.load %arg3[%c1_72, %92, %c0_73, %c0_74] : memref<2x18x18x4xbf16, #tpu.memory_space<vmem>>, vector<1x16x16x4xbf16>
    %94 = vector.shape_cast %93 : vector<1x16x16x4xbf16> to vector<16x16x4xbf16>
    %95 = vector.shape_cast %94 : vector<16x16x4xbf16> to vector<256x4xbf16>
    %c0_75 = arith.constant 0 : index
    %c12_76 = arith.constant 12 : index
    %96 = vector.load %arg8[%c0_75, %c12_76] : memref<256x36xbf16, #tpu.memory_space<vmem>>, vector<256x4xbf16>
    tpu.vector_store %arg8[%c0_75, %c12_76], %95 {strides = array<i32>} : memref<256x36xbf16, #tpu.memory_space<vmem>>, vector<256x4xbf16>,
    %c1_i32_77 = arith.constant 1 : i32
    %97 = arith.addi %1, %c1_i32_77 : i32
    %c1_78 = arith.constant 1 : index
    %98 = arith.index_cast %97 : i32 to index
    %c1_79 = arith.constant 1 : index
    %c0_80 = arith.constant 0 : index
    %99 = vector.load %arg3[%c1_78, %98, %c1_79, %c0_80] : memref<2x18x18x4xbf16, #tpu.memory_space<vmem>>, vector<1x16x16x4xbf16>
    %100 = vector.shape_cast %99 : vector<1x16x16x4xbf16> to vector<16x16x4xbf16>
    %101 = vector.shape_cast %100 : vector<16x16x4xbf16> to vector<256x4xbf16>
    %c0_81 = arith.constant 0 : index
    %c16_82 = arith.constant 16 : index
    %102 = vector.load %arg8[%c0_81, %c16_82] : memref<256x36xbf16, #tpu.memory_space<vmem>>, vector<256x4xbf16>
    tpu.vector_store %arg8[%c0_81, %c16_82], %101 {strides = array<i32>} : memref<256x36xbf16, #tpu.memory_space<vmem>>, vector<256x4xbf16>,
    %c1_i32_83 = arith.constant 1 : i32
    %103 = arith.addi %1, %c1_i32_83 : i32
    %c1_84 = arith.constant 1 : index
    %104 = arith.index_cast %103 : i32 to index
    %c2_85 = arith.constant 2 : index
    %c0_86 = arith.constant 0 : index
    %105 = vector.load %arg3[%c1_84, %104, %c2_85, %c0_86] : memref<2x18x18x4xbf16, #tpu.memory_space<vmem>>, vector<1x16x16x4xbf16>
    %106 = vector.shape_cast %105 : vector<1x16x16x4xbf16> to vector<16x16x4xbf16>
    %107 = vector.shape_cast %106 : vector<16x16x4xbf16> to vector<256x4xbf16>
    %c0_87 = arith.constant 0 : index
    %c20_88 = arith.constant 20 : index
    %108 = vector.load %arg8[%c0_87, %c20_88] : memref<256x36xbf16, #tpu.memory_space<vmem>>, vector<256x4xbf16>
    tpu.vector_store %arg8[%c0_87, %c20_88], %107 {strides = array<i32>} : memref<256x36xbf16, #tpu.memory_space<vmem>>, vector<256x4xbf16>,
    %c2_i32_89 = arith.constant 2 : i32
    %109 = arith.addi %1, %c2_i32_89 : i32
    %c1_90 = arith.constant 1 : index
    %110 = arith.index_cast %109 : i32 to index
    %c0_91 = arith.constant 0 : index
    %c0_92 = arith.constant 0 : index
    %111 = vector.load %arg3[%c1_90, %110, %c0_91, %c0_92] : memref<2x18x18x4xbf16, #tpu.memory_space<vmem>>, vector<1x16x16x4xbf16>
    %112 = vector.shape_cast %111 : vector<1x16x16x4xbf16> to vector<16x16x4xbf16>
    %113 = vector.shape_cast %112 : vector<16x16x4xbf16> to vector<256x4xbf16>
    %c0_93 = arith.constant 0 : index
    %c24_94 = arith.constant 24 : index
    %114 = vector.load %arg8[%c0_93, %c24_94] : memref<256x36xbf16, #tpu.memory_space<vmem>>, vector<256x4xbf16>
    tpu.vector_store %arg8[%c0_93, %c24_94], %113 {strides = array<i32>} : memref<256x36xbf16, #tpu.memory_space<vmem>>, vector<256x4xbf16>,
    %c2_i32_95 = arith.constant 2 : i32
    %115 = arith.addi %1, %c2_i32_95 : i32
    %c1_96 = arith.constant 1 : index
    %116 = arith.index_cast %115 : i32 to index
    %c1_97 = arith.constant 1 : index
    %c0_98 = arith.constant 0 : index
    %117 = vector.load %arg3[%c1_96, %116, %c1_97, %c0_98] : memref<2x18x18x4xbf16, #tpu.memory_space<vmem>>, vector<1x16x16x4xbf16>
    %118 = vector.shape_cast %117 : vector<1x16x16x4xbf16> to vector<16x16x4xbf16>
    %119 = vector.shape_cast %118 : vector<16x16x4xbf16> to vector<256x4xbf16>
    %c0_99 = arith.constant 0 : index
    %c28_100 = arith.constant 28 : index
    %120 = vector.load %arg8[%c0_99, %c28_100] : memref<256x36xbf16, #tpu.memory_space<vmem>>, vector<256x4xbf16>
    tpu.vector_store %arg8[%c0_99, %c28_100], %119 {strides = array<i32>} : memref<256x36xbf16, #tpu.memory_space<vmem>>, vector<256x4xbf16>,
    %c2_i32_101 = arith.constant 2 : i32
    %121 = arith.addi %1, %c2_i32_101 : i32
    %c1_102 = arith.constant 1 : index
    %122 = arith.index_cast %121 : i32 to index
    %c2_103 = arith.constant 2 : index
    %c0_104 = arith.constant 0 : index
    %123 = vector.load %arg3[%c1_102, %122, %c2_103, %c0_104] : memref<2x18x18x4xbf16, #tpu.memory_space<vmem>>, vector<1x16x16x4xbf16>
    %124 = vector.shape_cast %123 : vector<1x16x16x4xbf16> to vector<16x16x4xbf16>
    %125 = vector.shape_cast %124 : vector<16x16x4xbf16> to vector<256x4xbf16>
    %c0_105 = arith.constant 0 : index
    %c32_106 = arith.constant 32 : index
    %126 = vector.load %arg8[%c0_105, %c32_106] : memref<256x36xbf16, #tpu.memory_space<vmem>>, vector<256x4xbf16>
    tpu.vector_store %arg8[%c0_105, %c32_106], %125 {strides = array<i32>} : memref<256x36xbf16, #tpu.memory_space<vmem>>, vector<256x4xbf16>,
    %c0_107 = arith.constant 0 : index
    %c0_108 = arith.constant 0 : index
    %127 = vector.load %arg8[%c0_107, %c0_108] : memref<256x36xbf16, #tpu.memory_space<vmem>>, vector<256x36xbf16>
    %c0_109 = arith.constant 0 : index
    %c0_110 = arith.constant 0 : index
    %128 = vector.load %arg4[%c0_109, %c0_110] : memref<8x36xbf16, #tpu.memory_space<vmem>>, vector<8x36xbf16>
    %cst_111 = arith.constant dense<0.000000e+00> : vector<8x256xf32>
    %129 = tpu.matmul %128, %127, %cst_111 {dimension_numbers = #tpu.dot_dimension_numbers<[1], [1], [0], [0], [0, 0, 1, 0], [], []>} : vector<8x36xbf16>, vector<256x36xbf16>, vector<8x256xf32> -> vector<8x256xf32>
    %c0_112 = arith.constant 0 : index
    %c0_113 = arith.constant 0 : index
    %130 = vector.load %arg5[%c0_112, %c0_113] : memref<8x1xf32, #tpu.memory_space<vmem>>, vector<8x1xf32>
    %131 = vector.broadcast %130 : vector<8x1xf32> to vector<8x256xf32>
    %132 = arith.mulf %129, %131 : vector<8x256xf32>
    %c0_114 = arith.constant 0 : index
    %c0_115 = arith.constant 0 : index
    %133 = vector.load %arg6[%c0_114, %c0_115] : memref<8x1xf32, #tpu.memory_space<vmem>>, vector<8x1xf32>
    %134 = vector.broadcast %133 : vector<8x1xf32> to vector<8x256xf32>
    %135 = arith.addf %132, %134 : vector<8x256xf32>
    %cst_116 = arith.constant 0.000000e+00 : f32
    %136 = vector.broadcast %cst_116 : f32 to vector<8x256xf32>
    %137 = arith.cmpf ogt, %135, %136 : vector<8x256xf32>
    %cst_117 = arith.constant 1.000000e-01 : f32
    %138 = vector.broadcast %cst_117 : f32 to vector<8x256xf32>
    %139 = arith.mulf %138, %135 : vector<8x256xf32>
    %140 = arith.select %137, %135, %139 : vector<8x256xi1>, vector<8x256xf32>
    %c1_118 = arith.constant 1 : index
    %c0_119 = arith.constant 0 : index
    %c0_120 = arith.constant 0 : index
    %141 = vector.load %arg7[%c1_118, %c0_119, %c0_120] : memref<2x8x256xf32, #tpu.memory_space<vmem>>, vector<1x8x256xf32>
    %142 = vector.shape_cast %141 : vector<1x8x256xf32> to vector<8x256xf32>
    %143 = vector.shape_cast %140 : vector<8x256xf32> to vector<1x8x256xf32>
    tpu.vector_store %arg7[%c1_118, %c0_119, %c0_120], %143 {strides = array<i32>} : memref<2x8x256xf32, #tpu.memory_space<vmem>>, vector<1x8x256xf32>,
    return
  }
  func.func @transform_0(%arg0: i32, %arg1: i32, %arg2: i32) -> (i32, i32, i32, i32) {
    %c0_i32 = arith.constant 0 : i32
    %c0_i32_0 = arith.constant 0 : i32
    %c0_i32_1 = arith.constant 0 : i32
    %c0_i32_2 = arith.constant 0 : i32
    return %arg0, %c0_i32, %c0_i32_0, %c0_i32_1 : i32, i32, i32, i32
  }
  func.func @transform_1(%arg0: i32, %arg1: i32, %arg2: i32) -> (i32, i32) {
    %c0_i32 = arith.constant 0 : i32
    %c0_i32_0 = arith.constant 0 : i32
    return %arg1, %c0_i32 : i32, i32
  }
  func.func @transform_2(%arg0: i32, %arg1: i32, %arg2: i32) -> (i32, i32) {
    %c0_i32 = arith.constant 0 : i32
    %c0_i32_0 = arith.constant 0 : i32
    return %arg1, %c0_i32 : i32, i32
  }
  func.func @transform_3(%arg0: i32, %arg1: i32, %arg2: i32) -> (i32, i32) {
    %c0_i32 = arith.constant 0 : i32
    %c0_i32_0 = arith.constant 0 : i32
    return %arg1, %c0_i32 : i32, i32
  }
  func.func @transform_4(%arg0: i32, %arg1: i32, %arg2: i32) -> (i32, i32, i32) {
    %c0_i32 = arith.constant 0 : i32
    return %arg0, %arg1, %arg2 : i32, i32, i32
  }
}

</mosaic_0001>

<llo_original>
// kernel: cnn_block_forward.3
$region0: #{cnn_block_forward.3}
  #allocation0 [shape = 'u32[]', space=smem, size = 0x4, offset = 0x4, fixed_abs, tag = 'smem constant byte address 0x4 - core index']
  #allocation1 [shape = 'u32[144,128]{1,0:T(1,128)}', space=vmem, size = 0x12000, scoped, tag = 'internal scratch']
  #allocation2 [shape = 'bf16[256,36]{1,0:T(8,128)(2,1)}', space=vmem, size = 0x10000, scoped, tag = 'scratch operand']
  %s0 = inlined_call_operand.vmem [shape: bf16[2,18,18,4], index: 0, kind: input, shape index: {}]
  %s1 = inlined_call_operand.vmem [shape: bf16[8,36], index: 1, kind: input, shape index: {}]
  %s2 = inlined_call_operand.vmem [shape: f32[8,1], index: 2, kind: input, shape index: {}]
  %s3 = inlined_call_operand.vmem [shape: f32[8,1], index: 3, kind: input, shape index: {}]
  %s4 = inlined_call_operand.vmem [shape: f32[2,8,256], index: 4, kind: output, shape index: {}]
  %s5 = sld [smem:[#allocation0]]
  $region26: #{cnn_block_forward.3} parent=0
    _
  %s7 = ssub.s32 1, %s5
  %s8 = scalar_select 0, %s7, %s5
  // Predicated region
  $region2: #{cnn_block_forward.3} parent=0 // pred_check
    _
  $region3: #{cnn_block_forward.3} parent=0 // pred_check_branch
    %10 = sbr.rel (0) target = $region5
  $region4: #{cnn_block_forward.3} parent=0 // pred_region
    _
  $region5: #{cnn_block_forward.3} parent=0 // pred_fallthru
    _
  // Predicated region
  $region6: #{cnn_block_forward.3} parent=0 // pred_check
    _
  $region7: #{cnn_block_forward.3} parent=0 // pred_check_branch
    %12 = sbr.rel (0) target = $region9
  $region8: #{cnn_block_forward.3} parent=0 // pred_region
    _
  $region9: #{cnn_block_forward.3} parent=0 // pred_fallthru
    _
  // Predicated region
  $region10: #{cnn_block_forward.3} parent=0 // pred_check
    _
  $region11: #{cnn_block_forward.3} parent=0 // pred_check_branch
    %14 = sbr.rel (0) target = $region13
  $region12: #{cnn_block_forward.3} parent=0 // pred_region
    _
  $region13: #{cnn_block_forward.3} parent=0 // pred_fallthru
    _
  // Predicated region
  $region14: #{cnn_block_forward.3} parent=0 // pred_check
    _
  $region15: #{cnn_block_forward.3} parent=0 // pred_check_branch
    %16 = sbr.rel (0) target = $region17
  $region16: #{cnn_block_forward.3} parent=0 // pred_region
    _
  $region17: #{cnn_block_forward.3} parent=0 // pred_fallthru
    _
  %s18 = smul.u32 0, 16
  %s19 = smul.u32 %s18, 3
  %s20 = smul.addr %s19, 4
  %s21 = scalar_lea.vmem %s0, %s20
  %v22 = vld [vmem:[%s21] sm:$0xf]
  %v23 = vld [vmem:[%s21 + $0x4] sm:$0xf]
  %v24 = vld [vmem:[%s21 + $0xc] sm:$0xf]
  %v25 = vld [vmem:[%s21 + $0x10] sm:$0xf]
  %v26 = vld [vmem:[%s21 + $0x18] sm:$0xf]
  %v27 = vld [vmem:[%s21 + $0x1c] sm:$0xf]
  %v28 = vld [vmem:[%s21 + $0x24] sm:$0xf]
  %v29 = vld [vmem:[%s21 + $0x28] sm:$0xf]
  %v30 = vld [vmem:[%s21 + $0x30] sm:$0xf]
  %v31 = vld [vmem:[%s21 + $0x34] sm:$0xf]
  %v32 = vld [vmem:[%s21 + $0x3c] sm:$0xf]
  %v33 = vld [vmem:[%s21 + $0x40] sm:$0xf]
  %v34 = vld [vmem:[%s21 + $0x48] sm:$0xf]
  %v35 = vld [vmem:[%s21 + $0x4c] sm:$0xf]
  %v36 = vld [vmem:[%s21 + $0x54] sm:$0xf]
  %v37 = vld [vmem:[%s21 + $0x58] sm:$0xf]
  %v38 = vld [vmem:[%s21 + $0x60] sm:$0xf]
  %v39 = vld [vmem:[%s21 + $0x64] sm:$0xf]
  %v40 = vld [vmem:[%s21 + $0x6c] sm:$0xf]
  %v41 = vld [vmem:[%s21 + $0x70] sm:$0xf]
  %v42 = vld [vmem:[%s21 + $0x78] sm:$0xf]
  %v43 = vld [vmem:[%s21 + $0x7c] sm:$0xf]
  %v44 = vld [vmem:[%s21 + $0x84] sm:$0xf]
  %v45 = vld [vmem:[%s21 + $0x88] sm:$0xf]
  %v46 = vld [vmem:[%s21 + $0x90] sm:$0xf]
  %v47 = vld [vmem:[%s21 + $0x94] sm:$0xf]
  %v48 = vld [vmem:[%s21 + $0x9c] sm:$0xf]
  %v49 = vld [vmem:[%s21 + $0xa0] sm:$0xf]
  %v50 = vld [vmem:[%s21 + $0xa8] sm:$0xf]
  %v51 = vld [vmem:[%s21 + $0xac] sm:$0xf]
  %v52 = vld [vmem:[%s21 + $0xb4] sm:$0xf]
  %v53 = vld [vmem:[%s21 + $0xb8] sm:$0xf]
  %vm54 = vcmask 27648
  %55 = vst.msk [vmem:[#allocation2] sm:$0xf] %vm54, %v22
  %56 = vst.msk [vmem:[#allocation2 + $0x4] sm:$0xf] %vm54, %v23
  %57 = vst.msk [vmem:[#allocation2 + $0x8] sm:$0xf] %vm54, %v24
  %58 = vst.msk [vmem:[#allocation2 + $0xc] sm:$0xf] %vm54, %v25
  %59 = vst.msk [vmem:[#allocation2 + $0x10] sm:$0xf] %vm54, %v26
  %60 = vst.msk [vmem:[#allocation2 + $0x14] sm:$0xf] %vm54, %v27
  %61 = vst.msk [vmem:[#allocation2 + $0x18] sm:$0xf] %vm54, %v28
  %62 = vst.msk [vmem:[#allocation2 + $0x1c] sm:$0xf] %vm54, %v29
  %63 = vst.msk [vmem:[#allocation2 + $0x20] sm:$0xf] %vm54, %v30
  %64 = vst.msk [vmem:[#allocation2 + $0x24] sm:$0xf] %vm54, %v31
  %65 = vst.msk [vmem:[#allocation2 + $0x28] sm:$0xf] %vm54, %v32
  %66 = vst.msk [vmem:[#allocation2 + $0x2c] sm:$0xf] %vm54, %v33
  %67 = vst.msk [vmem:[#allocation2 + $0x30] sm:$0xf] %vm54, %v34
  %68 = vst.msk [vmem:[#allocation2 + $0x34] sm:$0xf] %vm54, %v35
  %69 = vst.msk [vmem:[#allocation2 + $0x38] sm:$0xf] %vm54, %v36
  %70 = vst.msk [vmem:[#allocation2 + $0x3c] sm:$0xf] %vm54, %v37
  %71 = vst.msk [vmem:[#allocation2 + $0x40] sm:$0xf] %vm54, %v38
  %72 = vst.msk [vmem:[#allocation2 + $0x44] sm:$0xf] %vm54, %v39
  %73 = vst.msk [vmem:[#allocation2 + $0x48] sm:$0xf] %vm54, %v40
  %74 = vst.msk [vmem:[#allocation2 + $0x4c] sm:$0xf] %vm54, %v41
  %75 = vst.msk [vmem:[#allocation2 + $0x50] sm:$0xf] %vm54, %v42
  %76 = vst.msk [vmem:[#allocation2 + $0x54] sm:$0xf] %vm54, %v43
  %77 = vst.msk [vmem:[#allocation2 + $0x58] sm:$0xf] %vm54, %v44
  %78 = vst.msk [vmem:[#allocation2 + $0x5c] sm:$0xf] %vm54, %v45
  %79 = vst.msk [vmem:[#allocation2 + $0x60] sm:$0xf] %vm54, %v46
  %80 = vst.msk [vmem:[#allocation2 + $0x64] sm:$0xf] %vm54, %v47
  %81 = vst.msk [vmem:[#allocation2 + $0x68] sm:$0xf] %vm54, %v48
  %82 = vst.msk [vmem:[#allocation2 + $0x6c] sm:$0xf] %vm54, %v49
  %83 = vst.msk [vmem:[#allocation2 + $0x70] sm:$0xf] %vm54, %v50
  %84 = vst.msk [vmem:[#allocation2 + $0x74] sm:$0xf] %vm54, %v51
  %85 = vst.msk [vmem:[#allocation2 + $0x78] sm:$0xf] %vm54, %v52
  %86 = vst.msk [vmem:[#allocation2 + $0x7c] sm:$0xf] %vm54, %v53
  %v87 = vld [vmem:[%s21] sm:$0xf]
  %v88 = vld [vmem:[%s21 + $0x4] sm:$0xf]
  %v89 = vld [vmem:[%s21 + $0x8] sm:$0x1]
  %v90 = vld [vmem:[%s21 + $0xc] sm:$0xf]
  %v91 = vld [vmem:[%s21 + $0x10] sm:$0xf]
  %v92 = vld [vmem:[%s21 + $0x14] sm:$0x1]
  %v93 = vld [vmem:[%s21 + $0x18] sm:$0xf]
  %v94 = vld [vmem:[%s21 + $0x1c] sm:$0xf]
  %v95 = vld [vmem:[%s21 + $0x20] sm:$0x1]
  %v96 = vld [vmem:[%s21 + $0x24] sm:$0xf]
  %v97 = vld [vmem:[%s21 + $0x28] sm:$0xf]
  %v98 = vld [vmem:[%s21 + $0x2c] sm:$0x1]
  %v99 = vld [vmem:[%s21 + $0x30] sm:$0xf]
  %v100 = vld [vmem:[%s21 + $0x34] sm:$0xf]
  %v101 = vld [vmem:[%s21 + $0x38] sm:$0x1]
  %v102 = vld [vmem:[%s21 + $0x3c] sm:$0xf]
  %v103 = vld [vmem:[%s21 + $0x40] sm:$0xf]
  %v104 = vld [vmem:[%s21 + $0x44] sm:$0x1]
  %v105 = vld [vmem:[%s21 + $0x48] sm:$0xf]
  %v106 = vld [vmem:[%s21 + $0x4c] sm:$0xf]
  %v107 = vld [vmem:[%s21 + $0x50] sm:$0x1]
  %v108 = vld [vmem:[%s21 + $0x54] sm:$0xf]
  %v109 = vld [vmem:[%s21 + $0x58] sm:$0xf]
  %v110 = vld [vmem:[%s21 + $0x5c] sm:$0x1]
  %v111 = vld [vmem:[%s21 + $0x60] sm:$0xf]
  %v112 = vld [vmem:[%s21 + $0x64] sm:$0xf]
  %v113 = vld [vmem:[%s21 + $0x68] sm:$0x1]
  %v114 = vld [vmem:[%s21 + $0x6c] sm:$0xf]
  %v115 = vld [vmem:[%s21 + $0x70] sm:$0xf]
  %v116 = vld [vmem:[%s21 + $0x74] sm:$0x1]
  %v117 = vld [vmem:[%s21 + $0x78] sm:$0xf]
  %v118 = vld [vmem:[%s21 + $0x7c] sm:$0xf]
  %v119 = vld [vmem:[%s21 + $0x80] sm:$0x1]
  %v120 = vld [vmem:[%s21 + $0x84] sm:$0xf]
  %v121 = vld [vmem:[%s21 + $0x88] sm:$0xf]
  %v122 = vld [vmem:[%s21 + $0x8c] sm:$0x1]
  %v123 = vld [vmem:[%s21 + $0x90] sm:$0xf]
  %v124 = vld [vmem:[%s21 + $0x94] sm:$0xf]
  %v125 = vld [vmem:[%s21 + $0x98] sm:$0x1]
  %v126 = vld [vmem:[%s21 + $0x9c] sm:$0xf]
  %v127 = vld [vmem:[%s21 + $0xa0] sm:$0xf]
  %v128 = vld [vmem:[%s21 + $0xa4] sm:$0x1]
  %v129 = vld [vmem:[%s21 + $0xa8] sm:$0xf]
  %v130 = vld [vmem:[%s21 + $0xac] sm:$0xf]
  %v131 = vld [vmem:[%s21 + $0xb0] sm:$0x1]
  %v132 = vld [vmem:[%s21 + $0xb4] sm:$0xf]
  %v133 = vld [vmem:[%s21 + $0xb8] sm:$0xf]
  %v134 = vld [vmem:[%s21 + $0xbc] sm:$0x1]
  %vm135 = vsmask.f32 3328
  %vm136 = vsmask.f32 7440
  %vm137 = vmor %vm135, %vm136
  %v139 = vshrl.u32 %v87, 16
  %v141 = vrot.slane %v139, 4
  %v142 = vshll.u32 %v87, 16
  %v144 = vrot.slane %v142, 5
  %v145 = vor.u32 %v141, %v144
  %v146 = vrot.slane %v145, 4
  %v148 = vshll.u32 %v88, 16
  %v150 = vrot.slane %v148, 5
  %v151 = vsel %vm137, %v146, %v150
  %v152 = vshrl.u32 %v88, 16
  %v154 = vrot.slane %v152, 4
  %v155 = vor.u32 %v154, %v150
  %v156 = vrot.slane %v155, 4
  %v158 = vshll.u32 %v89, 16
  %v160 = vrot.slane %v158, 5
  %v161 = vsel %vm137, %v156, %v160
  %v163 = vshrl.u32 %v90, 16
  %v165 = vrot.slane %v163, 4
  %v166 = vshll.u32 %v90, 16
  %v168 = vrot.slane %v166, 5
  %v169 = vor.u32 %v165, %v168
  %v170 = vrot.slane %v169, 4
  %v172 = vshll.u32 %v91, 16
  %v174 = vrot.slane %v172, 5
  %v175 = vsel %vm137, %v170, %v174
  %v176 = vshrl.u32 %v91, 16
  %v178 = vrot.slane %v176, 4
  %v179 = vor.u32 %v178, %v174
  %v180 = vrot.slane %v179, 4
  %v182 = vshll.u32 %v92, 16
  %v184 = vrot.slane %v182, 5
  %v185 = vsel %vm137, %v180, %v184
  %v187 = vshrl.u32 %v93, 16
  %v189 = vrot.slane %v187, 4
  %v190 = vshll.u32 %v93, 16
  %v192 = vrot.slane %v190, 5
  %v193 = vor.u32 %v189, %v192
  %v194 = vrot.slane %v193, 4
  %v196 = vshll.u32 %v94, 16
  %v198 = vrot.slane %v196, 5
  %v199 = vsel %vm137, %v194, %v198
  %v200 = vshrl.u32 %v94, 16
  %v202 = vrot.slane %v200, 4
  %v203 = vor.u32 %v202, %v198
  %v204 = vrot.slane %v203, 4
  %v206 = vshll.u32 %v95, 16
  %v208 = vrot.slane %v206, 5
  %v209 = vsel %vm137, %v204, %v208
  %v211 = vshrl.u32 %v96, 16
  %v213 = vrot.slane %v211, 4
  %v214 = vshll.u32 %v96, 16
  %v216 = vrot.slane %v214, 5
  %v217 = vor.u32 %v213, %v216
  %v218 = vrot.slane %v217, 4
  %v220 = vshll.u32 %v97, 16
  %v222 = vrot.slane %v220, 5
  %v223 = vsel %vm137, %v218, %v222
  %v224 = vshrl.u32 %v97, 16
  %v226 = vrot.slane %v224, 4
  %v227 = vor.u32 %v226, %v222
  %v228 = vrot.slane %v227, 4
  %v230 = vshll.u32 %v98, 16
  %v232 = vrot.slane %v230, 5
  %v233 = vsel %vm137, %v228, %v232
  %v235 = vshrl.u32 %v99, 16
  %v237 = vrot.slane %v235, 4
  %v238 = vshll.u32 %v99, 16
  %v240 = vrot.slane %v238, 5
  %v241 = vor.u32 %v237, %v240
  %v242 = vrot.slane %v241, 4
  %v244 = vshll.u32 %v100, 16
  %v246 = vrot.slane %v244, 5
  %v247 = vsel %vm137, %v242, %v246
  %v248 = vshrl.u32 %v100, 16
  %v250 = vrot.slane %v248, 4
  %v251 = vor.u32 %v250, %v246
  %v252 = vrot.slane %v251, 4
  %v254 = vshll.u32 %v101, 16
  %v256 = vrot.slane %v254, 5
  %v257 = vsel %vm137, %v252, %v256
  %v259 = vshrl.u32 %v102, 16
  %v261 = vrot.slane %v259, 4
  %v262 = vshll.u32 %v102, 16
  %v264 = vrot.slane %v262, 5
  %v265 = vor.u32 %v261, %v264
  %v266 = vrot.slane %v265, 4
  %v268 = vshll.u32 %v103, 16
  %v270 = vrot.slane %v268, 5
  %v271 = vsel %vm137, %v266, %v270
  %v272 = vshrl.u32 %v103, 16
  %v274 = vrot.slane %v272, 4
  %v275 = vor.u32 %v274, %v270
  %v276 = vrot.slane %v275, 4
  %v278 = vshll.u32 %v104, 16
  %v280 = vrot.slane %v278, 5
  %v281 = vsel %vm137, %v276, %v280
  %v283 = vshrl.u32 %v105, 16
  %v285 = vrot.slane %v283, 4
  %v286 = vshll.u32 %v105, 16
  %v288 = vrot.slane %v286, 5
  %v289 = vor.u32 %v285, %v288
  %v290 = vrot.slane %v289, 4
  %v292 = vshll.u32 %v106, 16
  %v294 = vrot.slane %v292, 5
  %v295 = vsel %vm137, %v290, %v294
  %v296 = vshrl.u32 %v106, 16
  %v298 = vrot.slane %v296, 4
  %v299 = vor.u32 %v298, %v294
  %v300 = vrot.slane %v299, 4
  %v302 = vshll.u32 %v107, 16
  %v304 = vrot.slane %v302, 5
  %v305 = vsel %vm137, %v300, %v304
  %v307 = vshrl.u32 %v108, 16
  %v309 = vrot.slane %v307, 4
  %v310 = vshll.u32 %v108, 16
  %v312 = vrot.slane %v310, 5
  %v313 = vor.u32 %v309, %v312
  %v314 = vrot.slane %v313, 4
  %v316 = vshll.u32 %v109, 16
  %v318 = vrot.slane %v316, 5
  %v319 = vsel %vm137, %v314, %v318
  %v320 = vshrl.u32 %v109, 16
  %v322 = vrot.slane %v320, 4
  %v323 = vor.u32 %v322, %v318
  %v324 = vrot.slane %v323, 4
  %v326 = vshll.u32 %v110, 16
  %v328 = vrot.slane %v326, 5
  %v329 = vsel %vm137, %v324, %v328
  %v331 = vshrl.u32 %v111, 16
  %v333 = vrot.slane %v331, 4
  %v334 = vshll.u32 %v111, 16
  %v336 = vrot.slane %v334, 5
  %v337 = vor.u32 %v333, %v336
  %v338 = vrot.slane %v337, 4
  %v340 = vshll.u32 %v112, 16
  %v342 = vrot.slane %v340, 5
  %v343 = vsel %vm137, %v338, %v342
  %v344 = vshrl.u32 %v112, 16
  %v346 = vrot.slane %v344, 4
  %v347 = vor.u32 %v346, %v342
  %v348 = vrot.slane %v347, 4
  %v350 = vshll.u32 %v113, 16
  %v352 = vrot.slane %v350, 5
  %v353 = vsel %vm137, %v348, %v352
  %v355 = vshrl.u32 %v114, 16
  %v357 = vrot.slane %v355, 4
  %v358 = vshll.u32 %v114, 16
  %v360 = vrot.slane %v358, 5
  %v361 = vor.u32 %v357, %v360
  %v362 = vrot.slane %v361, 4
  %v364 = vshll.u32 %v115, 16
  %v366 = vrot.slane %v364, 5
  %v367 = vsel %vm137, %v362, %v366
  %v368 = vshrl.u32 %v115, 16
  %v370 = vrot.slane %v368, 4
  %v371 = vor.u32 %v370, %v366
  %v372 = vrot.slane %v371, 4
  %v374 = vshll.u32 %v116, 16
  %v376 = vrot.slane %v374, 5
  %v377 = vsel %vm137, %v372, %v376
  %v379 = vshrl.u32 %v117, 16
  %v381 = vrot.slane %v379, 4
  %v382 = vshll.u32 %v117, 16
  %v384 = vrot.slane %v382, 5
  %v385 = vor.u32 %v381, %v384
  %v386 = vrot.slane %v385, 4
  %v388 = vshll.u32 %v118, 16
  %v390 = vrot.slane %v388, 5
  %v391 = vsel %vm137, %v386, %v390
  %v392 = vshrl.u32 %v118, 16
  %v394 = vrot.slane %v392, 4
  %v395 = vor.u32 %v394, %v390
  %v396 = vrot.slane %v395, 4
  %v398 = vshll.u32 %v119, 16
  %v400 = vrot.slane %v398, 5
  %v401 = vsel %vm137, %v396, %v400
  %v403 = vshrl.u32 %v120, 16
  %v405 = vrot.slane %v403, 4
  %v406 = vshll.u32 %v120, 16
  %v408 = vrot.slane %v406, 5
  %v409 = vor.u32 %v405, %v408
  %v410 = vrot.slane %v409, 4
  %v412 = vshll.u32 %v121, 16
  %v414 = vrot.slane %v412, 5
  %v415 = vsel %vm137, %v410, %v414
  %v416 = vshrl.u32 %v121, 16
  %v418 = vrot.slane %v416, 4
  %v419 = vor.u32 %v418, %v414
  %v420 = vrot.slane %v419, 4
  %v422 = vshll.u32 %v122, 16
  %v424 = vrot.slane %v422, 5
  %v425 = vsel %vm137, %v420, %v424
  %v427 = vshrl.u32 %v123, 16
  %v429 = vrot.slane %v427, 4
  %v430 = vshll.u32 %v123, 16
  %v432 = vrot.slane %v430, 5
  %v433 = vor.u32 %v429, %v432
  %v434 = vrot.slane %v433, 4
  %v436 = vshll.u32 %v124, 16
  %v438 = vrot.slane %v436, 5
  %v439 = vsel %vm137, %v434, %v438
  %v440 = vshrl.u32 %v124, 16
  %v442 = vrot.slane %v440, 4
  %v443 = vor.u32 %v442, %v438
  %v444 = vrot.slane %v443, 4
  %v446 = vshll.u32 %v125, 16
  %v448 = vrot.slane %v446, 5
  %v449 = vsel %vm137, %v444, %v448
  %v451 = vshrl.u32 %v126, 16
  %v453 = vrot.slane %v451, 4
  %v454 = vshll.u32 %v126, 16
  %v456 = vrot.slane %v454, 5
  %v457 = vor.u32 %v453, %v456
  %v458 = vrot.slane %v457, 4
  %v460 = vshll.u32 %v127, 16
  %v462 = vrot.slane %v460, 5
  %v463 = vsel %vm137, %v458, %v462
  %v464 = vshrl.u32 %v127, 16
  %v466 = vrot.slane %v464, 4
  %v467 = vor.u32 %v466, %v462
  %v468 = vrot.slane %v467, 4
  %v470 = vshll.u32 %v128, 16
  %v472 = vrot.slane %v470, 5
  %v473 = vsel %vm137, %v468, %v472
  %v475 = vshrl.u32 %v129, 16
  %v477 = vrot.slane %v475, 4
  %v478 = vshll.u32 %v129, 16
  %v480 = vrot.slane %v478, 5
  %v481 = vor.u32 %v477, %v480
  %v482 = vrot.slane %v481, 4
  %v484 = vshll.u32 %v130, 16
  %v486 = vrot.slane %v484, 5
  %v487 = vsel %vm137, %v482, %v486
  %v488 = vshrl.u32 %v130, 16
  %v490 = vrot.slane %v488, 4
  %v491 = vor.u32 %v490, %v486
  %v492 = vrot.slane %v491, 4
  %v494 = vshll.u32 %v131, 16
  %v496 = vrot.slane %v494, 5
  %v497 = vsel %vm137, %v492, %v496
  %v499 = vshrl.u32 %v132, 16
  %v501 = vrot.slane %v499, 4
  %v502 = vshll.u32 %v132, 16
  %v504 = vrot.slane %v502, 5
  %v505 = vor.u32 %v501, %v504
  %v506 = vrot.slane %v505, 4
  %v508 = vshll.u32 %v133, 16
  %v510 = vrot.slane %v508, 5
  %v511 = vsel %vm137, %v506, %v510
  %v512 = vshrl.u32 %v133, 16
  %v514 = vrot.slane %v512, 4
  %v515 = vor.u32 %v514, %v510
  %v516 = vrot.slane %v515, 4
  %v518 = vshll.u32 %v134, 16
  %v520 = vrot.slane %v518, 5
  %v521 = vsel %vm137, %v516, %v520
  %522 = vrot.lane.b32.xlu0 %v151, 4
  %v523 = vpop.permute.xlu0 %522
  %524 = vrot.lane.b32.xlu0 %v161, 4
  %v525 = vpop.permute.xlu0 %524
  %526 = vrot.lane.b32.xlu0 %v175, 4
  %v527 = vpop.permute.xlu0 %526
  %528 = vrot.lane.b32.xlu0 %v185, 4
  %v529 = vpop.permute.xlu0 %528
  %530 = vrot.lane.b32.xlu0 %v199, 4
  %v531 = vpop.permute.xlu0 %530
  %532 = vrot.lane.b32.xlu0 %v209, 4
  %v533 = vpop.permute.xlu0 %532
  %534 = vrot.lane.b32.xlu0 %v223, 4
  %v535 = vpop.permute.xlu0 %534
  %536 = vrot.lane.b32.xlu0 %v233, 4
  %v537 = vpop.permute.xlu0 %536
  %538 = vrot.lane.b32.xlu0 %v247, 4
  %v539 = vpop.permute.xlu0 %538
  %540 = vrot.lane.b32.xlu0 %v257, 4
  %v541 = vpop.permute.xlu0 %540
  %542 = vrot.lane.b32.xlu0 %v271, 4
  %v543 = vpop.permute.xlu0 %542
  %544 = vrot.lane.b32.xlu0 %v281, 4
  %v545 = vpop.permute.xlu0 %544
  %546 = vrot.lane.b32.xlu0 %v295, 4
  %v547 = vpop.permute.xlu0 %546
  %548 = vrot.lane.b32.xlu0 %v305, 4
  %v549 = vpop.permute.xlu0 %548
  %550 = vrot.lane.b32.xlu0 %v319, 4
  %v551 = vpop.permute.xlu0 %550
  %552 = vrot.lane.b32.xlu0 %v329, 4
  %v553 = vpop.permute.xlu0 %552
  %554 = vrot.lane.b32.xlu0 %v343, 4
  %v555 = vpop.permute.xlu0 %554
  %556 = vrot.lane.b32.xlu0 %v353, 4
  %v557 = vpop.permute.xlu0 %556
  %558 = vrot.lane.b32.xlu0 %v367, 4
  %v559 = vpop.permute.xlu0 %558
  %560 = vrot.lane.b32.xlu0 %v377, 4
  %v561 = vpop.permute.xlu0 %560
  %562 = vrot.lane.b32.xlu0 %v391, 4
  %v563 = vpop.permute.xlu0 %562
  %564 = vrot.lane.b32.xlu0 %v401, 4
  %v565 = vpop.permute.xlu0 %564
  %566 = vrot.lane.b32.xlu0 %v415, 4
  %v567 = vpop.permute.xlu0 %566
  %568 = vrot.lane.b32.xlu0 %v425, 4
  %v569 = vpop.permute.xlu0 %568
  %570 = vrot.lane.b32.xlu0 %v439, 4
  %v571 = vpop.permute.xlu0 %570
  %572 = vrot.lane.b32.xlu0 %v449, 4
  %v573 = vpop.permute.xlu0 %572
  %574 = vrot.lane.b32.xlu0 %v463, 4
  %v575 = vpop.permute.xlu0 %574
  %576 = vrot.lane.b32.xlu0 %v473, 4
  %v577 = vpop.permute.xlu0 %576
  %578 = vrot.lane.b32.xlu0 %v487, 4
  %v579 = vpop.permute.xlu0 %578
  %580 = vrot.lane.b32.xlu0 %v497, 4
  %v581 = vpop.permute.xlu0 %580
  %582 = vrot.lane.b32.xlu0 %v511, 4
  %v583 = vpop.permute.xlu0 %582
  %584 = vrot.lane.b32.xlu0 %v521, 4
  %v585 = vpop.permute.xlu0 %584
  %vm618 = vcmask 60448
  %619 = vst.msk [vmem:[#allocation2] sm:$0xf] %vm618, %v523
  %620 = vst.msk [vmem:[#allocation2 + $0x4] sm:$0xf] %vm618, %v525
  %621 = vst.msk [vmem:[#allocation2 + $0x8] sm:$0xf] %vm618, %v527
  %622 = vst.msk [vmem:[#allocation2 + $0xc] sm:$0xf] %vm618, %v529
  %623 = vst.msk [vmem:[#allocation2 + $0x10] sm:$0xf] %vm618, %v531
  %624 = vst.msk [vmem:[#allocation2 + $0x14] sm:$0xf] %vm618, %v533
  %625 = vst.msk [vmem:[#allocation2 + $0x18] sm:$0xf] %vm618, %v535
  %626 = vst.msk [vmem:[#allocation2 + $0x1c] sm:$0xf] %vm618, %v537
  %627 = vst.msk [vmem:[#allocation2 + $0x20] sm:$0xf] %vm618, %v539
  %628 = vst.msk [vmem:[#allocation2 + $0x24] sm:$0xf] %vm618, %v541
  %629 = vst.msk [vmem:[#allocation2 + $0x28] sm:$0xf] %vm618, %v543
  %630 = vst.msk [vmem:[#allocation2 + $0x2c] sm:$0xf] %vm618, %v545
  %631 = vst.msk [vmem:[#allocation2 + $0x30] sm:$0xf] %vm618, %v547
  %632 = vst.msk [vmem:[#allocation2 + $0x34] sm:$0xf] %vm618, %v549
  %633 = vst.msk [vmem:[#allocation2 + $0x38] sm:$0xf] %vm618, %v551
  %634 = vst.msk [vmem:[#allocation2 + $0x3c] sm:$0xf] %vm618, %v553
  %635 = vst.msk [vmem:[#allocation2 + $0x40] sm:$0xf] %vm618, %v555
  %636 = vst.msk [vmem:[#allocation2 + $0x44] sm:$0xf] %vm618, %v557
  %637 = vst.msk [vmem:[#allocation2 + $0x48] sm:$0xf] %vm618, %v559
  %638 = vst.msk [vmem:[#allocation2 + $0x4c] sm:$0xf] %vm618, %v561
  %639 = vst.msk [vmem:[#allocation2 + $0x50] sm:$0xf] %vm618, %v563
  %640 = vst.msk [vmem:[#allocation2 + $0x54] sm:$0xf] %vm618, %v565
  %641 = vst.msk [vmem:[#allocation2 + $0x58] sm:$0xf] %vm618, %v567
  %642 = vst.msk [vmem:[#allocation2 + $0x5c] sm:$0xf] %vm618, %v569
  %643 = vst.msk [vmem:[#allocation2 + $0x60] sm:$0xf] %vm618, %v571
  %644 = vst.msk [vmem:[#allocation2 + $0x64] sm:$0xf] %vm618, %v573
  %645 = vst.msk [vmem:[#allocation2 + $0x68] sm:$0xf] %vm618, %v575
  %646 = vst.msk [vmem:[#allocation2 + $0x6c] sm:$0xf] %vm618, %v577
  %647 = vst.msk [vmem:[#allocation2 + $0x70] sm:$0xf] %vm618, %v579
  %648 = vst.msk [vmem:[#allocation2 + $0x74] sm:$0xf] %vm618, %v581
  %649 = vst.msk [vmem:[#allocation2 + $0x78] sm:$0xf] %vm618, %v583
  %650 = vst.msk [vmem:[#allocation2 + $0x7c] sm:$0xf] %vm618, %v585
  %v651 = vld [vmem:[%s21] sm:$0xe]
  %v652 = vld [vmem:[%s21 + $0x4] sm:$0xf]
  %v653 = vld [vmem:[%s21 + $0x8] sm:$0x1]
  %v654 = vld [vmem:[%s21 + $0xc] sm:$0xe]
  %v655 = vld [vmem:[%s21 + $0x10] sm:$0xf]
  %v656 = vld [vmem:[%s21 + $0x14] sm:$0x1]
  %v657 = vld [vmem:[%s21 + $0x18] sm:$0xe]
  %v658 = vld [vmem:[%s21 + $0x1c] sm:$0xf]
  %v659 = vld [vmem:[%s21 + $0x20] sm:$0x1]
  %v660 = vld [vmem:[%s21 + $0x24] sm:$0xe]
  %v661 = vld [vmem:[%s21 + $0x28] sm:$0xf]
  %v662 = vld [vmem:[%s21 + $0x2c] sm:$0x1]
  %v663 = vld [vmem:[%s21 + $0x30] sm:$0xe]
  %v664 = vld [vmem:[%s21 + $0x34] sm:$0xf]
  %v665 = vld [vmem:[%s21 + $0x38] sm:$0x1]
  %v666 = vld [vmem:[%s21 + $0x3c] sm:$0xe]
  %v667 = vld [vmem:[%s21 + $0x40] sm:$0xf]
  %v668 = vld [vmem:[%s21 + $0x44] sm:$0x1]
  %v669 = vld [vmem:[%s21 + $0x48] sm:$0xe]
  %v670 = vld [vmem:[%s21 + $0x4c] sm:$0xf]
  %v671 = vld [vmem:[%s21 + $0x50] sm:$0x1]
  %v672 = vld [vmem:[%s21 + $0x54] sm:$0xe]
  %v673 = vld [vmem:[%s21 + $0x58] sm:$0xf]
  %v674 = vld [vmem:[%s21 + $0x5c] sm:$0x1]
  %v675 = vld [vmem:[%s21 + $0x60] sm:$0xe]
  %v676 = vld [vmem:[%s21 + $0x64] sm:$0xf]
  %v677 = vld [vmem:[%s21 + $0x68] sm:$0x1]
  %v678 = vld [vmem:[%s21 + $0x6c] sm:$0xe]
  %v679 = vld [vmem:[%s21 + $0x70] sm:$0xf]
  %v680 = vld [vmem:[%s21 + $0x74] sm:$0x1]
  %v681 = vld [vmem:[%s21 + $0x78] sm:$0xe]
  %v682 = vld [vmem:[%s21 + $0x7c] sm:$0xf]
  %v683 = vld [vmem:[%s21 + $0x80] sm:$0x1]
  %v684 = vld [vmem:[%s21 + $0x84] sm:$0xe]
  %v685 = vld [vmem:[%s21 + $0x88] sm:$0xf]
  %v686 = vld [vmem:[%s21 + $0x8c] sm:$0x1]
  %v687 = vld [vmem:[%s21 + $0x90] sm:$0xe]
  %v688 = vld [vmem:[%s21 + $0x94] sm:$0xf]
  %v689 = vld [vmem:[%s21 + $0x98] sm:$0x1]
  %v690 = vld [vmem:[%s21 + $0x9c] sm:$0xe]
  %v691 = vld [vmem:[%s21 + $0xa0] sm:$0xf]
  %v692 = vld [vmem:[%s21 + $0xa4] sm:$0x1]
  %v693 = vld [vmem:[%s21 + $0xa8] sm:$0xe]
  %v694 = vld [vmem:[%s21 + $0xac] sm:$0xf]
  %v695 = vld [vmem:[%s21 + $0xb0] sm:$0x1]
  %v696 = vld [vmem:[%s21 + $0xb4] sm:$0xe]
  %v697 = vld [vmem:[%s21 + $0xb8] sm:$0xf]
  %v698 = vld [vmem:[%s21 + $0xbc] sm:$0x1]
  %vm747 = vcmask 1042432
  %vm748 = vcmask 1046532
  %vm749 = vmor %vm747, %vm748
  %v750 = vrot.slane %v651, 5
  %v751 = vrot.slane %v750, 4
  %v752 = vrot.slane %v652, 5
  %v753 = vsel %vm749, %v751, %v752
  %v754 = vrot.slane %v752, 4
  %v755 = vrot.slane %v653, 5
  %v756 = vsel %vm749, %v754, %v755
  %v757 = vrot.slane %v654, 5
  %v758 = vrot.slane %v757, 4
  %v759 = vrot.slane %v655, 5
  %v760 = vsel %vm749, %v758, %v759
  %v761 = vrot.slane %v759, 4
  %v762 = vrot.slane %v656, 5
  %v763 = vsel %vm749, %v761, %v762
  %v764 = vrot.slane %v657, 5
  %v765 = vrot.slane %v764, 4
  %v766 = vrot.slane %v658, 5
  %v767 = vsel %vm749, %v765, %v766
  %v768 = vrot.slane %v766, 4
  %v769 = vrot.slane %v659, 5
  %v770 = vsel %vm749, %v768, %v769
  %v771 = vrot.slane %v660, 5
  %v772 = vrot.slane %v771, 4
  %v773 = vrot.slane %v661, 5
  %v774 = vsel %vm749, %v772, %v773
  %v775 = vrot.slane %v773, 4
  %v776 = vrot.slane %v662, 5
  %v777 = vsel %vm749, %v775, %v776
  %v778 = vrot.slane %v663, 5
  %v779 = vrot.slane %v778, 4
  %v780 = vrot.slane %v664, 5
  %v781 = vsel %vm749, %v779, %v780
  %v782 = vrot.slane %v780, 4
  %v783 = vrot.slane %v665, 5
  %v784 = vsel %vm749, %v782, %v783
  %v785 = vrot.slane %v666, 5
  %v786 = vrot.slane %v785, 4
  %v787 = vrot.slane %v667, 5
  %v788 = vsel %vm749, %v786, %v787
  %v789 = vrot.slane %v787, 4
  %v790 = vrot.slane %v668, 5
  %v791 = vsel %vm749, %v789, %v790
  %v792 = vrot.slane %v669, 5
  %v793 = vrot.slane %v792, 4
  %v794 = vrot.slane %v670, 5
  %v795 = vsel %vm749, %v793, %v794
  %v796 = vrot.slane %v794, 4
  %v797 = vrot.slane %v671, 5
  %v798 = vsel %vm749, %v796, %v797
  %v799 = vrot.slane %v672, 5
  %v800 = vrot.slane %v799, 4
  %v801 = vrot.slane %v673, 5
  %v802 = vsel %vm749, %v800, %v801
  %v803 = vrot.slane %v801, 4
  %v804 = vrot.slane %v674, 5
  %v805 = vsel %vm749, %v803, %v804
  %v806 = vrot.slane %v675, 5
  %v807 = vrot.slane %v806, 4
  %v808 = vrot.slane %v676, 5
  %v809 = vsel %vm749, %v807, %v808
  %v810 = vrot.slane %v808, 4
  %v811 = vrot.slane %v677, 5
  %v812 = vsel %vm749, %v810, %v811
  %v813 = vrot.slane %v678, 5
  %v814 = vrot.slane %v813, 4
  %v815 = vrot.slane %v679, 5
  %v816 = vsel %vm749, %v814, %v815
  %v817 = vrot.slane %v815, 4
  %v818 = vrot.slane %v680, 5
  %v819 = vsel %vm749, %v817, %v818
  %v820 = vrot.slane %v681, 5
  %v821 = vrot.slane %v820, 4
  %v822 = vrot.slane %v682, 5
  %v823 = vsel %vm749, %v821, %v822
  %v824 = vrot.slane %v822, 4
  %v825 = vrot.slane %v683, 5
  %v826 = vsel %vm749, %v824, %v825
  %v827 = vrot.slane %v684, 5
  %v828 = vrot.slane %v827, 4
  %v829 = vrot.slane %v685, 5
  %v830 = vsel %vm749, %v828, %v829
  %v831 = vrot.slane %v829, 4
  %v832 = vrot.slane %v686, 5
  %v833 = vsel %vm749, %v831, %v832
  %v834 = vrot.slane %v687, 5
  %v835 = vrot.slane %v834, 4
  %v836 = vrot.slane %v688, 5
  %v837 = vsel %vm749, %v835, %v836
  %v838 = vrot.slane %v836, 4
  %v839 = vrot.slane %v689, 5
  %v840 = vsel %vm749, %v838, %v839
  %v841 = vrot.slane %v690, 5
  %v842 = vrot.slane %v841, 4
  %v843 = vrot.slane %v691, 5
  %v844 = vsel %vm749, %v842, %v843
  %v845 = vrot.slane %v843, 4
  %v846 = vrot.slane %v692, 5
  %v847 = vsel %vm749, %v845, %v846
  %v848 = vrot.slane %v693, 5
  %v849 = vrot.slane %v848, 4
  %v850 = vrot.slane %v694, 5
  %v851 = vsel %vm749, %v849, %v850
  %v852 = vrot.slane %v850, 4
  %v853 = vrot.slane %v695, 5
  %v854 = vsel %vm749, %v852, %v853
  %v855 = vrot.slane %v696, 5
  %v856 = vrot.slane %v855, 4
  %v857 = vrot.slane %v697, 5
  %v858 = vsel %vm749, %v856, %v857
  %v859 = vrot.slane %v857, 4
  %v860 = vrot.slane %v698, 5
  %v861 = vsel %vm749, %v859, %v860
  %862 = vrot.lane.b32.xlu0 %v753, 8
  %v863 = vpop.permute.xlu0 %862
  %864 = vrot.lane.b32.xlu0 %v756, 8
  %v865 = vpop.permute.xlu0 %864
  %866 = vrot.lane.b32.xlu0 %v760, 8
  %v867 = vpop.permute.xlu0 %866
  %868 = vrot.lane.b32.xlu0 %v763, 8
  %v869 = vpop.permute.xlu0 %868
  %870 = vrot.lane.b32.xlu0 %v767, 8
  %v871 = vpop.permute.xlu0 %870
  %872 = vrot.lane.b32.xlu0 %v770, 8
  %v873 = vpop.permute.xlu0 %872
  %874 = vrot.lane.b32.xlu0 %v774, 8
  %v875 = vpop.permute.xlu0 %874
  %876 = vrot.lane.b32.xlu0 %v777, 8
  %v877 = vpop.permute.xlu0 %876
  %878 = vrot.lane.b32.xlu0 %v781, 8
  %v879 = vpop.permute.xlu0 %878
  %880 = vrot.lane.b32.xlu0 %v784, 8
  %v881 = vpop.permute.xlu0 %880
  %882 = vrot.lane.b32.xlu0 %v788, 8
  %v883 = vpop.permute.xlu0 %882
  %884 = vrot.lane.b32.xlu0 %v791, 8
  %v885 = vpop.permute.xlu0 %884
  %886 = vrot.lane.b32.xlu0 %v795, 8
  %v887 = vpop.permute.xlu0 %886
  %888 = vrot.lane.b32.xlu0 %v798, 8
  %v889 = vpop.permute.xlu0 %888
  %890 = vrot.lane.b32.xlu0 %v802, 8
  %v891 = vpop.permute.xlu0 %890
  %892 = vrot.lane.b32.xlu0 %v805, 8
  %v893 = vpop.permute.xlu0 %892
  %894 = vrot.lane.b32.xlu0 %v809, 8
  %v895 = vpop.permute.xlu0 %894
  %896 = vrot.lane.b32.xlu0 %v812, 8
  %v897 = vpop.permute.xlu0 %896
  %898 = vrot.lane.b32.xlu0 %v816, 8
  %v899 = vpop.permute.xlu0 %898
  %900 = vrot.lane.b32.xlu0 %v819, 8
  %v901 = vpop.permute.xlu0 %900
  %902 = vrot.lane.b32.xlu0 %v823, 8
  %v903 = vpop.permute.xlu0 %902
  %904 = vrot.lane.b32.xlu0 %v826, 8
  %v905 = vpop.permute.xlu0 %904
  %906 = vrot.lane.b32.xlu0 %v830, 8
  %v907 = vpop.permute.xlu0 %906
  %908 = vrot.lane.b32.xlu0 %v833, 8
  %v909 = vpop.permute.xlu0 %908
  %910 = vrot.lane.b32.xlu0 %v837, 8
  %v911 = vpop.permute.xlu0 %910
  %912 = vrot.lane.b32.xlu0 %v840, 8
  %v913 = vpop.permute.xlu0 %912
  %914 = vrot.lane.b32.xlu0 %v844, 8
  %v915 = vpop.permute.xlu0 %914
  %916 = vrot.lane.b32.xlu0 %v847, 8
  %v917 = vpop.permute.xlu0 %916
  %918 = vrot.lane.b32.xlu0 %v851, 8
  %v919 = vpop.permute.xlu0 %918
  %920 = vrot.lane.b32.xlu0 %v854, 8
  %v921 = vpop.permute.xlu0 %920
  %922 = vrot.lane.b32.xlu0 %v858, 8
  %v923 = vpop.permute.xlu0 %922
  %924 = vrot.lane.b32.xlu0 %v861, 8
  %v925 = vpop.permute.xlu0 %924
  %vm958 = vcmask 93248
  %959 = vst.msk [vmem:[#allocation2] sm:$0xf] %vm958, %v863
  %960 = vst.msk [vmem:[#allocation2 + $0x4] sm:$0xf] %vm958, %v865
  %961 = vst.msk [vmem:[#allocation2 + $0x8] sm:$0xf] %vm958, %v867
  %962 = vst.msk [vmem:[#allocation2 + $0xc] sm:$0xf] %vm958, %v869
  %963 = vst.msk [vmem:[#allocation2 + $0x10] sm:$0xf] %vm958, %v871
  %964 = vst.msk [vmem:[#allocation2 + $0x14] sm:$0xf] %vm958, %v873
  %965 = vst.msk [vmem:[#allocation2 + $0x18] sm:$0xf] %vm958, %v875
  %966 = vst.msk [vmem:[#allocation2 + $0x1c] sm:$0xf] %vm958, %v877
  %967 = vst.msk [vmem:[#allocation2 + $0x20] sm:$0xf] %vm958, %v879
  %968 = vst.msk [vmem:[#allocation2 + $0x24] sm:$0xf] %vm958, %v881
  %969 = vst.msk [vmem:[#allocation2 + $0x28] sm:$0xf] %vm958, %v883
  %970 = vst.msk [vmem:[#allocation2 + $0x2c] sm:$0xf] %vm958, %v885
  %971 = vst.msk [vmem:[#allocation2 + $0x30] sm:$0xf] %vm958, %v887
  %972 = vst.msk [vmem:[#allocation2 + $0x34] sm:$0xf] %vm958, %v889
  %973 = vst.msk [vmem:[#allocation2 + $0x38] sm:$0xf] %vm958, %v891
  %974 = vst.msk [vmem:[#allocation2 + $0x3c] sm:$0xf] %vm958, %v893
  %975 = vst.msk [vmem:[#allocation2 + $0x40] sm:$0xf] %vm958, %v895
  %976 = vst.msk [vmem:[#allocation2 + $0x44] sm:$0xf] %vm958, %v897
  %977 = vst.msk [vmem:[#allocation2 + $0x48] sm:$0xf] %vm958, %v899
  %978 = vst.msk [vmem:[#allocation2 + $0x4c] sm:$0xf] %vm958, %v901
  %979 = vst.msk [vmem:[#allocation2 + $0x50] sm:$0xf] %vm958, %v903
  %980 = vst.msk [vmem:[#allocation2 + $0x54] sm:$0xf] %vm958, %v905
  %981 = vst.msk [vmem:[#allocation2 + $0x58] sm:$0xf] %vm958, %v907
  %982 = vst.msk [vmem:[#allocation2 + $0x5c] sm:$0xf] %vm958, %v909
  %983 = vst.msk [vmem:[#allocation2 + $0x60] sm:$0xf] %vm958, %v911
  %984 = vst.msk [vmem:[#allocation2 + $0x64] sm:$0xf] %vm958, %v913
  %985 = vst.msk [vmem:[#allocation2 + $0x68] sm:$0xf] %vm958, %v915
  %986 = vst.msk [vmem:[#allocation2 + $0x6c] sm:$0xf] %vm958, %v917
  %987 = vst.msk [vmem:[#allocation2 + $0x70] sm:$0xf] %vm958, %v919
  %988 = vst.msk [vmem:[#allocation2 + $0x74] sm:$0xf] %vm958, %v921
  %989 = vst.msk [vmem:[#allocation2 + $0x78] sm:$0xf] %vm958, %v923
  %990 = vst.msk [vmem:[#allocation2 + $0x7c] sm:$0xf] %vm958, %v925
  %s991 = sadd.s32 %s18, 1
  %s992 = smul.u32 %s991, 3
  %s993 = smul.addr %s992, 4
  %s994 = scalar_lea.vmem %s0, %s993
  %v995 = vld [vmem:[%s994] sm:$0xf]
  %v996 = vld [vmem:[%s994 + $0x4] sm:$0xf]
  %v997 = vld [vmem:[%s994 + $0xc] sm:$0xf]
  %v998 = vld [vmem:[%s994 + $0x10] sm:$0xf]
  %v999 = vld [vmem:[%s994 + $0x18] sm:$0xf]
  %v1000 = vld [vmem:[%s994 + $0x1c] sm:$0xf]
  %v1001 = vld [vmem:[%s994 + $0x24] sm:$0xf]
  %v1002 = vld [vmem:[%s994 + $0x28] sm:$0xf]
  %v1003 = vld [vmem:[%s994 + $0x30] sm:$0xf]
  %v1004 = vld [vmem:[%s994 + $0x34] sm:$0xf]
  %v1005 = vld [vmem:[%s994 + $0x3c] sm:$0xf]
  %v1006 = vld [vmem:[%s994 + $0x40] sm:$0xf]
  %v1007 = vld [vmem:[%s994 + $0x48] sm:$0xf]
  %v1008 = vld [vmem:[%s994 + $0x4c] sm:$0xf]
  %v1009 = vld [vmem:[%s994 + $0x54] sm:$0xf]
  %v1010 = vld [vmem:[%s994 + $0x58] sm:$0xf]
  %v1011 = vld [vmem:[%s994 + $0x60] sm:$0xf]
  %v1012 = vld [vmem:[%s994 + $0x64] sm:$0xf]
  %v1013 = vld [vmem:[%s994 + $0x6c] sm:$0xf]
  %v1014 = vld [vmem:[%s994 + $0x70] sm:$0xf]
  %v1015 = vld [vmem:[%s994 + $0x78] sm:$0xf]
  %v1016 = vld [vmem:[%s994 + $0x7c] sm:$0xf]
  %v1017 = vld [vmem:[%s994 + $0x84] sm:$0xf]
  %v1018 = vld [vmem:[%s994 + $0x88] sm:$0xf]
  %v1019 = vld [vmem:[%s994 + $0x90] sm:$0xf]
  %v1020 = vld [vmem:[%s994 + $0x94] sm:$0xf]
  %v1021 = vld [vmem:[%s994 + $0x9c] sm:$0xf]
  %v1022 = vld [vmem:[%s994 + $0xa0] sm:$0xf]
  %v1023 = vld [vmem:[%s994 + $0xa8] sm:$0xf]
  %v1024 = vld [vmem:[%s994 + $0xac] sm:$0xf]
  %v1025 = vld [vmem:[%s994 + $0xb4] sm:$0xf]
  %v1026 = vld [vmem:[%s994 + $0xb8] sm:$0xf]
  %1059 = vrot.lane.b32.xlu0 %v995, 12
  %v1060 = vpop.permute.xlu0 %1059
  %1061 = vrot.lane.b32.xlu0 %v996, 12
  %v1062 = vpop.permute.xlu0 %1061
  %1063 = vrot.lane.b32.xlu0 %v997, 12
  %v1064 = vpop.permute.xlu0 %1063
  %1065 = vrot.lane.b32.xlu0 %v998, 12
  %v1066 = vpop.permute.xlu0 %1065
  %1067 = vrot.lane.b32.xlu0 %v999, 12
  %v1068 = vpop.permute.xlu0 %1067
  %1069 = vrot.lane.b32.xlu0 %v1000, 12
  %v1070 = vpop.permute.xlu0 %1069
  %1071 = vrot.lane.b32.xlu0 %v1001, 12
  %v1072 = vpop.permute.xlu0 %1071
  %1073 = vrot.lane.b32.xlu0 %v1002, 12
  %v1074 = vpop.permute.xlu0 %1073
  %1075 = vrot.lane.b32.xlu0 %v1003, 12
  %v1076 = vpop.permute.xlu0 %1075
  %1077 = vrot.lane.b32.xlu0 %v1004, 12
  %v1078 = vpop.permute.xlu0 %1077
  %1079 = vrot.lane.b32.xlu0 %v1005, 12
  %v1080 = vpop.permute.xlu0 %1079
  %1081 = vrot.lane.b32.xlu0 %v1006, 12
  %v1082 = vpop.permute.xlu0 %1081
  %1083 = vrot.lane.b32.xlu0 %v1007, 12
  %v1084 = vpop.permute.xlu0 %1083
  %1085 = vrot.lane.b32.xlu0 %v1008, 12
  %v1086 = vpop.permute.xlu0 %1085
  %1087 = vrot.lane.b32.xlu0 %v1009, 12
  %v1088 = vpop.permute.xlu0 %1087
  %1089 = vrot.lane.b32.xlu0 %v1010, 12
  %v1090 = vpop.permute.xlu0 %1089
  %1091 = vrot.lane.b32.xlu0 %v1011, 12
  %v1092 = vpop.permute.xlu0 %1091
  %1093 = vrot.lane.b32.xlu0 %v1012, 12
  %v1094 = vpop.permute.xlu0 %1093
  %1095 = vrot.lane.b32.xlu0 %v1013, 12
  %v1096 = vpop.permute.xlu0 %1095
  %1097 = vrot.lane.b32.xlu0 %v1014, 12
  %v1098 = vpop.permute.xlu0 %1097
  %1099 = vrot.lane.b32.xlu0 %v1015, 12
  %v1100 = vpop.permute.xlu0 %1099
  %1101 = vrot.lane.b32.xlu0 %v1016, 12
  %v1102 = vpop.permute.xlu0 %1101
  %1103 = vrot.lane.b32.xlu0 %v1017, 12
  %v1104 = vpop.permute.xlu0 %1103
  %1105 = vrot.lane.b32.xlu0 %v1018, 12
  %v1106 = vpop.permute.xlu0 %1105
  %1107 = vrot.lane.b32.xlu0 %v1019, 12
  %v1108 = vpop.permute.xlu0 %1107
  %1109 = vrot.lane.b32.xlu0 %v1020, 12
  %v1110 = vpop.permute.xlu0 %1109
  %1111 = vrot.lane.b32.xlu0 %v1021, 12
  %v1112 = vpop.permute.xlu0 %1111
  %1113 = vrot.lane.b32.xlu0 %v1022, 12
  %v1114 = vpop.permute.xlu0 %1113
  %1115 = vrot.lane.b32.xlu0 %v1023, 12
  %v1116 = vpop.permute.xlu0 %1115
  %1117 = vrot.lane.b32.xlu0 %v1024, 12
  %v1118 = vpop.permute.xlu0 %1117
  %1119 = vrot.lane.b32.xlu0 %v1025, 12
  %v1120 = vpop.permute.xlu0 %1119
  %1121 = vrot.lane.b32.xlu0 %v1026, 12
  %v1122 = vpop.permute.xlu0 %1121
  %vm1155 = vcmask 126048
  %1156 = vst.msk [vmem:[#allocation2] sm:$0xf] %vm1155, %v1060
  %1157 = vst.msk [vmem:[#allocation2 + $0x4] sm:$0xf] %vm1155, %v1062
  %1158 = vst.msk [vmem:[#allocation2 + $0x8] sm:$0xf] %vm1155, %v1064
  %1159 = vst.msk [vmem:[#allocation2 + $0xc] sm:$0xf] %vm1155, %v1066
  %1160 = vst.msk [vmem:[#allocation2 + $0x10] sm:$0xf] %vm1155, %v1068
  %1161 = vst.msk [vmem:[#allocation2 + $0x14] sm:$0xf] %vm1155, %v1070
  %1162 = vst.msk [vmem:[#allocation2 + $0x18] sm:$0xf] %vm1155, %v1072
  %1163 = vst.msk [vmem:[#allocation2 + $0x1c] sm:$0xf] %vm1155, %v1074
  %1164 = vst.msk [vmem:[#allocation2 + $0x20] sm:$0xf] %vm1155, %v1076
  %1165 = vst.msk [vmem:[#allocation2 + $0x24] sm:$0xf] %vm1155, %v1078
  %1166 = vst.msk [vmem:[#allocation2 + $0x28] sm:$0xf] %vm1155, %v1080
  %1167 = vst.msk [vmem:[#allocation2 + $0x2c] sm:$0xf] %vm1155, %v1082
  %1168 = vst.msk [vmem:[#allocation2 + $0x30] sm:$0xf] %vm1155, %v1084
  %1169 = vst.msk [vmem:[#allocation2 + $0x34] sm:$0xf] %vm1155, %v1086
  %1170 = vst.msk [vmem:[#allocation2 + $0x38] sm:$0xf] %vm1155, %v1088
  %1171 = vst.msk [vmem:[#allocation2 + $0x3c] sm:$0xf] %vm1155, %v1090
  %1172 = vst.msk [vmem:[#allocation2 + $0x40] sm:$0xf] %vm1155, %v1092
  %1173 = vst.msk [vmem:[#allocation2 + $0x44] sm:$0xf] %vm1155, %v1094
  %1174 = vst.msk [vmem:[#allocation2 + $0x48] sm:$0xf] %vm1155, %v1096
  %1175 = vst.msk [vmem:[#allocation2 + $0x4c] sm:$0xf] %vm1155, %v1098
  %1176 = vst.msk [vmem:[#allocation2 + $0x50] sm:$0xf] %vm1155, %v1100
  %1177 = vst.msk [vmem:[#allocation2 + $0x54] sm:$0xf] %vm1155, %v1102
  %1178 = vst.msk [vmem:[#allocation2 + $0x58] sm:$0xf] %vm1155, %v1104
  %1179 = vst.msk [vmem:[#allocation2 + $0x5c] sm:$0xf] %vm1155, %v1106
  %1180 = vst.msk [vmem:[#allocation2 + $0x60] sm:$0xf] %vm1155, %v1108
  %1181 = vst.msk [vmem:[#allocation2 + $0x64] sm:$0xf] %vm1155, %v1110
  %1182 = vst.msk [vmem:[#allocation2 + $0x68] sm:$0xf] %vm1155, %v1112
  %1183 = vst.msk [vmem:[#allocation2 + $0x6c] sm:$0xf] %vm1155, %v1114
  %1184 = vst.msk [vmem:[#allocation2 + $0x70] sm:$0xf] %vm1155, %v1116
  %1185 = vst.msk [vmem:[#allocation2 + $0x74] sm:$0xf] %vm1155, %v1118
  %1186 = vst.msk [vmem:[#allocation2 + $0x78] sm:$0xf] %vm1155, %v1120
  %1187 = vst.msk [vmem:[#allocation2 + $0x7c] sm:$0xf] %vm1155, %v1122
  %v1188 = vld [vmem:[%s994] sm:$0xf]
  %v1189 = vld [vmem:[%s994 + $0x4] sm:$0xf]
  %v1190 = vld [vmem:[%s994 + $0x8] sm:$0x1]
  %v1191 = vld [vmem:[%s994 + $0xc] sm:$0xf]
  %v1192 = vld [vmem:[%s994 + $0x10] sm:$0xf]
  %v1193 = vld [vmem:[%s994 + $0x14] sm:$0x1]
  %v1194 = vld [vmem:[%s994 + $0x18] sm:$0xf]
  %v1195 = vld [vmem:[%s994 + $0x1c] sm:$0xf]
  %v1196 = vld [vmem:[%s994 + $0x20] sm:$0x1]
  %v1197 = vld [vmem:[%s994 + $0x24] sm:$0xf]
  %v1198 = vld [vmem:[%s994 + $0x28] sm:$0xf]
  %v1199 = vld [vmem:[%s994 + $0x2c] sm:$0x1]
  %v1200 = vld [vmem:[%s994 + $0x30] sm:$0xf]
  %v1201 = vld [vmem:[%s994 + $0x34] sm:$0xf]
  %v1202 = vld [vmem:[%s994 + $0x38] sm:$0x1]
  %v1203 = vld [vmem:[%s994 + $0x3c] sm:$0xf]
  %v1204 = vld [vmem:[%s994 + $0x40] sm:$0xf]
  %v1205 = vld [vmem:[%s994 + $0x44] sm:$0x1]
  %v1206 = vld [vmem:[%s994 + $0x48] sm:$0xf]
  %v1207 = vld [vmem:[%s994 + $0x4c] sm:$0xf]
  %v1208 = vld [vmem:[%s994 + $0x50] sm:$0x1]
  %v1209 = vld [vmem:[%s994 + $0x54] sm:$0xf]
  %v1210 = vld [vmem:[%s994 + $0x58] sm:$0xf]
  %v1211 = vld [vmem:[%s994 + $0x5c] sm:$0x1]
  %v1212 = vld [vmem:[%s994 + $0x60] sm:$0xf]
  %v1213 = vld [vmem:[%s994 + $0x64] sm:$0xf]
  %v1214 = vld [vmem:[%s994 + $0x68] sm:$0x1]
  %v1215 = vld [vmem:[%s994 + $0x6c] sm:$0xf]
  %v1216 = vld [vmem:[%s994 + $0x70] sm:$0xf]
  %v1217 = vld [vmem:[%s994 + $0x74] sm:$0x1]
  %v1218 = vld [vmem:[%s994 + $0x78] sm:$0xf]
  %v1219 = vld [vmem:[%s994 + $0x7c] sm:$0xf]
  %v1220 = vld [vmem:[%s994 + $0x80] sm:$0x1]
  %v1221 = vld [vmem:[%s994 + $0x84] sm:$0xf]
  %v1222 = vld [vmem:[%s994 + $0x88] sm:$0xf]
  %v1223 = vld [vmem:[%s994 + $0x8c] sm:$0x1]
  %v1224 = vld [vmem:[%s994 + $0x90] sm:$0xf]
  %v1225 = vld [vmem:[%s994 + $0x94] sm:$0xf]
  %v1226 = vld [vmem:[%s994 + $0x98] sm:$0x1]
  %v1227 = vld [vmem:[%s994 + $0x9c] sm:$0xf]
  %v1228 = vld [vmem:[%s994 + $0xa0] sm:$0xf]
  %v1229 = vld [vmem:[%s994 + $0xa4] sm:$0x1]
  %v1230 = vld [vmem:[%s994 + $0xa8] sm:$0xf]
  %v1231 = vld [vmem:[%s994 + $0xac] sm:$0xf]
  %v1232 = vld [vmem:[%s994 + $0xb0] sm:$0x1]
  %v1233 = vld [vmem:[%s994 + $0xb4] sm:$0xf]
  %v1234 = vld [vmem:[%s994 + $0xb8] sm:$0xf]
  %v1235 = vld [vmem:[%s994 + $0xbc] sm:$0x1]
  %v1237 = vshrl.u32 %v1188, 16
  %v1239 = vrot.slane %v1237, 4
  %v1240 = vshll.u32 %v1188, 16
  %v1242 = vrot.slane %v1240, 5
  %v1243 = vor.u32 %v1239, %v1242
  %v1244 = vrot.slane %v1243, 4
  %v1246 = vshll.u32 %v1189, 16
  %v1248 = vrot.slane %v1246, 5
  %v1249 = vsel %vm137, %v1244, %v1248
  %v1250 = vshrl.u32 %v1189, 16
  %v1252 = vrot.slane %v1250, 4
  %v1253 = vor.u32 %v1252, %v1248
  %v1254 = vrot.slane %v1253, 4
  %v1256 = vshll.u32 %v1190, 16
  %v1258 = vrot.slane %v1256, 5
  %v1259 = vsel %vm137, %v1254, %v1258
  %v1261 = vshrl.u32 %v1191, 16
  %v1263 = vrot.slane %v1261, 4
  %v1264 = vshll.u32 %v1191, 16
  %v1266 = vrot.slane %v1264, 5
  %v1267 = vor.u32 %v1263, %v1266
  %v1268 = vrot.slane %v1267, 4
  %v1270 = vshll.u32 %v1192, 16
  %v1272 = vrot.slane %v1270, 5
  %v1273 = vsel %vm137, %v1268, %v1272
  %v1274 = vshrl.u32 %v1192, 16
  %v1276 = vrot.slane %v1274, 4
  %v1277 = vor.u32 %v1276, %v1272
  %v1278 = vrot.slane %v1277, 4
  %v1280 = vshll.u32 %v1193, 16
  %v1282 = vrot.slane %v1280, 5
  %v1283 = vsel %vm137, %v1278, %v1282
  %v1285 = vshrl.u32 %v1194, 16
  %v1287 = vrot.slane %v1285, 4
  %v1288 = vshll.u32 %v1194, 16
  %v1290 = vrot.slane %v1288, 5
  %v1291 = vor.u32 %v1287, %v1290
  %v1292 = vrot.slane %v1291, 4
  %v1294 = vshll.u32 %v1195, 16
  %v1296 = vrot.slane %v1294, 5
  %v1297 = vsel %vm137, %v1292, %v1296
  %v1298 = vshrl.u32 %v1195, 16
  %v1300 = vrot.slane %v1298, 4
  %v1301 = vor.u32 %v1300, %v1296
  %v1302 = vrot.slane %v1301, 4
  %v1304 = vshll.u32 %v1196, 16
  %v1306 = vrot.slane %v1304, 5
  %v1307 = vsel %vm137, %v1302, %v1306
  %v1309 = vshrl.u32 %v1197, 16
  %v1311 = vrot.slane %v1309, 4
  %v1312 = vshll.u32 %v1197, 16
  %v1314 = vrot.slane %v1312, 5
  %v1315 = vor.u32 %v1311, %v1314
  %v1316 = vrot.slane %v1315, 4
  %v1318 = vshll.u32 %v1198, 16
  %v1320 = vrot.slane %v1318, 5
  %v1321 = vsel %vm137, %v1316, %v1320
  %v1322 = vshrl.u32 %v1198, 16
  %v1324 = vrot.slane %v1322, 4
  %v1325 = vor.u32 %v1324, %v1320
  %v1326 = vrot.slane %v1325, 4
  %v1328 = vshll.u32 %v1199, 16
  %v1330 = vrot.slane %v1328, 5
  %v1331 = vsel %vm137, %v1326, %v1330
  %v1333 = vshrl.u32 %v1200, 16
  %v1335 = vrot.slane %v1333, 4
  %v1336 = vshll.u32 %v1200, 16
  %v1338 = vrot.slane %v1336, 5
  %v1339 = vor.u32 %v1335, %v1338
  %v1340 = vrot.slane %v1339, 4
  %v1342 = vshll.u32 %v1201, 16
  %v1344 = vrot.slane %v1342, 5
  %v1345 = vsel %vm137, %v1340, %v1344
  %v1346 = vshrl.u32 %v1201, 16
  %v1348 = vrot.slane %v1346, 4
  %v1349 = vor.u32 %v1348, %v1344
  %v1350 = vrot.slane %v1349, 4
  %v1352 = vshll.u32 %v1202, 16
  %v1354 = vrot.slane %v1352, 5
  %v1355 = vsel %vm137, %v1350, %v1354
  %v1357 = vshrl.u32 %v1203, 16
  %v1359 = vrot.slane %v1357, 4
  %v1360 = vshll.u32 %v1203, 16
  %v1362 = vrot.slane %v1360, 5
  %v1363 = vor.u32 %v1359, %v1362
  %v1364 = vrot.slane %v1363, 4
  %v1366 = vshll.u32 %v1204, 16
  %v1368 = vrot.slane %v1366, 5
  %v1369 = vsel %vm137, %v1364, %v1368
  %v1370 = vshrl.u32 %v1204, 16
  %v1372 = vrot.slane %v1370, 4
  %v1373 = vor.u32 %v1372, %v1368
  %v1374 = vrot.slane %v1373, 4
  %v1376 = vshll.u32 %v1205, 16
  %v1378 = vrot.slane %v1376, 5
  %v1379 = vsel %vm137, %v1374, %v1378
  %v1381 = vshrl.u32 %v1206, 16
  %v1383 = vrot.slane %v1381, 4
  %v1384 = vshll.u32 %v1206, 16
  %v1386 = vrot.slane %v1384, 5
  %v1387 = vor.u32 %v1383, %v1386
  %v1388 = vrot.slane %v1387, 4
  %v1390 = vshll.u32 %v1207, 16
  %v1392 = vrot.slane %v1390, 5
  %v1393 = vsel %vm137, %v1388, %v1392
  %v1394 = vshrl.u32 %v1207, 16
  %v1396 = vrot.slane %v1394, 4
  %v1397 = vor.u32 %v1396, %v1392
  %v1398 = vrot.slane %v1397, 4
  %v1400 = vshll.u32 %v1208, 16
  %v1402 = vrot.slane %v1400, 5
  %v1403 = vsel %vm137, %v1398, %v1402
  %v1405 = vshrl.u32 %v1209, 16
  %v1407 = vrot.slane %v1405, 4
  %v1408 = vshll.u32 %v1209, 16
  %v1410 = vrot.slane %v1408, 5
  %v1411 = vor.u32 %v1407, %v1410
  %v1412 = vrot.slane %v1411, 4
  %v1414 = vshll.u32 %v1210, 16
  %v1416 = vrot.slane %v1414, 5
  %v1417 = vsel %vm137, %v1412, %v1416
  %v1418 = vshrl.u32 %v1210, 16
  %v1420 = vrot.slane %v1418, 4
  %v1421 = vor.u32 %v1420, %v1416
  %v1422 = vrot.slane %v1421, 4
  %v1424 = vshll.u32 %v1211, 16
  %v1426 = vrot.slane %v1424, 5
  %v1427 = vsel %vm137, %v1422, %v1426
  %v1429 = vshrl.u32 %v1212, 16
  %v1431 = vrot.slane %v1429, 4
  %v1432 = vshll.u32 %v1212, 16
  %v1434 = vrot.slane %v1432, 5
  %v1435 = vor.u32 %v1431, %v1434
  %v1436 = vrot.slane %v1435, 4
  %v1438 = vshll.u32 %v1213, 16
  %v1440 = vrot.slane %v1438, 5
  %v1441 = vsel %vm137, %v1436, %v1440
  %v1442 = vshrl.u32 %v1213, 16
  %v1444 = vrot.slane %v1442, 4
  %v1445 = vor.u32 %v1444, %v1440
  %v1446 = vrot.slane %v1445, 4
  %v1448 = vshll.u32 %v1214, 16
  %v1450 = vrot.slane %v1448, 5
  %v1451 = vsel %vm137, %v1446, %v1450
  %v1453 = vshrl.u32 %v1215, 16
  %v1455 = vrot.slane %v1453, 4
  %v1456 = vshll.u32 %v1215, 16
  %v1458 = vrot.slane %v1456, 5
  %v1459 = vor.u32 %v1455, %v1458
  %v1460 = vrot.slane %v1459, 4
  %v1462 = vshll.u32 %v1216, 16
  %v1464 = vrot.slane %v1462, 5
  %v1465 = vsel %vm137, %v1460, %v1464
  %v1466 = vshrl.u32 %v1216, 16
  %v1468 = vrot.slane %v1466, 4
  %v1469 = vor.u32 %v1468, %v1464
  %v1470 = vrot.slane %v1469, 4
  %v1472 = vshll.u32 %v1217, 16
  %v1474 = vrot.slane %v1472, 5
  %v1475 = vsel %vm137, %v1470, %v1474
  %v1477 = vshrl.u32 %v1218, 16
  %v1479 = vrot.slane %v1477, 4
  %v1480 = vshll.u32 %v1218, 16
  %v1482 = vrot.slane %v1480, 5
  %v1483 = vor.u32 %v1479, %v1482
  %v1484 = vrot.slane %v1483, 4
  %v1486 = vshll.u32 %v1219, 16
  %v1488 = vrot.slane %v1486, 5
  %v1489 = vsel %vm137, %v1484, %v1488
  %v1490 = vshrl.u32 %v1219, 16
  %v1492 = vrot.slane %v1490, 4
  %v1493 = vor.u32 %v1492, %v1488
  %v1494 = vrot.slane %v1493, 4
  %v1496 = vshll.u32 %v1220, 16
  %v1498 = vrot.slane %v1496, 5
  %v1499 = vsel %vm137, %v1494, %v1498
  %v1501 = vshrl.u32 %v1221, 16
  %v1503 = vrot.slane %v1501, 4
  %v1504 = vshll.u32 %v1221, 16
  %v1506 = vrot.slane %v1504, 5
  %v1507 = vor.u32 %v1503, %v1506
  %v1508 = vrot.slane %v1507, 4
  %v1510 = vshll.u32 %v1222, 16
  %v1512 = vrot.slane %v1510, 5
  %v1513 = vsel %vm137, %v1508, %v1512
  %v1514 = vshrl.u32 %v1222, 16
  %v1516 = vrot.slane %v1514, 4
  %v1517 = vor.u32 %v1516, %v1512
  %v1518 = vrot.slane %v1517, 4
  %v1520 = vshll.u32 %v1223, 16
  %v1522 = vrot.slane %v1520, 5
  %v1523 = vsel %vm137, %v1518, %v1522
  %v1525 = vshrl.u32 %v1224, 16
  %v1527 = vrot.slane %v1525, 4
  %v1528 = vshll.u32 %v1224, 16
  %v1530 = vrot.slane %v1528, 5
  %v1531 = vor.u32 %v1527, %v1530
  %v1532 = vrot.slane %v1531, 4
  %v1534 = vshll.u32 %v1225, 16
  %v1536 = vrot.slane %v1534, 5
  %v1537 = vsel %vm137, %v1532, %v1536
  %v1538 = vshrl.u32 %v1225, 16
  %v1540 = vrot.slane %v1538, 4
  %v1541 = vor.u32 %v1540, %v1536
  %v1542 = vrot.slane %v1541, 4
  %v1544 = vshll.u32 %v1226, 16
  %v1546 = vrot.slane %v1544, 5
  %v1547 = vsel %vm137, %v1542, %v1546
  %v1549 = vshrl.u32 %v1227, 16
  %v1551 = vrot.slane %v1549, 4
  %v1552 = vshll.u32 %v1227, 16
  %v1554 = vrot.slane %v1552, 5
  %v1555 = vor.u32 %v1551, %v1554
  %v1556 = vrot.slane %v1555, 4
  %v1558 = vshll.u32 %v1228, 16
  %v1560 = vrot.slane %v1558, 5
  %v1561 = vsel %vm137, %v1556, %v1560
  %v1562 = vshrl.u32 %v1228, 16
  %v1564 = vrot.slane %v1562, 4
  %v1565 = vor.u32 %v1564, %v1560
  %v1566 = vrot.slane %v1565, 4
  %v1568 = vshll.u32 %v1229, 16
  %v1570 = vrot.slane %v1568, 5
  %v1571 = vsel %vm137, %v1566, %v1570
  %v1573 = vshrl.u32 %v1230, 16
  %v1575 = vrot.slane %v1573, 4
  %v1576 = vshll.u32 %v1230, 16
  %v1578 = vrot.slane %v1576, 5
  %v1579 = vor.u32 %v1575, %v1578
  %v1580 = vrot.slane %v1579, 4
  %v1582 = vshll.u32 %v1231, 16
  %v1584 = vrot.slane %v1582, 5
  %v1585 = vsel %vm137, %v1580, %v1584
  %v1586 = vshrl.u32 %v1231, 16
  %v1588 = vrot.slane %v1586, 4
  %v1589 = vor.u32 %v1588, %v1584
  %v1590 = vrot.slane %v1589, 4
  %v1592 = vshll.u32 %v1232, 16
  %v1594 = vrot.slane %v1592, 5
  %v1595 = vsel %vm137, %v1590, %v1594
  %v1597 = vshrl.u32 %v1233, 16
  %v1599 = vrot.slane %v1597, 4
  %v1600 = vshll.u32 %v1233, 16
  %v1602 = vrot.slane %v1600, 5
  %v1603 = vor.u32 %v1599, %v1602
  %v1604 = vrot.slane %v1603, 4
  %v1606 = vshll.u32 %v1234, 16
  %v1608 = vrot.slane %v1606, 5
  %v1609 = vsel %vm137, %v1604, %v1608
  %v1610 = vshrl.u32 %v1234, 16
  %v1612 = vrot.slane %v1610, 4
  %v1613 = vor.u32 %v1612, %v1608
  %v1614 = vrot.slane %v1613, 4
  %v1616 = vshll.u32 %v1235, 16
  %v1618 = vrot.slane %v1616, 5
  %v1619 = vsel %vm137, %v1614, %v1618
  %1620 = vrot.lane.b32.xlu0 %v1249, 16
  %v1621 = vpop.permute.xlu0 %1620
  %1622 = vrot.lane.b32.xlu0 %v1259, 16
  %v1623 = vpop.permute.xlu0 %1622
  %1624 = vrot.lane.b32.xlu0 %v1273, 16
  %v1625 = vpop.permute.xlu0 %1624
  %1626 = vrot.lane.b32.xlu0 %v1283, 16
  %v1627 = vpop.permute.xlu0 %1626
  %1628 = vrot.lane.b32.xlu0 %v1297, 16
  %v1629 = vpop.permute.xlu0 %1628
  %1630 = vrot.lane.b32.xlu0 %v1307, 16
  %v1631 = vpop.permute.xlu0 %1630
  %1632 = vrot.lane.b32.xlu0 %v1321, 16
  %v1633 = vpop.permute.xlu0 %1632
  %1634 = vrot.lane.b32.xlu0 %v1331, 16
  %v1635 = vpop.permute.xlu0 %1634
  %1636 = vrot.lane.b32.xlu0 %v1345, 16
  %v1637 = vpop.permute.xlu0 %1636
  %1638 = vrot.lane.b32.xlu0 %v1355, 16
  %v1639 = vpop.permute.xlu0 %1638
  %1640 = vrot.lane.b32.xlu0 %v1369, 16
  %v1641 = vpop.permute.xlu0 %1640
  %1642 = vrot.lane.b32.xlu0 %v1379, 16
  %v1643 = vpop.permute.xlu0 %1642
  %1644 = vrot.lane.b32.xlu0 %v1393, 16
  %v1645 = vpop.permute.xlu0 %1644
  %1646 = vrot.lane.b32.xlu0 %v1403, 16
  %v1647 = vpop.permute.xlu0 %1646
  %1648 = vrot.lane.b32.xlu0 %v1417, 16
  %v1649 = vpop.permute.xlu0 %1648
  %1650 = vrot.lane.b32.xlu0 %v1427, 16
  %v1651 = vpop.permute.xlu0 %1650
  %1652 = vrot.lane.b32.xlu0 %v1441, 16
  %v1653 = vpop.permute.xlu0 %1652
  %1654 = vrot.lane.b32.xlu0 %v1451, 16
  %v1655 = vpop.permute.xlu0 %1654
  %1656 = vrot.lane.b32.xlu0 %v1465, 16
  %v1657 = vpop.permute.xlu0 %1656
  %1658 = vrot.lane.b32.xlu0 %v1475, 16
  %v1659 = vpop.permute.xlu0 %1658
  %1660 = vrot.lane.b32.xlu0 %v1489, 16
  %v1661 = vpop.permute.xlu0 %1660
  %1662 = vrot.lane.b32.xlu0 %v1499, 16
  %v1663 = vpop.permute.xlu0 %1662
  %1664 = vrot.lane.b32.xlu0 %v1513, 16
  %v1665 = vpop.permute.xlu0 %1664
  %1666 = vrot.lane.b32.xlu0 %v1523, 16
  %v1667 = vpop.permute.xlu0 %1666
  %1668 = vrot.lane.b32.xlu0 %v1537, 16
  %v1669 = vpop.permute.xlu0 %1668
  %1670 = vrot.lane.b32.xlu0 %v1547, 16
  %v1671 = vpop.permute.xlu0 %1670
  %1672 = vrot.lane.b32.xlu0 %v1561, 16
  %v1673 = vpop.permute.xlu0 %1672
  %1674 = vrot.lane.b32.xlu0 %v1571, 16
  %v1675 = vpop.permute.xlu0 %1674
  %1676 = vrot.lane.b32.xlu0 %v1585, 16
  %v1677 = vpop.permute.xlu0 %1676
  %1678 = vrot.lane.b32.xlu0 %v1595, 16
  %v1679 = vpop.permute.xlu0 %1678
  %1680 = vrot.lane.b32.xlu0 %v1609, 16
  %v1681 = vpop.permute.xlu0 %1680
  %1682 = vrot.lane.b32.xlu0 %v1619, 16
  %v1683 = vpop.permute.xlu0 %1682
  %vm1716 = vcmask 158848
  %1717 = vst.msk [vmem:[#allocation2] sm:$0xf] %vm1716, %v1621
  %1718 = vst.msk [vmem:[#allocation2 + $0x4] sm:$0xf] %vm1716, %v1623
  %1719 = vst.msk [vmem:[#allocation2 + $0x8] sm:$0xf] %vm1716, %v1625
  %1720 = vst.msk [vmem:[#allocation2 + $0xc] sm:$0xf] %vm1716, %v1627
  %1721 = vst.msk [vmem:[#allocation2 + $0x10] sm:$0xf] %vm1716, %v1629
  %1722 = vst.msk [vmem:[#allocation2 + $0x14] sm:$0xf] %vm1716, %v1631
  %1723 = vst.msk [vmem:[#allocation2 + $0x18] sm:$0xf] %vm1716, %v1633
  %1724 = vst.msk [vmem:[#allocation2 + $0x1c] sm:$0xf] %vm1716, %v1635
  %1725 = vst.msk [vmem:[#allocation2 + $0x20] sm:$0xf] %vm1716, %v1637
  %1726 = vst.msk [vmem:[#allocation2 + $0x24] sm:$0xf] %vm1716, %v1639
  %1727 = vst.msk [vmem:[#allocation2 + $0x28] sm:$0xf] %vm1716, %v1641
  %1728 = vst.msk [vmem:[#allocation2 + $0x2c] sm:$0xf] %vm1716, %v1643
  %1729 = vst.msk [vmem:[#allocation2 + $0x30] sm:$0xf] %vm1716, %v1645
  %1730 = vst.msk [vmem:[#allocation2 + $0x34] sm:$0xf] %vm1716, %v1647
  %1731 = vst.msk [vmem:[#allocation2 + $0x38] sm:$0xf] %vm1716, %v1649
  %1732 = vst.msk [vmem:[#allocation2 + $0x3c] sm:$0xf] %vm1716, %v1651
  %1733 = vst.msk [vmem:[#allocation2 + $0x40] sm:$0xf] %vm1716, %v1653
  %1734 = vst.msk [vmem:[#allocation2 + $0x44] sm:$0xf] %vm1716, %v1655
  %1735 = vst.msk [vmem:[#allocation2 + $0x48] sm:$0xf] %vm1716, %v1657
  %1736 = vst.msk [vmem:[#allocation2 + $0x4c] sm:$0xf] %vm1716, %v1659
  %1737 = vst.msk [vmem:[#allocation2 + $0x50] sm:$0xf] %vm1716, %v1661
  %1738 = vst.msk [vmem:[#allocation2 + $0x54] sm:$0xf] %vm1716, %v1663
  %1739 = vst.msk [vmem:[#allocation2 + $0x58] sm:$0xf] %vm1716, %v1665
  %1740 = vst.msk [vmem:[#allocation2 + $0x5c] sm:$0xf] %vm1716, %v1667
  %1741 = vst.msk [vmem:[#allocation2 + $0x60] sm:$0xf] %vm1716, %v1669
  %1742 = vst.msk [vmem:[#allocation2 + $0x64] sm:$0xf] %vm1716, %v1671
  %1743 = vst.msk [vmem:[#allocation2 + $0x68] sm:$0xf] %vm1716, %v1673
  %1744 = vst.msk [vmem:[#allocation2 + $0x6c] sm:$0xf] %vm1716, %v1675
  %1745 = vst.msk [vmem:[#allocation2 + $0x70] sm:$0xf] %vm1716, %v1677
  %1746 = vst.msk [vmem:[#allocation2 + $0x74] sm:$0xf] %vm1716, %v1679
  %1747 = vst.msk [vmem:[#allocation2 + $0x78] sm:$0xf] %vm1716, %v1681
  %1748 = vst.msk [vmem:[#allocation2 + $0x7c] sm:$0xf] %vm1716, %v1683
  %v1749 = vld [vmem:[%s994] sm:$0xe]
  %v1750 = vld [vmem:[%s994 + $0x4] sm:$0xf]
  %v1751 = vld [vmem:[%s994 + $0x8] sm:$0x1]
  %v1752 = vld [vmem:[%s994 + $0xc] sm:$0xe]
  %v1753 = vld [vmem:[%s994 + $0x10] sm:$0xf]
  %v1754 = vld [vmem:[%s994 + $0x14] sm:$0x1]
  %v1755 = vld [vmem:[%s994 + $0x18] sm:$0xe]
  %v1756 = vld [vmem:[%s994 + $0x1c] sm:$0xf]
  %v1757 = vld [vmem:[%s994 + $0x20] sm:$0x1]
  %v1758 = vld [vmem:[%s994 + $0x24] sm:$0xe]
  %v1759 = vld [vmem:[%s994 + $0x28] sm:$0xf]
  %v1760 = vld [vmem:[%s994 + $0x2c] sm:$0x1]
  %v1761 = vld [vmem:[%s994 + $0x30] sm:$0xe]
  %v1762 = vld [vmem:[%s994 + $0x34] sm:$0xf]
  %v1763 = vld [vmem:[%s994 + $0x38] sm:$0x1]
  %v1764 = vld [vmem:[%s994 + $0x3c] sm:$0xe]
  %v1765 = vld [vmem:[%s994 + $0x40] sm:$0xf]
  %v1766 = vld [vmem:[%s994 + $0x44] sm:$0x1]
  %v1767 = vld [vmem:[%s994 + $0x48] sm:$0xe]
  %v1768 = vld [vmem:[%s994 + $0x4c] sm:$0xf]
  %v1769 = vld [vmem:[%s994 + $0x50] sm:$0x1]
  %v1770 = vld [vmem:[%s994 + $0x54] sm:$0xe]
  %v1771 = vld [vmem:[%s994 + $0x58] sm:$0xf]
  %v1772 = vld [vmem:[%s994 + $0x5c] sm:$0x1]
  %v1773 = vld [vmem:[%s994 + $0x60] sm:$0xe]
  %v1774 = vld [vmem:[%s994 + $0x64] sm:$0xf]
  %v1775 = vld [vmem:[%s994 + $0x68] sm:$0x1]
  %v1776 = vld [vmem:[%s994 + $0x6c] sm:$0xe]
  %v1777 = vld [vmem:[%s994 + $0x70] sm:$0xf]
  %v1778 = vld [vmem:[%s994 + $0x74] sm:$0x1]
  %v1779 = vld [vmem:[%s994 + $0x78] sm:$0xe]
  %v1780 = vld [vmem:[%s994 + $0x7c] sm:$0xf]
  %v1781 = vld [vmem:[%s994 + $0x80] sm:$0x1]
  %v1782 = vld [vmem:[%s994 + $0x84] sm:$0xe]
  %v1783 = vld [vmem:[%s994 + $0x88] sm:$0xf]
  %v1784 = vld [vmem:[%s994 + $0x8c] sm:$0x1]
  %v1785 = vld [vmem:[%s994 + $0x90] sm:$0xe]
  %v1786 = vld [vmem:[%s994 + $0x94] sm:$0xf]
  %v1787 = vld [vmem:[%s994 + $0x98] sm:$0x1]
  %v1788 = vld [vmem:[%s994 + $0x9c] sm:$0xe]
  %v1789 = vld [vmem:[%s994 + $0xa0] sm:$0xf]
  %v1790 = vld [vmem:[%s994 + $0xa4] sm:$0x1]
  %v1791 = vld [vmem:[%s994 + $0xa8] sm:$0xe]
  %v1792 = vld [vmem:[%s994 + $0xac] sm:$0xf]
  %v1793 = vld [vmem:[%s994 + $0xb0] sm:$0x1]
  %v1794 = vld [vmem:[%s994 + $0xb4] sm:$0xe]
  %v1795 = vld [vmem:[%s994 + $0xb8] sm:$0xf]
  %v1796 = vld [vmem:[%s994 + $0xbc] sm:$0x1]
  %v1845 = vrot.slane %v1749, 5
  %v1846 = vrot.slane %v1845, 4
  %v1847 = vrot.slane %v1750, 5
  %v1848 = vsel %vm749, %v1846, %v1847
  %v1849 = vrot.slane %v1847, 4
  %v1850 = vrot.slane %v1751, 5
  %v1851 = vsel %vm749, %v1849, %v1850
  %v1852 = vrot.slane %v1752, 5
  %v1853 = vrot.slane %v1852, 4
  %v1854 = vrot.slane %v1753, 5
  %v1855 = vsel %vm749, %v1853, %v1854
  %v1856 = vrot.slane %v1854, 4
  %v1857 = vrot.slane %v1754, 5
  %v1858 = vsel %vm749, %v1856, %v1857
  %v1859 = vrot.slane %v1755, 5
  %v1860 = vrot.slane %v1859, 4
  %v1861 = vrot.slane %v1756, 5
  %v1862 = vsel %vm749, %v1860, %v1861
  %v1863 = vrot.slane %v1861, 4
  %v1864 = vrot.slane %v1757, 5
  %v1865 = vsel %vm749, %v1863, %v1864
  %v1866 = vrot.slane %v1758, 5
  %v1867 = vrot.slane %v1866, 4
  %v1868 = vrot.slane %v1759, 5
  %v1869 = vsel %vm749, %v1867, %v1868
  %v1870 = vrot.slane %v1868, 4
  %v1871 = vrot.slane %v1760, 5
  %v1872 = vsel %vm749, %v1870, %v1871
  %v1873 = vrot.slane %v1761, 5
  %v1874 = vrot.slane %v1873, 4
  %v1875 = vrot.slane %v1762, 5
  %v1876 = vsel %vm749, %v1874, %v1875
  %v1877 = vrot.slane %v1875, 4
  %v1878 = vrot.slane %v1763, 5
  %v1879 = vsel %vm749, %v1877, %v1878
  %v1880 = vrot.slane %v1764, 5
  %v1881 = vrot.slane %v1880, 4
  %v1882 = vrot.slane %v1765, 5
  %v1883 = vsel %vm749, %v1881, %v1882
  %v1884 = vrot.slane %v1882, 4
  %v1885 = vrot.slane %v1766, 5
  %v1886 = vsel %vm749, %v1884, %v1885
  %v1887 = vrot.slane %v1767, 5
  %v1888 = vrot.slane %v1887, 4
  %v1889 = vrot.slane %v1768, 5
  %v1890 = vsel %vm749, %v1888, %v1889
  %v1891 = vrot.slane %v1889, 4
  %v1892 = vrot.slane %v1769, 5
  %v1893 = vsel %vm749, %v1891, %v1892
  %v1894 = vrot.slane %v1770, 5
  %v1895 = vrot.slane %v1894, 4
  %v1896 = vrot.slane %v1771, 5
  %v1897 = vsel %vm749, %v1895, %v1896
  %v1898 = vrot.slane %v1896, 4
  %v1899 = vrot.slane %v1772, 5
  %v1900 = vsel %vm749, %v1898, %v1899
  %v1901 = vrot.slane %v1773, 5
  %v1902 = vrot.slane %v1901, 4
  %v1903 = vrot.slane %v1774, 5
  %v1904 = vsel %vm749, %v1902, %v1903
  %v1905 = vrot.slane %v1903, 4
  %v1906 = vrot.slane %v1775, 5
  %v1907 = vsel %vm749, %v1905, %v1906
  %v1908 = vrot.slane %v1776, 5
  %v1909 = vrot.slane %v1908, 4
  %v1910 = vrot.slane %v1777, 5
  %v1911 = vsel %vm749, %v1909, %v1910
  %v1912 = vrot.slane %v1910, 4
  %v1913 = vrot.slane %v1778, 5
  %v1914 = vsel %vm749, %v1912, %v1913
  %v1915 = vrot.slane %v1779, 5
  %v1916 = vrot.slane %v1915, 4
  %v1917 = vrot.slane %v1780, 5
  %v1918 = vsel %vm749, %v1916, %v1917
  %v1919 = vrot.slane %v1917, 4
  %v1920 = vrot.slane %v1781, 5
  %v1921 = vsel %vm749, %v1919, %v1920
  %v1922 = vrot.slane %v1782, 5
  %v1923 = vrot.slane %v1922, 4
  %v1924 = vrot.slane %v1783, 5
  %v1925 = vsel %vm749, %v1923, %v1924
  %v1926 = vrot.slane %v1924, 4
  %v1927 = vrot.slane %v1784, 5
  %v1928 = vsel %vm749, %v1926, %v1927
  %v1929 = vrot.slane %v1785, 5
  %v1930 = vrot.slane %v1929, 4
  %v1931 = vrot.slane %v1786, 5
  %v1932 = vsel %vm749, %v1930, %v1931
  %v1933 = vrot.slane %v1931, 4
  %v1934 = vrot.slane %v1787, 5
  %v1935 = vsel %vm749, %v1933, %v1934
  %v1936 = vrot.slane %v1788, 5
  %v1937 = vrot.slane %v1936, 4
  %v1938 = vrot.slane %v1789, 5
  %v1939 = vsel %vm749, %v1937, %v1938
  %v1940 = vrot.slane %v1938, 4
  %v1941 = vrot.slane %v1790, 5
  %v1942 = vsel %vm749, %v1940, %v1941
  %v1943 = vrot.slane %v1791, 5
  %v1944 = vrot.slane %v1943, 4
  %v1945 = vrot.slane %v1792, 5
  %v1946 = vsel %vm749, %v1944, %v1945
  %v1947 = vrot.slane %v1945, 4
  %v1948 = vrot.slane %v1793, 5
  %v1949 = vsel %vm749, %v1947, %v1948
  %v1950 = vrot.slane %v1794, 5
  %v1951 = vrot.slane %v1950, 4
  %v1952 = vrot.slane %v1795, 5
  %v1953 = vsel %vm749, %v1951, %v1952
  %v1954 = vrot.slane %v1952, 4
  %v1955 = vrot.slane %v1796, 5
  %v1956 = vsel %vm749, %v1954, %v1955
  %1957 = vrot.lane.b32.xlu0 %v1848, 20
  %v1958 = vpop.permute.xlu0 %1957
  %1959 = vrot.lane.b32.xlu0 %v1851, 20
  %v1960 = vpop.permute.xlu0 %1959
  %1961 = vrot.lane.b32.xlu0 %v1855, 20
  %v1962 = vpop.permute.xlu0 %1961
  %1963 = vrot.lane.b32.xlu0 %v1858, 20
  %v1964 = vpop.permute.xlu0 %1963
  %1965 = vrot.lane.b32.xlu0 %v1862, 20
  %v1966 = vpop.permute.xlu0 %1965
  %1967 = vrot.lane.b32.xlu0 %v1865, 20
  %v1968 = vpop.permute.xlu0 %1967
  %1969 = vrot.lane.b32.xlu0 %v1869, 20
  %v1970 = vpop.permute.xlu0 %1969
  %1971 = vrot.lane.b32.xlu0 %v1872, 20
  %v1972 = vpop.permute.xlu0 %1971
  %1973 = vrot.lane.b32.xlu0 %v1876, 20
  %v1974 = vpop.permute.xlu0 %1973
  %1975 = vrot.lane.b32.xlu0 %v1879, 20
  %v1976 = vpop.permute.xlu0 %1975
  %1977 = vrot.lane.b32.xlu0 %v1883, 20
  %v1978 = vpop.permute.xlu0 %1977
  %1979 = vrot.lane.b32.xlu0 %v1886, 20
  %v1980 = vpop.permute.xlu0 %1979
  %1981 = vrot.lane.b32.xlu0 %v1890, 20
  %v1982 = vpop.permute.xlu0 %1981
  %1983 = vrot.lane.b32.xlu0 %v1893, 20
  %v1984 = vpop.permute.xlu0 %1983
  %1985 = vrot.lane.b32.xlu0 %v1897, 20
  %v1986 = vpop.permute.xlu0 %1985
  %1987 = vrot.lane.b32.xlu0 %v1900, 20
  %v1988 = vpop.permute.xlu0 %1987
  %1989 = vrot.lane.b32.xlu0 %v1904, 20
  %v1990 = vpop.permute.xlu0 %1989
  %1991 = vrot.lane.b32.xlu0 %v1907, 20
  %v1992 = vpop.permute.xlu0 %1991
  %1993 = vrot.lane.b32.xlu0 %v1911, 20
  %v1994 = vpop.permute.xlu0 %1993
  %1995 = vrot.lane.b32.xlu0 %v1914, 20
  %v1996 = vpop.permute.xlu0 %1995
  %1997 = vrot.lane.b32.xlu0 %v1918, 20
  %v1998 = vpop.permute.xlu0 %1997
  %1999 = vrot.lane.b32.xlu0 %v1921, 20
  %v2000 = vpop.permute.xlu0 %1999
  %2001 = vrot.lane.b32.xlu0 %v1925, 20
  %v2002 = vpop.permute.xlu0 %2001
  %2003 = vrot.lane.b32.xlu0 %v1928, 20
  %v2004 = vpop.permute.xlu0 %2003
  %2005 = vrot.lane.b32.xlu0 %v1932, 20
  %v2006 = vpop.permute.xlu0 %2005
  %2007 = vrot.lane.b32.xlu0 %v1935, 20
  %v2008 = vpop.permute.xlu0 %2007
  %2009 = vrot.lane.b32.xlu0 %v1939, 20
  %v2010 = vpop.permute.xlu0 %2009
  %2011 = vrot.lane.b32.xlu0 %v1942, 20
  %v2012 = vpop.permute.xlu0 %2011
  %2013 = vrot.lane.b32.xlu0 %v1946, 20
  %v2014 = vpop.permute.xlu0 %2013
  %2015 = vrot.lane.b32.xlu0 %v1949, 20
  %v2016 = vpop.permute.xlu0 %2015
  %2017 = vrot.lane.b32.xlu0 %v1953, 20
  %v2018 = vpop.permute.xlu0 %2017
  %2019 = vrot.lane.b32.xlu0 %v1956, 20
  %v2020 = vpop.permute.xlu0 %2019
  %vm2053 = vcmask 191648
  %2054 = vst.msk [vmem:[#allocation2] sm:$0xf] %vm2053, %v1958
  %2055 = vst.msk [vmem:[#allocation2 + $0x4] sm:$0xf] %vm2053, %v1960
  %2056 = vst.msk [vmem:[#allocation2 + $0x8] sm:$0xf] %vm2053, %v1962
  %2057 = vst.msk [vmem:[#allocation2 + $0xc] sm:$0xf] %vm2053, %v1964
  %2058 = vst.msk [vmem:[#allocation2 + $0x10] sm:$0xf] %vm2053, %v1966
  %2059 = vst.msk [vmem:[#allocation2 + $0x14] sm:$0xf] %vm2053, %v1968
  %2060 = vst.msk [vmem:[#allocation2 + $0x18] sm:$0xf] %vm2053, %v1970
  %2061 = vst.msk [vmem:[#allocation2 + $0x1c] sm:$0xf] %vm2053, %v1972
  %2062 = vst.msk [vmem:[#allocation2 + $0x20] sm:$0xf] %vm2053, %v1974
  %2063 = vst.msk [vmem:[#allocation2 + $0x24] sm:$0xf] %vm2053, %v1976
  %2064 = vst.msk [vmem:[#allocation2 + $0x28] sm:$0xf] %vm2053, %v1978
  %2065 = vst.msk [vmem:[#allocation2 + $0x2c] sm:$0xf] %vm2053, %v1980
  %2066 = vst.msk [vmem:[#allocation2 + $0x30] sm:$0xf] %vm2053, %v1982
  %2067 = vst.msk [vmem:[#allocation2 + $0x34] sm:$0xf] %vm2053, %v1984
  %2068 = vst.msk [vmem:[#allocation2 + $0x38] sm:$0xf] %vm2053, %v1986
  %2069 = vst.msk [vmem:[#allocation2 + $0x3c] sm:$0xf] %vm2053, %v1988
  %2070 = vst.msk [vmem:[#allocation2 + $0x40] sm:$0xf] %vm2053, %v1990
  %2071 = vst.msk [vmem:[#allocation2 + $0x44] sm:$0xf] %vm2053, %v1992
  %2072 = vst.msk [vmem:[#allocation2 + $0x48] sm:$0xf] %vm2053, %v1994
  %2073 = vst.msk [vmem:[#allocation2 + $0x4c] sm:$0xf] %vm2053, %v1996
  %2074 = vst.msk [vmem:[#allocation2 + $0x50] sm:$0xf] %vm2053, %v1998
  %2075 = vst.msk [vmem:[#allocation2 + $0x54] sm:$0xf] %vm2053, %v2000
  %2076 = vst.msk [vmem:[#allocation2 + $0x58] sm:$0xf] %vm2053, %v2002
  %2077 = vst.msk [vmem:[#allocation2 + $0x5c] sm:$0xf] %vm2053, %v2004
  %2078 = vst.msk [vmem:[#allocation2 + $0x60] sm:$0xf] %vm2053, %v2006
  %2079 = vst.msk [vmem:[#allocation2 + $0x64] sm:$0xf] %vm2053, %v2008
  %2080 = vst.msk [vmem:[#allocation2 + $0x68] sm:$0xf] %vm2053, %v2010
  %2081 = vst.msk [vmem:[#allocation2 + $0x6c] sm:$0xf] %vm2053, %v2012
  %2082 = vst.msk [vmem:[#allocation2 + $0x70] sm:$0xf] %vm2053, %v2014
  %2083 = vst.msk [vmem:[#allocation2 + $0x74] sm:$0xf] %vm2053, %v2016
  %2084 = vst.msk [vmem:[#allocation2 + $0x78] sm:$0xf] %vm2053, %v2018
  %2085 = vst.msk [vmem:[#allocation2 + $0x7c] sm:$0xf] %vm2053, %v2020
  %s2086 = sadd.s32 %s18, 2
  %s2087 = smul.u32 %s2086, 3
  %s2088 = smul.addr %s2087, 4
  %s2089 = scalar_lea.vmem %s0, %s2088
  %v2090 = vld [vmem:[%s2089] sm:$0xf]
  %v2091 = vld [vmem:[%s2089 + $0x4] sm:$0xf]
  %v2092 = vld [vmem:[%s2089 + $0xc] sm:$0xf]
  %v2093 = vld [vmem:[%s2089 + $0x10] sm:$0xf]
  %v2094 = vld [vmem:[%s2089 + $0x18] sm:$0xf]
  %v2095 = vld [vmem:[%s2089 + $0x1c] sm:$0xf]
  %v2096 = vld [vmem:[%s2089 + $0x24] sm:$0xf]
  %v2097 = vld [vmem:[%s2089 + $0x28] sm:$0xf]
  %v2098 = vld [vmem:[%s2089 + $0x30] sm:$0xf]
  %v2099 = vld [vmem:[%s2089 + $0x34] sm:$0xf]
  %v2100 = vld [vmem:[%s2089 + $0x3c] sm:$0xf]
  %v2101 = vld [vmem:[%s2089 + $0x40] sm:$0xf]
  %v2102 = vld [vmem:[%s2089 + $0x48] sm:$0xf]
  %v2103 = vld [vmem:[%s2089 + $0x4c] sm:$0xf]
  %v2104 = vld [vmem:[%s2089 + $0x54] sm:$0xf]
  %v2105 = vld [vmem:[%s2089 + $0x58] sm:$0xf]
  %v2106 = vld [vmem:[%s2089 + $0x60] sm:$0xf]
  %v2107 = vld [vmem:[%s2089 + $0x64] sm:$0xf]
  %v2108 = vld [vmem:[%s2089 + $0x6c] sm:$0xf]
  %v2109 = vld [vmem:[%s2089 + $0x70] sm:$0xf]
  %v2110 = vld [vmem:[%s2089 + $0x78] sm:$0xf]
  %v2111 = vld [vmem:[%s2089 + $0x7c] sm:$0xf]
  %v2112 = vld [vmem:[%s2089 + $0x84] sm:$0xf]
  %v2113 = vld [vmem:[%s2089 + $0x88] sm:$0xf]
  %v2114 = vld [vmem:[%s2089 + $0x90] sm:$0xf]
  %v2115 = vld [vmem:[%s2089 + $0x94] sm:$0xf]
  %v2116 = vld [vmem:[%s2089 + $0x9c] sm:$0xf]
  %v2117 = vld [vmem:[%s2089 + $0xa0] sm:$0xf]
  %v2118 = vld [vmem:[%s2089 + $0xa8] sm:$0xf]
  %v2119 = vld [vmem:[%s2089 + $0xac] sm:$0xf]
  %v2120 = vld [vmem:[%s2089 + $0xb4] sm:$0xf]
  %v2121 = vld [vmem:[%s2089 + $0xb8] sm:$0xf]
  %2154 = vrot.lane.b32.xlu0 %v2090, 24
  %v2155 = vpop.permute.xlu0 %2154
  %2156 = vrot.lane.b32.xlu0 %v2091, 24
  %v2157 = vpop.permute.xlu0 %2156
  %2158 = vrot.lane.b32.xlu0 %v2092, 24
  %v2159 = vpop.permute.xlu0 %2158
  %2160 = vrot.lane.b32.xlu0 %v2093, 24
  %v2161 = vpop.permute.xlu0 %2160
  %2162 = vrot.lane.b32.xlu0 %v2094, 24
  %v2163 = vpop.permute.xlu0 %2162
  %2164 = vrot.lane.b32.xlu0 %v2095, 24
  %v2165 = vpop.permute.xlu0 %2164
  %2166 = vrot.lane.b32.xlu0 %v2096, 24
  %v2167 = vpop.permute.xlu0 %2166
  %2168 = vrot.lane.b32.xlu0 %v2097, 24
  %v2169 = vpop.permute.xlu0 %2168
  %2170 = vrot.lane.b32.xlu0 %v2098, 24
  %v2171 = vpop.permute.xlu0 %2170
  %2172 = vrot.lane.b32.xlu0 %v2099, 24
  %v2173 = vpop.permute.xlu0 %2172
  %2174 = vrot.lane.b32.xlu0 %v2100, 24
  %v2175 = vpop.permute.xlu0 %2174
  %2176 = vrot.lane.b32.xlu0 %v2101, 24
  %v2177 = vpop.permute.xlu0 %2176
  %2178 = vrot.lane.b32.xlu0 %v2102, 24
  %v2179 = vpop.permute.xlu0 %2178
  %2180 = vrot.lane.b32.xlu0 %v2103, 24
  %v2181 = vpop.permute.xlu0 %2180
  %2182 = vrot.lane.b32.xlu0 %v2104, 24
  %v2183 = vpop.permute.xlu0 %2182
  %2184 = vrot.lane.b32.xlu0 %v2105, 24
  %v2185 = vpop.permute.xlu0 %2184
  %2186 = vrot.lane.b32.xlu0 %v2106, 24
  %v2187 = vpop.permute.xlu0 %2186
  %2188 = vrot.lane.b32.xlu0 %v2107, 24
  %v2189 = vpop.permute.xlu0 %2188
  %2190 = vrot.lane.b32.xlu0 %v2108, 24
  %v2191 = vpop.permute.xlu0 %2190
  %2192 = vrot.lane.b32.xlu0 %v2109, 24
  %v2193 = vpop.permute.xlu0 %2192
  %2194 = vrot.lane.b32.xlu0 %v2110, 24
  %v2195 = vpop.permute.xlu0 %2194
  %2196 = vrot.lane.b32.xlu0 %v2111, 24
  %v2197 = vpop.permute.xlu0 %2196
  %2198 = vrot.lane.b32.xlu0 %v2112, 24
  %v2199 = vpop.permute.xlu0 %2198
  %2200 = vrot.lane.b32.xlu0 %v2113, 24
  %v2201 = vpop.permute.xlu0 %2200
  %2202 = vrot.lane.b32.xlu0 %v2114, 24
  %v2203 = vpop.permute.xlu0 %2202
  %2204 = vrot.lane.b32.xlu0 %v2115, 24
  %v2205 = vpop.permute.xlu0 %2204
  %2206 = vrot.lane.b32.xlu0 %v2116, 24
  %v2207 = vpop.permute.xlu0 %2206
  %2208 = vrot.lane.b32.xlu0 %v2117, 24
  %v2209 = vpop.permute.xlu0 %2208
  %2210 = vrot.lane.b32.xlu0 %v2118, 24
  %v2211 = vpop.permute.xlu0 %2210
  %2212 = vrot.lane.b32.xlu0 %v2119, 24
  %v2213 = vpop.permute.xlu0 %2212
  %2214 = vrot.lane.b32.xlu0 %v2120, 24
  %v2215 = vpop.permute.xlu0 %2214
  %2216 = vrot.lane.b32.xlu0 %v2121, 24
  %v2217 = vpop.permute.xlu0 %2216
  %vm2250 = vcmask 224448
  %2251 = vst.msk [vmem:[#allocation2] sm:$0xf] %vm2250, %v2155
  %2252 = vst.msk [vmem:[#allocation2 + $0x4] sm:$0xf] %vm2250, %v2157
  %2253 = vst.msk [vmem:[#allocation2 + $0x8] sm:$0xf] %vm2250, %v2159
  %2254 = vst.msk [vmem:[#allocation2 + $0xc] sm:$0xf] %vm2250, %v2161
  %2255 = vst.msk [vmem:[#allocation2 + $0x10] sm:$0xf] %vm2250, %v2163
  %2256 = vst.msk [vmem:[#allocation2 + $0x14] sm:$0xf] %vm2250, %v2165
  %2257 = vst.msk [vmem:[#allocation2 + $0x18] sm:$0xf] %vm2250, %v2167
  %2258 = vst.msk [vmem:[#allocation2 + $0x1c] sm:$0xf] %vm2250, %v2169
  %2259 = vst.msk [vmem:[#allocation2 + $0x20] sm:$0xf] %vm2250, %v2171
  %2260 = vst.msk [vmem:[#allocation2 + $0x24] sm:$0xf] %vm2250, %v2173
  %2261 = vst.msk [vmem:[#allocation2 + $0x28] sm:$0xf] %vm2250, %v2175
  %2262 = vst.msk [vmem:[#allocation2 + $0x2c] sm:$0xf] %vm2250, %v2177
  %2263 = vst.msk [vmem:[#allocation2 + $0x30] sm:$0xf] %vm2250, %v2179
  %2264 = vst.msk [vmem:[#allocation2 + $0x34] sm:$0xf] %vm2250, %v2181
  %2265 = vst.msk [vmem:[#allocation2 + $0x38] sm:$0xf] %vm2250, %v2183
  %2266 = vst.msk [vmem:[#allocation2 + $0x3c] sm:$0xf] %vm2250, %v2185
  %2267 = vst.msk [vmem:[#allocation2 + $0x40] sm:$0xf] %vm2250, %v2187
  %2268 = vst.msk [vmem:[#allocation2 + $0x44] sm:$0xf] %vm2250, %v2189
  %2269 = vst.msk [vmem:[#allocation2 + $0x48] sm:$0xf] %vm2250, %v2191
  %2270 = vst.msk [vmem:[#allocation2 + $0x4c] sm:$0xf] %vm2250, %v2193
  %2271 = vst.msk [vmem:[#allocation2 + $0x50] sm:$0xf] %vm2250, %v2195
  %2272 = vst.msk [vmem:[#allocation2 + $0x54] sm:$0xf] %vm2250, %v2197
  %2273 = vst.msk [vmem:[#allocation2 + $0x58] sm:$0xf] %vm2250, %v2199
  %2274 = vst.msk [vmem:[#allocation2 + $0x5c] sm:$0xf] %vm2250, %v2201
  %2275 = vst.msk [vmem:[#allocation2 + $0x60] sm:$0xf] %vm2250, %v2203
  %2276 = vst.msk [vmem:[#allocation2 + $0x64] sm:$0xf] %vm2250, %v2205
  %2277 = vst.msk [vmem:[#allocation2 + $0x68] sm:$0xf] %vm2250, %v2207
  %2278 = vst.msk [vmem:[#allocation2 + $0x6c] sm:$0xf] %vm2250, %v2209
  %2279 = vst.msk [vmem:[#allocation2 + $0x70] sm:$0xf] %vm2250, %v2211
  %2280 = vst.msk [vmem:[#allocation2 + $0x74] sm:$0xf] %vm2250, %v2213
  %2281 = vst.msk [vmem:[#allocation2 + $0x78] sm:$0xf] %vm2250, %v2215
  %2282 = vst.msk [vmem:[#allocation2 + $0x7c] sm:$0xf] %vm2250, %v2217
  %v2283 = vld [vmem:[%s2089] sm:$0xf]
  %v2284 = vld [vmem:[%s2089 + $0x4] sm:$0xf]
  %v2285 = vld [vmem:[%s2089 + $0x8] sm:$0x1]
  %v2286 = vld [vmem:[%s2089 + $0xc] sm:$0xf]
  %v2287 = vld [vmem:[%s2089 + $0x10] sm:$0xf]
  %v2288 = vld [vmem:[%s2089 + $0x14] sm:$0x1]
  %v2289 = vld [vmem:[%s2089 + $0x18] sm:$0xf]
  %v2290 = vld [vmem:[%s2089 + $0x1c] sm:$0xf]
  %v2291 = vld [vmem:[%s2089 + $0x20] sm:$0x1]
  %v2292 = vld [vmem:[%s2089 + $0x24] sm:$0xf]
  %v2293 = vld [vmem:[%s2089 + $0x28] sm:$0xf]
  %v2294 = vld [vmem:[%s2089 + $0x2c] sm:$0x1]
  %v2295 = vld [vmem:[%s2089 + $0x30] sm:$0xf]
  %v2296 = vld [vmem:[%s2089 + $0x34] sm:$0xf]
  %v2297 = vld [vmem:[%s2089 + $0x38] sm:$0x1]
  %v2298 = vld [vmem:[%s2089 + $0x3c] sm:$0xf]
  %v2299 = vld [vmem:[%s2089 + $0x40] sm:$0xf]
  %v2300 = vld [vmem:[%s2089 + $0x44] sm:$0x1]
  %v2301 = vld [vmem:[%s2089 + $0x48] sm:$0xf]
  %v2302 = vld [vmem:[%s2089 + $0x4c] sm:$0xf]
  %v2303 = vld [vmem:[%s2089 + $0x50] sm:$0x1]
  %v2304 = vld [vmem:[%s2089 + $0x54] sm:$0xf]
  %v2305 = vld [vmem:[%s2089 + $0x58] sm:$0xf]
  %v2306 = vld [vmem:[%s2089 + $0x5c] sm:$0x1]
  %v2307 = vld [vmem:[%s2089 + $0x60] sm:$0xf]
  %v2308 = vld [vmem:[%s2089 + $0x64] sm:$0xf]
  %v2309 = vld [vmem:[%s2089 + $0x68] sm:$0x1]
  %v2310 = vld [vmem:[%s2089 + $0x6c] sm:$0xf]
  %v2311 = vld [vmem:[%s2089 + $0x70] sm:$0xf]
  %v2312 = vld [vmem:[%s2089 + $0x74] sm:$0x1]
  %v2313 = vld [vmem:[%s2089 + $0x78] sm:$0xf]
  %v2314 = vld [vmem:[%s2089 + $0x7c] sm:$0xf]
  %v2315 = vld [vmem:[%s2089 + $0x80] sm:$0x1]
  %v2316 = vld [vmem:[%s2089 + $0x84] sm:$0xf]
  %v2317 = vld [vmem:[%s2089 + $0x88] sm:$0xf]
  %v2318 = vld [vmem:[%s2089 + $0x8c] sm:$0x1]
  %v2319 = vld [vmem:[%s2089 + $0x90] sm:$0xf]
  %v2320 = vld [vmem:[%s2089 + $0x94] sm:$0xf]
  %v2321 = vld [vmem:[%s2089 + $0x98] sm:$0x1]
  %v2322 = vld [vmem:[%s2089 + $0x9c] sm:$0xf]
  %v2323 = vld [vmem:[%s2089 + $0xa0] sm:$0xf]
  %v2324 = vld [vmem:[%s2089 + $0xa4] sm:$0x1]
  %v2325 = vld [vmem:[%s2089 + $0xa8] sm:$0xf]
  %v2326 = vld [vmem:[%s2089 + $0xac] sm:$0xf]
  %v2327 = vld [vmem:[%s2089 + $0xb0] sm:$0x1]
  %v2328 = vld [vmem:[%s2089 + $0xb4] sm:$0xf]
  %v2329 = vld [vmem:[%s2089 + $0xb8] sm:$0xf]
  %v2330 = vld [vmem:[%s2089 + $0xbc] sm:$0x1]
  %v2332 = vshrl.u32 %v2283, 16
  %v2334 = vrot.slane %v2332, 4
  %v2335 = vshll.u32 %v2283, 16
  %v2337 = vrot.slane %v2335, 5
  %v2338 = vor.u32 %v2334, %v2337
  %v2339 = vrot.slane %v2338, 4
  %v2341 = vshll.u32 %v2284, 16
  %v2343 = vrot.slane %v2341, 5
  %v2344 = vsel %vm137, %v2339, %v2343
  %v2345 = vshrl.u32 %v2284, 16
  %v2347 = vrot.slane %v2345, 4
  %v2348 = vor.u32 %v2347, %v2343
  %v2349 = vrot.slane %v2348, 4
  %v2351 = vshll.u32 %v2285, 16
  %v2353 = vrot.slane %v2351, 5
  %v2354 = vsel %vm137, %v2349, %v2353
  %v2356 = vshrl.u32 %v2286, 16
  %v2358 = vrot.slane %v2356, 4
  %v2359 = vshll.u32 %v2286, 16
  %v2361 = vrot.slane %v2359, 5
  %v2362 = vor.u32 %v2358, %v2361
  %v2363 = vrot.slane %v2362, 4
  %v2365 = vshll.u32 %v2287, 16
  %v2367 = vrot.slane %v2365, 5
  %v2368 = vsel %vm137, %v2363, %v2367
  %v2369 = vshrl.u32 %v2287, 16
  %v2371 = vrot.slane %v2369, 4
  %v2372 = vor.u32 %v2371, %v2367
  %v2373 = vrot.slane %v2372, 4
  %v2375 = vshll.u32 %v2288, 16
  %v2377 = vrot.slane %v2375, 5
  %v2378 = vsel %vm137, %v2373, %v2377
  %v2380 = vshrl.u32 %v2289, 16
  %v2382 = vrot.slane %v2380, 4
  %v2383 = vshll.u32 %v2289, 16
  %v2385 = vrot.slane %v2383, 5
  %v2386 = vor.u32 %v2382, %v2385
  %v2387 = vrot.slane %v2386, 4
  %v2389 = vshll.u32 %v2290, 16
  %v2391 = vrot.slane %v2389, 5
  %v2392 = vsel %vm137, %v2387, %v2391
  %v2393 = vshrl.u32 %v2290, 16
  %v2395 = vrot.slane %v2393, 4
  %v2396 = vor.u32 %v2395, %v2391
  %v2397 = vrot.slane %v2396, 4
  %v2399 = vshll.u32 %v2291, 16
  %v2401 = vrot.slane %v2399, 5
  %v2402 = vsel %vm137, %v2397, %v2401
  %v2404 = vshrl.u32 %v2292, 16
  %v2406 = vrot.slane %v2404, 4
  %v2407 = vshll.u32 %v2292, 16
  %v2409 = vrot.slane %v2407, 5
  %v2410 = vor.u32 %v2406, %v2409
  %v2411 = vrot.slane %v2410, 4
  %v2413 = vshll.u32 %v2293, 16
  %v2415 = vrot.slane %v2413, 5
  %v2416 = vsel %vm137, %v2411, %v2415
  %v2417 = vshrl.u32 %v2293, 16
  %v2419 = vrot.slane %v2417, 4
  %v2420 = vor.u32 %v2419, %v2415
  %v2421 = vrot.slane %v2420, 4
  %v2423 = vshll.u32 %v2294, 16
  %v2425 = vrot.slane %v2423, 5
  %v2426 = vsel %vm137, %v2421, %v2425
  %v2428 = vshrl.u32 %v2295, 16
  %v2430 = vrot.slane %v2428, 4
  %v2431 = vshll.u32 %v2295, 16
  %v2433 = vrot.slane %v2431, 5
  %v2434 = vor.u32 %v2430, %v2433
  %v2435 = vrot.slane %v2434, 4
  %v2437 = vshll.u32 %v2296, 16
  %v2439 = vrot.slane %v2437, 5
  %v2440 = vsel %vm137, %v2435, %v2439
  %v2441 = vshrl.u32 %v2296, 16
  %v2443 = vrot.slane %v2441, 4
  %v2444 = vor.u32 %v2443, %v2439
  %v2445 = vrot.slane %v2444, 4
  %v2447 = vshll.u32 %v2297, 16
  %v2449 = vrot.slane %v2447, 5
  %v2450 = vsel %vm137, %v2445, %v2449
  %v2452 = vshrl.u32 %v2298, 16
  %v2454 = vrot.slane %v2452, 4
  %v2455 = vshll.u32 %v2298, 16
  %v2457 = vrot.slane %v2455, 5
  %v2458 = vor.u32 %v2454, %v2457
  %v2459 = vrot.slane %v2458, 4
  %v2461 = vshll.u32 %v2299, 16
  %v2463 = vrot.slane %v2461, 5
  %v2464 = vsel %vm137, %v2459, %v2463
  %v2465 = vshrl.u32 %v2299, 16
  %v2467 = vrot.slane %v2465, 4
  %v2468 = vor.u32 %v2467, %v2463
  %v2469 = vrot.slane %v2468, 4
  %v2471 = vshll.u32 %v2300, 16
  %v2473 = vrot.slane %v2471, 5
  %v2474 = vsel %vm137, %v2469, %v2473
  %v2476 = vshrl.u32 %v2301, 16
  %v2478 = vrot.slane %v2476, 4
  %v2479 = vshll.u32 %v2301, 16
  %v2481 = vrot.slane %v2479, 5
  %v2482 = vor.u32 %v2478, %v2481
  %v2483 = vrot.slane %v2482, 4
  %v2485 = vshll.u32 %v2302, 16
  %v2487 = vrot.slane %v2485, 5
  %v2488 = vsel %vm137, %v2483, %v2487
  %v2489 = vshrl.u32 %v2302, 16
  %v2491 = vrot.slane %v2489, 4
  %v2492 = vor.u32 %v2491, %v2487
  %v2493 = vrot.slane %v2492, 4
  %v2495 = vshll.u32 %v2303, 16
  %v2497 = vrot.slane %v2495, 5
  %v2498 = vsel %vm137, %v2493, %v2497
  %v2500 = vshrl.u32 %v2304, 16
  %v2502 = vrot.slane %v2500, 4
  %v2503 = vshll.u32 %v2304, 16
  %v2505 = vrot.slane %v2503, 5
  %v2506 = vor.u32 %v2502, %v2505
  %v2507 = vrot.slane %v2506, 4
  %v2509 = vshll.u32 %v2305, 16
  %v2511 = vrot.slane %v2509, 5
  %v2512 = vsel %vm137, %v2507, %v2511
  %v2513 = vshrl.u32 %v2305, 16
  %v2515 = vrot.slane %v2513, 4
  %v2516 = vor.u32 %v2515, %v2511
  %v2517 = vrot.slane %v2516, 4
  %v2519 = vshll.u32 %v2306, 16
  %v2521 = vrot.slane %v2519, 5
  %v2522 = vsel %vm137, %v2517, %v2521
  %v2524 = vshrl.u32 %v2307, 16
  %v2526 = vrot.slane %v2524, 4
  %v2527 = vshll.u32 %v2307, 16
  %v2529 = vrot.slane %v2527, 5
  %v2530 = vor.u32 %v2526, %v2529
  %v2531 = vrot.slane %v2530, 4
  %v2533 = vshll.u32 %v2308, 16
  %v2535 = vrot.slane %v2533, 5
  %v2536 = vsel %vm137, %v2531, %v2535
  %v2537 = vshrl.u32 %v2308, 16
  %v2539 = vrot.slane %v2537, 4
  %v2540 = vor.u32 %v2539, %v2535
  %v2541 = vrot.slane %v2540, 4
  %v2543 = vshll.u32 %v2309, 16
  %v2545 = vrot.slane %v2543, 5
  %v2546 = vsel %vm137, %v2541, %v2545
  %v2548 = vshrl.u32 %v2310, 16
  %v2550 = vrot.slane %v2548, 4
  %v2551 = vshll.u32 %v2310, 16
  %v2553 = vrot.slane %v2551, 5
  %v2554 = vor.u32 %v2550, %v2553
  %v2555 = vrot.slane %v2554, 4
  %v2557 = vshll.u32 %v2311, 16
  %v2559 = vrot.slane %v2557, 5
  %v2560 = vsel %vm137, %v2555, %v2559
  %v2561 = vshrl.u32 %v2311, 16
  %v2563 = vrot.slane %v2561, 4
  %v2564 = vor.u32 %v2563, %v2559
  %v2565 = vrot.slane %v2564, 4
  %v2567 = vshll.u32 %v2312, 16
  %v2569 = vrot.slane %v2567, 5
  %v2570 = vsel %vm137, %v2565, %v2569
  %v2572 = vshrl.u32 %v2313, 16
  %v2574 = vrot.slane %v2572, 4
  %v2575 = vshll.u32 %v2313, 16
  %v2577 = vrot.slane %v2575, 5
  %v2578 = vor.u32 %v2574, %v2577
  %v2579 = vrot.slane %v2578, 4
  %v2581 = vshll.u32 %v2314, 16
  %v2583 = vrot.slane %v2581, 5
  %v2584 = vsel %vm137, %v2579, %v2583
  %v2585 = vshrl.u32 %v2314, 16
  %v2587 = vrot.slane %v2585, 4
  %v2588 = vor.u32 %v2587, %v2583
  %v2589 = vrot.slane %v2588, 4
  %v2591 = vshll.u32 %v2315, 16
  %v2593 = vrot.slane %v2591, 5
  %v2594 = vsel %vm137, %v2589, %v2593
  %v2596 = vshrl.u32 %v2316, 16
  %v2598 = vrot.slane %v2596, 4
  %v2599 = vshll.u32 %v2316, 16
  %v2601 = vrot.slane %v2599, 5
  %v2602 = vor.u32 %v2598, %v2601
  %v2603 = vrot.slane %v2602, 4
  %v2605 = vshll.u32 %v2317, 16
  %v2607 = vrot.slane %v2605, 5
  %v2608 = vsel %vm137, %v2603, %v2607
  %v2609 = vshrl.u32 %v2317, 16
  %v2611 = vrot.slane %v2609, 4
  %v2612 = vor.u32 %v2611, %v2607
  %v2613 = vrot.slane %v2612, 4
  %v2615 = vshll.u32 %v2318, 16
  %v2617 = vrot.slane %v2615, 5
  %v2618 = vsel %vm137, %v2613, %v2617
  %v2620 = vshrl.u32 %v2319, 16
  %v2622 = vrot.slane %v2620, 4
  %v2623 = vshll.u32 %v2319, 16
  %v2625 = vrot.slane %v2623, 5
  %v2626 = vor.u32 %v2622, %v2625
  %v2627 = vrot.slane %v2626, 4
  %v2629 = vshll.u32 %v2320, 16
  %v2631 = vrot.slane %v2629, 5
  %v2632 = vsel %vm137, %v2627, %v2631
  %v2633 = vshrl.u32 %v2320, 16
  %v2635 = vrot.slane %v2633, 4
  %v2636 = vor.u32 %v2635, %v2631
  %v2637 = vrot.slane %v2636, 4
  %v2639 = vshll.u32 %v2321, 16
  %v2641 = vrot.slane %v2639, 5
  %v2642 = vsel %vm137, %v2637, %v2641
  %v2644 = vshrl.u32 %v2322, 16
  %v2646 = vrot.slane %v2644, 4
  %v2647 = vshll.u32 %v2322, 16
  %v2649 = vrot.slane %v2647, 5
  %v2650 = vor.u32 %v2646, %v2649
  %v2651 = vrot.slane %v2650, 4
  %v2653 = vshll.u32 %v2323, 16
  %v2655 = vrot.slane %v2653, 5
  %v2656 = vsel %vm137, %v2651, %v2655
  %v2657 = vshrl.u32 %v2323, 16
  %v2659 = vrot.slane %v2657, 4
  %v2660 = vor.u32 %v2659, %v2655
  %v2661 = vrot.slane %v2660, 4
  %v2663 = vshll.u32 %v2324, 16
  %v2665 = vrot.slane %v2663, 5
  %v2666 = vsel %vm137, %v2661, %v2665
  %v2668 = vshrl.u32 %v2325, 16
  %v2670 = vrot.slane %v2668, 4
  %v2671 = vshll.u32 %v2325, 16
  %v2673 = vrot.slane %v2671, 5
  %v2674 = vor.u32 %v2670, %v2673
  %v2675 = vrot.slane %v2674, 4
  %v2677 = vshll.u32 %v2326, 16
  %v2679 = vrot.slane %v2677, 5
  %v2680 = vsel %vm137, %v2675, %v2679
  %v2681 = vshrl.u32 %v2326, 16
  %v2683 = vrot.slane %v2681, 4
  %v2684 = vor.u32 %v2683, %v2679
  %v2685 = vrot.slane %v2684, 4
  %v2687 = vshll.u32 %v2327, 16
  %v2689 = vrot.slane %v2687, 5
  %v2690 = vsel %vm137, %v2685, %v2689
  %v2692 = vshrl.u32 %v2328, 16
  %v2694 = vrot.slane %v2692, 4
  %v2695 = vshll.u32 %v2328, 16
  %v2697 = vrot.slane %v2695, 5
  %v2698 = vor.u32 %v2694, %v2697
  %v2699 = vrot.slane %v2698, 4
  %v2701 = vshll.u32 %v2329, 16
  %v2703 = vrot.slane %v2701, 5
  %v2704 = vsel %vm137, %v2699, %v2703
  %v2705 = vshrl.u32 %v2329, 16
  %v2707 = vrot.slane %v2705, 4
  %v2708 = vor.u32 %v2707, %v2703
  %v2709 = vrot.slane %v2708, 4
  %v2711 = vshll.u32 %v2330, 16
  %v2713 = vrot.slane %v2711, 5
  %v2714 = vsel %vm137, %v2709, %v2713
  %2715 = vrot.lane.b32.xlu0 %v2344, 28
  %v2716 = vpop.permute.xlu0 %2715
  %2717 = vrot.lane.b32.xlu0 %v2354, 28
  %v2718 = vpop.permute.xlu0 %2717
  %2719 = vrot.lane.b32.xlu0 %v2368, 28
  %v2720 = vpop.permute.xlu0 %2719
  %2721 = vrot.lane.b32.xlu0 %v2378, 28
  %v2722 = vpop.permute.xlu0 %2721
  %2723 = vrot.lane.b32.xlu0 %v2392, 28
  %v2724 = vpop.permute.xlu0 %2723
  %2725 = vrot.lane.b32.xlu0 %v2402, 28
  %v2726 = vpop.permute.xlu0 %2725
  %2727 = vrot.lane.b32.xlu0 %v2416, 28
  %v2728 = vpop.permute.xlu0 %2727
  %2729 = vrot.lane.b32.xlu0 %v2426, 28
  %v2730 = vpop.permute.xlu0 %2729
  %2731 = vrot.lane.b32.xlu0 %v2440, 28
  %v2732 = vpop.permute.xlu0 %2731
  %2733 = vrot.lane.b32.xlu0 %v2450, 28
  %v2734 = vpop.permute.xlu0 %2733
  %2735 = vrot.lane.b32.xlu0 %v2464, 28
  %v2736 = vpop.permute.xlu0 %2735
  %2737 = vrot.lane.b32.xlu0 %v2474, 28
  %v2738 = vpop.permute.xlu0 %2737
  %2739 = vrot.lane.b32.xlu0 %v2488, 28
  %v2740 = vpop.permute.xlu0 %2739
  %2741 = vrot.lane.b32.xlu0 %v2498, 28
  %v2742 = vpop.permute.xlu0 %2741
  %2743 = vrot.lane.b32.xlu0 %v2512, 28
  %v2744 = vpop.permute.xlu0 %2743
  %2745 = vrot.lane.b32.xlu0 %v2522, 28
  %v2746 = vpop.permute.xlu0 %2745
  %2747 = vrot.lane.b32.xlu0 %v2536, 28
  %v2748 = vpop.permute.xlu0 %2747
  %2749 = vrot.lane.b32.xlu0 %v2546, 28
  %v2750 = vpop.permute.xlu0 %2749
  %2751 = vrot.lane.b32.xlu0 %v2560, 28
  %v2752 = vpop.permute.xlu0 %2751
  %2753 = vrot.lane.b32.xlu0 %v2570, 28
  %v2754 = vpop.permute.xlu0 %2753
  %2755 = vrot.lane.b32.xlu0 %v2584, 28
  %v2756 = vpop.permute.xlu0 %2755
  %2757 = vrot.lane.b32.xlu0 %v2594, 28
  %v2758 = vpop.permute.xlu0 %2757
  %2759 = vrot.lane.b32.xlu0 %v2608, 28
  %v2760 = vpop.permute.xlu0 %2759
  %2761 = vrot.lane.b32.xlu0 %v2618, 28
  %v2762 = vpop.permute.xlu0 %2761
  %2763 = vrot.lane.b32.xlu0 %v2632, 28
  %v2764 = vpop.permute.xlu0 %2763
  %2765 = vrot.lane.b32.xlu0 %v2642, 28
  %v2766 = vpop.permute.xlu0 %2765
  %2767 = vrot.lane.b32.xlu0 %v2656, 28
  %v2768 = vpop.permute.xlu0 %2767
  %2769 = vrot.lane.b32.xlu0 %v2666, 28
  %v2770 = vpop.permute.xlu0 %2769
  %2771 = vrot.lane.b32.xlu0 %v2680, 28
  %v2772 = vpop.permute.xlu0 %2771
  %2773 = vrot.lane.b32.xlu0 %v2690, 28
  %v2774 = vpop.permute.xlu0 %2773
  %2775 = vrot.lane.b32.xlu0 %v2704, 28
  %v2776 = vpop.permute.xlu0 %2775
  %2777 = vrot.lane.b32.xlu0 %v2714, 28
  %v2778 = vpop.permute.xlu0 %2777
  %vm2811 = vcmask 257248
  %2812 = vst.msk [vmem:[#allocation2] sm:$0xf] %vm2811, %v2716
  %2813 = vst.msk [vmem:[#allocation2 + $0x4] sm:$0xf] %vm2811, %v2718
  %2814 = vst.msk [vmem:[#allocation2 + $0x8] sm:$0xf] %vm2811, %v2720
  %2815 = vst.msk [vmem:[#allocation2 + $0xc] sm:$0xf] %vm2811, %v2722
  %2816 = vst.msk [vmem:[#allocation2 + $0x10] sm:$0xf] %vm2811, %v2724
  %2817 = vst.msk [vmem:[#allocation2 + $0x14] sm:$0xf] %vm2811, %v2726
  %2818 = vst.msk [vmem:[#allocation2 + $0x18] sm:$0xf] %vm2811, %v2728
  %2819 = vst.msk [vmem:[#allocation2 + $0x1c] sm:$0xf] %vm2811, %v2730
  %2820 = vst.msk [vmem:[#allocation2 + $0x20] sm:$0xf] %vm2811, %v2732
  %2821 = vst.msk [vmem:[#allocation2 + $0x24] sm:$0xf] %vm2811, %v2734
  %2822 = vst.msk [vmem:[#allocation2 + $0x28] sm:$0xf] %vm2811, %v2736
  %2823 = vst.msk [vmem:[#allocation2 + $0x2c] sm:$0xf] %vm2811, %v2738
  %2824 = vst.msk [vmem:[#allocation2 + $0x30] sm:$0xf] %vm2811, %v2740
  %2825 = vst.msk [vmem:[#allocation2 + $0x34] sm:$0xf] %vm2811, %v2742
  %2826 = vst.msk [vmem:[#allocation2 + $0x38] sm:$0xf] %vm2811, %v2744
  %2827 = vst.msk [vmem:[#allocation2 + $0x3c] sm:$0xf] %vm2811, %v2746
  %2828 = vst.msk [vmem:[#allocation2 + $0x40] sm:$0xf] %vm2811, %v2748
  %2829 = vst.msk [vmem:[#allocation2 + $0x44] sm:$0xf] %vm2811, %v2750
  %2830 = vst.msk [vmem:[#allocation2 + $0x48] sm:$0xf] %vm2811, %v2752
  %2831 = vst.msk [vmem:[#allocation2 + $0x4c] sm:$0xf] %vm2811, %v2754
  %2832 = vst.msk [vmem:[#allocation2 + $0x50] sm:$0xf] %vm2811, %v2756
  %2833 = vst.msk [vmem:[#allocation2 + $0x54] sm:$0xf] %vm2811, %v2758
  %2834 = vst.msk [vmem:[#allocation2 + $0x58] sm:$0xf] %vm2811, %v2760
  %2835 = vst.msk [vmem:[#allocation2 + $0x5c] sm:$0xf] %vm2811, %v2762
  %2836 = vst.msk [vmem:[#allocation2 + $0x60] sm:$0xf] %vm2811, %v2764
  %2837 = vst.msk [vmem:[#allocation2 + $0x64] sm:$0xf] %vm2811, %v2766
  %2838 = vst.msk [vmem:[#allocation2 + $0x68] sm:$0xf] %vm2811, %v2768
  %2839 = vst.msk [vmem:[#allocation2 + $0x6c] sm:$0xf] %vm2811, %v2770
  %2840 = vst.msk [vmem:[#allocation2 + $0x70] sm:$0xf] %vm2811, %v2772
  %2841 = vst.msk [vmem:[#allocation2 + $0x74] sm:$0xf] %vm2811, %v2774
  %2842 = vst.msk [vmem:[#allocation2 + $0x78] sm:$0xf] %vm2811, %v2776
  %2843 = vst.msk [vmem:[#allocation2 + $0x7c] sm:$0xf] %vm2811, %v2778
  %v2844 = vld [vmem:[%s2089] sm:$0xe]
  %v2845 = vld [vmem:[%s2089 + $0x4] sm:$0xf]
  %v2846 = vld [vmem:[%s2089 + $0x8] sm:$0x1]
  %v2847 = vld [vmem:[%s2089 + $0xc] sm:$0xe]
  %v2848 = vld [vmem:[%s2089 + $0x10] sm:$0xf]
  %v2849 = vld [vmem:[%s2089 + $0x14] sm:$0x1]
  %v2850 = vld [vmem:[%s2089 + $0x18] sm:$0xe]
  %v2851 = vld [vmem:[%s2089 + $0x1c] sm:$0xf]
  %v2852 = vld [vmem:[%s2089 + $0x20] sm:$0x1]
  %v2853 = vld [vmem:[%s2089 + $0x24] sm:$0xe]
  %v2854 = vld [vmem:[%s2089 + $0x28] sm:$0xf]
  %v2855 = vld [vmem:[%s2089 + $0x2c] sm:$0x1]
  %v2856 = vld [vmem:[%s2089 + $0x30] sm:$0xe]
  %v2857 = vld [vmem:[%s2089 + $0x34] sm:$0xf]
  %v2858 = vld [vmem:[%s2089 + $0x38] sm:$0x1]
  %v2859 = vld [vmem:[%s2089 + $0x3c] sm:$0xe]
  %v2860 = vld [vmem:[%s2089 + $0x40] sm:$0xf]
  %v2861 = vld [vmem:[%s2089 + $0x44] sm:$0x1]
  %v2862 = vld [vmem:[%s2089 + $0x48] sm:$0xe]
  %v2863 = vld [vmem:[%s2089 + $0x4c] sm:$0xf]
  %v2864 = vld [vmem:[%s2089 + $0x50] sm:$0x1]
  %v2865 = vld [vmem:[%s2089 + $0x54] sm:$0xe]
  %v2866 = vld [vmem:[%s2089 + $0x58] sm:$0xf]
  %v2867 = vld [vmem:[%s2089 + $0x5c] sm:$0x1]
  %v2868 = vld [vmem:[%s2089 + $0x60] sm:$0xe]
  %v2869 = vld [vmem:[%s2089 + $0x64] sm:$0xf]
  %v2870 = vld [vmem:[%s2089 + $0x68] sm:$0x1]
  %v2871 = vld [vmem:[%s2089 + $0x6c] sm:$0xe]
  %v2872 = vld [vmem:[%s2089 + $0x70] sm:$0xf]
  %v2873 = vld [vmem:[%s2089 + $0x74] sm:$0x1]
  %v2874 = vld [vmem:[%s2089 + $0x78] sm:$0xe]
  %v2875 = vld [vmem:[%s2089 + $0x7c] sm:$0xf]
  %v2876 = vld [vmem:[%s2089 + $0x80] sm:$0x1]
  %v2877 = vld [vmem:[%s2089 + $0x84] sm:$0xe]
  %v2878 = vld [vmem:[%s2089 + $0x88] sm:$0xf]
  %v2879 = vld [vmem:[%s2089 + $0x8c] sm:$0x1]
  %v2880 = vld [vmem:[%s2089 + $0x90] sm:$0xe]
  %v2881 = vld [vmem:[%s2089 + $0x94] sm:$0xf]
  %v2882 = vld [vmem:[%s2089 + $0x98] sm:$0x1]
  %v2883 = vld [vmem:[%s2089 + $0x9c] sm:$0xe]
  %v2884 = vld [vmem:[%s2089 + $0xa0] sm:$0xf]
  %v2885 = vld [vmem:[%s2089 + $0xa4] sm:$0x1]
  %v2886 = vld [vmem:[%s2089 + $0xa8] sm:$0xe]
  %v2887 = vld [vmem:[%s2089 + $0xac] sm:$0xf]
  %v2888 = vld [vmem:[%s2089 + $0xb0] sm:$0x1]
  %v2889 = vld [vmem:[%s2089 + $0xb4] sm:$0xe]
  %v2890 = vld [vmem:[%s2089 + $0xb8] sm:$0xf]
  %v2891 = vld [vmem:[%s2089 + $0xbc] sm:$0x1]
  %v2940 = vrot.slane %v2844, 5
  %v2941 = vrot.slane %v2940, 4
  %v2942 = vrot.slane %v2845, 5
  %v2943 = vsel %vm749, %v2941, %v2942
  %v2944 = vrot.slane %v2942, 4
  %v2945 = vrot.slane %v2846, 5
  %v2946 = vsel %vm749, %v2944, %v2945
  %v2947 = vrot.slane %v2847, 5
  %v2948 = vrot.slane %v2947, 4
  %v2949 = vrot.slane %v2848, 5
  %v2950 = vsel %vm749, %v2948, %v2949
  %v2951 = vrot.slane %v2949, 4
  %v2952 = vrot.slane %v2849, 5
  %v2953 = vsel %vm749, %v2951, %v2952
  %v2954 = vrot.slane %v2850, 5
  %v2955 = vrot.slane %v2954, 4
  %v2956 = vrot.slane %v2851, 5
  %v2957 = vsel %vm749, %v2955, %v2956
  %v2958 = vrot.slane %v2956, 4
  %v2959 = vrot.slane %v2852, 5
  %v2960 = vsel %vm749, %v2958, %v2959
  %v2961 = vrot.slane %v2853, 5
  %v2962 = vrot.slane %v2961, 4
  %v2963 = vrot.slane %v2854, 5
  %v2964 = vsel %vm749, %v2962, %v2963
  %v2965 = vrot.slane %v2963, 4
  %v2966 = vrot.slane %v2855, 5
  %v2967 = vsel %vm749, %v2965, %v2966
  %v2968 = vrot.slane %v2856, 5
  %v2969 = vrot.slane %v2968, 4
  %v2970 = vrot.slane %v2857, 5
  %v2971 = vsel %vm749, %v2969, %v2970
  %v2972 = vrot.slane %v2970, 4
  %v2973 = vrot.slane %v2858, 5
  %v2974 = vsel %vm749, %v2972, %v2973
  %v2975 = vrot.slane %v2859, 5
  %v2976 = vrot.slane %v2975, 4
  %v2977 = vrot.slane %v2860, 5
  %v2978 = vsel %vm749, %v2976, %v2977
  %v2979 = vrot.slane %v2977, 4
  %v2980 = vrot.slane %v2861, 5
  %v2981 = vsel %vm749, %v2979, %v2980
  %v2982 = vrot.slane %v2862, 5
  %v2983 = vrot.slane %v2982, 4
  %v2984 = vrot.slane %v2863, 5
  %v2985 = vsel %vm749, %v2983, %v2984
  %v2986 = vrot.slane %v2984, 4
  %v2987 = vrot.slane %v2864, 5
  %v2988 = vsel %vm749, %v2986, %v2987
  %v2989 = vrot.slane %v2865, 5
  %v2990 = vrot.slane %v2989, 4
  %v2991 = vrot.slane %v2866, 5
  %v2992 = vsel %vm749, %v2990, %v2991
  %v2993 = vrot.slane %v2991, 4
  %v2994 = vrot.slane %v2867, 5
  %v2995 = vsel %vm749, %v2993, %v2994
  %v2996 = vrot.slane %v2868, 5
  %v2997 = vrot.slane %v2996, 4
  %v2998 = vrot.slane %v2869, 5
  %v2999 = vsel %vm749, %v2997, %v2998
  %v3000 = vrot.slane %v2998, 4
  %v3001 = vrot.slane %v2870, 5
  %v3002 = vsel %vm749, %v3000, %v3001
  %v3003 = vrot.slane %v2871, 5
  %v3004 = vrot.slane %v3003, 4
  %v3005 = vrot.slane %v2872, 5
  %v3006 = vsel %vm749, %v3004, %v3005
  %v3007 = vrot.slane %v3005, 4
  %v3008 = vrot.slane %v2873, 5
  %v3009 = vsel %vm749, %v3007, %v3008
  %v3010 = vrot.slane %v2874, 5
  %v3011 = vrot.slane %v3010, 4
  %v3012 = vrot.slane %v2875, 5
  %v3013 = vsel %vm749, %v3011, %v3012
  %v3014 = vrot.slane %v3012, 4
  %v3015 = vrot.slane %v2876, 5
  %v3016 = vsel %vm749, %v3014, %v3015
  %v3017 = vrot.slane %v2877, 5
  %v3018 = vrot.slane %v3017, 4
  %v3019 = vrot.slane %v2878, 5
  %v3020 = vsel %vm749, %v3018, %v3019
  %v3021 = vrot.slane %v3019, 4
  %v3022 = vrot.slane %v2879, 5
  %v3023 = vsel %vm749, %v3021, %v3022
  %v3024 = vrot.slane %v2880, 5
  %v3025 = vrot.slane %v3024, 4
  %v3026 = vrot.slane %v2881, 5
  %v3027 = vsel %vm749, %v3025, %v3026
  %v3028 = vrot.slane %v3026, 4
  %v3029 = vrot.slane %v2882, 5
  %v3030 = vsel %vm749, %v3028, %v3029
  %v3031 = vrot.slane %v2883, 5
  %v3032 = vrot.slane %v3031, 4
  %v3033 = vrot.slane %v2884, 5
  %v3034 = vsel %vm749, %v3032, %v3033
  %v3035 = vrot.slane %v3033, 4
  %v3036 = vrot.slane %v2885, 5
  %v3037 = vsel %vm749, %v3035, %v3036
  %v3038 = vrot.slane %v2886, 5
  %v3039 = vrot.slane %v3038, 4
  %v3040 = vrot.slane %v2887, 5
  %v3041 = vsel %vm749, %v3039, %v3040
  %v3042 = vrot.slane %v3040, 4
  %v3043 = vrot.slane %v2888, 5
  %v3044 = vsel %vm749, %v3042, %v3043
  %v3045 = vrot.slane %v2889, 5
  %v3046 = vrot.slane %v3045, 4
  %v3047 = vrot.slane %v2890, 5
  %v3048 = vsel %vm749, %v3046, %v3047
  %v3049 = vrot.slane %v3047, 4
  %v3050 = vrot.slane %v2891, 5
  %v3051 = vsel %vm749, %v3049, %v3050
  %3052 = vrot.lane.b32.xlu0 %v2943, 32
  %v3053 = vpop.permute.xlu0 %3052
  %3054 = vrot.lane.b32.xlu0 %v2946, 32
  %v3055 = vpop.permute.xlu0 %3054
  %3056 = vrot.lane.b32.xlu0 %v2950, 32
  %v3057 = vpop.permute.xlu0 %3056
  %3058 = vrot.lane.b32.xlu0 %v2953, 32
  %v3059 = vpop.permute.xlu0 %3058
  %3060 = vrot.lane.b32.xlu0 %v2957, 32
  %v3061 = vpop.permute.xlu0 %3060
  %3062 = vrot.lane.b32.xlu0 %v2960, 32
  %v3063 = vpop.permute.xlu0 %3062
  %3064 = vrot.lane.b32.xlu0 %v2964, 32
  %v3065 = vpop.permute.xlu0 %3064
  %3066 = vrot.lane.b32.xlu0 %v2967, 32
  %v3067 = vpop.permute.xlu0 %3066
  %3068 = vrot.lane.b32.xlu0 %v2971, 32
  %v3069 = vpop.permute.xlu0 %3068
  %3070 = vrot.lane.b32.xlu0 %v2974, 32
  %v3071 = vpop.permute.xlu0 %3070
  %3072 = vrot.lane.b32.xlu0 %v2978, 32
  %v3073 = vpop.permute.xlu0 %3072
  %3074 = vrot.lane.b32.xlu0 %v2981, 32
  %v3075 = vpop.permute.xlu0 %3074
  %3076 = vrot.lane.b32.xlu0 %v2985, 32
  %v3077 = vpop.permute.xlu0 %3076
  %3078 = vrot.lane.b32.xlu0 %v2988, 32
  %v3079 = vpop.permute.xlu0 %3078
  %3080 = vrot.lane.b32.xlu0 %v2992, 32
  %v3081 = vpop.permute.xlu0 %3080
  %3082 = vrot.lane.b32.xlu0 %v2995, 32
  %v3083 = vpop.permute.xlu0 %3082
  %3084 = vrot.lane.b32.xlu0 %v2999, 32
  %v3085 = vpop.permute.xlu0 %3084
  %3086 = vrot.lane.b32.xlu0 %v3002, 32
  %v3087 = vpop.permute.xlu0 %3086
  %3088 = vrot.lane.b32.xlu0 %v3006, 32
  %v3089 = vpop.permute.xlu0 %3088
  %3090 = vrot.lane.b32.xlu0 %v3009, 32
  %v3091 = vpop.permute.xlu0 %3090
  %3092 = vrot.lane.b32.xlu0 %v3013, 32
  %v3093 = vpop.permute.xlu0 %3092
  %3094 = vrot.lane.b32.xlu0 %v3016, 32
  %v3095 = vpop.permute.xlu0 %3094
  %3096 = vrot.lane.b32.xlu0 %v3020, 32
  %v3097 = vpop.permute.xlu0 %3096
  %3098 = vrot.lane.b32.xlu0 %v3023, 32
  %v3099 = vpop.permute.xlu0 %3098
  %3100 = vrot.lane.b32.xlu0 %v3027, 32
  %v3101 = vpop.permute.xlu0 %3100
  %3102 = vrot.lane.b32.xlu0 %v3030, 32
  %v3103 = vpop.permute.xlu0 %3102
  %3104 = vrot.lane.b32.xlu0 %v3034, 32
  %v3105 = vpop.permute.xlu0 %3104
  %3106 = vrot.lane.b32.xlu0 %v3037, 32
  %v3107 = vpop.permute.xlu0 %3106
  %3108 = vrot.lane.b32.xlu0 %v3041, 32
  %v3109 = vpop.permute.xlu0 %3108
  %3110 = vrot.lane.b32.xlu0 %v3044, 32
  %v3111 = vpop.permute.xlu0 %3110
  %3112 = vrot.lane.b32.xlu0 %v3048, 32
  %v3113 = vpop.permute.xlu0 %3112
  %3114 = vrot.lane.b32.xlu0 %v3051, 32
  %v3115 = vpop.permute.xlu0 %3114
  %vm3148 = vcmask 290048
  %3149 = vst.msk [vmem:[#allocation2] sm:$0xf] %vm3148, %v3053
  %3150 = vst.msk [vmem:[#allocation2 + $0x4] sm:$0xf] %vm3148, %v3055
  %3151 = vst.msk [vmem:[#allocation2 + $0x8] sm:$0xf] %vm3148, %v3057
  %3152 = vst.msk [vmem:[#allocation2 + $0xc] sm:$0xf] %vm3148, %v3059
  %3153 = vst.msk [vmem:[#allocation2 + $0x10] sm:$0xf] %vm3148, %v3061
  %3154 = vst.msk [vmem:[#allocation2 + $0x14] sm:$0xf] %vm3148, %v3063
  %3155 = vst.msk [vmem:[#allocation2 + $0x18] sm:$0xf] %vm3148, %v3065
  %3156 = vst.msk [vmem:[#allocation2 + $0x1c] sm:$0xf] %vm3148, %v3067
  %3157 = vst.msk [vmem:[#allocation2 + $0x20] sm:$0xf] %vm3148, %v3069
  %3158 = vst.msk [vmem:[#allocation2 + $0x24] sm:$0xf] %vm3148, %v3071
  %3159 = vst.msk [vmem:[#allocation2 + $0x28] sm:$0xf] %vm3148, %v3073
  %3160 = vst.msk [vmem:[#allocation2 + $0x2c] sm:$0xf] %vm3148, %v3075
  %3161 = vst.msk [vmem:[#allocation2 + $0x30] sm:$0xf] %vm3148, %v3077
  %3162 = vst.msk [vmem:[#allocation2 + $0x34] sm:$0xf] %vm3148, %v3079
  %3163 = vst.msk [vmem:[#allocation2 + $0x38] sm:$0xf] %vm3148, %v3081
  %3164 = vst.msk [vmem:[#allocation2 + $0x3c] sm:$0xf] %vm3148, %v3083
  %3165 = vst.msk [vmem:[#allocation2 + $0x40] sm:$0xf] %vm3148, %v3085
  %3166 = vst.msk [vmem:[#allocation2 + $0x44] sm:$0xf] %vm3148, %v3087
  %3167 = vst.msk [vmem:[#allocation2 + $0x48] sm:$0xf] %vm3148, %v3089
  %3168 = vst.msk [vmem:[#allocation2 + $0x4c] sm:$0xf] %vm3148, %v3091
  %3169 = vst.msk [vmem:[#allocation2 + $0x50] sm:$0xf] %vm3148, %v3093
  %3170 = vst.msk [vmem:[#allocation2 + $0x54] sm:$0xf] %vm3148, %v3095
  %3171 = vst.msk [vmem:[#allocation2 + $0x58] sm:$0xf] %vm3148, %v3097
  %3172 = vst.msk [vmem:[#allocation2 + $0x5c] sm:$0xf] %vm3148, %v3099
  %3173 = vst.msk [vmem:[#allocation2 + $0x60] sm:$0xf] %vm3148, %v3101
  %3174 = vst.msk [vmem:[#allocation2 + $0x64] sm:$0xf] %vm3148, %v3103
  %3175 = vst.msk [vmem:[#allocation2 + $0x68] sm:$0xf] %vm3148, %v3105
  %3176 = vst.msk [vmem:[#allocation2 + $0x6c] sm:$0xf] %vm3148, %v3107
  %3177 = vst.msk [vmem:[#allocation2 + $0x70] sm:$0xf] %vm3148, %v3109
  %3178 = vst.msk [vmem:[#allocation2 + $0x74] sm:$0xf] %vm3148, %v3111
  %3179 = vst.msk [vmem:[#allocation2 + $0x78] sm:$0xf] %vm3148, %v3113
  %3180 = vst.msk [vmem:[#allocation2 + $0x7c] sm:$0xf] %vm3148, %v3115
  %v3181 = vld [vmem:[#allocation2] sm:$0xf]
  %v3182 = vld [vmem:[#allocation2 + $0x4] sm:$0xf]
  %v3183 = vld [vmem:[#allocation2 + $0x8] sm:$0xf]
  %v3184 = vld [vmem:[#allocation2 + $0xc] sm:$0xf]
  %v3185 = vld [vmem:[#allocation2 + $0x10] sm:$0xf]
  %v3186 = vld [vmem:[#allocation2 + $0x14] sm:$0xf]
  %v3187 = vld [vmem:[#allocation2 + $0x18] sm:$0xf]
  %v3188 = vld [vmem:[#allocation2 + $0x1c] sm:$0xf]
  %v3189 = vld [vmem:[#allocation2 + $0x20] sm:$0xf]
  %v3190 = vld [vmem:[#allocation2 + $0x24] sm:$0xf]
  %v3191 = vld [vmem:[#allocation2 + $0x28] sm:$0xf]
  %v3192 = vld [vmem:[#allocation2 + $0x2c] sm:$0xf]
  %v3193 = vld [vmem:[#allocation2 + $0x30] sm:$0xf]
  %v3194 = vld [vmem:[#allocation2 + $0x34] sm:$0xf]
  %v3195 = vld [vmem:[#allocation2 + $0x38] sm:$0xf]
  %v3196 = vld [vmem:[#allocation2 + $0x3c] sm:$0xf]
  %v3197 = vld [vmem:[#allocation2 + $0x40] sm:$0xf]
  %v3198 = vld [vmem:[#allocation2 + $0x44] sm:$0xf]
  %v3199 = vld [vmem:[#allocation2 + $0x48] sm:$0xf]
  %v3200 = vld [vmem:[#allocation2 + $0x4c] sm:$0xf]
  %v3201 = vld [vmem:[#allocation2 + $0x50] sm:$0xf]
  %v3202 = vld [vmem:[#allocation2 + $0x54] sm:$0xf]
  %v3203 = vld [vmem:[#allocation2 + $0x58] sm:$0xf]
  %v3204 = vld [vmem:[#allocation2 + $0x5c] sm:$0xf]
  %v3205 = vld [vmem:[#allocation2 + $0x60] sm:$0xf]
  %v3206 = vld [vmem:[#allocation2 + $0x64] sm:$0xf]
  %v3207 = vld [vmem:[#allocation2 + $0x68] sm:$0xf]
  %v3208 = vld [vmem:[#allocation2 + $0x6c] sm:$0xf]
  %v3209 = vld [vmem:[#allocation2 + $0x70] sm:$0xf]
  %v3210 = vld [vmem:[#allocation2 + $0x74] sm:$0xf]
  %v3211 = vld [vmem:[#allocation2 + $0x78] sm:$0xf]
  %v3212 = vld [vmem:[#allocation2 + $0x7c] sm:$0xf]
  %v3213 = vld [vmem:[%s1] sm:$0xf]
  %v3246 = vunpack.c.l.b16 %v3181
  %v3247 = vunpack.c.l.b16 %v3182
  %v3248 = vunpack.c.l.b16 %v3183
  %v3249 = vunpack.c.l.b16 %v3184
  %v3250 = vunpack.c.l.b16 %v3185
  %v3251 = vunpack.c.l.b16 %v3186
  %v3252 = vunpack.c.l.b16 %v3187
  %v3253 = vunpack.c.l.b16 %v3188
  %v3254 = vunpack.c.l.b16 %v3189
  %v3255 = vunpack.c.l.b16 %v3190
  %v3256 = vunpack.c.l.b16 %v3191
  %v3257 = vunpack.c.l.b16 %v3192
  %v3258 = vunpack.c.l.b16 %v3193
  %v3259 = vunpack.c.l.b16 %v3194
  %v3260 = vunpack.c.l.b16 %v3195
  %v3261 = vunpack.c.l.b16 %v3196
  %v3262 = vunpack.c.l.b16 %v3197
  %v3263 = vunpack.c.l.b16 %v3198
  %v3264 = vunpack.c.l.b16 %v3199
  %v3265 = vunpack.c.l.b16 %v3200
  %v3266 = vunpack.c.l.b16 %v3201
  %v3267 = vunpack.c.l.b16 %v3202
  %v3268 = vunpack.c.l.b16 %v3203
  %v3269 = vunpack.c.l.b16 %v3204
  %v3270 = vunpack.c.l.b16 %v3205
  %v3271 = vunpack.c.l.b16 %v3206
  %v3272 = vunpack.c.l.b16 %v3207
  %v3273 = vunpack.c.l.b16 %v3208
  %v3274 = vunpack.c.l.b16 %v3209
  %v3275 = vunpack.c.l.b16 %v3210
  %v3276 = vunpack.c.l.b16 %v3211
  %v3277 = vunpack.c.l.b16 %v3212
  %v3278 = vpack.c.b16 %v3247, %v3246
  %v3279 = vpack.c.b16 %v3249, %v3248
  %v3280 = vpack.c.b16 %v3251, %v3250
  %v3281 = vpack.c.b16 %v3253, %v3252
  %v3282 = vpack.c.b16 %v3255, %v3254
  %v3283 = vpack.c.b16 %v3257, %v3256
  %v3284 = vpack.c.b16 %v3259, %v3258
  %v3285 = vpack.c.b16 %v3261, %v3260
  %v3286 = vpack.c.b16 %v3263, %v3262
  %v3287 = vpack.c.b16 %v3265, %v3264
  %v3288 = vpack.c.b16 %v3267, %v3266
  %v3289 = vpack.c.b16 %v3269, %v3268
  %v3290 = vpack.c.b16 %v3271, %v3270
  %v3291 = vpack.c.b16 %v3273, %v3272
  %v3292 = vpack.c.b16 %v3275, %v3274
  %v3293 = vpack.c.b16 %v3277, %v3276
  %vm3294 = vcmask 293888
  %v3296 = vsel %vm3294, %v3213, 0
  %v3299 = vsel %vm3294, %v3278, 0
  %v3302 = vsel %vm3294, %v3279, 0
  %v3305 = vsel %vm3294, %v3280, 0
  %v3308 = vsel %vm3294, %v3281, 0
  %v3311 = vsel %vm3294, %v3282, 0
  %v3314 = vsel %vm3294, %v3283, 0
  %v3317 = vsel %vm3294, %v3284, 0
  %v3320 = vsel %vm3294, %v3285, 0
  %v3323 = vsel %vm3294, %v3286, 0
  %v3326 = vsel %vm3294, %v3287, 0
  %v3329 = vsel %vm3294, %v3288, 0
  %v3332 = vsel %vm3294, %v3289, 0
  %v3335 = vsel %vm3294, %v3290, 0
  %v3338 = vsel %vm3294, %v3291, 0
  %v3341 = vsel %vm3294, %v3292, 0
  %v3344 = vsel %vm3294, %v3293, 0
  %3346 = vmatprep.subr.bf16.mxu0 0
  %3347 = vmatpush1.bf16.xpose.msra.mxu0 %v3320
  %3348 = vmatprep.subr.bf16.mxu0 0
  %3349 = vmatpush1.bf16.xpose.msra.mxu0 %v3317
  %3350 = vmatprep.subr.bf16.mxu0 0
  %3351 = vmatpush1.bf16.xpose.msra.mxu0 %v3314
  %3352 = vmatprep.subr.bf16.mxu0 0
  %3353 = vmatpush1.bf16.xpose.msra.mxu0 %v3311
  %3354 = vmatprep.subr.bf16.mxu0 0
  %3355 = vmatpush1.bf16.xpose.msra.mxu0 %v3308
  %3356 = vmatprep.subr.bf16.mxu0 0
  %3357 = vmatpush1.bf16.xpose.msra.mxu0 %v3305
  %3358 = vmatprep.subr.bf16.mxu0 0
  %3359 = vmatpush1.bf16.xpose.msra.mxu0 %v3302
  %3360 = vmatprep.subr.bf16.mxu0 0
  %3361 = vmatpush1.bf16.xpose.msra.mxu0 %v3299
  %3362 = vmatprep.subr.bf16.mxu0 0
  %3363 = vmatpush2.bf16.xpose.msra.mxu0 %v3344
  %3364 = vmatprep.subr.bf16.mxu0 0
  %3365 = vmatpush2.bf16.xpose.msra.mxu0 %v3341
  %3366 = vmatprep.subr.bf16.mxu0 0
  %3367 = vmatpush2.bf16.xpose.msra.mxu0 %v3338
  %3368 = vmatprep.subr.bf16.mxu0 0
  %3369 = vmatpush2.bf16.xpose.msra.mxu0 %v3335
  %3370 = vmatprep.subr.bf16.mxu0 0
  %3371 = vmatpush2.bf16.xpose.msra.mxu0 %v3332
  %3372 = vmatprep.subr.bf16.mxu0 0
  %3373 = vmatpush2.bf16.xpose.msra.mxu0 %v3329
  %3374 = vmatprep.subr.bf16.mxu0 0
  %3375 = vmatpush2.bf16.xpose.msra.mxu0 %v3326
  %3376 = vmatprep.subr.bf16.mxu0 0
  %3377 = vmatpush2.bf16.xpose.msra.mxu0 %v3323
  %3378 = vmatprep.mubr.bf16.mxu0 0
  %3379 = vmatmul.mubr.bf16.gmra.mxu0 %v3296
  %v3380 = vpop.f32.mrf.mxu0
  %v3381 = vadd.f32 0.0, %v3380
  %v3382 = vpop.f32.mrf.mxu0
  %v3383 = vadd.f32 0.0, %v3382
  %v3384 = vpop.f32.mrf.mxu0
  %v3385 = vpop.f32.mrf.mxu0
  %3386 = vdwg.mxu0
  %v3387 = vld [vmem:[%s2] sm:$0xff]
  %3389 = vset.pattern.permute.xlu0 0
  %3390 = vperm.xlu0 %3389, %v3387
  %v3391 = vpop.permute.xlu0 %3390
  %v3393 = vmul.f32 %v3381, %v3391
  %v3394 = vmul.f32 %v3383, %v3391
  %v3395 = vld [vmem:[%s3] sm:$0xff]
  %3397 = vset.pattern.permute.xlu0 0
  %3398 = vperm.xlu0 %3397, %v3395
  %v3399 = vpop.permute.xlu0 %3398
  %v3401 = vadd.f32 %v3393, %v3399
  %v3402 = vadd.f32 %v3394, %v3399
  %vm3403 = vcmp.gt.f32.partialorder %v3401, 0.0
  %vm3404 = vcmp.gt.f32.partialorder %v3402, 0.0
  %v3405 = vmul.f32 %v3401, 0.1
  %v3406 = vmul.f32 %v3402, 0.1
  %v3407 = vsel %vm3403, %v3401, %v3405
  %v3408 = vsel %vm3404, %v3402, %v3406
  %3409 = vst [vmem:[%s4] sm:$0xff] %v3407
  %3410 = vst [vmem:[%s4 + $0x8] sm:$0xff] %v3408
  %s3411 = sadd.s32 %s19, 54
  %s3412 = smul.addr %s3411, 4
  %s3413 = scalar_lea.vmem %s0, %s3412
  %v3414 = vld [vmem:[%s3413] sm:$0xf]
  %v3415 = vld [vmem:[%s3413 + $0x4] sm:$0xf]
  %v3416 = vld [vmem:[%s3413 + $0xc] sm:$0xf]
  %v3417 = vld [vmem:[%s3413 + $0x10] sm:$0xf]
  %v3418 = vld [vmem:[%s3413 + $0x18] sm:$0xf]
  %v3419 = vld [vmem:[%s3413 + $0x1c] sm:$0xf]
  %v3420 = vld [vmem:[%s3413 + $0x24] sm:$0xf]
  %v3421 = vld [vmem:[%s3413 + $0x28] sm:$0xf]
  %v3422 = vld [vmem:[%s3413 + $0x30] sm:$0xf]
  %v3423 = vld [vmem:[%s3413 + $0x34] sm:$0xf]
  %v3424 = vld [vmem:[%s3413 + $0x3c] sm:$0xf]
  %v3425 = vld [vmem:[%s3413 + $0x40] sm:$0xf]
  %v3426 = vld [vmem:[%s3413 + $0x48] sm:$0xf]
  %v3427 = vld [vmem:[%s3413 + $0x4c] sm:$0xf]
  %v3428 = vld [vmem:[%s3413 + $0x54] sm:$0xf]
  %v3429 = vld [vmem:[%s3413 + $0x58] sm:$0xf]
  %v3430 = vld [vmem:[%s3413 + $0x60] sm:$0xf]
  %v3431 = vld [vmem:[%s3413 + $0x64] sm:$0xf]
  %v3432 = vld [vmem:[%s3413 + $0x6c] sm:$0xf]
  %v3433 = vld [vmem:[%s3413 + $0x70] sm:$0xf]
  %v3434 = vld [vmem:[%s3413 + $0x78] sm:$0xf]
  %v3435 = vld [vmem:[%s3413 + $0x7c] sm:$0xf]
  %v3436 = vld [vmem:[%s3413 + $0x84] sm:$0xf]
  %v3437 = vld [vmem:[%s3413 + $0x88] sm:$0xf]
  %v3438 = vld [vmem:[%s3413 + $0x90] sm:$0xf]
  %v3439 = vld [vmem:[%s3413 + $0x94] sm:$0xf]
  %v3440 = vld [vmem:[%s3413 + $0x9c] sm:$0xf]
  %v3441 = vld [vmem:[%s3413 + $0xa0] sm:$0xf]
  %v3442 = vld [vmem:[%s3413 + $0xa8] sm:$0xf]
  %v3443 = vld [vmem:[%s3413 + $0xac] sm:$0xf]
  %v3444 = vld [vmem:[%s3413 + $0xb4] sm:$0xf]
  %v3445 = vld [vmem:[%s3413 + $0xb8] sm:$0xf]
  %3446 = vst.msk [vmem:[#allocation2] sm:$0xf] %vm54, %v3414
  %3447 = vst.msk [vmem:[#allocation2 + $0x4] sm:$0xf] %vm54, %v3415
  %3448 = vst.msk [vmem:[#allocation2 + $0x8] sm:$0xf] %vm54, %v3416
  %3449 = vst.msk [vmem:[#allocation2 + $0xc] sm:$0xf] %vm54, %v3417
  %3450 = vst.msk [vmem:[#allocation2 + $0x10] sm:$0xf] %vm54, %v3418
  %3451 = vst.msk [vmem:[#allocation2 + $0x14] sm:$0xf] %vm54, %v3419
  %3452 = vst.msk [vmem:[#allocation2 + $0x18] sm:$0xf] %vm54, %v3420
  %3453 = vst.msk [vmem:[#allocation2 + $0x1c] sm:$0xf] %vm54, %v3421
  %3454 = vst.msk [vmem:[#allocation2 + $0x20] sm:$0xf] %vm54, %v3422
  %3455 = vst.msk [vmem:[#allocation2 + $0x24] sm:$0xf] %vm54, %v3423
  %3456 = vst.msk [vmem:[#allocation2 + $0x28] sm:$0xf] %vm54, %v3424
  %3457 = vst.msk [vmem:[#allocation2 + $0x2c] sm:$0xf] %vm54, %v3425
  %3458 = vst.msk [vmem:[#allocation2 + $0x30] sm:$0xf] %vm54, %v3426
  %3459 = vst.msk [vmem:[#allocation2 + $0x34] sm:$0xf] %vm54, %v3427
  %3460 = vst.msk [vmem:[#allocation2 + $0x38] sm:$0xf] %vm54, %v3428
  %3461 = vst.msk [vmem:[#allocation2 + $0x3c] sm:$0xf] %vm54, %v3429
  %3462 = vst.msk [vmem:[#allocation2 + $0x40] sm:$0xf] %vm54, %v3430
  %3463 = vst.msk [vmem:[#allocation2 + $0x44] sm:$0xf] %vm54, %v3431
  %3464 = vst.msk [vmem:[#allocation2 + $0x48] sm:$0xf] %vm54, %v3432
  %3465 = vst.msk [vmem:[#allocation2 + $0x4c] sm:$0xf] %vm54, %v3433
  %3466 = vst.msk [vmem:[#allocation2 + $0x50] sm:$0xf] %vm54, %v3434
  %3467 = vst.msk [vmem:[#allocation2 + $0x54] sm:$0xf] %vm54, %v3435
  %3468 = vst.msk [vmem:[#allocation2 + $0x58] sm:$0xf] %vm54, %v3436
  %3469 = vst.msk [vmem:[#allocation2 + $0x5c] sm:$0xf] %vm54, %v3437
  %3470 = vst.msk [vmem:[#allocation2 + $0x60] sm:$0xf] %vm54, %v3438
  %3471 = vst.msk [vmem:[#allocation2 + $0x64] sm:$0xf] %vm54, %v3439
  %3472 = vst.msk [vmem:[#allocation2 + $0x68] sm:$0xf] %vm54, %v3440
  %3473 = vst.msk [vmem:[#allocation2 + $0x6c] sm:$0xf] %vm54, %v3441
  %3474 = vst.msk [vmem:[#allocation2 + $0x70] sm:$0xf] %vm54, %v3442
  %3475 = vst.msk [vmem:[#allocation2 + $0x74] sm:$0xf] %vm54, %v3443
  %3476 = vst.msk [vmem:[#allocation2 + $0x78] sm:$0xf] %vm54, %v3444
  %3477 = vst.msk [vmem:[#allocation2 + $0x7c] sm:$0xf] %vm54, %v3445
  %v3478 = vld [vmem:[%s3413] sm:$0xf]
  %v3479 = vld [vmem:[%s3413 + $0x4] sm:$0xf]
  %v3480 = vld [vmem:[%s3413 + $0x8] sm:$0x1]
  %v3481 = vld [vmem:[%s3413 + $0xc] sm:$0xf]
  %v3482 = vld [vmem:[%s3413 + $0x10] sm:$0xf]
  %v3483 = vld [vmem:[%s3413 + $0x14] sm:$0x1]
  %v3484 = vld [vmem:[%s3413 + $0x18] sm:$0xf]
  %v3485 = vld [vmem:[%s3413 + $0x1c] sm:$0xf]
  %v3486 = vld [vmem:[%s3413 + $0x20] sm:$0x1]
  %v3487 = vld [vmem:[%s3413 + $0x24] sm:$0xf]
  %v3488 = vld [vmem:[%s3413 + $0x28] sm:$0xf]
  %v3489 = vld [vmem:[%s3413 + $0x2c] sm:$0x1]
  %v3490 = vld [vmem:[%s3413 + $0x30] sm:$0xf]
  %v3491 = vld [vmem:[%s3413 + $0x34] sm:$0xf]
  %v3492 = vld [vmem:[%s3413 + $0x38] sm:$0x1]
  %v3493 = vld [vmem:[%s3413 + $0x3c] sm:$0xf]
  %v3494 = vld [vmem:[%s3413 + $0x40] sm:$0xf]
  %v3495 = vld [vmem:[%s3413 + $0x44] sm:$0x1]
  %v3496 = vld [vmem:[%s3413 + $0x48] sm:$0xf]
  %v3497 = vld [vmem:[%s3413 + $0x4c] sm:$0xf]
  %v3498 = vld [vmem:[%s3413 + $0x50] sm:$0x1]
  %v3499 = vld [vmem:[%s3413 + $0x54] sm:$0xf]
  %v3500 = vld [vmem:[%s3413 + $0x58] sm:$0xf]
  %v3501 = vld [vmem:[%s3413 + $0x5c] sm:$0x1]
  %v3502 = vld [vmem:[%s3413 + $0x60] sm:$0xf]
  %v3503 = vld [vmem:[%s3413 + $0x64] sm:$0xf]
  %v3504 = vld [vmem:[%s3413 + $0x68] sm:$0x1]
  %v3505 = vld [vmem:[%s3413 + $0x6c] sm:$0xf]
  %v3506 = vld [vmem:[%s3413 + $0x70] sm:$0xf]
  %v3507 = vld [vmem:[%s3413 + $0x74] sm:$0x1]
  %v3508 = vld [vmem:[%s3413 + $0x78] sm:$0xf]
  %v3509 = vld [vmem:[%s3413 + $0x7c] sm:$0xf]
  %v3510 = vld [vmem:[%s3413 + $0x80] sm:$0x1]
  %v3511 = vld [vmem:[%s3413 + $0x84] sm:$0xf]
  %v3512 = vld [vmem:[%s3413 + $0x88] sm:$0xf]
  %v3513 = vld [vmem:[%s3413 + $0x8c] sm:$0x1]
  %v3514 = vld [vmem:[%s3413 + $0x90] sm:$0xf]
  %v3515 = vld [vmem:[%s3413 + $0x94] sm:$0xf]
  %v3516 = vld [vmem:[%s3413 + $0x98] sm:$0x1]
  %v3517 = vld [vmem:[%s3413 + $0x9c] sm:$0xf]
  %v3518 = vld [vmem:[%s3413 + $0xa0] sm:$0xf]
  %v3519 = vld [vmem:[%s3413 + $0xa4] sm:$0x1]
  %v3520 = vld [vmem:[%s3413 + $0xa8] sm:$0xf]
  %v3521 = vld [vmem:[%s3413 + $0xac] sm:$0xf]
  %v3522 = vld [vmem:[%s3413 + $0xb0] sm:$0x1]
  %v3523 = vld [vmem:[%s3413 + $0xb4] sm:$0xf]
  %v3524 = vld [vmem:[%s3413 + $0xb8] sm:$0xf]
  %v3525 = vld [vmem:[%s3413 + $0xbc] sm:$0x1]
  %v3527 = vshrl.u32 %v3478, 16
  %v3529 = vrot.slane %v3527, 4
  %v3530 = vshll.u32 %v3478, 16
  %v3532 = vrot.slane %v3530, 5
  %v3533 = vor.u32 %v3529, %v3532
  %v3534 = vrot.slane %v3533, 4
  %v3536 = vshll.u32 %v3479, 16
  %v3538 = vrot.slane %v3536, 5
  %v3539 = vsel %vm137, %v3534, %v3538
  %v3540 = vshrl.u32 %v3479, 16
  %v3542 = vrot.slane %v3540, 4
  %v3543 = vor.u32 %v3542, %v3538
  %v3544 = vrot.slane %v3543, 4
  %v3546 = vshll.u32 %v3480, 16
  %v3548 = vrot.slane %v3546, 5
  %v3549 = vsel %vm137, %v3544, %v3548
  %v3551 = vshrl.u32 %v3481, 16
  %v3553 = vrot.slane %v3551, 4
  %v3554 = vshll.u32 %v3481, 16
  %v3556 = vrot.slane %v3554, 5
  %v3557 = vor.u32 %v3553, %v3556
  %v3558 = vrot.slane %v3557, 4
  %v3560 = vshll.u32 %v3482, 16
  %v3562 = vrot.slane %v3560, 5
  %v3563 = vsel %vm137, %v3558, %v3562
  %v3564 = vshrl.u32 %v3482, 16
  %v3566 = vrot.slane %v3564, 4
  %v3567 = vor.u32 %v3566, %v3562
  %v3568 = vrot.slane %v3567, 4
  %v3570 = vshll.u32 %v3483, 16
  %v3572 = vrot.slane %v3570, 5
  %v3573 = vsel %vm137, %v3568, %v3572
  %v3575 = vshrl.u32 %v3484, 16
  %v3577 = vrot.slane %v3575, 4
  %v3578 = vshll.u32 %v3484, 16
  %v3580 = vrot.slane %v3578, 5
  %v3581 = vor.u32 %v3577, %v3580
  %v3582 = vrot.slane %v3581, 4
  %v3584 = vshll.u32 %v3485, 16
  %v3586 = vrot.slane %v3584, 5
  %v3587 = vsel %vm137, %v3582, %v3586
  %v3588 = vshrl.u32 %v3485, 16
  %v3590 = vrot.slane %v3588, 4
  %v3591 = vor.u32 %v3590, %v3586
  %v3592 = vrot.slane %v3591, 4
  %v3594 = vshll.u32 %v3486, 16
  %v3596 = vrot.slane %v3594, 5
  %v3597 = vsel %vm137, %v3592, %v3596
  %v3599 = vshrl.u32 %v3487, 16
  %v3601 = vrot.slane %v3599, 4
  %v3602 = vshll.u32 %v3487, 16
  %v3604 = vrot.slane %v3602, 5
  %v3605 = vor.u32 %v3601, %v3604
  %v3606 = vrot.slane %v3605, 4
  %v3608 = vshll.u32 %v3488, 16
  %v3610 = vrot.slane %v3608, 5
  %v3611 = vsel %vm137, %v3606, %v3610
  %v3612 = vshrl.u32 %v3488, 16
  %v3614 = vrot.slane %v3612, 4
  %v3615 = vor.u32 %v3614, %v3610
  %v3616 = vrot.slane %v3615, 4
  %v3618 = vshll.u32 %v3489, 16
  %v3620 = vrot.slane %v3618, 5
  %v3621 = vsel %vm137, %v3616, %v3620
  %v3623 = vshrl.u32 %v3490, 16
  %v3625 = vrot.slane %v3623, 4
  %v3626 = vshll.u32 %v3490, 16
  %v3628 = vrot.slane %v3626, 5
  %v3629 = vor.u32 %v3625, %v3628
  %v3630 = vrot.slane %v3629, 4
  %v3632 = vshll.u32 %v3491, 16
  %v3634 = vrot.slane %v3632, 5
  %v3635 = vsel %vm137, %v3630, %v3634
  %v3636 = vshrl.u32 %v3491, 16
  %v3638 = vrot.slane %v3636, 4
  %v3639 = vor.u32 %v3638, %v3634
  %v3640 = vrot.slane %v3639, 4
  %v3642 = vshll.u32 %v3492, 16
  %v3644 = vrot.slane %v3642, 5
  %v3645 = vsel %vm137, %v3640, %v3644
  %v3647 = vshrl.u32 %v3493, 16
  %v3649 = vrot.slane %v3647, 4
  %v3650 = vshll.u32 %v3493, 16
  %v3652 = vrot.slane %v3650, 5
  %v3653 = vor.u32 %v3649, %v3652
  %v3654 = vrot.slane %v3653, 4
  %v3656 = vshll.u32 %v3494, 16
  %v3658 = vrot.slane %v3656, 5
  %v3659 = vsel %vm137, %v3654, %v3658
  %v3660 = vshrl.u32 %v3494, 16
  %v3662 = vrot.slane %v3660, 4
  %v3663 = vor.u32 %v3662, %v3658
  %v3664 = vrot.slane %v3663, 4
  %v3666 = vshll.u32 %v3495, 16
  %v3668 = vrot.slane %v3666, 5
  %v3669 = vsel %vm137, %v3664, %v3668
  %v3671 = vshrl.u32 %v3496, 16
  %v3673 = vrot.slane %v3671, 4
  %v3674 = vshll.u32 %v3496, 16
  %v3676 = vrot.slane %v3674, 5
  %v3677 = vor.u32 %v3673, %v3676
  %v3678 = vrot.slane %v3677, 4
  %v3680 = vshll.u32 %v3497, 16
  %v3682 = vrot.slane %v3680, 5
  %v3683 = vsel %vm137, %v3678, %v3682
  %v3684 = vshrl.u32 %v3497, 16
  %v3686 = vrot.slane %v3684, 4
  %v3687 = vor.u32 %v3686, %v3682
  %v3688 = vrot.slane %v3687, 4
  %v3690 = vshll.u32 %v3498, 16
  %v3692 = vrot.slane %v3690, 5
  %v3693 = vsel %vm137, %v3688, %v3692
  %v3695 = vshrl.u32 %v3499, 16
  %v3697 = vrot.slane %v3695, 4
  %v3698 = vshll.u32 %v3499, 16
  %v3700 = vrot.slane %v3698, 5
  %v3701 = vor.u32 %v3697, %v3700
  %v3702 = vrot.slane %v3701, 4
  %v3704 = vshll.u32 %v3500, 16
  %v3706 = vrot.slane %v3704, 5
  %v3707 = vsel %vm137, %v3702, %v3706
  %v3708 = vshrl.u32 %v3500, 16
  %v3710 = vrot.slane %v3708, 4
  %v3711 = vor.u32 %v3710, %v3706
  %v3712 = vrot.slane %v3711, 4
  %v3714 = vshll.u32 %v3501, 16
  %v3716 = vrot.slane %v3714, 5
  %v3717 = vsel %vm137, %v3712, %v3716
  %v3719 = vshrl.u32 %v3502, 16
  %v3721 = vrot.slane %v3719, 4
  %v3722 = vshll.u32 %v3502, 16
  %v3724 = vrot.slane %v3722, 5
  %v3725 = vor.u32 %v3721, %v3724
  %v3726 = vrot.slane %v3725, 4
  %v3728 = vshll.u32 %v3503, 16
  %v3730 = vrot.slane %v3728, 5
  %v3731 = vsel %vm137, %v3726, %v3730
  %v3732 = vshrl.u32 %v3503, 16
  %v3734 = vrot.slane %v3732, 4
  %v3735 = vor.u32 %v3734, %v3730
  %v3736 = vrot.slane %v3735, 4
  %v3738 = vshll.u32 %v3504, 16
  %v3740 = vrot.slane %v3738, 5
  %v3741 = vsel %vm137, %v3736, %v3740
  %v3743 = vshrl.u32 %v3505, 16
  %v3745 = vrot.slane %v3743, 4
  %v3746 = vshll.u32 %v3505, 16
  %v3748 = vrot.slane %v3746, 5
  %v3749 = vor.u32 %v3745, %v3748
  %v3750 = vrot.slane %v3749, 4
  %v3752 = vshll.u32 %v3506, 16
  %v3754 = vrot.slane %v3752, 5
  %v3755 = vsel %vm137, %v3750, %v3754
  %v3756 = vshrl.u32 %v3506, 16
  %v3758 = vrot.slane %v3756, 4
  %v3759 = vor.u32 %v3758, %v3754
  %v3760 = vrot.slane %v3759, 4
  %v3762 = vshll.u32 %v3507, 16
  %v3764 = vrot.slane %v3762, 5
  %v3765 = vsel %vm137, %v3760, %v3764
  %v3767 = vshrl.u32 %v3508, 16
  %v3769 = vrot.slane %v3767, 4
  %v3770 = vshll.u32 %v3508, 16
  %v3772 = vrot.slane %v3770, 5
  %v3773 = vor.u32 %v3769, %v3772
  %v3774 = vrot.slane %v3773, 4
  %v3776 = vshll.u32 %v3509, 16
  %v3778 = vrot.slane %v3776, 5
  %v3779 = vsel %vm137, %v3774, %v3778
  %v3780 = vshrl.u32 %v3509, 16
  %v3782 = vrot.slane %v3780, 4
  %v3783 = vor.u32 %v3782, %v3778
  %v3784 = vrot.slane %v3783, 4
  %v3786 = vshll.u32 %v3510, 16
  %v3788 = vrot.slane %v3786, 5
  %v3789 = vsel %vm137, %v3784, %v3788
  %v3791 = vshrl.u32 %v3511, 16
  %v3793 = vrot.slane %v3791, 4
  %v3794 = vshll.u32 %v3511, 16
  %v3796 = vrot.slane %v3794, 5
  %v3797 = vor.u32 %v3793, %v3796
  %v3798 = vrot.slane %v3797, 4
  %v3800 = vshll.u32 %v3512, 16
  %v3802 = vrot.slane %v3800, 5
  %v3803 = vsel %vm137, %v3798, %v3802
  %v3804 = vshrl.u32 %v3512, 16
  %v3806 = vrot.slane %v3804, 4
  %v3807 = vor.u32 %v3806, %v3802
  %v3808 = vrot.slane %v3807, 4
  %v3810 = vshll.u32 %v3513, 16
  %v3812 = vrot.slane %v3810, 5
  %v3813 = vsel %vm137, %v3808, %v3812
  %v3815 = vshrl.u32 %v3514, 16
  %v3817 = vrot.slane %v3815, 4
  %v3818 = vshll.u32 %v3514, 16
  %v3820 = vrot.slane %v3818, 5
  %v3821 = vor.u32 %v3817, %v3820
  %v3822 = vrot.slane %v3821, 4
  %v3824 = vshll.u32 %v3515, 16
  %v3826 = vrot.slane %v3824, 5
  %v3827 = vsel %vm137, %v3822, %v3826
  %v3828 = vshrl.u32 %v3515, 16
  %v3830 = vrot.slane %v3828, 4
  %v3831 = vor.u32 %v3830, %v3826
  %v3832 = vrot.slane %v3831, 4
  %v3834 = vshll.u32 %v3516, 16
  %v3836 = vrot.slane %v3834, 5
  %v3837 = vsel %vm137, %v3832, %v3836
  %v3839 = vshrl.u32 %v3517, 16
  %v3841 = vrot.slane %v3839, 4
  %v3842 = vshll.u32 %v3517, 16
  %v3844 = vrot.slane %v3842, 5
  %v3845 = vor.u32 %v3841, %v3844
  %v3846 = vrot.slane %v3845, 4
  %v3848 = vshll.u32 %v3518, 16
  %v3850 = vrot.slane %v3848, 5
  %v3851 = vsel %vm137, %v3846, %v3850
  %v3852 = vshrl.u32 %v3518, 16
  %v3854 = vrot.slane %v3852, 4
  %v3855 = vor.u32 %v3854, %v3850
  %v3856 = vrot.slane %v3855, 4
  %v3858 = vshll.u32 %v3519, 16
  %v3860 = vrot.slane %v3858, 5
  %v3861 = vsel %vm137, %v3856, %v3860
  %v3863 = vshrl.u32 %v3520, 16
  %v3865 = vrot.slane %v3863, 4
  %v3866 = vshll.u32 %v3520, 16
  %v3868 = vrot.slane %v3866, 5
  %v3869 = vor.u32 %v3865, %v3868
  %v3870 = vrot.slane %v3869, 4
  %v3872 = vshll.u32 %v3521, 16
  %v3874 = vrot.slane %v3872, 5
  %v3875 = vsel %vm137, %v3870, %v3874
  %v3876 = vshrl.u32 %v3521, 16
  %v3878 = vrot.slane %v3876, 4
  %v3879 = vor.u32 %v3878, %v3874
  %v3880 = vrot.slane %v3879, 4
  %v3882 = vshll.u32 %v3522, 16
  %v3884 = vrot.slane %v3882, 5
  %v3885 = vsel %vm137, %v3880, %v3884
  %v3887 = vshrl.u32 %v3523, 16
  %v3889 = vrot.slane %v3887, 4
  %v3890 = vshll.u32 %v3523, 16
  %v3892 = vrot.slane %v3890, 5
  %v3893 = vor.u32 %v3889, %v3892
  %v3894 = vrot.slane %v3893, 4
  %v3896 = vshll.u32 %v3524, 16
  %v3898 = vrot.slane %v3896, 5
  %v3899 = vsel %vm137, %v3894, %v3898
  %v3900 = vshrl.u32 %v3524, 16
  %v3902 = vrot.slane %v3900, 4
  %v3903 = vor.u32 %v3902, %v3898
  %v3904 = vrot.slane %v3903, 4
  %v3906 = vshll.u32 %v3525, 16
  %v3908 = vrot.slane %v3906, 5
  %v3909 = vsel %vm137, %v3904, %v3908
  %3910 = vrot.lane.b32.xlu0 %v3539, 4
  %v3911 = vpop.permute.xlu0 %3910
  %3912 = vrot.lane.b32.xlu0 %v3549, 4
  %v3913 = vpop.permute.xlu0 %3912
  %3914 = vrot.lane.b32.xlu0 %v3563, 4
  %v3915 = vpop.permute.xlu0 %3914
  %3916 = vrot.lane.b32.xlu0 %v3573, 4
  %v3917 = vpop.permute.xlu0 %3916
  %3918 = vrot.lane.b32.xlu0 %v3587, 4
  %v3919 = vpop.permute.xlu0 %3918
  %3920 = vrot.lane.b32.xlu0 %v3597, 4
  %v3921 = vpop.permute.xlu0 %3920
  %3922 = vrot.lane.b32.xlu0 %v3611, 4
  %v3923 = vpop.permute.xlu0 %3922
  %3924 = vrot.lane.b32.xlu0 %v3621, 4
  %v3925 = vpop.permute.xlu0 %3924
  %3926 = vrot.lane.b32.xlu0 %v3635, 4
  %v3927 = vpop.permute.xlu0 %3926
  %3928 = vrot.lane.b32.xlu0 %v3645, 4
  %v3929 = vpop.permute.xlu0 %3928
  %3930 = vrot.lane.b32.xlu0 %v3659, 4
  %v3931 = vpop.permute.xlu0 %3930
  %3932 = vrot.lane.b32.xlu0 %v3669, 4
  %v3933 = vpop.permute.xlu0 %3932
  %3934 = vrot.lane.b32.xlu0 %v3683, 4
  %v3935 = vpop.permute.xlu0 %3934
  %3936 = vrot.lane.b32.xlu0 %v3693, 4
  %v3937 = vpop.permute.xlu0 %3936
  %3938 = vrot.lane.b32.xlu0 %v3707, 4
  %v3939 = vpop.permute.xlu0 %3938
  %3940 = vrot.lane.b32.xlu0 %v3717, 4
  %v3941 = vpop.permute.xlu0 %3940
  %3942 = vrot.lane.b32.xlu0 %v3731, 4
  %v3943 = vpop.permute.xlu0 %3942
  %3944 = vrot.lane.b32.xlu0 %v3741, 4
  %v3945 = vpop.permute.xlu0 %3944
  %3946 = vrot.lane.b32.xlu0 %v3755, 4
  %v3947 = vpop.permute.xlu0 %3946
  %3948 = vrot.lane.b32.xlu0 %v3765, 4
  %v3949 = vpop.permute.xlu0 %3948
  %3950 = vrot.lane.b32.xlu0 %v3779, 4
  %v3951 = vpop.permute.xlu0 %3950
  %3952 = vrot.lane.b32.xlu0 %v3789, 4
  %v3953 = vpop.permute.xlu0 %3952
  %3954 = vrot.lane.b32.xlu0 %v3803, 4
  %v3955 = vpop.permute.xlu0 %3954
  %3956 = vrot.lane.b32.xlu0 %v3813, 4
  %v3957 = vpop.permute.xlu0 %3956
  %3958 = vrot.lane.b32.xlu0 %v3827, 4
  %v3959 = vpop.permute.xlu0 %3958
  %3960 = vrot.lane.b32.xlu0 %v3837, 4
  %v3961 = vpop.permute.xlu0 %3960
  %3962 = vrot.lane.b32.xlu0 %v3851, 4
  %v3963 = vpop.permute.xlu0 %3962
  %3964 = vrot.lane.b32.xlu0 %v3861, 4
  %v3965 = vpop.permute.xlu0 %3964
  %3966 = vrot.lane.b32.xlu0 %v3875, 4
  %v3967 = vpop.permute.xlu0 %3966
  %3968 = vrot.lane.b32.xlu0 %v3885, 4
  %v3969 = vpop.permute.xlu0 %3968
  %3970 = vrot.lane.b32.xlu0 %v3899, 4
  %v3971 = vpop.permute.xlu0 %3970
  %3972 = vrot.lane.b32.xlu0 %v3909, 4
  %v3973 = vpop.permute.xlu0 %3972
  %4006 = vst.msk [vmem:[#allocation2] sm:$0xf] %vm618, %v3911
  %4007 = vst.msk [vmem:[#allocation2 + $0x4] sm:$0xf] %vm618, %v3913
  %4008 = vst.msk [vmem:[#allocation2 + $0x8] sm:$0xf] %vm618, %v3915
  %4009 = vst.msk [vmem:[#allocation2 + $0xc] sm:$0xf] %vm618, %v3917
  %4010 = vst.msk [vmem:[#allocation2 + $0x10] sm:$0xf] %vm618, %v3919
  %4011 = vst.msk [vmem:[#allocation2 + $0x14] sm:$0xf] %vm618, %v3921
  %4012 = vst.msk [vmem:[#allocation2 + $0x18] sm:$0xf] %vm618, %v3923
  %4013 = vst.msk [vmem:[#allocation2 + $0x1c] sm:$0xf] %vm618, %v3925
  %4014 = vst.msk [vmem:[#allocation2 + $0x20] sm:$0xf] %vm618, %v3927
  %4015 = vst.msk [vmem:[#allocation2 + $0x24] sm:$0xf] %vm618, %v3929
  %4016 = vst.msk [vmem:[#allocation2 + $0x28] sm:$0xf] %vm618, %v3931
  %4017 = vst.msk [vmem:[#allocation2 + $0x2c] sm:$0xf] %vm618, %v3933
  %4018 = vst.msk [vmem:[#allocation2 + $0x30] sm:$0xf] %vm618, %v3935
  %4019 = vst.msk [vmem:[#allocation2 + $0x34] sm:$0xf] %vm618, %v3937
  %4020 = vst.msk [vmem:[#allocation2 + $0x38] sm:$0xf] %vm618, %v3939
  %4021 = vst.msk [vmem:[#allocation2 + $0x3c] sm:$0xf] %vm618, %v3941
  %4022 = vst.msk [vmem:[#allocation2 + $0x40] sm:$0xf] %vm618, %v3943
  %4023 = vst.msk [vmem:[#allocation2 + $0x44] sm:$0xf] %vm618, %v3945
  %4024 = vst.msk [vmem:[#allocation2 + $0x48] sm:$0xf] %vm618, %v3947
  %4025 = vst.msk [vmem:[#allocation2 + $0x4c] sm:$0xf] %vm618, %v3949
  %4026 = vst.msk [vmem:[#allocation2 + $0x50] sm:$0xf] %vm618, %v3951
  %4027 = vst.msk [vmem:[#allocation2 + $0x54] sm:$0xf] %vm618, %v3953
  %4028 = vst.msk [vmem:[#allocation2 + $0x58] sm:$0xf] %vm618, %v3955
  %4029 = vst.msk [vmem:[#allocation2 + $0x5c] sm:$0xf] %vm618, %v3957
  %4030 = vst.msk [vmem:[#allocation2 + $0x60] sm:$0xf] %vm618, %v3959
  %4031 = vst.msk [vmem:[#allocation2 + $0x64] sm:$0xf] %vm618, %v3961
  %4032 = vst.msk [vmem:[#allocation2 + $0x68] sm:$0xf] %vm618, %v3963
  %4033 = vst.msk [vmem:[#allocation2 + $0x6c] sm:$0xf] %vm618, %v3965
  %4034 = vst.msk [vmem:[#allocation2 + $0x70] sm:$0xf] %vm618, %v3967
  %4035 = vst.msk [vmem:[#allocation2 + $0x74] sm:$0xf] %vm618, %v3969
  %4036 = vst.msk [vmem:[#allocation2 + $0x78] sm:$0xf] %vm618, %v3971
  %4037 = vst.msk [vmem:[#allocation2 + $0x7c] sm:$0xf] %vm618, %v3973
  %v4038 = vld [vmem:[%s3413] sm:$0xe]
  %v4039 = vld [vmem:[%s3413 + $0x4] sm:$0xf]
  %v4040 = vld [vmem:[%s3413 + $0x8] sm:$0x1]
  %v4041 = vld [vmem:[%s3413 + $0xc] sm:$0xe]
  %v4042 = vld [vmem:[%s3413 + $0x10] sm:$0xf]
  %v4043 = vld [vmem:[%s3413 + $0x14] sm:$0x1]
  %v4044 = vld [vmem:[%s3413 + $0x18] sm:$0xe]
  %v4045 = vld [vmem:[%s3413 + $0x1c] sm:$0xf]
  %v4046 = vld [vmem:[%s3413 + $0x20] sm:$0x1]
  %v4047 = vld [vmem:[%s3413 + $0x24] sm:$0xe]
  %v4048 = vld [vmem:[%s3413 + $0x28] sm:$0xf]
  %v4049 = vld [vmem:[%s3413 + $0x2c] sm:$0x1]
  %v4050 = vld [vmem:[%s3413 + $0x30] sm:$0xe]
  %v4051 = vld [vmem:[%s3413 + $0x34] sm:$0xf]
  %v4052 = vld [vmem:[%s3413 + $0x38] sm:$0x1]
  %v4053 = vld [vmem:[%s3413 + $0x3c] sm:$0xe]
  %v4054 = vld [vmem:[%s3413 + $0x40] sm:$0xf]
  %v4055 = vld [vmem:[%s3413 + $0x44] sm:$0x1]
  %v4056 = vld [vmem:[%s3413 + $0x48] sm:$0xe]
  %v4057 = vld [vmem:[%s3413 + $0x4c] sm:$0xf]
  %v4058 = vld [vmem:[%s3413 + $0x50] sm:$0x1]
  %v4059 = vld [vmem:[%s3413 + $0x54] sm:$0xe]
  %v4060 = vld [vmem:[%s3413 + $0x58] sm:$0xf]
  %v4061 = vld [vmem:[%s3413 + $0x5c] sm:$0x1]
  %v4062 = vld [vmem:[%s3413 + $0x60] sm:$0xe]
  %v4063 = vld [vmem:[%s3413 + $0x64] sm:$0xf]
  %v4064 = vld [vmem:[%s3413 + $0x68] sm:$0x1]
  %v4065 = vld [vmem:[%s3413 + $0x6c] sm:$0xe]
  %v4066 = vld [vmem:[%s3413 + $0x70] sm:$0xf]
  %v4067 = vld [vmem:[%s3413 + $0x74] sm:$0x1]
  %v4068 = vld [vmem:[%s3413 + $0x78] sm:$0xe]
  %v4069 = vld [vmem:[%s3413 + $0x7c] sm:$0xf]
  %v4070 = vld [vmem:[%s3413 + $0x80] sm:$0x1]
  %v4071 = vld [vmem:[%s3413 + $0x84] sm:$0xe]
  %v4072 = vld [vmem:[%s3413 + $0x88] sm:$0xf]
  %v4073 = vld [vmem:[%s3413 + $0x8c] sm:$0x1]
  %v4074 = vld [vmem:[%s3413 + $0x90] sm:$0xe]
  %v4075 = vld [vmem:[%s3413 + $0x94] sm:$0xf]
  %v4076 = vld [vmem:[%s3413 + $0x98] sm:$0x1]
  %v4077 = vld [vmem:[%s3413 + $0x9c] sm:$0xe]
  %v4078 = vld [vmem:[%s3413 + $0xa0] sm:$0xf]
  %v4079 = vld [vmem:[%s3413 + $0xa4] sm:$0x1]
  %v4080 = vld [vmem:[%s3413 + $0xa8] sm:$0xe]
  %v4081 = vld [vmem:[%s3413 + $0xac] sm:$0xf]
  %v4082 = vld [vmem:[%s3413 + $0xb0] sm:$0x1]
  %v4083 = vld [vmem:[%s3413 + $0xb4] sm:$0xe]
  %v4084 = vld [vmem:[%s3413 + $0xb8] sm:$0xf]
  %v4085 = vld [vmem:[%s3413 + $0xbc] sm:$0x1]
  %v4134 = vrot.slane %v4038, 5
  %v4135 = vrot.slane %v4134, 4
  %v4136 = vrot.slane %v4039, 5
  %v4137 = vsel %vm749, %v4135, %v4136
  %v4138 = vrot.slane %v4136, 4
  %v4139 = vrot.slane %v4040, 5
  %v4140 = vsel %vm749, %v4138, %v4139
  %v4141 = vrot.slane %v4041, 5
  %v4142 = vrot.slane %v4141, 4
  %v4143 = vrot.slane %v4042, 5
  %v4144 = vsel %vm749, %v4142, %v4143
  %v4145 = vrot.slane %v4143, 4
  %v4146 = vrot.slane %v4043, 5
  %v4147 = vsel %vm749, %v4145, %v4146
  %v4148 = vrot.slane %v4044, 5
  %v4149 = vrot.slane %v4148, 4
  %v4150 = vrot.slane %v4045, 5
  %v4151 = vsel %vm749, %v4149, %v4150
  %v4152 = vrot.slane %v4150, 4
  %v4153 = vrot.slane %v4046, 5
  %v4154 = vsel %vm749, %v4152, %v4153
  %v4155 = vrot.slane %v4047, 5
  %v4156 = vrot.slane %v4155, 4
  %v4157 = vrot.slane %v4048, 5
  %v4158 = vsel %vm749, %v4156, %v4157
  %v4159 = vrot.slane %v4157, 4
  %v4160 = vrot.slane %v4049, 5
  %v4161 = vsel %vm749, %v4159, %v4160
  %v4162 = vrot.slane %v4050, 5
  %v4163 = vrot.slane %v4162, 4
  %v4164 = vrot.slane %v4051, 5
  %v4165 = vsel %vm749, %v4163, %v4164
  %v4166 = vrot.slane %v4164, 4
  %v4167 = vrot.slane %v4052, 5
  %v4168 = vsel %vm749, %v4166, %v4167
  %v4169 = vrot.slane %v4053, 5
  %v4170 = vrot.slane %v4169, 4
  %v4171 = vrot.slane %v4054, 5
  %v4172 = vsel %vm749, %v4170, %v4171
  %v4173 = vrot.slane %v4171, 4
  %v4174 = vrot.slane %v4055, 5
  %v4175 = vsel %vm749, %v4173, %v4174
  %v4176 = vrot.slane %v4056, 5
  %v4177 = vrot.slane %v4176, 4
  %v4178 = vrot.slane %v4057, 5
  %v4179 = vsel %vm749, %v4177, %v4178
  %v4180 = vrot.slane %v4178, 4
  %v4181 = vrot.slane %v4058, 5
  %v4182 = vsel %vm749, %v4180, %v4181
  %v4183 = vrot.slane %v4059, 5
  %v4184 = vrot.slane %v4183, 4
  %v4185 = vrot.slane %v4060, 5
  %v4186 = vsel %vm749, %v4184, %v4185
  %v4187 = vrot.slane %v4185, 4
  %v4188 = vrot.slane %v4061, 5
  %v4189 = vsel %vm749, %v4187, %v4188
  %v4190 = vrot.slane %v4062, 5
  %v4191 = vrot.slane %v4190, 4
  %v4192 = vrot.slane %v4063, 5
  %v4193 = vsel %vm749, %v4191, %v4192
  %v4194 = vrot.slane %v4192, 4
  %v4195 = vrot.slane %v4064, 5
  %v4196 = vsel %vm749, %v4194, %v4195
  %v4197 = vrot.slane %v4065, 5
  %v4198 = vrot.slane %v4197, 4
  %v4199 = vrot.slane %v4066, 5
  %v4200 = vsel %vm749, %v4198, %v4199
  %v4201 = vrot.slane %v4199, 4
  %v4202 = vrot.slane %v4067, 5
  %v4203 = vsel %vm749, %v4201, %v4202
  %v4204 = vrot.slane %v4068, 5
  %v4205 = vrot.slane %v4204, 4
  %v4206 = vrot.slane %v4069, 5
  %v4207 = vsel %vm749, %v4205, %v4206
  %v4208 = vrot.slane %v4206, 4
  %v4209 = vrot.slane %v4070, 5
  %v4210 = vsel %vm749, %v4208, %v4209
  %v4211 = vrot.slane %v4071, 5
  %v4212 = vrot.slane %v4211, 4
  %v4213 = vrot.slane %v4072, 5
  %v4214 = vsel %vm749, %v4212, %v4213
  %v4215 = vrot.slane %v4213, 4
  %v4216 = vrot.slane %v4073, 5
  %v4217 = vsel %vm749, %v4215, %v4216
  %v4218 = vrot.slane %v4074, 5
  %v4219 = vrot.slane %v4218, 4
  %v4220 = vrot.slane %v4075, 5
  %v4221 = vsel %vm749, %v4219, %v4220
  %v4222 = vrot.slane %v4220, 4
  %v4223 = vrot.slane %v4076, 5
  %v4224 = vsel %vm749, %v4222, %v4223
  %v4225 = vrot.slane %v4077, 5
  %v4226 = vrot.slane %v4225, 4
  %v4227 = vrot.slane %v4078, 5
  %v4228 = vsel %vm749, %v4226, %v4227
  %v4229 = vrot.slane %v4227, 4
  %v4230 = vrot.slane %v4079, 5
  %v4231 = vsel %vm749, %v4229, %v4230
  %v4232 = vrot.slane %v4080, 5
  %v4233 = vrot.slane %v4232, 4
  %v4234 = vrot.slane %v4081, 5
  %v4235 = vsel %vm749, %v4233, %v4234
  %v4236 = vrot.slane %v4234, 4
  %v4237 = vrot.slane %v4082, 5
  %v4238 = vsel %vm749, %v4236, %v4237
  %v4239 = vrot.slane %v4083, 5
  %v4240 = vrot.slane %v4239, 4
  %v4241 = vrot.slane %v4084, 5
  %v4242 = vsel %vm749, %v4240, %v4241
  %v4243 = vrot.slane %v4241, 4
  %v4244 = vrot.slane %v4085, 5
  %v4245 = vsel %vm749, %v4243, %v4244
  %4246 = vrot.lane.b32.xlu0 %v4137, 8
  %v4247 = vpop.permute.xlu0 %4246
  %4248 = vrot.lane.b32.xlu0 %v4140, 8
  %v4249 = vpop.permute.xlu0 %4248
  %4250 = vrot.lane.b32.xlu0 %v4144, 8
  %v4251 = vpop.permute.xlu0 %4250
  %4252 = vrot.lane.b32.xlu0 %v4147, 8
  %v4253 = vpop.permute.xlu0 %4252
  %4254 = vrot.lane.b32.xlu0 %v4151, 8
  %v4255 = vpop.permute.xlu0 %4254
  %4256 = vrot.lane.b32.xlu0 %v4154, 8
  %v4257 = vpop.permute.xlu0 %4256
  %4258 = vrot.lane.b32.xlu0 %v4158, 8
  %v4259 = vpop.permute.xlu0 %4258
  %4260 = vrot.lane.b32.xlu0 %v4161, 8
  %v4261 = vpop.permute.xlu0 %4260
  %4262 = vrot.lane.b32.xlu0 %v4165, 8
  %v4263 = vpop.permute.xlu0 %4262
  %4264 = vrot.lane.b32.xlu0 %v4168, 8
  %v4265 = vpop.permute.xlu0 %4264
  %4266 = vrot.lane.b32.xlu0 %v4172, 8
  %v4267 = vpop.permute.xlu0 %4266
  %4268 = vrot.lane.b32.xlu0 %v4175, 8
  %v4269 = vpop.permute.xlu0 %4268
  %4270 = vrot.lane.b32.xlu0 %v4179, 8
  %v4271 = vpop.permute.xlu0 %4270
  %4272 = vrot.lane.b32.xlu0 %v4182, 8
  %v4273 = vpop.permute.xlu0 %4272
  %4274 = vrot.lane.b32.xlu0 %v4186, 8
  %v4275 = vpop.permute.xlu0 %4274
  %4276 = vrot.lane.b32.xlu0 %v4189, 8
  %v4277 = vpop.permute.xlu0 %4276
  %4278 = vrot.lane.b32.xlu0 %v4193, 8
  %v4279 = vpop.permute.xlu0 %4278
  %4280 = vrot.lane.b32.xlu0 %v4196, 8
  %v4281 = vpop.permute.xlu0 %4280
  %4282 = vrot.lane.b32.xlu0 %v4200, 8
  %v4283 = vpop.permute.xlu0 %4282
  %4284 = vrot.lane.b32.xlu0 %v4203, 8
  %v4285 = vpop.permute.xlu0 %4284
  %4286 = vrot.lane.b32.xlu0 %v4207, 8
  %v4287 = vpop.permute.xlu0 %4286
  %4288 = vrot.lane.b32.xlu0 %v4210, 8
  %v4289 = vpop.permute.xlu0 %4288
  %4290 = vrot.lane.b32.xlu0 %v4214, 8
  %v4291 = vpop.permute.xlu0 %4290
  %4292 = vrot.lane.b32.xlu0 %v4217, 8
  %v4293 = vpop.permute.xlu0 %4292
  %4294 = vrot.lane.b32.xlu0 %v4221, 8
  %v4295 = vpop.permute.xlu0 %4294
  %4296 = vrot.lane.b32.xlu0 %v4224, 8
  %v4297 = vpop.permute.xlu0 %4296
  %4298 = vrot.lane.b32.xlu0 %v4228, 8
  %v4299 = vpop.permute.xlu0 %4298
  %4300 = vrot.lane.b32.xlu0 %v4231, 8
  %v4301 = vpop.permute.xlu0 %4300
  %4302 = vrot.lane.b32.xlu0 %v4235, 8
  %v4303 = vpop.permute.xlu0 %4302
  %4304 = vrot.lane.b32.xlu0 %v4238, 8
  %v4305 = vpop.permute.xlu0 %4304
  %4306 = vrot.lane.b32.xlu0 %v4242, 8
  %v4307 = vpop.permute.xlu0 %4306
  %4308 = vrot.lane.b32.xlu0 %v4245, 8
  %v4309 = vpop.permute.xlu0 %4308
  %4342 = vst.msk [vmem:[#allocation2] sm:$0xf] %vm958, %v4247
  %4343 = vst.msk [vmem:[#allocation2 + $0x4] sm:$0xf] %vm958, %v4249
  %4344 = vst.msk [vmem:[#allocation2 + $0x8] sm:$0xf] %vm958, %v4251
  %4345 = vst.msk [vmem:[#allocation2 + $0xc] sm:$0xf] %vm958, %v4253
  %4346 = vst.msk [vmem:[#allocation2 + $0x10] sm:$0xf] %vm958, %v4255
  %4347 = vst.msk [vmem:[#allocation2 + $0x14] sm:$0xf] %vm958, %v4257
  %4348 = vst.msk [vmem:[#allocation2 + $0x18] sm:$0xf] %vm958, %v4259
  %4349 = vst.msk [vmem:[#allocation2 + $0x1c] sm:$0xf] %vm958, %v4261
  %4350 = vst.msk [vmem:[#allocation2 + $0x20] sm:$0xf] %vm958, %v4263
  %4351 = vst.msk [vmem:[#allocation2 + $0x24] sm:$0xf] %vm958, %v4265
  %4352 = vst.msk [vmem:[#allocation2 + $0x28] sm:$0xf] %vm958, %v4267
  %4353 = vst.msk [vmem:[#allocation2 + $0x2c] sm:$0xf] %vm958, %v4269
  %4354 = vst.msk [vmem:[#allocation2 + $0x30] sm:$0xf] %vm958, %v4271
  %4355 = vst.msk [vmem:[#allocation2 + $0x34] sm:$0xf] %vm958, %v4273
  %4356 = vst.msk [vmem:[#allocation2 + $0x38] sm:$0xf] %vm958, %v4275
  %4357 = vst.msk [vmem:[#allocation2 + $0x3c] sm:$0xf] %vm958, %v4277
  %4358 = vst.msk [vmem:[#allocation2 + $0x40] sm:$0xf] %vm958, %v4279
  %4359 = vst.msk [vmem:[#allocation2 + $0x44] sm:$0xf] %vm958, %v4281
  %4360 = vst.msk [vmem:[#allocation2 + $0x48] sm:$0xf] %vm958, %v4283
  %4361 = vst.msk [vmem:[#allocation2 + $0x4c] sm:$0xf] %vm958, %v4285
  %4362 = vst.msk [vmem:[#allocation2 + $0x50] sm:$0xf] %vm958, %v4287
  %4363 = vst.msk [vmem:[#allocation2 + $0x54] sm:$0xf] %vm958, %v4289
  %4364 = vst.msk [vmem:[#allocation2 + $0x58] sm:$0xf] %vm958, %v4291
  %4365 = vst.msk [vmem:[#allocation2 + $0x5c] sm:$0xf] %vm958, %v4293
  %4366 = vst.msk [vmem:[#allocation2 + $0x60] sm:$0xf] %vm958, %v4295
  %4367 = vst.msk [vmem:[#allocation2 + $0x64] sm:$0xf] %vm958, %v4297
  %4368 = vst.msk [vmem:[#allocation2 + $0x68] sm:$0xf] %vm958, %v4299
  %4369 = vst.msk [vmem:[#allocation2 + $0x6c] sm:$0xf] %vm958, %v4301
  %4370 = vst.msk [vmem:[#allocation2 + $0x70] sm:$0xf] %vm958, %v4303
  %4371 = vst.msk [vmem:[#allocation2 + $0x74] sm:$0xf] %vm958, %v4305
  %4372 = vst.msk [vmem:[#allocation2 + $0x78] sm:$0xf] %vm958, %v4307
  %4373 = vst.msk [vmem:[#allocation2 + $0x7c] sm:$0xf] %vm958, %v4309
  %s4374 = sadd.s32 %s992, 54
  %s4375 = smul.addr %s4374, 4
  %s4376 = scalar_lea.vmem %s0, %s4375
  %v4377 = vld [vmem:[%s4376] sm:$0xf]
  %v4378 = vld [vmem:[%s4376 + $0x4] sm:$0xf]
  %v4379 = vld [vmem:[%s4376 + $0xc] sm:$0xf]
  %v4380 = vld [vmem:[%s4376 + $0x10] sm:$0xf]
  %v4381 = vld [vmem:[%s4376 + $0x18] sm:$0xf]
  %v4382 = vld [vmem:[%s4376 + $0x1c] sm:$0xf]
  %v4383 = vld [vmem:[%s4376 + $0x24] sm:$0xf]
  %v4384 = vld [vmem:[%s4376 + $0x28] sm:$0xf]
  %v4385 = vld [vmem:[%s4376 + $0x30] sm:$0xf]
  %v4386 = vld [vmem:[%s4376 + $0x34] sm:$0xf]
  %v4387 = vld [vmem:[%s4376 + $0x3c] sm:$0xf]
  %v4388 = vld [vmem:[%s4376 + $0x40] sm:$0xf]
  %v4389 = vld [vmem:[%s4376 + $0x48] sm:$0xf]
  %v4390 = vld [vmem:[%s4376 + $0x4c] sm:$0xf]
  %v4391 = vld [vmem:[%s4376 + $0x54] sm:$0xf]
  %v4392 = vld [vmem:[%s4376 + $0x58] sm:$0xf]
  %v4393 = vld [vmem:[%s4376 + $0x60] sm:$0xf]
  %v4394 = vld [vmem:[%s4376 + $0x64] sm:$0xf]
  %v4395 = vld [vmem:[%s4376 + $0x6c] sm:$0xf]
  %v4396 = vld [vmem:[%s4376 + $0x70] sm:$0xf]
  %v4397 = vld [vmem:[%s4376 + $0x78] sm:$0xf]
  %v4398 = vld [vmem:[%s4376 + $0x7c] sm:$0xf]
  %v4399 = vld [vmem:[%s4376 + $0x84] sm:$0xf]
  %v4400 = vld [vmem:[%s4376 + $0x88] sm:$0xf]
  %v4401 = vld [vmem:[%s4376 + $0x90] sm:$0xf]
  %v4402 = vld [vmem:[%s4376 + $0x94] sm:$0xf]
  %v4403 = vld [vmem:[%s4376 + $0x9c] sm:$0xf]
  %v4404 = vld [vmem:[%s4376 + $0xa0] sm:$0xf]
  %v4405 = vld [vmem:[%s4376 + $0xa8] sm:$0xf]
  %v4406 = vld [vmem:[%s4376 + $0xac] sm:$0xf]
  %v4407 = vld [vmem:[%s4376 + $0xb4] sm:$0xf]
  %v4408 = vld [vmem:[%s4376 + $0xb8] sm:$0xf]
  %4441 = vrot.lane.b32.xlu0 %v4377, 12
  %v4442 = vpop.permute.xlu0 %4441
  %4443 = vrot.lane.b32.xlu0 %v4378, 12
  %v4444 = vpop.permute.xlu0 %4443
  %4445 = vrot.lane.b32.xlu0 %v4379, 12
  %v4446 = vpop.permute.xlu0 %4445
  %4447 = vrot.lane.b32.xlu0 %v4380, 12
  %v4448 = vpop.permute.xlu0 %4447
  %4449 = vrot.lane.b32.xlu0 %v4381, 12
  %v4450 = vpop.permute.xlu0 %4449
  %4451 = vrot.lane.b32.xlu0 %v4382, 12
  %v4452 = vpop.permute.xlu0 %4451
  %4453 = vrot.lane.b32.xlu0 %v4383, 12
  %v4454 = vpop.permute.xlu0 %4453
  %4455 = vrot.lane.b32.xlu0 %v4384, 12
  %v4456 = vpop.permute.xlu0 %4455
  %4457 = vrot.lane.b32.xlu0 %v4385, 12
  %v4458 = vpop.permute.xlu0 %4457
  %4459 = vrot.lane.b32.xlu0 %v4386, 12
  %v4460 = vpop.permute.xlu0 %4459
  %4461 = vrot.lane.b32.xlu0 %v4387, 12
  %v4462 = vpop.permute.xlu0 %4461
  %4463 = vrot.lane.b32.xlu0 %v4388, 12
  %v4464 = vpop.permute.xlu0 %4463
  %4465 = vrot.lane.b32.xlu0 %v4389, 12
  %v4466 = vpop.permute.xlu0 %4465
  %4467 = vrot.lane.b32.xlu0 %v4390, 12
  %v4468 = vpop.permute.xlu0 %4467
  %4469 = vrot.lane.b32.xlu0 %v4391, 12
  %v4470 = vpop.permute.xlu0 %4469
  %4471 = vrot.lane.b32.xlu0 %v4392, 12
  %v4472 = vpop.permute.xlu0 %4471
  %4473 = vrot.lane.b32.xlu0 %v4393, 12
  %v4474 = vpop.permute.xlu0 %4473
  %4475 = vrot.lane.b32.xlu0 %v4394, 12
  %v4476 = vpop.permute.xlu0 %4475
  %4477 = vrot.lane.b32.xlu0 %v4395, 12
  %v4478 = vpop.permute.xlu0 %4477
  %4479 = vrot.lane.b32.xlu0 %v4396, 12
  %v4480 = vpop.permute.xlu0 %4479
  %4481 = vrot.lane.b32.xlu0 %v4397, 12
  %v4482 = vpop.permute.xlu0 %4481
  %4483 = vrot.lane.b32.xlu0 %v4398, 12
  %v4484 = vpop.permute.xlu0 %4483
  %4485 = vrot.lane.b32.xlu0 %v4399, 12
  %v4486 = vpop.permute.xlu0 %4485
  %4487 = vrot.lane.b32.xlu0 %v4400, 12
  %v4488 = vpop.permute.xlu0 %4487
  %4489 = vrot.lane.b32.xlu0 %v4401, 12
  %v4490 = vpop.permute.xlu0 %4489
  %4491 = vrot.lane.b32.xlu0 %v4402, 12
  %v4492 = vpop.permute.xlu0 %4491
  %4493 = vrot.lane.b32.xlu0 %v4403, 12
  %v4494 = vpop.permute.xlu0 %4493
  %4495 = vrot.lane.b32.xlu0 %v4404, 12
  %v4496 = vpop.permute.xlu0 %4495
  %4497 = vrot.lane.b32.xlu0 %v4405, 12
  %v4498 = vpop.permute.xlu0 %4497
  %4499 = vrot.lane.b32.xlu0 %v4406, 12
  %v4500 = vpop.permute.xlu0 %4499
  %4501 = vrot.lane.b32.xlu0 %v4407, 12
  %v4502 = vpop.permute.xlu0 %4501
  %4503 = vrot.lane.b32.xlu0 %v4408, 12
  %v4504 = vpop.permute.xlu0 %4503
  %4537 = vst.msk [vmem:[#allocation2] sm:$0xf] %vm1155, %v4442
  %4538 = vst.msk [vmem:[#allocation2 + $0x4] sm:$0xf] %vm1155, %v4444
  %4539 = vst.msk [vmem:[#allocation2 + $0x8] sm:$0xf] %vm1155, %v4446
  %4540 = vst.msk [vmem:[#allocation2 + $0xc] sm:$0xf] %vm1155, %v4448
  %4541 = vst.msk [vmem:[#allocation2 + $0x10] sm:$0xf] %vm1155, %v4450
  %4542 = vst.msk [vmem:[#allocation2 + $0x14] sm:$0xf] %vm1155, %v4452
  %4543 = vst.msk [vmem:[#allocation2 + $0x18] sm:$0xf] %vm1155, %v4454
  %4544 = vst.msk [vmem:[#allocation2 + $0x1c] sm:$0xf] %vm1155, %v4456
  %4545 = vst.msk [vmem:[#allocation2 + $0x20] sm:$0xf] %vm1155, %v4458
  %4546 = vst.msk [vmem:[#allocation2 + $0x24] sm:$0xf] %vm1155, %v4460
  %4547 = vst.msk [vmem:[#allocation2 + $0x28] sm:$0xf] %vm1155, %v4462
  %4548 = vst.msk [vmem:[#allocation2 + $0x2c] sm:$0xf] %vm1155, %v4464
  %4549 = vst.msk [vmem:[#allocation2 + $0x30] sm:$0xf] %vm1155, %v4466
  %4550 = vst.msk [vmem:[#allocation2 + $0x34] sm:$0xf] %vm1155, %v4468
  %4551 = vst.msk [vmem:[#allocation2 + $0x38] sm:$0xf] %vm1155, %v4470
  %4552 = vst.msk [vmem:[#allocation2 + $0x3c] sm:$0xf] %vm1155, %v4472
  %4553 = vst.msk [vmem:[#allocation2 + $0x40] sm:$0xf] %vm1155, %v4474
  %4554 = vst.msk [vmem:[#allocation2 + $0x44] sm:$0xf] %vm1155, %v4476
  %4555 = vst.msk [vmem:[#allocation2 + $0x48] sm:$0xf] %vm1155, %v4478
  %4556 = vst.msk [vmem:[#allocation2 + $0x4c] sm:$0xf] %vm1155, %v4480
  %4557 = vst.msk [vmem:[#allocation2 + $0x50] sm:$0xf] %vm1155, %v4482
  %4558 = vst.msk [vmem:[#allocation2 + $0x54] sm:$0xf] %vm1155, %v4484
  %4559 = vst.msk [vmem:[#allocation2 + $0x58] sm:$0xf] %vm1155, %v4486
  %4560 = vst.msk [vmem:[#allocation2 + $0x5c] sm:$0xf] %vm1155, %v4488
  %4561 = vst.msk [vmem:[#allocation2 + $0x60] sm:$0xf] %vm1155, %v4490
  %4562 = vst.msk [vmem:[#allocation2 + $0x64] sm:$0xf] %vm1155, %v4492
  %4563 = vst.msk [vmem:[#allocation2 + $0x68] sm:$0xf] %vm1155, %v4494
  %4564 = vst.msk [vmem:[#allocation2 + $0x6c] sm:$0xf] %vm1155, %v4496
  %4565 = vst.msk [vmem:[#allocation2 + $0x70] sm:$0xf] %vm1155, %v4498
  %4566 = vst.msk [vmem:[#allocation2 + $0x74] sm:$0xf] %vm1155, %v4500
  %4567 = vst.msk [vmem:[#allocation2 + $0x78] sm:$0xf] %vm1155, %v4502
  %4568 = vst.msk [vmem:[#allocation2 + $0x7c] sm:$0xf] %vm1155, %v4504
  %v4569 = vld [vmem:[%s4376] sm:$0xf]
  %v4570 = vld [vmem:[%s4376 + $0x4] sm:$0xf]
  %v4571 = vld [vmem:[%s4376 + $0x8] sm:$0x1]
  %v4572 = vld [vmem:[%s4376 + $0xc] sm:$0xf]
  %v4573 = vld [vmem:[%s4376 + $0x10] sm:$0xf]
  %v4574 = vld [vmem:[%s4376 + $0x14] sm:$0x1]
  %v4575 = vld [vmem:[%s4376 + $0x18] sm:$0xf]
  %v4576 = vld [vmem:[%s4376 + $0x1c] sm:$0xf]
  %v4577 = vld [vmem:[%s4376 + $0x20] sm:$0x1]
  %v4578 = vld [vmem:[%s4376 + $0x24] sm:$0xf]
  %v4579 = vld [vmem:[%s4376 + $0x28] sm:$0xf]
  %v4580 = vld [vmem:[%s4376 + $0x2c] sm:$0x1]
  %v4581 = vld [vmem:[%s4376 + $0x30] sm:$0xf]
  %v4582 = vld [vmem:[%s4376 + $0x34] sm:$0xf]
  %v4583 = vld [vmem:[%s4376 + $0x38] sm:$0x1]
  %v4584 = vld [vmem:[%s4376 + $0x3c] sm:$0xf]
  %v4585 = vld [vmem:[%s4376 + $0x40] sm:$0xf]
  %v4586 = vld [vmem:[%s4376 + $0x44] sm:$0x1]
  %v4587 = vld [vmem:[%s4376 + $0x48] sm:$0xf]
  %v4588 = vld [vmem:[%s4376 + $0x4c] sm:$0xf]
  %v4589 = vld [vmem:[%s4376 + $0x50] sm:$0x1]
  %v4590 = vld [vmem:[%s4376 + $0x54] sm:$0xf]
  %v4591 = vld [vmem:[%s4376 + $0x58] sm:$0xf]
  %v4592 = vld [vmem:[%s4376 + $0x5c] sm:$0x1]
  %v4593 = vld [vmem:[%s4376 + $0x60] sm:$0xf]
  %v4594 = vld [vmem:[%s4376 + $0x64] sm:$0xf]
  %v4595 = vld [vmem:[%s4376 + $0x68] sm:$0x1]
  %v4596 = vld [vmem:[%s4376 + $0x6c] sm:$0xf]
  %v4597 = vld [vmem:[%s4376 + $0x70] sm:$0xf]
  %v4598 = vld [vmem:[%s4376 + $0x74] sm:$0x1]
  %v4599 = vld [vmem:[%s4376 + $0x78] sm:$0xf]
  %v4600 = vld [vmem:[%s4376 + $0x7c] sm:$0xf]
  %v4601 = vld [vmem:[%s4376 + $0x80] sm:$0x1]
  %v4602 = vld [vmem:[%s4376 + $0x84] sm:$0xf]
  %v4603 = vld [vmem:[%s4376 + $0x88] sm:$0xf]
  %v4604 = vld [vmem:[%s4376 + $0x8c] sm:$0x1]
  %v4605 = vld [vmem:[%s4376 + $0x90] sm:$0xf]
  %v4606 = vld [vmem:[%s4376 + $0x94] sm:$0xf]
  %v4607 = vld [vmem:[%s4376 + $0x98] sm:$0x1]
  %v4608 = vld [vmem:[%s4376 + $0x9c] sm:$0xf]
  %v4609 = vld [vmem:[%s4376 + $0xa0] sm:$0xf]
  %v4610 = vld [vmem:[%s4376 + $0xa4] sm:$0x1]
  %v4611 = vld [vmem:[%s4376 + $0xa8] sm:$0xf]
  %v4612 = vld [vmem:[%s4376 + $0xac] sm:$0xf]
  %v4613 = vld [vmem:[%s4376 + $0xb0] sm:$0x1]
  %v4614 = vld [vmem:[%s4376 + $0xb4] sm:$0xf]
  %v4615 = vld [vmem:[%s4376 + $0xb8] sm:$0xf]
  %v4616 = vld [vmem:[%s4376 + $0xbc] sm:$0x1]
  %v4618 = vshrl.u32 %v4569, 16
  %v4620 = vrot.slane %v4618, 4
  %v4621 = vshll.u32 %v4569, 16
  %v4623 = vrot.slane %v4621, 5
  %v4624 = vor.u32 %v4620, %v4623
  %v4625 = vrot.slane %v4624, 4
  %v4627 = vshll.u32 %v4570, 16
  %v4629 = vrot.slane %v4627, 5
  %v4630 = vsel %vm137, %v4625, %v4629
  %v4631 = vshrl.u32 %v4570, 16
  %v4633 = vrot.slane %v4631, 4
  %v4634 = vor.u32 %v4633, %v4629
  %v4635 = vrot.slane %v4634, 4
  %v4637 = vshll.u32 %v4571, 16
  %v4639 = vrot.slane %v4637, 5
  %v4640 = vsel %vm137, %v4635, %v4639
  %v4642 = vshrl.u32 %v4572, 16
  %v4644 = vrot.slane %v4642, 4
  %v4645 = vshll.u32 %v4572, 16
  %v4647 = vrot.slane %v4645, 5
  %v4648 = vor.u32 %v4644, %v4647
  %v4649 = vrot.slane %v4648, 4
  %v4651 = vshll.u32 %v4573, 16
  %v4653 = vrot.slane %v4651, 5
  %v4654 = vsel %vm137, %v4649, %v4653
  %v4655 = vshrl.u32 %v4573, 16
  %v4657 = vrot.slane %v4655, 4
  %v4658 = vor.u32 %v4657, %v4653
  %v4659 = vrot.slane %v4658, 4
  %v4661 = vshll.u32 %v4574, 16
  %v4663 = vrot.slane %v4661, 5
  %v4664 = vsel %vm137, %v4659, %v4663
  %v4666 = vshrl.u32 %v4575, 16
  %v4668 = vrot.slane %v4666, 4
  %v4669 = vshll.u32 %v4575, 16
  %v4671 = vrot.slane %v4669, 5
  %v4672 = vor.u32 %v4668, %v4671
  %v4673 = vrot.slane %v4672, 4
  %v4675 = vshll.u32 %v4576, 16
  %v4677 = vrot.slane %v4675, 5
  %v4678 = vsel %vm137, %v4673, %v4677
  %v4679 = vshrl.u32 %v4576, 16
  %v4681 = vrot.slane %v4679, 4
  %v4682 = vor.u32 %v4681, %v4677
  %v4683 = vrot.slane %v4682, 4
  %v4685 = vshll.u32 %v4577, 16
  %v4687 = vrot.slane %v4685, 5
  %v4688 = vsel %vm137, %v4683, %v4687
  %v4690 = vshrl.u32 %v4578, 16
  %v4692 = vrot.slane %v4690, 4
  %v4693 = vshll.u32 %v4578, 16
  %v4695 = vrot.slane %v4693, 5
  %v4696 = vor.u32 %v4692, %v4695
  %v4697 = vrot.slane %v4696, 4
  %v4699 = vshll.u32 %v4579, 16
  %v4701 = vrot.slane %v4699, 5
  %v4702 = vsel %vm137, %v4697, %v4701
  %v4703 = vshrl.u32 %v4579, 16
  %v4705 = vrot.slane %v4703, 4
  %v4706 = vor.u32 %v4705, %v4701
  %v4707 = vrot.slane %v4706, 4
  %v4709 = vshll.u32 %v4580, 16
  %v4711 = vrot.slane %v4709, 5
  %v4712 = vsel %vm137, %v4707, %v4711
  %v4714 = vshrl.u32 %v4581, 16
  %v4716 = vrot.slane %v4714, 4
  %v4717 = vshll.u32 %v4581, 16
  %v4719 = vrot.slane %v4717, 5
  %v4720 = vor.u32 %v4716, %v4719
  %v4721 = vrot.slane %v4720, 4
  %v4723 = vshll.u32 %v4582, 16
  %v4725 = vrot.slane %v4723, 5
  %v4726 = vsel %vm137, %v4721, %v4725
  %v4727 = vshrl.u32 %v4582, 16
  %v4729 = vrot.slane %v4727, 4
  %v4730 = vor.u32 %v4729, %v4725
  %v4731 = vrot.slane %v4730, 4
  %v4733 = vshll.u32 %v4583, 16
  %v4735 = vrot.slane %v4733, 5
  %v4736 = vsel %vm137, %v4731, %v4735
  %v4738 = vshrl.u32 %v4584, 16
  %v4740 = vrot.slane %v4738, 4
  %v4741 = vshll.u32 %v4584, 16
  %v4743 = vrot.slane %v4741, 5
  %v4744 = vor.u32 %v4740, %v4743
  %v4745 = vrot.slane %v4744, 4
  %v4747 = vshll.u32 %v4585, 16
  %v4749 = vrot.slane %v4747, 5
  %v4750 = vsel %vm137, %v4745, %v4749
  %v4751 = vshrl.u32 %v4585, 16
  %v4753 = vrot.slane %v4751, 4
  %v4754 = vor.u32 %v4753, %v4749
  %v4755 = vrot.slane %v4754, 4
  %v4757 = vshll.u32 %v4586, 16
  %v4759 = vrot.slane %v4757, 5
  %v4760 = vsel %vm137, %v4755, %v4759
  %v4762 = vshrl.u32 %v4587, 16
  %v4764 = vrot.slane %v4762, 4
  %v4765 = vshll.u32 %v4587, 16
  %v4767 = vrot.slane %v4765, 5
  %v4768 = vor.u32 %v4764, %v4767
  %v4769 = vrot.slane %v4768, 4
  %v4771 = vshll.u32 %v4588, 16
  %v4773 = vrot.slane %v4771, 5
  %v4774 = vsel %vm137, %v4769, %v4773
  %v4775 = vshrl.u32 %v4588, 16
  %v4777 = vrot.slane %v4775, 4
  %v4778 = vor.u32 %v4777, %v4773
  %v4779 = vrot.slane %v4778, 4
  %v4781 = vshll.u32 %v4589, 16
  %v4783 = vrot.slane %v4781, 5
  %v4784 = vsel %vm137, %v4779, %v4783
  %v4786 = vshrl.u32 %v4590, 16
  %v4788 = vrot.slane %v4786, 4
  %v4789 = vshll.u32 %v4590, 16
  %v4791 = vrot.slane %v4789, 5
  %v4792 = vor.u32 %v4788, %v4791
  %v4793 = vrot.slane %v4792, 4
  %v4795 = vshll.u32 %v4591, 16
  %v4797 = vrot.slane %v4795, 5
  %v4798 = vsel %vm137, %v4793, %v4797
  %v4799 = vshrl.u32 %v4591, 16
  %v4801 = vrot.slane %v4799, 4
  %v4802 = vor.u32 %v4801, %v4797
  %v4803 = vrot.slane %v4802, 4
  %v4805 = vshll.u32 %v4592, 16
  %v4807 = vrot.slane %v4805, 5
  %v4808 = vsel %vm137, %v4803, %v4807
  %v4810 = vshrl.u32 %v4593, 16
  %v4812 = vrot.slane %v4810, 4
  %v4813 = vshll.u32 %v4593, 16
  %v4815 = vrot.slane %v4813, 5
  %v4816 = vor.u32 %v4812, %v4815
  %v4817 = vrot.slane %v4816, 4
  %v4819 = vshll.u32 %v4594, 16
  %v4821 = vrot.slane %v4819, 5
  %v4822 = vsel %vm137, %v4817, %v4821
  %v4823 = vshrl.u32 %v4594, 16
  %v4825 = vrot.slane %v4823, 4
  %v4826 = vor.u32 %v4825, %v4821
  %v4827 = vrot.slane %v4826, 4
  %v4829 = vshll.u32 %v4595, 16
  %v4831 = vrot.slane %v4829, 5
  %v4832 = vsel %vm137, %v4827, %v4831
  %v4834 = vshrl.u32 %v4596, 16
  %v4836 = vrot.slane %v4834, 4
  %v4837 = vshll.u32 %v4596, 16
  %v4839 = vrot.slane %v4837, 5
  %v4840 = vor.u32 %v4836, %v4839
  %v4841 = vrot.slane %v4840, 4
  %v4843 = vshll.u32 %v4597, 16
  %v4845 = vrot.slane %v4843, 5
  %v4846 = vsel %vm137, %v4841, %v4845
  %v4847 = vshrl.u32 %v4597, 16
  %v4849 = vrot.slane %v4847, 4
  %v4850 = vor.u32 %v4849, %v4845
  %v4851 = vrot.slane %v4850, 4
  %v4853 = vshll.u32 %v4598, 16
  %v4855 = vrot.slane %v4853, 5
  %v4856 = vsel %vm137, %v4851, %v4855
  %v4858 = vshrl.u32 %v4599, 16
  %v4860 = vrot.slane %v4858, 4
  %v4861 = vshll.u32 %v4599, 16
  %v4863 = vrot.slane %v4861, 5
  %v4864 = vor.u32 %v4860, %v4863
  %v4865 = vrot.slane %v4864, 4
  %v4867 = vshll.u32 %v4600, 16
  %v4869 = vrot.slane %v4867, 5
  %v4870 = vsel %vm137, %v4865, %v4869
  %v4871 = vshrl.u32 %v4600, 16
  %v4873 = vrot.slane %v4871, 4
  %v4874 = vor.u32 %v4873, %v4869
  %v4875 = vrot.slane %v4874, 4
  %v4877 = vshll.u32 %v4601, 16
  %v4879 = vrot.slane %v4877, 5
  %v4880 = vsel %vm137, %v4875, %v4879
  %v4882 = vshrl.u32 %v4602, 16
  %v4884 = vrot.slane %v4882, 4
  %v4885 = vshll.u32 %v4602, 16
  %v4887 = vrot.slane %v4885, 5
  %v4888 = vor.u32 %v4884, %v4887
  %v4889 = vrot.slane %v4888, 4
  %v4891 = vshll.u32 %v4603, 16
  %v4893 = vrot.slane %v4891, 5
  %v4894 = vsel %vm137, %v4889, %v4893
  %v4895 = vshrl.u32 %v4603, 16
  %v4897 = vrot.slane %v4895, 4
  %v4898 = vor.u32 %v4897, %v4893
  %v4899 = vrot.slane %v4898, 4
  %v4901 = vshll.u32 %v4604, 16
  %v4903 = vrot.slane %v4901, 5
  %v4904 = vsel %vm137, %v4899, %v4903
  %v4906 = vshrl.u32 %v4605, 16
  %v4908 = vrot.slane %v4906, 4
  %v4909 = vshll.u32 %v4605, 16
  %v4911 = vrot.slane %v4909, 5
  %v4912 = vor.u32 %v4908, %v4911
  %v4913 = vrot.slane %v4912, 4
  %v4915 = vshll.u32 %v4606, 16
  %v4917 = vrot.slane %v4915, 5
  %v4918 = vsel %vm137, %v4913, %v4917
  %v4919 = vshrl.u32 %v4606, 16
  %v4921 = vrot.slane %v4919, 4
  %v4922 = vor.u32 %v4921, %v4917
  %v4923 = vrot.slane %v4922, 4
  %v4925 = vshll.u32 %v4607, 16
  %v4927 = vrot.slane %v4925, 5
  %v4928 = vsel %vm137, %v4923, %v4927
  %v4930 = vshrl.u32 %v4608, 16
  %v4932 = vrot.slane %v4930, 4
  %v4933 = vshll.u32 %v4608, 16
  %v4935 = vrot.slane %v4933, 5
  %v4936 = vor.u32 %v4932, %v4935
  %v4937 = vrot.slane %v4936, 4
  %v4939 = vshll.u32 %v4609, 16
  %v4941 = vrot.slane %v4939, 5
  %v4942 = vsel %vm137, %v4937, %v4941
  %v4943 = vshrl.u32 %v4609, 16
  %v4945 = vrot.slane %v4943, 4
  %v4946 = vor.u32 %v4945, %v4941
  %v4947 = vrot.slane %v4946, 4
  %v4949 = vshll.u32 %v4610, 16
  %v4951 = vrot.slane %v4949, 5
  %v4952 = vsel %vm137, %v4947, %v4951
  %v4954 = vshrl.u32 %v4611, 16
  %v4956 = vrot.slane %v4954, 4
  %v4957 = vshll.u32 %v4611, 16
  %v4959 = vrot.slane %v4957, 5
  %v4960 = vor.u32 %v4956, %v4959
  %v4961 = vrot.slane %v4960, 4
  %v4963 = vshll.u32 %v4612, 16
  %v4965 = vrot.slane %v4963, 5
  %v4966 = vsel %vm137, %v4961, %v4965
  %v4967 = vshrl.u32 %v4612, 16
  %v4969 = vrot.slane %v4967, 4
  %v4970 = vor.u32 %v4969, %v4965
  %v4971 = vrot.slane %v4970, 4
  %v4973 = vshll.u32 %v4613, 16
  %v4975 = vrot.slane %v4973, 5
  %v4976 = vsel %vm137, %v4971, %v4975
  %v4978 = vshrl.u32 %v4614, 16
  %v4980 = vrot.slane %v4978, 4
  %v4981 = vshll.u32 %v4614, 16
  %v4983 = vrot.slane %v4981, 5
  %v4984 = vor.u32 %v4980, %v4983
  %v4985 = vrot.slane %v4984, 4
  %v4987 = vshll.u32 %v4615, 16
  %v4989 = vrot.slane %v4987, 5
  %v4990 = vsel %vm137, %v4985, %v4989
  %v4991 = vshrl.u32 %v4615, 16
  %v4993 = vrot.slane %v4991, 4
  %v4994 = vor.u32 %v4993, %v4989
  %v4995 = vrot.slane %v4994, 4
  %v4997 = vshll.u32 %v4616, 16
  %v4999 = vrot.slane %v4997, 5
  %v5000 = vsel %vm137, %v4995, %v4999
  %5001 = vrot.lane.b32.xlu0 %v4630, 16
  %v5002 = vpop.permute.xlu0 %5001
  %5003 = vrot.lane.b32.xlu0 %v4640, 16
  %v5004 = vpop.permute.xlu0 %5003
  %5005 = vrot.lane.b32.xlu0 %v4654, 16
  %v5006 = vpop.permute.xlu0 %5005
  %5007 = vrot.lane.b32.xlu0 %v4664, 16
  %v5008 = vpop.permute.xlu0 %5007
  %5009 = vrot.lane.b32.xlu0 %v4678, 16
  %v5010 = vpop.permute.xlu0 %5009
  %5011 = vrot.lane.b32.xlu0 %v4688, 16
  %v5012 = vpop.permute.xlu0 %5011
  %5013 = vrot.lane.b32.xlu0 %v4702, 16
  %v5014 = vpop.permute.xlu0 %5013
  %5015 = vrot.lane.b32.xlu0 %v4712, 16
  %v5016 = vpop.permute.xlu0 %5015
  %5017 = vrot.lane.b32.xlu0 %v4726, 16
  %v5018 = vpop.permute.xlu0 %5017
  %5019 = vrot.lane.b32.xlu0 %v4736, 16
  %v5020 = vpop.permute.xlu0 %5019
  %5021 = vrot.lane.b32.xlu0 %v4750, 16
  %v5022 = vpop.permute.xlu0 %5021
  %5023 = vrot.lane.b32.xlu0 %v4760, 16
  %v5024 = vpop.permute.xlu0 %5023
  %5025 = vrot.lane.b32.xlu0 %v4774, 16
  %v5026 = vpop.permute.xlu0 %5025
  %5027 = vrot.lane.b32.xlu0 %v4784, 16
  %v5028 = vpop.permute.xlu0 %5027
  %5029 = vrot.lane.b32.xlu0 %v4798, 16
  %v5030 = vpop.permute.xlu0 %5029
  %5031 = vrot.lane.b32.xlu0 %v4808, 16
  %v5032 = vpop.permute.xlu0 %5031
  %5033 = vrot.lane.b32.xlu0 %v4822, 16
  %v5034 = vpop.permute.xlu0 %5033
  %5035 = vrot.lane.b32.xlu0 %v4832, 16
  %v5036 = vpop.permute.xlu0 %5035
  %5037 = vrot.lane.b32.xlu0 %v4846, 16
  %v5038 = vpop.permute.xlu0 %5037
  %5039 = vrot.lane.b32.xlu0 %v4856, 16
  %v5040 = vpop.permute.xlu0 %5039
  %5041 = vrot.lane.b32.xlu0 %v4870, 16
  %v5042 = vpop.permute.xlu0 %5041
  %5043 = vrot.lane.b32.xlu0 %v4880, 16
  %v5044 = vpop.permute.xlu0 %5043
  %5045 = vrot.lane.b32.xlu0 %v4894, 16
  %v5046 = vpop.permute.xlu0 %5045
  %5047 = vrot.lane.b32.xlu0 %v4904, 16
  %v5048 = vpop.permute.xlu0 %5047
  %5049 = vrot.lane.b32.xlu0 %v4918, 16
  %v5050 = vpop.permute.xlu0 %5049
  %5051 = vrot.lane.b32.xlu0 %v4928, 16
  %v5052 = vpop.permute.xlu0 %5051
  %5053 = vrot.lane.b32.xlu0 %v4942, 16
  %v5054 = vpop.permute.xlu0 %5053
  %5055 = vrot.lane.b32.xlu0 %v4952, 16
  %v5056 = vpop.permute.xlu0 %5055
  %5057 = vrot.lane.b32.xlu0 %v4966, 16
  %v5058 = vpop.permute.xlu0 %5057
  %5059 = vrot.lane.b32.xlu0 %v4976, 16
  %v5060 = vpop.permute.xlu0 %5059
  %5061 = vrot.lane.b32.xlu0 %v4990, 16
  %v5062 = vpop.permute.xlu0 %5061
  %5063 = vrot.lane.b32.xlu0 %v5000, 16
  %v5064 = vpop.permute.xlu0 %5063
  %5097 = vst.msk [vmem:[#allocation2] sm:$0xf] %vm1716, %v5002
  %5098 = vst.msk [vmem:[#allocation2 + $0x4] sm:$0xf] %vm1716, %v5004
  %5099 = vst.msk [vmem:[#allocation2 + $0x8] sm:$0xf] %vm1716, %v5006
  %5100 = vst.msk [vmem:[#allocation2 + $0xc] sm:$0xf] %vm1716, %v5008
  %5101 = vst.msk [vmem:[#allocation2 + $0x10] sm:$0xf] %vm1716, %v5010
  %5102 = vst.msk [vmem:[#allocation2 + $0x14] sm:$0xf] %vm1716, %v5012
  %5103 = vst.msk [vmem:[#allocation2 + $0x18] sm:$0xf] %vm1716, %v5014
  %5104 = vst.msk [vmem:[#allocation2 + $0x1c] sm:$0xf] %vm1716, %v5016
  %5105 = vst.msk [vmem:[#allocation2 + $0x20] sm:$0xf] %vm1716, %v5018
  %5106 = vst.msk [vmem:[#allocation2 + $0x24] sm:$0xf] %vm1716, %v5020
  %5107 = vst.msk [vmem:[#allocation2 + $0x28] sm:$0xf] %vm1716, %v5022
  %5108 = vst.msk [vmem:[#allocation2 + $0x2c] sm:$0xf] %vm1716, %v5024
  %5109 = vst.msk [vmem:[#allocation2 + $0x30] sm:$0xf] %vm1716, %v5026
  %5110 = vst.msk [vmem:[#allocation2 + $0x34] sm:$0xf] %vm1716, %v5028
  %5111 = vst.msk [vmem:[#allocation2 + $0x38] sm:$0xf] %vm1716, %v5030
  %5112 = vst.msk [vmem:[#allocation2 + $0x3c] sm:$0xf] %vm1716, %v5032
  %5113 = vst.msk [vmem:[#allocation2 + $0x40] sm:$0xf] %vm1716, %v5034
  %5114 = vst.msk [vmem:[#allocation2 + $0x44] sm:$0xf] %vm1716, %v5036
  %5115 = vst.msk [vmem:[#allocation2 + $0x48] sm:$0xf] %vm1716, %v5038
  %5116 = vst.msk [vmem:[#allocation2 + $0x4c] sm:$0xf] %vm1716, %v5040
  %5117 = vst.msk [vmem:[#allocation2 + $0x50] sm:$0xf] %vm1716, %v5042
  %5118 = vst.msk [vmem:[#allocation2 + $0x54] sm:$0xf] %vm1716, %v5044
  %5119 = vst.msk [vmem:[#allocation2 + $0x58] sm:$0xf] %vm1716, %v5046
  %5120 = vst.msk [vmem:[#allocation2 + $0x5c] sm:$0xf] %vm1716, %v5048
  %5121 = vst.msk [vmem:[#allocation2 + $0x60] sm:$0xf] %vm1716, %v5050
  %5122 = vst.msk [vmem:[#allocation2 + $0x64] sm:$0xf] %vm1716, %v5052
  %5123 = vst.msk [vmem:[#allocation2 + $0x68] sm:$0xf] %vm1716, %v5054
  %5124 = vst.msk [vmem:[#allocation2 + $0x6c] sm:$0xf] %vm1716, %v5056
  %5125 = vst.msk [vmem:[#allocation2 + $0x70] sm:$0xf] %vm1716, %v5058
  %5126 = vst.msk [vmem:[#allocation2 + $0x74] sm:$0xf] %vm1716, %v5060
  %5127 = vst.msk [vmem:[#allocation2 + $0x78] sm:$0xf] %vm1716, %v5062
  %5128 = vst.msk [vmem:[#allocation2 + $0x7c] sm:$0xf] %vm1716, %v5064
  %v5129 = vld [vmem:[%s4376] sm:$0xe]
  %v5130 = vld [vmem:[%s4376 + $0x4] sm:$0xf]
  %v5131 = vld [vmem:[%s4376 + $0x8] sm:$0x1]
  %v5132 = vld [vmem:[%s4376 + $0xc] sm:$0xe]
  %v5133 = vld [vmem:[%s4376 + $0x10] sm:$0xf]
  %v5134 = vld [vmem:[%s4376 + $0x14] sm:$0x1]
  %v5135 = vld [vmem:[%s4376 + $0x18] sm:$0xe]
  %v5136 = vld [vmem:[%s4376 + $0x1c] sm:$0xf]
  %v5137 = vld [vmem:[%s4376 + $0x20] sm:$0x1]
  %v5138 = vld [vmem:[%s4376 + $0x24] sm:$0xe]
  %v5139 = vld [vmem:[%s4376 + $0x28] sm:$0xf]
  %v5140 = vld [vmem:[%s4376 + $0x2c] sm:$0x1]
  %v5141 = vld [vmem:[%s4376 + $0x30] sm:$0xe]
  %v5142 = vld [vmem:[%s4376 + $0x34] sm:$0xf]
  %v5143 = vld [vmem:[%s4376 + $0x38] sm:$0x1]
  %v5144 = vld [vmem:[%s4376 + $0x3c] sm:$0xe]
  %v5145 = vld [vmem:[%s4376 + $0x40] sm:$0xf]
  %v5146 = vld [vmem:[%s4376 + $0x44] sm:$0x1]
  %v5147 = vld [vmem:[%s4376 + $0x48] sm:$0xe]
  %v5148 = vld [vmem:[%s4376 + $0x4c] sm:$0xf]
  %v5149 = vld [vmem:[%s4376 + $0x50] sm:$0x1]
  %v5150 = vld [vmem:[%s4376 + $0x54] sm:$0xe]
  %v5151 = vld [vmem:[%s4376 + $0x58] sm:$0xf]
  %v5152 = vld [vmem:[%s4376 + $0x5c] sm:$0x1]
  %v5153 = vld [vmem:[%s4376 + $0x60] sm:$0xe]
  %v5154 = vld [vmem:[%s4376 + $0x64] sm:$0xf]
  %v5155 = vld [vmem:[%s4376 + $0x68] sm:$0x1]
  %v5156 = vld [vmem:[%s4376 + $0x6c] sm:$0xe]
  %v5157 = vld [vmem:[%s4376 + $0x70] sm:$0xf]
  %v5158 = vld [vmem:[%s4376 + $0x74] sm:$0x1]
  %v5159 = vld [vmem:[%s4376 + $0x78] sm:$0xe]
  %v5160 = vld [vmem:[%s4376 + $0x7c] sm:$0xf]
  %v5161 = vld [vmem:[%s4376 + $0x80] sm:$0x1]
  %v5162 = vld [vmem:[%s4376 + $0x84] sm:$0xe]
  %v5163 = vld [vmem:[%s4376 + $0x88] sm:$0xf]
  %v5164 = vld [vmem:[%s4376 + $0x8c] sm:$0x1]
  %v5165 = vld [vmem:[%s4376 + $0x90] sm:$0xe]
  %v5166 = vld [vmem:[%s4376 + $0x94] sm:$0xf]
  %v5167 = vld [vmem:[%s4376 + $0x98] sm:$0x1]
  %v5168 = vld [vmem:[%s4376 + $0x9c] sm:$0xe]
  %v5169 = vld [vmem:[%s4376 + $0xa0] sm:$0xf]
  %v5170 = vld [vmem:[%s4376 + $0xa4] sm:$0x1]
  %v5171 = vld [vmem:[%s4376 + $0xa8] sm:$0xe]
  %v5172 = vld [vmem:[%s4376 + $0xac] sm:$0xf]
  %v5173 = vld [vmem:[%s4376 + $0xb0] sm:$0x1]
  %v5174 = vld [vmem:[%s4376 + $0xb4] sm:$0xe]
  %v5175 = vld [vmem:[%s4376 + $0xb8] sm:$0xf]
  %v5176 = vld [vmem:[%s4376 + $0xbc] sm:$0x1]
  %v5225 = vrot.slane %v5129, 5
  %v5226 = vrot.slane %v5225, 4
  %v5227 = vrot.slane %v5130, 5
  %v5228 = vsel %vm749, %v5226, %v5227
  %v5229 = vrot.slane %v5227, 4
  %v5230 = vrot.slane %v5131, 5
  %v5231 = vsel %vm749, %v5229, %v5230
  %v5232 = vrot.slane %v5132, 5
  %v5233 = vrot.slane %v5232, 4
  %v5234 = vrot.slane %v5133, 5
  %v5235 = vsel %vm749, %v5233, %v5234
  %v5236 = vrot.slane %v5234, 4
  %v5237 = vrot.slane %v5134, 5
  %v5238 = vsel %vm749, %v5236, %v5237
  %v5239 = vrot.slane %v5135, 5
  %v5240 = vrot.slane %v5239, 4
  %v5241 = vrot.slane %v5136, 5
  %v5242 = vsel %vm749, %v5240, %v5241
  %v5243 = vrot.slane %v5241, 4
  %v5244 = vrot.slane %v5137, 5
  %v5245 = vsel %vm749, %v5243, %v5244
  %v5246 = vrot.slane %v5138, 5
  %v5247 = vrot.slane %v5246, 4
  %v5248 = vrot.slane %v5139, 5
  %v5249 = vsel %vm749, %v5247, %v5248
  %v5250 = vrot.slane %v5248, 4
  %v5251 = vrot.slane %v5140, 5
  %v5252 = vsel %vm749, %v5250, %v5251
  %v5253 = vrot.slane %v5141, 5
  %v5254 = vrot.slane %v5253, 4
  %v5255 = vrot.slane %v5142, 5
  %v5256 = vsel %vm749, %v5254, %v5255
  %v5257 = vrot.slane %v5255, 4
  %v5258 = vrot.slane %v5143, 5
  %v5259 = vsel %vm749, %v5257, %v5258
  %v5260 = vrot.slane %v5144, 5
  %v5261 = vrot.slane %v5260, 4
  %v5262 = vrot.slane %v5145, 5
  %v5263 = vsel %vm749, %v5261, %v5262
  %v5264 = vrot.slane %v5262, 4
  %v5265 = vrot.slane %v5146, 5
  %v5266 = vsel %vm749, %v5264, %v5265
  %v5267 = vrot.slane %v5147, 5
  %v5268 = vrot.slane %v5267, 4
  %v5269 = vrot.slane %v5148, 5
  %v5270 = vsel %vm749, %v5268, %v5269
  %v5271 = vrot.slane %v5269, 4
  %v5272 = vrot.slane %v5149, 5
  %v5273 = vsel %vm749, %v5271, %v5272
  %v5274 = vrot.slane %v5150, 5
  %v5275 = vrot.slane %v5274, 4
  %v5276 = vrot.slane %v5151, 5
  %v5277 = vsel %vm749, %v5275, %v5276
  %v5278 = vrot.slane %v5276, 4
  %v5279 = vrot.slane %v5152, 5
  %v5280 = vsel %vm749, %v5278, %v5279
  %v5281 = vrot.slane %v5153, 5
  %v5282 = vrot.slane %v5281, 4
  %v5283 = vrot.slane %v5154, 5
  %v5284 = vsel %vm749, %v5282, %v5283
  %v5285 = vrot.slane %v5283, 4
  %v5286 = vrot.slane %v5155, 5
  %v5287 = vsel %vm749, %v5285, %v5286
  %v5288 = vrot.slane %v5156, 5
  %v5289 = vrot.slane %v5288, 4
  %v5290 = vrot.slane %v5157, 5
  %v5291 = vsel %vm749, %v5289, %v5290
  %v5292 = vrot.slane %v5290, 4
  %v5293 = vrot.slane %v5158, 5
  %v5294 = vsel %vm749, %v5292, %v5293
  %v5295 = vrot.slane %v5159, 5
  %v5296 = vrot.slane %v5295, 4
  %v5297 = vrot.slane %v5160, 5
  %v5298 = vsel %vm749, %v5296, %v5297
  %v5299 = vrot.slane %v5297, 4
  %v5300 = vrot.slane %v5161, 5
  %v5301 = vsel %vm749, %v5299, %v5300
  %v5302 = vrot.slane %v5162, 5
  %v5303 = vrot.slane %v5302, 4
  %v5304 = vrot.slane %v5163, 5
  %v5305 = vsel %vm749, %v5303, %v5304
  %v5306 = vrot.slane %v5304, 4
  %v5307 = vrot.slane %v5164, 5
  %v5308 = vsel %vm749, %v5306, %v5307
  %v5309 = vrot.slane %v5165, 5
  %v5310 = vrot.slane %v5309, 4
  %v5311 = vrot.slane %v5166, 5
  %v5312 = vsel %vm749, %v5310, %v5311
  %v5313 = vrot.slane %v5311, 4
  %v5314 = vrot.slane %v5167, 5
  %v5315 = vsel %vm749, %v5313, %v5314
  %v5316 = vrot.slane %v5168, 5
  %v5317 = vrot.slane %v5316, 4
  %v5318 = vrot.slane %v5169, 5
  %v5319 = vsel %vm749, %v5317, %v5318
  %v5320 = vrot.slane %v5318, 4
  %v5321 = vrot.slane %v5170, 5
  %v5322 = vsel %vm749, %v5320, %v5321
  %v5323 = vrot.slane %v5171, 5
  %v5324 = vrot.slane %v5323, 4
  %v5325 = vrot.slane %v5172, 5
  %v5326 = vsel %vm749, %v5324, %v5325
  %v5327 = vrot.slane %v5325, 4
  %v5328 = vrot.slane %v5173, 5
  %v5329 = vsel %vm749, %v5327, %v5328
  %v5330 = vrot.slane %v5174, 5
  %v5331 = vrot.slane %v5330, 4
  %v5332 = vrot.slane %v5175, 5
  %v5333 = vsel %vm749, %v5331, %v5332
  %v5334 = vrot.slane %v5332, 4
  %v5335 = vrot.slane %v5176, 5
  %v5336 = vsel %vm749, %v5334, %v5335
  %5337 = vrot.lane.b32.xlu0 %v5228, 20
  %v5338 = vpop.permute.xlu0 %5337
  %5339 = vrot.lane.b32.xlu0 %v5231, 20
  %v5340 = vpop.permute.xlu0 %5339
  %5341 = vrot.lane.b32.xlu0 %v5235, 20
  %v5342 = vpop.permute.xlu0 %5341
  %5343 = vrot.lane.b32.xlu0 %v5238, 20
  %v5344 = vpop.permute.xlu0 %5343
  %5345 = vrot.lane.b32.xlu0 %v5242, 20
  %v5346 = vpop.permute.xlu0 %5345
  %5347 = vrot.lane.b32.xlu0 %v5245, 20
  %v5348 = vpop.permute.xlu0 %5347
  %5349 = vrot.lane.b32.xlu0 %v5249, 20
  %v5350 = vpop.permute.xlu0 %5349
  %5351 = vrot.lane.b32.xlu0 %v5252, 20
  %v5352 = vpop.permute.xlu0 %5351
  %5353 = vrot.lane.b32.xlu0 %v5256, 20
  %v5354 = vpop.permute.xlu0 %5353
  %5355 = vrot.lane.b32.xlu0 %v5259, 20
  %v5356 = vpop.permute.xlu0 %5355
  %5357 = vrot.lane.b32.xlu0 %v5263, 20
  %v5358 = vpop.permute.xlu0 %5357
  %5359 = vrot.lane.b32.xlu0 %v5266, 20
  %v5360 = vpop.permute.xlu0 %5359
  %5361 = vrot.lane.b32.xlu0 %v5270, 20
  %v5362 = vpop.permute.xlu0 %5361
  %5363 = vrot.lane.b32.xlu0 %v5273, 20
  %v5364 = vpop.permute.xlu0 %5363
  %5365 = vrot.lane.b32.xlu0 %v5277, 20
  %v5366 = vpop.permute.xlu0 %5365
  %5367 = vrot.lane.b32.xlu0 %v5280, 20
  %v5368 = vpop.permute.xlu0 %5367
  %5369 = vrot.lane.b32.xlu0 %v5284, 20
  %v5370 = vpop.permute.xlu0 %5369
  %5371 = vrot.lane.b32.xlu0 %v5287, 20
  %v5372 = vpop.permute.xlu0 %5371
  %5373 = vrot.lane.b32.xlu0 %v5291, 20
  %v5374 = vpop.permute.xlu0 %5373
  %5375 = vrot.lane.b32.xlu0 %v5294, 20
  %v5376 = vpop.permute.xlu0 %5375
  %5377 = vrot.lane.b32.xlu0 %v5298, 20
  %v5378 = vpop.permute.xlu0 %5377
  %5379 = vrot.lane.b32.xlu0 %v5301, 20
  %v5380 = vpop.permute.xlu0 %5379
  %5381 = vrot.lane.b32.xlu0 %v5305, 20
  %v5382 = vpop.permute.xlu0 %5381
  %5383 = vrot.lane.b32.xlu0 %v5308, 20
  %v5384 = vpop.permute.xlu0 %5383
  %5385 = vrot.lane.b32.xlu0 %v5312, 20
  %v5386 = vpop.permute.xlu0 %5385
  %5387 = vrot.lane.b32.xlu0 %v5315, 20
  %v5388 = vpop.permute.xlu0 %5387
  %5389 = vrot.lane.b32.xlu0 %v5319, 20
  %v5390 = vpop.permute.xlu0 %5389
  %5391 = vrot.lane.b32.xlu0 %v5322, 20
  %v5392 = vpop.permute.xlu0 %5391
  %5393 = vrot.lane.b32.xlu0 %v5326, 20
  %v5394 = vpop.permute.xlu0 %5393
  %5395 = vrot.lane.b32.xlu0 %v5329, 20
  %v5396 = vpop.permute.xlu0 %5395
  %5397 = vrot.lane.b32.xlu0 %v5333, 20
  %v5398 = vpop.permute.xlu0 %5397
  %5399 = vrot.lane.b32.xlu0 %v5336, 20
  %v5400 = vpop.permute.xlu0 %5399
  %5433 = vst.msk [vmem:[#allocation2] sm:$0xf] %vm2053, %v5338
  %5434 = vst.msk [vmem:[#allocation2 + $0x4] sm:$0xf] %vm2053, %v5340
  %5435 = vst.msk [vmem:[#allocation2 + $0x8] sm:$0xf] %vm2053, %v5342
  %5436 = vst.msk [vmem:[#allocation2 + $0xc] sm:$0xf] %vm2053, %v5344
  %5437 = vst.msk [vmem:[#allocation2 + $0x10] sm:$0xf] %vm2053, %v5346
  %5438 = vst.msk [vmem:[#allocation2 + $0x14] sm:$0xf] %vm2053, %v5348
  %5439 = vst.msk [vmem:[#allocation2 + $0x18] sm:$0xf] %vm2053, %v5350
  %5440 = vst.msk [vmem:[#allocation2 + $0x1c] sm:$0xf] %vm2053, %v5352
  %5441 = vst.msk [vmem:[#allocation2 + $0x20] sm:$0xf] %vm2053, %v5354
  %5442 = vst.msk [vmem:[#allocation2 + $0x24] sm:$0xf] %vm2053, %v5356
  %5443 = vst.msk [vmem:[#allocation2 + $0x28] sm:$0xf] %vm2053, %v5358
  %5444 = vst.msk [vmem:[#allocation2 + $0x2c] sm:$0xf] %vm2053, %v5360
  %5445 = vst.msk [vmem:[#allocation2 + $0x30] sm:$0xf] %vm2053, %v5362
  %5446 = vst.msk [vmem:[#allocation2 + $0x34] sm:$0xf] %vm2053, %v5364
  %5447 = vst.msk [vmem:[#allocation2 + $0x38] sm:$0xf] %vm2053, %v5366
  %5448 = vst.msk [vmem:[#allocation2 + $0x3c] sm:$0xf] %vm2053, %v5368
  %5449 = vst.msk [vmem:[#allocation2 + $0x40] sm:$0xf] %vm2053, %v5370
  %5450 = vst.msk [vmem:[#allocation2 + $0x44] sm:$0xf] %vm2053, %v5372
  %5451 = vst.msk [vmem:[#allocation2 + $0x48] sm:$0xf] %vm2053, %v5374
  %5452 = vst.msk [vmem:[#allocation2 + $0x4c] sm:$0xf] %vm2053, %v5376
  %5453 = vst.msk [vmem:[#allocation2 + $0x50] sm:$0xf] %vm2053, %v5378
  %5454 = vst.msk [vmem:[#allocation2 + $0x54] sm:$0xf] %vm2053, %v5380
  %5455 = vst.msk [vmem:[#allocation2 + $0x58] sm:$0xf] %vm2053, %v5382
  %5456 = vst.msk [vmem:[#allocation2 + $0x5c] sm:$0xf] %vm2053, %v5384
  %5457 = vst.msk [vmem:[#allocation2 + $0x60] sm:$0xf] %vm2053, %v5386
  %5458 = vst.msk [vmem:[#allocation2 + $0x64] sm:$0xf] %vm2053, %v5388
  %5459 = vst.msk [vmem:[#allocation2 + $0x68] sm:$0xf] %vm2053, %v5390
  %5460 = vst.msk [vmem:[#allocation2 + $0x6c] sm:$0xf] %vm2053, %v5392
  %5461 = vst.msk [vmem:[#allocation2 + $0x70] sm:$0xf] %vm2053, %v5394
  %5462 = vst.msk [vmem:[#allocation2 + $0x74] sm:$0xf] %vm2053, %v5396
  %5463 = vst.msk [vmem:[#allocation2 + $0x78] sm:$0xf] %vm2053, %v5398
  %5464 = vst.msk [vmem:[#allocation2 + $0x7c] sm:$0xf] %vm2053, %v5400
  %s5465 = sadd.s32 %s2087, 54
  %s5466 = smul.addr %s5465, 4
  %s5467 = scalar_lea.vmem %s0, %s5466
  %v5468 = vld [vmem:[%s5467] sm:$0xf]
  %v5469 = vld [vmem:[%s5467 + $0x4] sm:$0xf]
  %v5470 = vld [vmem:[%s5467 + $0xc] sm:$0xf]
  %v5471 = vld [vmem:[%s5467 + $0x10] sm:$0xf]
  %v5472 = vld [vmem:[%s5467 + $0x18] sm:$0xf]
  %v5473 = vld [vmem:[%s5467 + $0x1c] sm:$0xf]
  %v5474 = vld [vmem:[%s5467 + $0x24] sm:$0xf]
  %v5475 = vld [vmem:[%s5467 + $0x28] sm:$0xf]
  %v5476 = vld [vmem:[%s5467 + $0x30] sm:$0xf]
  %v5477 = vld [vmem:[%s5467 + $0x34] sm:$0xf]
  %v5478 = vld [vmem:[%s5467 + $0x3c] sm:$0xf]
  %v5479 = vld [vmem:[%s5467 + $0x40] sm:$0xf]
  %v5480 = vld [vmem:[%s5467 + $0x48] sm:$0xf]
  %v5481 = vld [vmem:[%s5467 + $0x4c] sm:$0xf]
  %v5482 = vld [vmem:[%s5467 + $0x54] sm:$0xf]
  %v5483 = vld [vmem:[%s5467 + $0x58] sm:$0xf]
  %v5484 = vld [vmem:[%s5467 + $0x60] sm:$0xf]
  %v5485 = vld [vmem:[%s5467 + $0x64] sm:$0xf]
  %v5486 = vld [vmem:[%s5467 + $0x6c] sm:$0xf]
  %v5487 = vld [vmem:[%s5467 + $0x70] sm:$0xf]
  %v5488 = vld [vmem:[%s5467 + $0x78] sm:$0xf]
  %v5489 = vld [vmem:[%s5467 + $0x7c] sm:$0xf]
  %v5490 = vld [vmem:[%s5467 + $0x84] sm:$0xf]
  %v5491 = vld [vmem:[%s5467 + $0x88] sm:$0xf]
  %v5492 = vld [vmem:[%s5467 + $0x90] sm:$0xf]
  %v5493 = vld [vmem:[%s5467 + $0x94] sm:$0xf]
  %v5494 = vld [vmem:[%s5467 + $0x9c] sm:$0xf]
  %v5495 = vld [vmem:[%s5467 + $0xa0] sm:$0xf]
  %v5496 = vld [vmem:[%s5467 + $0xa8] sm:$0xf]
  %v5497 = vld [vmem:[%s5467 + $0xac] sm:$0xf]
  %v5498 = vld [vmem:[%s5467 + $0xb4] sm:$0xf]
  %v5499 = vld [vmem:[%s5467 + $0xb8] sm:$0xf]
  %5532 = vrot.lane.b32.xlu0 %v5468, 24
  %v5533 = vpop.permute.xlu0 %5532
  %5534 = vrot.lane.b32.xlu0 %v5469, 24
  %v5535 = vpop.permute.xlu0 %5534
  %5536 = vrot.lane.b32.xlu0 %v5470, 24
  %v5537 = vpop.permute.xlu0 %5536
  %5538 = vrot.lane.b32.xlu0 %v5471, 24
  %v5539 = vpop.permute.xlu0 %5538
  %5540 = vrot.lane.b32.xlu0 %v5472, 24
  %v5541 = vpop.permute.xlu0 %5540
  %5542 = vrot.lane.b32.xlu0 %v5473, 24
  %v5543 = vpop.permute.xlu0 %5542
  %5544 = vrot.lane.b32.xlu0 %v5474, 24
  %v5545 = vpop.permute.xlu0 %5544
  %5546 = vrot.lane.b32.xlu0 %v5475, 24
  %v5547 = vpop.permute.xlu0 %5546
  %5548 = vrot.lane.b32.xlu0 %v5476, 24
  %v5549 = vpop.permute.xlu0 %5548
  %5550 = vrot.lane.b32.xlu0 %v5477, 24
  %v5551 = vpop.permute.xlu0 %5550
  %5552 = vrot.lane.b32.xlu0 %v5478, 24
  %v5553 = vpop.permute.xlu0 %5552
  %5554 = vrot.lane.b32.xlu0 %v5479, 24
  %v5555 = vpop.permute.xlu0 %5554
  %5556 = vrot.lane.b32.xlu0 %v5480, 24
  %v5557 = vpop.permute.xlu0 %5556
  %5558 = vrot.lane.b32.xlu0 %v5481, 24
  %v5559 = vpop.permute.xlu0 %5558
  %5560 = vrot.lane.b32.xlu0 %v5482, 24
  %v5561 = vpop.permute.xlu0 %5560
  %5562 = vrot.lane.b32.xlu0 %v5483, 24
  %v5563 = vpop.permute.xlu0 %5562
  %5564 = vrot.lane.b32.xlu0 %v5484, 24
  %v5565 = vpop.permute.xlu0 %5564
  %5566 = vrot.lane.b32.xlu0 %v5485, 24
  %v5567 = vpop.permute.xlu0 %5566
  %5568 = vrot.lane.b32.xlu0 %v5486, 24
  %v5569 = vpop.permute.xlu0 %5568
  %5570 = vrot.lane.b32.xlu0 %v5487, 24
  %v5571 = vpop.permute.xlu0 %5570
  %5572 = vrot.lane.b32.xlu0 %v5488, 24
  %v5573 = vpop.permute.xlu0 %5572
  %5574 = vrot.lane.b32.xlu0 %v5489, 24
  %v5575 = vpop.permute.xlu0 %5574
  %5576 = vrot.lane.b32.xlu0 %v5490, 24
  %v5577 = vpop.permute.xlu0 %5576
  %5578 = vrot.lane.b32.xlu0 %v5491, 24
  %v5579 = vpop.permute.xlu0 %5578
  %5580 = vrot.lane.b32.xlu0 %v5492, 24
  %v5581 = vpop.permute.xlu0 %5580
  %5582 = vrot.lane.b32.xlu0 %v5493, 24
  %v5583 = vpop.permute.xlu0 %5582
  %5584 = vrot.lane.b32.xlu0 %v5494, 24
  %v5585 = vpop.permute.xlu0 %5584
  %5586 = vrot.lane.b32.xlu0 %v5495, 24
  %v5587 = vpop.permute.xlu0 %5586
  %5588 = vrot.lane.b32.xlu0 %v5496, 24
  %v5589 = vpop.permute.xlu0 %5588
  %5590 = vrot.lane.b32.xlu0 %v5497, 24
  %v5591 = vpop.permute.xlu0 %5590
  %5592 = vrot.lane.b32.xlu0 %v5498, 24
  %v5593 = vpop.permute.xlu0 %5592
  %5594 = vrot.lane.b32.xlu0 %v5499, 24
  %v5595 = vpop.permute.xlu0 %5594
  %5628 = vst.msk [vmem:[#allocation2] sm:$0xf] %vm2250, %v5533
  %5629 = vst.msk [vmem:[#allocation2 + $0x4] sm:$0xf] %vm2250, %v5535
  %5630 = vst.msk [vmem:[#allocation2 + $0x8] sm:$0xf] %vm2250, %v5537
  %5631 = vst.msk [vmem:[#allocation2 + $0xc] sm:$0xf] %vm2250, %v5539
  %5632 = vst.msk [vmem:[#allocation2 + $0x10] sm:$0xf] %vm2250, %v5541
  %5633 = vst.msk [vmem:[#allocation2 + $0x14] sm:$0xf] %vm2250, %v5543
  %5634 = vst.msk [vmem:[#allocation2 + $0x18] sm:$0xf] %vm2250, %v5545
  %5635 = vst.msk [vmem:[#allocation2 + $0x1c] sm:$0xf] %vm2250, %v5547
  %5636 = vst.msk [vmem:[#allocation2 + $0x20] sm:$0xf] %vm2250, %v5549
  %5637 = vst.msk [vmem:[#allocation2 + $0x24] sm:$0xf] %vm2250, %v5551
  %5638 = vst.msk [vmem:[#allocation2 + $0x28] sm:$0xf] %vm2250, %v5553
  %5639 = vst.msk [vmem:[#allocation2 + $0x2c] sm:$0xf] %vm2250, %v5555
  %5640 = vst.msk [vmem:[#allocation2 + $0x30] sm:$0xf] %vm2250, %v5557
  %5641 = vst.msk [vmem:[#allocation2 + $0x34] sm:$0xf] %vm2250, %v5559
  %5642 = vst.msk [vmem:[#allocation2 + $0x38] sm:$0xf] %vm2250, %v5561
  %5643 = vst.msk [vmem:[#allocation2 + $0x3c] sm:$0xf] %vm2250, %v5563
  %5644 = vst.msk [vmem:[#allocation2 + $0x40] sm:$0xf] %vm2250, %v5565
  %5645 = vst.msk [vmem:[#allocation2 + $0x44] sm:$0xf] %vm2250, %v5567
  %5646 = vst.msk [vmem:[#allocation2 + $0x48] sm:$0xf] %vm2250, %v5569
  %5647 = vst.msk [vmem:[#allocation2 + $0x4c] sm:$0xf] %vm2250, %v5571
  %5648 = vst.msk [vmem:[#allocation2 + $0x50] sm:$0xf] %vm2250, %v5573
  %5649 = vst.msk [vmem:[#allocation2 + $0x54] sm:$0xf] %vm2250, %v5575
  %5650 = vst.msk [vmem:[#allocation2 + $0x58] sm:$0xf] %vm2250, %v5577
  %5651 = vst.msk [vmem:[#allocation2 + $0x5c] sm:$0xf] %vm2250, %v5579
  %5652 = vst.msk [vmem:[#allocation2 + $0x60] sm:$0xf] %vm2250, %v5581
  %5653 = vst.msk [vmem:[#allocation2 + $0x64] sm:$0xf] %vm2250, %v5583
  %5654 = vst.msk [vmem:[#allocation2 + $0x68] sm:$0xf] %vm2250, %v5585
  %5655 = vst.msk [vmem:[#allocation2 + $0x6c] sm:$0xf] %vm2250, %v5587
  %5656 = vst.msk [vmem:[#allocation2 + $0x70] sm:$0xf] %vm2250, %v5589
  %5657 = vst.msk [vmem:[#allocation2 + $0x74] sm:$0xf] %vm2250, %v5591
  %5658 = vst.msk [vmem:[#allocation2 + $0x78] sm:$0xf] %vm2250, %v5593
  %5659 = vst.msk [vmem:[#allocation2 + $0x7c] sm:$0xf] %vm2250, %v5595
  %v5660 = vld [vmem:[%s5467] sm:$0xf]
  %v5661 = vld [vmem:[%s5467 + $0x4] sm:$0xf]
  %v5662 = vld [vmem:[%s5467 + $0x8] sm:$0x1]
  %v5663 = vld [vmem:[%s5467 + $0xc] sm:$0xf]
  %v5664 = vld [vmem:[%s5467 + $0x10] sm:$0xf]
  %v5665 = vld [vmem:[%s5467 + $0x14] sm:$0x1]
  %v5666 = vld [vmem:[%s5467 + $0x18] sm:$0xf]
  %v5667 = vld [vmem:[%s5467 + $0x1c] sm:$0xf]
  %v5668 = vld [vmem:[%s5467 + $0x20] sm:$0x1]
  %v5669 = vld [vmem:[%s5467 + $0x24] sm:$0xf]
  %v5670 = vld [vmem:[%s5467 + $0x28] sm:$0xf]
  %v5671 = vld [vmem:[%s5467 + $0x2c] sm:$0x1]
  %v5672 = vld [vmem:[%s5467 + $0x30] sm:$0xf]
  %v5673 = vld [vmem:[%s5467 + $0x34] sm:$0xf]
  %v5674 = vld [vmem:[%s5467 + $0x38] sm:$0x1]
  %v5675 = vld [vmem:[%s5467 + $0x3c] sm:$0xf]
  %v5676 = vld [vmem:[%s5467 + $0x40] sm:$0xf]
  %v5677 = vld [vmem:[%s5467 + $0x44] sm:$0x1]
  %v5678 = vld [vmem:[%s5467 + $0x48] sm:$0xf]
  %v5679 = vld [vmem:[%s5467 + $0x4c] sm:$0xf]
  %v5680 = vld [vmem:[%s5467 + $0x50] sm:$0x1]
  %v5681 = vld [vmem:[%s5467 + $0x54] sm:$0xf]
  %v5682 = vld [vmem:[%s5467 + $0x58] sm:$0xf]
  %v5683 = vld [vmem:[%s5467 + $0x5c] sm:$0x1]
  %v5684 = vld [vmem:[%s5467 + $0x60] sm:$0xf]
  %v5685 = vld [vmem:[%s5467 + $0x64] sm:$0xf]
  %v5686 = vld [vmem:[%s5467 + $0x68] sm:$0x1]
  %v5687 = vld [vmem:[%s5467 + $0x6c] sm:$0xf]
  %v5688 = vld [vmem:[%s5467 + $0x70] sm:$0xf]
  %v5689 = vld [vmem:[%s5467 + $0x74] sm:$0x1]
  %v5690 = vld [vmem:[%s5467 + $0x78] sm:$0xf]
  %v5691 = vld [vmem:[%s5467 + $0x7c] sm:$0xf]
  %v5692 = vld [vmem:[%s5467 + $0x80] sm:$0x1]
  %v5693 = vld [vmem:[%s5467 + $0x84] sm:$0xf]
  %v5694 = vld [vmem:[%s5467 + $0x88] sm:$0xf]
  %v5695 = vld [vmem:[%s5467 + $0x8c] sm:$0x1]
  %v5696 = vld [vmem:[%s5467 + $0x90] sm:$0xf]
  %v5697 = vld [vmem:[%s5467 + $0x94] sm:$0xf]
  %v5698 = vld [vmem:[%s5467 + $0x98] sm:$0x1]
  %v5699 = vld [vmem:[%s5467 + $0x9c] sm:$0xf]
  %v5700 = vld [vmem:[%s5467 + $0xa0] sm:$0xf]
  %v5701 = vld [vmem:[%s5467 + $0xa4] sm:$0x1]
  %v5702 = vld [vmem:[%s5467 + $0xa8] sm:$0xf]
  %v5703 = vld [vmem:[%s5467 + $0xac] sm:$0xf]
  %v5704 = vld [vmem:[%s5467 + $0xb0] sm:$0x1]
  %v5705 = vld [vmem:[%s5467 + $0xb4] sm:$0xf]
  %v5706 = vld [vmem:[%s5467 + $0xb8] sm:$0xf]
  %v5707 = vld [vmem:[%s5467 + $0xbc] sm:$0x1]
  %v5709 = vshrl.u32 %v5660, 16
  %v5711 = vrot.slane %v5709, 4
  %v5712 = vshll.u32 %v5660, 16
  %v5714 = vrot.slane %v5712, 5
  %v5715 = vor.u32 %v5711, %v5714
  %v5716 = vrot.slane %v5715, 4
  %v5718 = vshll.u32 %v5661, 16
  %v5720 = vrot.slane %v5718, 5
  %v5721 = vsel %vm137, %v5716, %v5720
  %v5722 = vshrl.u32 %v5661, 16
  %v5724 = vrot.slane %v5722, 4
  %v5725 = vor.u32 %v5724, %v5720
  %v5726 = vrot.slane %v5725, 4
  %v5728 = vshll.u32 %v5662, 16
  %v5730 = vrot.slane %v5728, 5
  %v5731 = vsel %vm137, %v5726, %v5730
  %v5733 = vshrl.u32 %v5663, 16
  %v5735 = vrot.slane %v5733, 4
  %v5736 = vshll.u32 %v5663, 16
  %v5738 = vrot.slane %v5736, 5
  %v5739 = vor.u32 %v5735, %v5738
  %v5740 = vrot.slane %v5739, 4
  %v5742 = vshll.u32 %v5664, 16
  %v5744 = vrot.slane %v5742, 5
  %v5745 = vsel %vm137, %v5740, %v5744
  %v5746 = vshrl.u32 %v5664, 16
  %v5748 = vrot.slane %v5746, 4
  %v5749 = vor.u32 %v5748, %v5744
  %v5750 = vrot.slane %v5749, 4
  %v5752 = vshll.u32 %v5665, 16
  %v5754 = vrot.slane %v5752, 5
  %v5755 = vsel %vm137, %v5750, %v5754
  %v5757 = vshrl.u32 %v5666, 16
  %v5759 = vrot.slane %v5757, 4
  %v5760 = vshll.u32 %v5666, 16
  %v5762 = vrot.slane %v5760, 5
  %v5763 = vor.u32 %v5759, %v5762
  %v5764 = vrot.slane %v5763, 4
  %v5766 = vshll.u32 %v5667, 16
  %v5768 = vrot.slane %v5766, 5
  %v5769 = vsel %vm137, %v5764, %v5768
  %v5770 = vshrl.u32 %v5667, 16
  %v5772 = vrot.slane %v5770, 4
  %v5773 = vor.u32 %v5772, %v5768
  %v5774 = vrot.slane %v5773, 4
  %v5776 = vshll.u32 %v5668, 16
  %v5778 = vrot.slane %v5776, 5
  %v5779 = vsel %vm137, %v5774, %v5778
  %v5781 = vshrl.u32 %v5669, 16
  %v5783 = vrot.slane %v5781, 4
  %v5784 = vshll.u32 %v5669, 16
  %v5786 = vrot.slane %v5784, 5
  %v5787 = vor.u32 %v5783, %v5786
  %v5788 = vrot.slane %v5787, 4
  %v5790 = vshll.u32 %v5670, 16
  %v5792 = vrot.slane %v5790, 5
  %v5793 = vsel %vm137, %v5788, %v5792
  %v5794 = vshrl.u32 %v5670, 16
  %v5796 = vrot.slane %v5794, 4
  %v5797 = vor.u32 %v5796, %v5792
  %v5798 = vrot.slane %v5797, 4
  %v5800 = vshll.u32 %v5671, 16
  %v5802 = vrot.slane %v5800, 5
  %v5803 = vsel %vm137, %v5798, %v5802
  %v5805 = vshrl.u32 %v5672, 16
  %v5807 = vrot.slane %v5805, 4
  %v5808 = vshll.u32 %v5672, 16
  %v5810 = vrot.slane %v5808, 5
  %v5811 = vor.u32 %v5807, %v5810
  %v5812 = vrot.slane %v5811, 4
  %v5814 = vshll.u32 %v5673, 16
  %v5816 = vrot.slane %v5814, 5
  %v5817 = vsel %vm137, %v5812, %v5816
  %v5818 = vshrl.u32 %v5673, 16
  %v5820 = vrot.slane %v5818, 4
  %v5821 = vor.u32 %v5820, %v5816
  %v5822 = vrot.slane %v5821, 4
  %v5824 = vshll.u32 %v5674, 16
  %v5826 = vrot.slane %v5824, 5
  %v5827 = vsel %vm137, %v5822, %v5826
  %v5829 = vshrl.u32 %v5675, 16
  %v5831 = vrot.slane %v5829, 4
  %v5832 = vshll.u32 %v5675, 16
  %v5834 = vrot.slane %v5832, 5
  %v5835 = vor.u32 %v5831, %v5834
  %v5836 = vrot.slane %v5835, 4
  %v5838 = vshll.u32 %v5676, 16
  %v5840 = vrot.slane %v5838, 5
  %v5841 = vsel %vm137, %v5836, %v5840
  %v5842 = vshrl.u32 %v5676, 16
  %v5844 = vrot.slane %v5842, 4
  %v5845 = vor.u32 %v5844, %v5840
  %v5846 = vrot.slane %v5845, 4
  %v5848 = vshll.u32 %v5677, 16
  %v5850 = vrot.slane %v5848, 5
  %v5851 = vsel %vm137, %v5846, %v5850
  %v5853 = vshrl.u32 %v5678, 16
  %v5855 = vrot.slane %v5853, 4
  %v5856 = vshll.u32 %v5678, 16
  %v5858 = vrot.slane %v5856, 5
  %v5859 = vor.u32 %v5855, %v5858
  %v5860 = vrot.slane %v5859, 4
  %v5862 = vshll.u32 %v5679, 16
  %v5864 = vrot.slane %v5862, 5
  %v5865 = vsel %vm137, %v5860, %v5864
  %v5866 = vshrl.u32 %v5679, 16
  %v5868 = vrot.slane %v5866, 4
  %v5869 = vor.u32 %v5868, %v5864
  %v5870 = vrot.slane %v5869, 4
  %v5872 = vshll.u32 %v5680, 16
  %v5874 = vrot.slane %v5872, 5
  %v5875 = vsel %vm137, %v5870, %v5874
  %v5877 = vshrl.u32 %v5681, 16
  %v5879 = vrot.slane %v5877, 4
  %v5880 = vshll.u32 %v5681, 16
  %v5882 = vrot.slane %v5880, 5
  %v5883 = vor.u32 %v5879, %v5882
  %v5884 = vrot.slane %v5883, 4
  %v5886 = vshll.u32 %v5682, 16
  %v5888 = vrot.slane %v5886, 5
  %v5889 = vsel %vm137, %v5884, %v5888
  %v5890 = vshrl.u32 %v5682, 16
  %v5892 = vrot.slane %v5890, 4
  %v5893 = vor.u32 %v5892, %v5888
  %v5894 = vrot.slane %v5893, 4
  %v5896 = vshll.u32 %v5683, 16
  %v5898 = vrot.slane %v5896, 5
  %v5899 = vsel %vm137, %v5894, %v5898
  %v5901 = vshrl.u32 %v5684, 16
  %v5903 = vrot.slane %v5901, 4
  %v5904 = vshll.u32 %v5684, 16
  %v5906 = vrot.slane %v5904, 5
  %v5907 = vor.u32 %v5903, %v5906
  %v5908 = vrot.slane %v5907, 4
  %v5910 = vshll.u32 %v5685, 16
  %v5912 = vrot.slane %v5910, 5
  %v5913 = vsel %vm137, %v5908, %v5912
  %v5914 = vshrl.u32 %v5685, 16
  %v5916 = vrot.slane %v5914, 4
  %v5917 = vor.u32 %v5916, %v5912
  %v5918 = vrot.slane %v5917, 4
  %v5920 = vshll.u32 %v5686, 16
  %v5922 = vrot.slane %v5920, 5
  %v5923 = vsel %vm137, %v5918, %v5922
  %v5925 = vshrl.u32 %v5687, 16
  %v5927 = vrot.slane %v5925, 4
  %v5928 = vshll.u32 %v5687, 16
  %v5930 = vrot.slane %v5928, 5
  %v5931 = vor.u32 %v5927, %v5930
  %v5932 = vrot.slane %v5931, 4
  %v5934 = vshll.u32 %v5688, 16
  %v5936 = vrot.slane %v5934, 5
  %v5937 = vsel %vm137, %v5932, %v5936
  %v5938 = vshrl.u32 %v5688, 16
  %v5940 = vrot.slane %v5938, 4
  %v5941 = vor.u32 %v5940, %v5936
  %v5942 = vrot.slane %v5941, 4
  %v5944 = vshll.u32 %v5689, 16
  %v5946 = vrot.slane %v5944, 5
  %v5947 = vsel %vm137, %v5942, %v5946
  %v5949 = vshrl.u32 %v5690, 16
  %v5951 = vrot.slane %v5949, 4
  %v5952 = vshll.u32 %v5690, 16
  %v5954 = vrot.slane %v5952, 5
  %v5955 = vor.u32 %v5951, %v5954
  %v5956 = vrot.slane %v5955, 4
  %v5958 = vshll.u32 %v5691, 16
  %v5960 = vrot.slane %v5958, 5
  %v5961 = vsel %vm137, %v5956, %v5960
  %v5962 = vshrl.u32 %v5691, 16
  %v5964 = vrot.slane %v5962, 4
  %v5965 = vor.u32 %v5964, %v5960
  %v5966 = vrot.slane %v5965, 4
  %v5968 = vshll.u32 %v5692, 16
  %v5970 = vrot.slane %v5968, 5
  %v5971 = vsel %vm137, %v5966, %v5970
  %v5973 = vshrl.u32 %v5693, 16
  %v5975 = vrot.slane %v5973, 4
  %v5976 = vshll.u32 %v5693, 16
  %v5978 = vrot.slane %v5976, 5
  %v5979 = vor.u32 %v5975, %v5978
  %v5980 = vrot.slane %v5979, 4
  %v5982 = vshll.u32 %v5694, 16
  %v5984 = vrot.slane %v5982, 5
  %v5985 = vsel %vm137, %v5980, %v5984
  %v5986 = vshrl.u32 %v5694, 16
  %v5988 = vrot.slane %v5986, 4
  %v5989 = vor.u32 %v5988, %v5984
  %v5990 = vrot.slane %v5989, 4
  %v5992 = vshll.u32 %v5695, 16
  %v5994 = vrot.slane %v5992, 5
  %v5995 = vsel %vm137, %v5990, %v5994
  %v5997 = vshrl.u32 %v5696, 16
  %v5999 = vrot.slane %v5997, 4
  %v6000 = vshll.u32 %v5696, 16
  %v6002 = vrot.slane %v6000, 5
  %v6003 = vor.u32 %v5999, %v6002
  %v6004 = vrot.slane %v6003, 4
  %v6006 = vshll.u32 %v5697, 16
  %v6008 = vrot.slane %v6006, 5
  %v6009 = vsel %vm137, %v6004, %v6008
  %v6010 = vshrl.u32 %v5697, 16
  %v6012 = vrot.slane %v6010, 4
  %v6013 = vor.u32 %v6012, %v6008
  %v6014 = vrot.slane %v6013, 4
  %v6016 = vshll.u32 %v5698, 16
  %v6018 = vrot.slane %v6016, 5
  %v6019 = vsel %vm137, %v6014, %v6018
  %v6021 = vshrl.u32 %v5699, 16
  %v6023 = vrot.slane %v6021, 4
  %v6024 = vshll.u32 %v5699, 16
  %v6026 = vrot.slane %v6024, 5
  %v6027 = vor.u32 %v6023, %v6026
  %v6028 = vrot.slane %v6027, 4
  %v6030 = vshll.u32 %v5700, 16
  %v6032 = vrot.slane %v6030, 5
  %v6033 = vsel %vm137, %v6028, %v6032
  %v6034 = vshrl.u32 %v5700, 16
  %v6036 = vrot.slane %v6034, 4
  %v6037 = vor.u32 %v6036, %v6032
  %v6038 = vrot.slane %v6037, 4
  %v6040 = vshll.u32 %v5701, 16
  %v6042 = vrot.slane %v6040, 5
  %v6043 = vsel %vm137, %v6038, %v6042
  %v6045 = vshrl.u32 %v5702, 16
  %v6047 = vrot.slane %v6045, 4
  %v6048 = vshll.u32 %v5702, 16
  %v6050 = vrot.slane %v6048, 5
  %v6051 = vor.u32 %v6047, %v6050
  %v6052 = vrot.slane %v6051, 4
  %v6054 = vshll.u32 %v5703, 16
  %v6056 = vrot.slane %v6054, 5
  %v6057 = vsel %vm137, %v6052, %v6056
  %v6058 = vshrl.u32 %v5703, 16
  %v6060 = vrot.slane %v6058, 4
  %v6061 = vor.u32 %v6060, %v6056
  %v6062 = vrot.slane %v6061, 4
  %v6064 = vshll.u32 %v5704, 16
  %v6066 = vrot.slane %v6064, 5
  %v6067 = vsel %vm137, %v6062, %v6066
  %v6069 = vshrl.u32 %v5705, 16
  %v6071 = vrot.slane %v6069, 4
  %v6072 = vshll.u32 %v5705, 16
  %v6074 = vrot.slane %v6072, 5
  %v6075 = vor.u32 %v6071, %v6074
  %v6076 = vrot.slane %v6075, 4
  %v6078 = vshll.u32 %v5706, 16
  %v6080 = vrot.slane %v6078, 5
  %v6081 = vsel %vm137, %v6076, %v6080
  %v6082 = vshrl.u32 %v5706, 16
  %v6084 = vrot.slane %v6082, 4
  %v6085 = vor.u32 %v6084, %v6080
  %v6086 = vrot.slane %v6085, 4
  %v6088 = vshll.u32 %v5707, 16
  %v6090 = vrot.slane %v6088, 5
  %v6091 = vsel %vm137, %v6086, %v6090
  %6092 = vrot.lane.b32.xlu0 %v5721, 28
  %v6093 = vpop.permute.xlu0 %6092
  %6094 = vrot.lane.b32.xlu0 %v5731, 28
  %v6095 = vpop.permute.xlu0 %6094
  %6096 = vrot.lane.b32.xlu0 %v5745, 28
  %v6097 = vpop.permute.xlu0 %6096
  %6098 = vrot.lane.b32.xlu0 %v5755, 28
  %v6099 = vpop.permute.xlu0 %6098
  %6100 = vrot.lane.b32.xlu0 %v5769, 28
  %v6101 = vpop.permute.xlu0 %6100
  %6102 = vrot.lane.b32.xlu0 %v5779, 28
  %v6103 = vpop.permute.xlu0 %6102
  %6104 = vrot.lane.b32.xlu0 %v5793, 28
  %v6105 = vpop.permute.xlu0 %6104
  %6106 = vrot.lane.b32.xlu0 %v5803, 28
  %v6107 = vpop.permute.xlu0 %6106
  %6108 = vrot.lane.b32.xlu0 %v5817, 28
  %v6109 = vpop.permute.xlu0 %6108
  %6110 = vrot.lane.b32.xlu0 %v5827, 28
  %v6111 = vpop.permute.xlu0 %6110
  %6112 = vrot.lane.b32.xlu0 %v5841, 28
  %v6113 = vpop.permute.xlu0 %6112
  %6114 = vrot.lane.b32.xlu0 %v5851, 28
  %v6115 = vpop.permute.xlu0 %6114
  %6116 = vrot.lane.b32.xlu0 %v5865, 28
  %v6117 = vpop.permute.xlu0 %6116
  %6118 = vrot.lane.b32.xlu0 %v5875, 28
  %v6119 = vpop.permute.xlu0 %6118
  %6120 = vrot.lane.b32.xlu0 %v5889, 28
  %v6121 = vpop.permute.xlu0 %6120
  %6122 = vrot.lane.b32.xlu0 %v5899, 28
  %v6123 = vpop.permute.xlu0 %6122
  %6124 = vrot.lane.b32.xlu0 %v5913, 28
  %v6125 = vpop.permute.xlu0 %6124
  %6126 = vrot.lane.b32.xlu0 %v5923, 28
  %v6127 = vpop.permute.xlu0 %6126
  %6128 = vrot.lane.b32.xlu0 %v5937, 28
  %v6129 = vpop.permute.xlu0 %6128
  %6130 = vrot.lane.b32.xlu0 %v5947, 28
  %v6131 = vpop.permute.xlu0 %6130
  %6132 = vrot.lane.b32.xlu0 %v5961, 28
  %v6133 = vpop.permute.xlu0 %6132
  %6134 = vrot.lane.b32.xlu0 %v5971, 28
  %v6135 = vpop.permute.xlu0 %6134
  %6136 = vrot.lane.b32.xlu0 %v5985, 28
  %v6137 = vpop.permute.xlu0 %6136
  %6138 = vrot.lane.b32.xlu0 %v5995, 28
  %v6139 = vpop.permute.xlu0 %6138
  %6140 = vrot.lane.b32.xlu0 %v6009, 28
  %v6141 = vpop.permute.xlu0 %6140
  %6142 = vrot.lane.b32.xlu0 %v6019, 28
  %v6143 = vpop.permute.xlu0 %6142
  %6144 = vrot.lane.b32.xlu0 %v6033, 28
  %v6145 = vpop.permute.xlu0 %6144
  %6146 = vrot.lane.b32.xlu0 %v6043, 28
  %v6147 = vpop.permute.xlu0 %6146
  %6148 = vrot.lane.b32.xlu0 %v6057, 28
  %v6149 = vpop.permute.xlu0 %6148
  %6150 = vrot.lane.b32.xlu0 %v6067, 28
  %v6151 = vpop.permute.xlu0 %6150
  %6152 = vrot.lane.b32.xlu0 %v6081, 28
  %v6153 = vpop.permute.xlu0 %6152
  %6154 = vrot.lane.b32.xlu0 %v6091, 28
  %v6155 = vpop.permute.xlu0 %6154
  %6188 = vst.msk [vmem:[#allocation2] sm:$0xf] %vm2811, %v6093
  %6189 = vst.msk [vmem:[#allocation2 + $0x4] sm:$0xf] %vm2811, %v6095
  %6190 = vst.msk [vmem:[#allocation2 + $0x8] sm:$0xf] %vm2811, %v6097
  %6191 = vst.msk [vmem:[#allocation2 + $0xc] sm:$0xf] %vm2811, %v6099
  %6192 = vst.msk [vmem:[#allocation2 + $0x10] sm:$0xf] %vm2811, %v6101
  %6193 = vst.msk [vmem:[#allocation2 + $0x14] sm:$0xf] %vm2811, %v6103
  %6194 = vst.msk [vmem:[#allocation2 + $0x18] sm:$0xf] %vm2811, %v6105
  %6195 = vst.msk [vmem:[#allocation2 + $0x1c] sm:$0xf] %vm2811, %v6107
  %6196 = vst.msk [vmem:[#allocation2 + $0x20] sm:$0xf] %vm2811, %v6109
  %6197 = vst.msk [vmem:[#allocation2 + $0x24] sm:$0xf] %vm2811, %v6111
  %6198 = vst.msk [vmem:[#allocation2 + $0x28] sm:$0xf] %vm2811, %v6113
  %6199 = vst.msk [vmem:[#allocation2 + $0x2c] sm:$0xf] %vm2811, %v6115
  %6200 = vst.msk [vmem:[#allocation2 + $0x30] sm:$0xf] %vm2811, %v6117
  %6201 = vst.msk [vmem:[#allocation2 + $0x34] sm:$0xf] %vm2811, %v6119
  %6202 = vst.msk [vmem:[#allocation2 + $0x38] sm:$0xf] %vm2811, %v6121
  %6203 = vst.msk [vmem:[#allocation2 + $0x3c] sm:$0xf] %vm2811, %v6123
  %6204 = vst.msk [vmem:[#allocation2 + $0x40] sm:$0xf] %vm2811, %v6125
  %6205 = vst.msk [vmem:[#allocation2 + $0x44] sm:$0xf] %vm2811, %v6127
  %6206 = vst.msk [vmem:[#allocation2 + $0x48] sm:$0xf] %vm2811, %v6129
  %6207 = vst.msk [vmem:[#allocation2 + $0x4c] sm:$0xf] %vm2811, %v6131
  %6208 = vst.msk [vmem:[#allocation2 + $0x50] sm:$0xf] %vm2811, %v6133
  %6209 = vst.msk [vmem:[#allocation2 + $0x54] sm:$0xf] %vm2811, %v6135
  %6210 = vst.msk [vmem:[#allocation2 + $0x58] sm:$0xf] %vm2811, %v6137
  %6211 = vst.msk [vmem:[#allocation2 + $0x5c] sm:$0xf] %vm2811, %v6139
  %6212 = vst.msk [vmem:[#allocation2 + $0x60] sm:$0xf] %vm2811, %v6141
  %6213 = vst.msk [vmem:[#allocation2 + $0x64] sm:$0xf] %vm2811, %v6143
  %6214 = vst.msk [vmem:[#allocation2 + $0x68] sm:$0xf] %vm2811, %v6145
  %6215 = vst.msk [vmem:[#allocation2 + $0x6c] sm:$0xf] %vm2811, %v6147
  %6216 = vst.msk [vmem:[#allocation2 + $0x70] sm:$0xf] %vm2811, %v6149
  %6217 = vst.msk [vmem:[#allocation2 + $0x74] sm:$0xf] %vm2811, %v6151
  %6218 = vst.msk [vmem:[#allocation2 + $0x78] sm:$0xf] %vm2811, %v6153
  %6219 = vst.msk [vmem:[#allocation2 + $0x7c] sm:$0xf] %vm2811, %v6155
  %v6220 = vld [vmem:[%s5467] sm:$0xe]
  %v6221 = vld [vmem:[%s5467 + $0x4] sm:$0xf]
  %v6222 = vld [vmem:[%s5467 + $0x8] sm:$0x1]
  %v6223 = vld [vmem:[%s5467 + $0xc] sm:$0xe]
  %v6224 = vld [vmem:[%s5467 + $0x10] sm:$0xf]
  %v6225 = vld [vmem:[%s5467 + $0x14] sm:$0x1]
  %v6226 = vld [vmem:[%s5467 + $0x18] sm:$0xe]
  %v6227 = vld [vmem:[%s5467 + $0x1c] sm:$0xf]
  %v6228 = vld [vmem:[%s5467 + $0x20] sm:$0x1]
  %v6229 = vld [vmem:[%s5467 + $0x24] sm:$0xe]
  %v6230 = vld [vmem:[%s5467 + $0x28] sm:$0xf]
  %v6231 = vld [vmem:[%s5467 + $0x2c] sm:$0x1]
  %v6232 = vld [vmem:[%s5467 + $0x30] sm:$0xe]
  %v6233 = vld [vmem:[%s5467 + $0x34] sm:$0xf]
  %v6234 = vld [vmem:[%s5467 + $0x38] sm:$0x1]
  %v6235 = vld [vmem:[%s5467 + $0x3c] sm:$0xe]
  %v6236 = vld [vmem:[%s5467 + $0x40] sm:$0xf]
  %v6237 = vld [vmem:[%s5467 + $0x44] sm:$0x1]
  %v6238 = vld [vmem:[%s5467 + $0x48] sm:$0xe]
  %v6239 = vld [vmem:[%s5467 + $0x4c] sm:$0xf]
  %v6240 = vld [vmem:[%s5467 + $0x50] sm:$0x1]
  %v6241 = vld [vmem:[%s5467 + $0x54] sm:$0xe]
  %v6242 = vld [vmem:[%s5467 + $0x58] sm:$0xf]
  %v6243 = vld [vmem:[%s5467 + $0x5c] sm:$0x1]
  %v6244 = vld [vmem:[%s5467 + $0x60] sm:$0xe]
  %v6245 = vld [vmem:[%s5467 + $0x64] sm:$0xf]
  %v6246 = vld [vmem:[%s5467 + $0x68] sm:$0x1]
  %v6247 = vld [vmem:[%s5467 + $0x6c] sm:$0xe]
  %v6248 = vld [vmem:[%s5467 + $0x70] sm:$0xf]
  %v6249 = vld [vmem:[%s5467 + $0x74] sm:$0x1]
  %v6250 = vld [vmem:[%s5467 + $0x78] sm:$0xe]
  %v6251 = vld [vmem:[%s5467 + $0x7c] sm:$0xf]
  %v6252 = vld [vmem:[%s5467 + $0x80] sm:$0x1]
  %v6253 = vld [vmem:[%s5467 + $0x84] sm:$0xe]
  %v6254 = vld [vmem:[%s5467 + $0x88] sm:$0xf]
  %v6255 = vld [vmem:[%s5467 + $0x8c] sm:$0x1]
  %v6256 = vld [vmem:[%s5467 + $0x90] sm:$0xe]
  %v6257 = vld [vmem:[%s5467 + $0x94] sm:$0xf]
  %v6258 = vld [vmem:[%s5467 + $0x98] sm:$0x1]
  %v6259 = vld [vmem:[%s5467 + $0x9c] sm:$0xe]
  %v6260 = vld [vmem:[%s5467 + $0xa0] sm:$0xf]
  %v6261 = vld [vmem:[%s5467 + $0xa4] sm:$0x1]
  %v6262 = vld [vmem:[%s5467 + $0xa8] sm:$0xe]
  %v6263 = vld [vmem:[%s5467 + $0xac] sm:$0xf]
  %v6264 = vld [vmem:[%s5467 + $0xb0] sm:$0x1]
  %v6265 = vld [vmem:[%s5467 + $0xb4] sm:$0xe]
  %v6266 = vld [vmem:[%s5467 + $0xb8] sm:$0xf]
  %v6267 = vld [vmem:[%s5467 + $0xbc] sm:$0x1]
  %v6316 = vrot.slane %v6220, 5
  %v6317 = vrot.slane %v6316, 4
  %v6318 = vrot.slane %v6221, 5
  %v6319 = vsel %vm749, %v6317, %v6318
  %v6320 = vrot.slane %v6318, 4
  %v6321 = vrot.slane %v6222, 5
  %v6322 = vsel %vm749, %v6320, %v6321
  %v6323 = vrot.slane %v6223, 5
  %v6324 = vrot.slane %v6323, 4
  %v6325 = vrot.slane %v6224, 5
  %v6326 = vsel %vm749, %v6324, %v6325
  %v6327 = vrot.slane %v6325, 4
  %v6328 = vrot.slane %v6225, 5
  %v6329 = vsel %vm749, %v6327, %v6328
  %v6330 = vrot.slane %v6226, 5
  %v6331 = vrot.slane %v6330, 4
  %v6332 = vrot.slane %v6227, 5
  %v6333 = vsel %vm749, %v6331, %v6332
  %v6334 = vrot.slane %v6332, 4
  %v6335 = vrot.slane %v6228, 5
  %v6336 = vsel %vm749, %v6334, %v6335
  %v6337 = vrot.slane %v6229, 5
  %v6338 = vrot.slane %v6337, 4
  %v6339 = vrot.slane %v6230, 5
  %v6340 = vsel %vm749, %v6338, %v6339
  %v6341 = vrot.slane %v6339, 4
  %v6342 = vrot.slane %v6231, 5
  %v6343 = vsel %vm749, %v6341, %v6342
  %v6344 = vrot.slane %v6232, 5
  %v6345 = vrot.slane %v6344, 4
  %v6346 = vrot.slane %v6233, 5
  %v6347 = vsel %vm749, %v6345, %v6346
  %v6348 = vrot.slane %v6346, 4
  %v6349 = vrot.slane %v6234, 5
  %v6350 = vsel %vm749, %v6348, %v6349
  %v6351 = vrot.slane %v6235, 5
  %v6352 = vrot.slane %v6351, 4
  %v6353 = vrot.slane %v6236, 5
  %v6354 = vsel %vm749, %v6352, %v6353
  %v6355 = vrot.slane %v6353, 4
  %v6356 = vrot.slane %v6237, 5
  %v6357 = vsel %vm749, %v6355, %v6356
  %v6358 = vrot.slane %v6238, 5
  %v6359 = vrot.slane %v6358, 4
  %v6360 = vrot.slane %v6239, 5
  %v6361 = vsel %vm749, %v6359, %v6360
  %v6362 = vrot.slane %v6360, 4
  %v6363 = vrot.slane %v6240, 5
  %v6364 = vsel %vm749, %v6362, %v6363
  %v6365 = vrot.slane %v6241, 5
  %v6366 = vrot.slane %v6365, 4
  %v6367 = vrot.slane %v6242, 5
  %v6368 = vsel %vm749, %v6366, %v6367
  %v6369 = vrot.slane %v6367, 4
  %v6370 = vrot.slane %v6243, 5
  %v6371 = vsel %vm749, %v6369, %v6370
  %v6372 = vrot.slane %v6244, 5
  %v6373 = vrot.slane %v6372, 4
  %v6374 = vrot.slane %v6245, 5
  %v6375 = vsel %vm749, %v6373, %v6374
  %v6376 = vrot.slane %v6374, 4
  %v6377 = vrot.slane %v6246, 5
  %v6378 = vsel %vm749, %v6376, %v6377
  %v6379 = vrot.slane %v6247, 5
  %v6380 = vrot.slane %v6379, 4
  %v6381 = vrot.slane %v6248, 5
  %v6382 = vsel %vm749, %v6380, %v6381
  %v6383 = vrot.slane %v6381, 4
  %v6384 = vrot.slane %v6249, 5
  %v6385 = vsel %vm749, %v6383, %v6384
  %v6386 = vrot.slane %v6250, 5
  %v6387 = vrot.slane %v6386, 4
  %v6388 = vrot.slane %v6251, 5
  %v6389 = vsel %vm749, %v6387, %v6388
  %v6390 = vrot.slane %v6388, 4
  %v6391 = vrot.slane %v6252, 5
  %v6392 = vsel %vm749, %v6390, %v6391
  %v6393 = vrot.slane %v6253, 5
  %v6394 = vrot.slane %v6393, 4
  %v6395 = vrot.slane %v6254, 5
  %v6396 = vsel %vm749, %v6394, %v6395
  %v6397 = vrot.slane %v6395, 4
  %v6398 = vrot.slane %v6255, 5
  %v6399 = vsel %vm749, %v6397, %v6398
  %v6400 = vrot.slane %v6256, 5
  %v6401 = vrot.slane %v6400, 4
  %v6402 = vrot.slane %v6257, 5
  %v6403 = vsel %vm749, %v6401, %v6402
  %v6404 = vrot.slane %v6402, 4
  %v6405 = vrot.slane %v6258, 5
  %v6406 = vsel %vm749, %v6404, %v6405
  %v6407 = vrot.slane %v6259, 5
  %v6408 = vrot.slane %v6407, 4
  %v6409 = vrot.slane %v6260, 5
  %v6410 = vsel %vm749, %v6408, %v6409
  %v6411 = vrot.slane %v6409, 4
  %v6412 = vrot.slane %v6261, 5
  %v6413 = vsel %vm749, %v6411, %v6412
  %v6414 = vrot.slane %v6262, 5
  %v6415 = vrot.slane %v6414, 4
  %v6416 = vrot.slane %v6263, 5
  %v6417 = vsel %vm749, %v6415, %v6416
  %v6418 = vrot.slane %v6416, 4
  %v6419 = vrot.slane %v6264, 5
  %v6420 = vsel %vm749, %v6418, %v6419
  %v6421 = vrot.slane %v6265, 5
  %v6422 = vrot.slane %v6421, 4
  %v6423 = vrot.slane %v6266, 5
  %v6424 = vsel %vm749, %v6422, %v6423
  %v6425 = vrot.slane %v6423, 4
  %v6426 = vrot.slane %v6267, 5
  %v6427 = vsel %vm749, %v6425, %v6426
  %6428 = vrot.lane.b32.xlu0 %v6319, 32
  %v6429 = vpop.permute.xlu0 %6428
  %6430 = vrot.lane.b32.xlu0 %v6322, 32
  %v6431 = vpop.permute.xlu0 %6430
  %6432 = vrot.lane.b32.xlu0 %v6326, 32
  %v6433 = vpop.permute.xlu0 %6432
  %6434 = vrot.lane.b32.xlu0 %v6329, 32
  %v6435 = vpop.permute.xlu0 %6434
  %6436 = vrot.lane.b32.xlu0 %v6333, 32
  %v6437 = vpop.permute.xlu0 %6436
  %6438 = vrot.lane.b32.xlu0 %v6336, 32
  %v6439 = vpop.permute.xlu0 %6438
  %6440 = vrot.lane.b32.xlu0 %v6340, 32
  %v6441 = vpop.permute.xlu0 %6440
  %6442 = vrot.lane.b32.xlu0 %v6343, 32
  %v6443 = vpop.permute.xlu0 %6442
  %6444 = vrot.lane.b32.xlu0 %v6347, 32
  %v6445 = vpop.permute.xlu0 %6444
  %6446 = vrot.lane.b32.xlu0 %v6350, 32
  %v6447 = vpop.permute.xlu0 %6446
  %6448 = vrot.lane.b32.xlu0 %v6354, 32
  %v6449 = vpop.permute.xlu0 %6448
  %6450 = vrot.lane.b32.xlu0 %v6357, 32
  %v6451 = vpop.permute.xlu0 %6450
  %6452 = vrot.lane.b32.xlu0 %v6361, 32
  %v6453 = vpop.permute.xlu0 %6452
  %6454 = vrot.lane.b32.xlu0 %v6364, 32
  %v6455 = vpop.permute.xlu0 %6454
  %6456 = vrot.lane.b32.xlu0 %v6368, 32
  %v6457 = vpop.permute.xlu0 %6456
  %6458 = vrot.lane.b32.xlu0 %v6371, 32
  %v6459 = vpop.permute.xlu0 %6458
  %6460 = vrot.lane.b32.xlu0 %v6375, 32
  %v6461 = vpop.permute.xlu0 %6460
  %6462 = vrot.lane.b32.xlu0 %v6378, 32
  %v6463 = vpop.permute.xlu0 %6462
  %6464 = vrot.lane.b32.xlu0 %v6382, 32
  %v6465 = vpop.permute.xlu0 %6464
  %6466 = vrot.lane.b32.xlu0 %v6385, 32
  %v6467 = vpop.permute.xlu0 %6466
  %6468 = vrot.lane.b32.xlu0 %v6389, 32
  %v6469 = vpop.permute.xlu0 %6468
  %6470 = vrot.lane.b32.xlu0 %v6392, 32
  %v6471 = vpop.permute.xlu0 %6470
  %6472 = vrot.lane.b32.xlu0 %v6396, 32
  %v6473 = vpop.permute.xlu0 %6472
  %6474 = vrot.lane.b32.xlu0 %v6399, 32
  %v6475 = vpop.permute.xlu0 %6474
  %6476 = vrot.lane.b32.xlu0 %v6403, 32
  %v6477 = vpop.permute.xlu0 %6476
  %6478 = vrot.lane.b32.xlu0 %v6406, 32
  %v6479 = vpop.permute.xlu0 %6478
  %6480 = vrot.lane.b32.xlu0 %v6410, 32
  %v6481 = vpop.permute.xlu0 %6480
  %6482 = vrot.lane.b32.xlu0 %v6413, 32
  %v6483 = vpop.permute.xlu0 %6482
  %6484 = vrot.lane.b32.xlu0 %v6417, 32
  %v6485 = vpop.permute.xlu0 %6484
  %6486 = vrot.lane.b32.xlu0 %v6420, 32
  %v6487 = vpop.permute.xlu0 %6486
  %6488 = vrot.lane.b32.xlu0 %v6424, 32
  %v6489 = vpop.permute.xlu0 %6488
  %6490 = vrot.lane.b32.xlu0 %v6427, 32
  %v6491 = vpop.permute.xlu0 %6490
  %6524 = vst.msk [vmem:[#allocation2] sm:$0xf] %vm3148, %v6429
  %6525 = vst.msk [vmem:[#allocation2 + $0x4] sm:$0xf] %vm3148, %v6431
  %6526 = vst.msk [vmem:[#allocation2 + $0x8] sm:$0xf] %vm3148, %v6433
  %6527 = vst.msk [vmem:[#allocation2 + $0xc] sm:$0xf] %vm3148, %v6435
  %6528 = vst.msk [vmem:[#allocation2 + $0x10] sm:$0xf] %vm3148, %v6437
  %6529 = vst.msk [vmem:[#allocation2 + $0x14] sm:$0xf] %vm3148, %v6439
  %6530 = vst.msk [vmem:[#allocation2 + $0x18] sm:$0xf] %vm3148, %v6441
  %6531 = vst.msk [vmem:[#allocation2 + $0x1c] sm:$0xf] %vm3148, %v6443
  %6532 = vst.msk [vmem:[#allocation2 + $0x20] sm:$0xf] %vm3148, %v6445
  %6533 = vst.msk [vmem:[#allocation2 + $0x24] sm:$0xf] %vm3148, %v6447
  %6534 = vst.msk [vmem:[#allocation2 + $0x28] sm:$0xf] %vm3148, %v6449
  %6535 = vst.msk [vmem:[#allocation2 + $0x2c] sm:$0xf] %vm3148, %v6451
  %6536 = vst.msk [vmem:[#allocation2 + $0x30] sm:$0xf] %vm3148, %v6453
  %6537 = vst.msk [vmem:[#allocation2 + $0x34] sm:$0xf] %vm3148, %v6455
  %6538 = vst.msk [vmem:[#allocation2 + $0x38] sm:$0xf] %vm3148, %v6457
  %6539 = vst.msk [vmem:[#allocation2 + $0x3c] sm:$0xf] %vm3148, %v6459
  %6540 = vst.msk [vmem:[#allocation2 + $0x40] sm:$0xf] %vm3148, %v6461
  %6541 = vst.msk [vmem:[#allocation2 + $0x44] sm:$0xf] %vm3148, %v6463
  %6542 = vst.msk [vmem:[#allocation2 + $0x48] sm:$0xf] %vm3148, %v6465
  %6543 = vst.msk [vmem:[#allocation2 + $0x4c] sm:$0xf] %vm3148, %v6467
  %6544 = vst.msk [vmem:[#allocation2 + $0x50] sm:$0xf] %vm3148, %v6469
  %6545 = vst.msk [vmem:[#allocation2 + $0x54] sm:$0xf] %vm3148, %v6471
  %6546 = vst.msk [vmem:[#allocation2 + $0x58] sm:$0xf] %vm3148, %v6473
  %6547 = vst.msk [vmem:[#allocation2 + $0x5c] sm:$0xf] %vm3148, %v6475
  %6548 = vst.msk [vmem:[#allocation2 + $0x60] sm:$0xf] %vm3148, %v6477
  %6549 = vst.msk [vmem:[#allocation2 + $0x64] sm:$0xf] %vm3148, %v6479
  %6550 = vst.msk [vmem:[#allocation2 + $0x68] sm:$0xf] %vm3148, %v6481
  %6551 = vst.msk [vmem:[#allocation2 + $0x6c] sm:$0xf] %vm3148, %v6483
  %6552 = vst.msk [vmem:[#allocation2 + $0x70] sm:$0xf] %vm3148, %v6485
  %6553 = vst.msk [vmem:[#allocation2 + $0x74] sm:$0xf] %vm3148, %v6487
  %6554 = vst.msk [vmem:[#allocation2 + $0x78] sm:$0xf] %vm3148, %v6489
  %6555 = vst.msk [vmem:[#allocation2 + $0x7c] sm:$0xf] %vm3148, %v6491
  %v6556 = vld [vmem:[#allocation2] sm:$0xf]
  %v6557 = vld [vmem:[#allocation2 + $0x4] sm:$0xf]
  %v6558 = vld [vmem:[#allocation2 + $0x8] sm:$0xf]
  %v6559 = vld [vmem:[#allocation2 + $0xc] sm:$0xf]
  %v6560 = vld [vmem:[#allocation2 + $0x10] sm:$0xf]
  %v6561 = vld [vmem:[#allocation2 + $0x14] sm:$0xf]
  %v6562 = vld [vmem:[#allocation2 + $0x18] sm:$0xf]
  %v6563 = vld [vmem:[#allocation2 + $0x1c] sm:$0xf]
  %v6564 = vld [vmem:[#allocation2 + $0x20] sm:$0xf]
  %v6565 = vld [vmem:[#allocation2 + $0x24] sm:$0xf]
  %v6566 = vld [vmem:[#allocation2 + $0x28] sm:$0xf]
  %v6567 = vld [vmem:[#allocation2 + $0x2c] sm:$0xf]
  %v6568 = vld [vmem:[#allocation2 + $0x30] sm:$0xf]
  %v6569 = vld [vmem:[#allocation2 + $0x34] sm:$0xf]
  %v6570 = vld [vmem:[#allocation2 + $0x38] sm:$0xf]
  %v6571 = vld [vmem:[#allocation2 + $0x3c] sm:$0xf]
  %v6572 = vld [vmem:[#allocation2 + $0x40] sm:$0xf]
  %v6573 = vld [vmem:[#allocation2 + $0x44] sm:$0xf]
  %v6574 = vld [vmem:[#allocation2 + $0x48] sm:$0xf]
  %v6575 = vld [vmem:[#allocation2 + $0x4c] sm:$0xf]
  %v6576 = vld [vmem:[#allocation2 + $0x50] sm:$0xf]
  %v6577 = vld [vmem:[#allocation2 + $0x54] sm:$0xf]
  %v6578 = vld [vmem:[#allocation2 + $0x58] sm:$0xf]
  %v6579 = vld [vmem:[#allocation2 + $0x5c] sm:$0xf]
  %v6580 = vld [vmem:[#allocation2 + $0x60] sm:$0xf]
  %v6581 = vld [vmem:[#allocation2 + $0x64] sm:$0xf]
  %v6582 = vld [vmem:[#allocation2 + $0x68] sm:$0xf]
  %v6583 = vld [vmem:[#allocation2 + $0x6c] sm:$0xf]
  %v6584 = vld [vmem:[#allocation2 + $0x70] sm:$0xf]
  %v6585 = vld [vmem:[#allocation2 + $0x74] sm:$0xf]
  %v6586 = vld [vmem:[#allocation2 + $0x78] sm:$0xf]
  %v6587 = vld [vmem:[#allocation2 + $0x7c] sm:$0xf]
  %v6588 = vld [vmem:[%s1] sm:$0xf]
  %v6621 = vunpack.c.l.b16 %v6556
  %v6622 = vunpack.c.l.b16 %v6557
  %v6623 = vunpack.c.l.b16 %v6558
  %v6624 = vunpack.c.l.b16 %v6559
  %v6625 = vunpack.c.l.b16 %v6560
  %v6626 = vunpack.c.l.b16 %v6561
  %v6627 = vunpack.c.l.b16 %v6562
  %v6628 = vunpack.c.l.b16 %v6563
  %v6629 = vunpack.c.l.b16 %v6564
  %v6630 = vunpack.c.l.b16 %v6565
  %v6631 = vunpack.c.l.b16 %v6566
  %v6632 = vunpack.c.l.b16 %v6567
  %v6633 = vunpack.c.l.b16 %v6568
  %v6634 = vunpack.c.l.b16 %v6569
  %v6635 = vunpack.c.l.b16 %v6570
  %v6636 = vunpack.c.l.b16 %v6571
  %v6637 = vunpack.c.l.b16 %v6572
  %v6638 = vunpack.c.l.b16 %v6573
  %v6639 = vunpack.c.l.b16 %v6574
  %v6640 = vunpack.c.l.b16 %v6575
  %v6641 = vunpack.c.l.b16 %v6576
  %v6642 = vunpack.c.l.b16 %v6577
  %v6643 = vunpack.c.l.b16 %v6578
  %v6644 = vunpack.c.l.b16 %v6579
  %v6645 = vunpack.c.l.b16 %v6580
  %v6646 = vunpack.c.l.b16 %v6581
  %v6647 = vunpack.c.l.b16 %v6582
  %v6648 = vunpack.c.l.b16 %v6583
  %v6649 = vunpack.c.l.b16 %v6584
  %v6650 = vunpack.c.l.b16 %v6585
  %v6651 = vunpack.c.l.b16 %v6586
  %v6652 = vunpack.c.l.b16 %v6587
  %v6653 = vpack.c.b16 %v6622, %v6621
  %v6654 = vpack.c.b16 %v6624, %v6623
  %v6655 = vpack.c.b16 %v6626, %v6625
  %v6656 = vpack.c.b16 %v6628, %v6627
  %v6657 = vpack.c.b16 %v6630, %v6629
  %v6658 = vpack.c.b16 %v6632, %v6631
  %v6659 = vpack.c.b16 %v6634, %v6633
  %v6660 = vpack.c.b16 %v6636, %v6635
  %v6661 = vpack.c.b16 %v6638, %v6637
  %v6662 = vpack.c.b16 %v6640, %v6639
  %v6663 = vpack.c.b16 %v6642, %v6641
  %v6664 = vpack.c.b16 %v6644, %v6643
  %v6665 = vpack.c.b16 %v6646, %v6645
  %v6666 = vpack.c.b16 %v6648, %v6647
  %v6667 = vpack.c.b16 %v6650, %v6649
  %v6668 = vpack.c.b16 %v6652, %v6651
  %v6670 = vsel %vm3294, %v6588, 0
  %v6673 = vsel %vm3294, %v6653, 0
  %v6676 = vsel %vm3294, %v6654, 0
  %v6679 = vsel %vm3294, %v6655, 0
  %v6682 = vsel %vm3294, %v6656, 0
  %v6685 = vsel %vm3294, %v6657, 0
  %v6688 = vsel %vm3294, %v6658, 0
  %v6691 = vsel %vm3294, %v6659, 0
  %v6694 = vsel %vm3294, %v6660, 0
  %v6697 = vsel %vm3294, %v6661, 0
  %v6700 = vsel %vm3294, %v6662, 0
  %v6703 = vsel %vm3294, %v6663, 0
  %v6706 = vsel %vm3294, %v6664, 0
  %v6709 = vsel %vm3294, %v6665, 0
  %v6712 = vsel %vm3294, %v6666, 0
  %v6715 = vsel %vm3294, %v6667, 0
  %v6718 = vsel %vm3294, %v6668, 0
  %6720 = vmatprep.subr.bf16.mxu0 0
  %6721 = vmatpush1.bf16.xpose.msra.mxu0 %v6694
  %6722 = vmatprep.subr.bf16.mxu0 0
  %6723 = vmatpush1.bf16.xpose.msra.mxu0 %v6691
  %6724 = vmatprep.subr.bf16.mxu0 0
  %6725 = vmatpush1.bf16.xpose.msra.mxu0 %v6688
  %6726 = vmatprep.subr.bf16.mxu0 0
  %6727 = vmatpush1.bf16.xpose.msra.mxu0 %v6685
  %6728 = vmatprep.subr.bf16.mxu0 0
  %6729 = vmatpush1.bf16.xpose.msra.mxu0 %v6682
  %6730 = vmatprep.subr.bf16.mxu0 0
  %6731 = vmatpush1.bf16.xpose.msra.mxu0 %v6679
  %6732 = vmatprep.subr.bf16.mxu0 0
  %6733 = vmatpush1.bf16.xpose.msra.mxu0 %v6676
  %6734 = vmatprep.subr.bf16.mxu0 0
  %6735 = vmatpush1.bf16.xpose.msra.mxu0 %v6673
  %6736 = vmatprep.subr.bf16.mxu0 0
  %6737 = vmatpush2.bf16.xpose.msra.mxu0 %v6718
  %6738 = vmatprep.subr.bf16.mxu0 0
  %6739 = vmatpush2.bf16.xpose.msra.mxu0 %v6715
  %6740 = vmatprep.subr.bf16.mxu0 0
  %6741 = vmatpush2.bf16.xpose.msra.mxu0 %v6712
  %6742 = vmatprep.subr.bf16.mxu0 0
  %6743 = vmatpush2.bf16.xpose.msra.mxu0 %v6709
  %6744 = vmatprep.subr.bf16.mxu0 0
  %6745 = vmatpush2.bf16.xpose.msra.mxu0 %v6706
  %6746 = vmatprep.subr.bf16.mxu0 0
  %6747 = vmatpush2.bf16.xpose.msra.mxu0 %v6703
  %6748 = vmatprep.subr.bf16.mxu0 0
  %6749 = vmatpush2.bf16.xpose.msra.mxu0 %v6700
  %6750 = vmatprep.subr.bf16.mxu0 0
  %6751 = vmatpush2.bf16.xpose.msra.mxu0 %v6697
  %6752 = vmatprep.mubr.bf16.mxu0 0
  %6753 = vmatmul.mubr.bf16.gmra.mxu0 %v6670
  %v6754 = vpop.f32.mrf.mxu0
  %v6755 = vadd.f32 0.0, %v6754
  %v6756 = vpop.f32.mrf.mxu0
  %v6757 = vadd.f32 0.0, %v6756
  %v6758 = vpop.f32.mrf.mxu0
  %v6759 = vpop.f32.mrf.mxu0
  %6760 = vdwg.mxu0
  %v6761 = vld [vmem:[%s2] sm:$0xff]
  %6763 = vset.pattern.permute.xlu0 0
  %6764 = vperm.xlu0 %6763, %v6761
  %v6765 = vpop.permute.xlu0 %6764
  %v6767 = vmul.f32 %v6755, %v6765
  %v6768 = vmul.f32 %v6757, %v6765
  %v6769 = vld [vmem:[%s3] sm:$0xff]
  %6771 = vset.pattern.permute.xlu0 0
  %6772 = vperm.xlu0 %6771, %v6769
  %v6773 = vpop.permute.xlu0 %6772
  %v6775 = vadd.f32 %v6767, %v6773
  %v6776 = vadd.f32 %v6768, %v6773
  %vm6777 = vcmp.gt.f32.partialorder %v6775, 0.0
  %vm6778 = vcmp.gt.f32.partialorder %v6776, 0.0
  %v6779 = vmul.f32 %v6775, 0.1
  %v6780 = vmul.f32 %v6776, 0.1
  %v6781 = vsel %vm6777, %v6775, %v6779
  %v6782 = vsel %vm6778, %v6776, %v6780
  %s6783 = scalar_lea.vmem %s4, 16
  %6784 = vst [vmem:[%s6783] sm:$0xff] %v6781
  %6785 = vst [vmem:[%s6783 + $0x8] sm:$0xff] %v6782
  // Predicated region
  $region18: #{cnn_block_forward.3} parent=0 // pred_check
    _
  $region19: #{cnn_block_forward.3} parent=0 // pred_check_branch
    %6787 = sbr.rel (0) target = $region21
  $region20: #{cnn_block_forward.3} parent=0 // pred_region
    _
  $region21: #{cnn_block_forward.3} parent=0 // pred_fallthru
    _
  // Predicated region
  $region22: #{cnn_block_forward.3} parent=0 // pred_check
    _
  $region23: #{cnn_block_forward.3} parent=0 // pred_check_branch
    %6789 = sbr.rel (0) target = $region25
  $region24: #{cnn_block_forward.3} parent=0 // pred_region
    _
  $region25: #{cnn_block_forward.3} parent=0 // pred_fallthru
    _

// kernel: cnn_block_forward.2
$region0: #{cnn_block_forward.2}
  #allocation0 [shape = 'u32[]', space=smem, size = 0x4, offset = 0x4, fixed_abs, tag = 'smem constant byte address 0x4 - core index']
  #allocation1 [shape = 'u32[144,128]{1,0:T(1,128)}', space=vmem, size = 0x12000, scoped, tag = 'internal scratch']
  #allocation2 [shape = 'bf16[256,36]{1,0:T(8,128)(2,1)}', space=vmem, size = 0x10000, scoped, tag = 'scratch operand']
  %s0 = inlined_call_operand.vmem [shape: bf16[2,18,18,4], index: 0, kind: input, shape index: {}]
  %s1 = inlined_call_operand.vmem [shape: bf16[8,36], index: 1, kind: input, shape index: {}]
  %s2 = inlined_call_operand.vmem [shape: f32[1,1,2,8], index: 2, kind: output, shape index: {}]
  %s3 = sld [smem:[#allocation0]]
  $region18: #{cnn_block_forward.2} parent=0
    _
  %s5 = ssub.s32 1, %s3
  %s6 = scalar_select 0, %s5, %s3
  // Predicated region
  $region2: #{cnn_block_forward.2} parent=0 // pred_check
    _
  $region3: #{cnn_block_forward.2} parent=0 // pred_check_branch
    %8 = sbr.rel (0) target = $region5
  $region4: #{cnn_block_forward.2} parent=0 // pred_region
    _
  $region5: #{cnn_block_forward.2} parent=0 // pred_fallthru
    _
  // Predicated region
  $region6: #{cnn_block_forward.2} parent=0 // pred_check
    _
  $region7: #{cnn_block_forward.2} parent=0 // pred_check_branch
    %10 = sbr.rel (0) target = $region9
  $region8: #{cnn_block_forward.2} parent=0 // pred_region
    _
  $region9: #{cnn_block_forward.2} parent=0 // pred_fallthru
    _
  %s12 = smul.u32 0, 16
  %s13 = smul.u32 %s12, 3
  %s14 = smul.addr %s13, 4
  %s15 = scalar_lea.vmem %s0, %s14
  %v16 = vld [vmem:[%s15] sm:$0xf]
  %v17 = vld [vmem:[%s15 + $0x4] sm:$0xf]
  %v18 = vld [vmem:[%s15 + $0xc] sm:$0xf]
  %v19 = vld [vmem:[%s15 + $0x10] sm:$0xf]
  %v20 = vld [vmem:[%s15 + $0x18] sm:$0xf]
  %v21 = vld [vmem:[%s15 + $0x1c] sm:$0xf]
  %v22 = vld [vmem:[%s15 + $0x24] sm:$0xf]
  %v23 = vld [vmem:[%s15 + $0x28] sm:$0xf]
  %v24 = vld [vmem:[%s15 + $0x30] sm:$0xf]
  %v25 = vld [vmem:[%s15 + $0x34] sm:$0xf]
  %v26 = vld [vmem:[%s15 + $0x3c] sm:$0xf]
  %v27 = vld [vmem:[%s15 + $0x40] sm:$0xf]
  %v28 = vld [vmem:[%s15 + $0x48] sm:$0xf]
  %v29 = vld [vmem:[%s15 + $0x4c] sm:$0xf]
  %v30 = vld [vmem:[%s15 + $0x54] sm:$0xf]
  %v31 = vld [vmem:[%s15 + $0x58] sm:$0xf]
  %v32 = vld [vmem:[%s15 + $0x60] sm:$0xf]
  %v33 = vld [vmem:[%s15 + $0x64] sm:$0xf]
  %v34 = vld [vmem:[%s15 + $0x6c] sm:$0xf]
  %v35 = vld [vmem:[%s15 + $0x70] sm:$0xf]
  %v36 = vld [vmem:[%s15 + $0x78] sm:$0xf]
  %v37 = vld [vmem:[%s15 + $0x7c] sm:$0xf]
  %v38 = vld [vmem:[%s15 + $0x84] sm:$0xf]
  %v39 = vld [vmem:[%s15 + $0x88] sm:$0xf]
  %v40 = vld [vmem:[%s15 + $0x90] sm:$0xf]
  %v41 = vld [vmem:[%s15 + $0x94] sm:$0xf]
  %v42 = vld [vmem:[%s15 + $0x9c] sm:$0xf]
  %v43 = vld [vmem:[%s15 + $0xa0] sm:$0xf]
  %v44 = vld [vmem:[%s15 + $0xa8] sm:$0xf]
  %v45 = vld [vmem:[%s15 + $0xac] sm:$0xf]
  %v46 = vld [vmem:[%s15 + $0xb4] sm:$0xf]
  %v47 = vld [vmem:[%s15 + $0xb8] sm:$0xf]
  %vm48 = vcmask 27648
  %49 = vst.msk [vmem:[#allocation2] sm:$0xf] %vm48, %v16
  %50 = vst.msk [vmem:[#allocation2 + $0x4] sm:$0xf] %vm48, %v17
  %51 = vst.msk [vmem:[#allocation2 + $0x8] sm:$0xf] %vm48, %v18
  %52 = vst.msk [vmem:[#allocation2 + $0xc] sm:$0xf] %vm48, %v19
  %53 = vst.msk [vmem:[#allocation2 + $0x10] sm:$0xf] %vm48, %v20
  %54 = vst.msk [vmem:[#allocation2 + $0x14] sm:$0xf] %vm48, %v21
  %55 = vst.msk [vmem:[#allocation2 + $0x18] sm:$0xf] %vm48, %v22
  %56 = vst.msk [vmem:[#allocation2 + $0x1c] sm:$0xf] %vm48, %v23
  %57 = vst.msk [vmem:[#allocation2 + $0x20] sm:$0xf] %vm48, %v24
  %58 = vst.msk [vmem:[#allocation2 + $0x24] sm:$0xf] %vm48, %v25
  %59 = vst.msk [vmem:[#allocation2 + $0x28] sm:$0xf] %vm48, %v26
  %60 = vst.msk [vmem:[#allocation2 + $0x2c] sm:$0xf] %vm48, %v27
  %61 = vst.msk [vmem:[#allocation2 + $0x30] sm:$0xf] %vm48, %v28
  %62 = vst.msk [vmem:[#allocation2 + $0x34] sm:$0xf] %vm48, %v29
  %63 = vst.msk [vmem:[#allocation2 + $0x38] sm:$0xf] %vm48, %v30
  %64 = vst.msk [vmem:[#allocation2 + $0x3c] sm:$0xf] %vm48, %v31
  %65 = vst.msk [vmem:[#allocation2 + $0x40] sm:$0xf] %vm48, %v32
  %66 = vst.msk [vmem:[#allocation2 + $0x44] sm:$0xf] %vm48, %v33
  %67 = vst.msk [vmem:[#allocation2 + $0x48] sm:$0xf] %vm48, %v34
  %68 = vst.msk [vmem:[#allocation2 + $0x4c] sm:$0xf] %vm48, %v35
  %69 = vst.msk [vmem:[#allocation2 + $0x50] sm:$0xf] %vm48, %v36
  %70 = vst.msk [vmem:[#allocation2 + $0x54] sm:$0xf] %vm48, %v37
  %71 = vst.msk [vmem:[#allocation2 + $0x58] sm:$0xf] %vm48, %v38
  %72 = vst.msk [vmem:[#allocation2 + $0x5c] sm:$0xf] %vm48, %v39
  %73 = vst.msk [vmem:[#allocation2 + $0x60] sm:$0xf] %vm48, %v40
  %74 = vst.msk [vmem:[#allocation2 + $0x64] sm:$0xf] %vm48, %v41
  %75 = vst.msk [vmem:[#allocation2 + $0x68] sm:$0xf] %vm48, %v42
  %76 = vst.msk [vmem:[#allocation2 + $0x6c] sm:$0xf] %vm48, %v43
  %77 = vst.msk [vmem:[#allocation2 + $0x70] sm:$0xf] %vm48, %v44
  %78 = vst.msk [vmem:[#allocation2 + $0x74] sm:$0xf] %vm48, %v45
  %79 = vst.msk [vmem:[#allocation2 + $0x78] sm:$0xf] %vm48, %v46
  %80 = vst.msk [vmem:[#allocation2 + $0x7c] sm:$0xf] %vm48, %v47
  %v81 = vld [vmem:[%s15] sm:$0xf]
  %v82 = vld [vmem:[%s15 + $0x4] sm:$0xf]
  %v83 = vld [vmem:[%s15 + $0x8] sm:$0x1]
  %v84 = vld [vmem:[%s15 + $0xc] sm:$0xf]
  %v85 = vld [vmem:[%s15 + $0x10] sm:$0xf]
  %v86 = vld [vmem:[%s15 + $0x14] sm:$0x1]
  %v87 = vld [vmem:[%s15 + $0x18] sm:$0xf]
  %v88 = vld [vmem:[%s15 + $0x1c] sm:$0xf]
  %v89 = vld [vmem:[%s15 + $0x20] sm:$0x1]
  %v90 = vld [vmem:[%s15 + $0x24] sm:$0xf]
  %v91 = vld [vmem:[%s15 + $0x28] sm:$0xf]
  %v92 = vld [vmem:[%s15 + $0x2c] sm:$0x1]
  %v93 = vld [vmem:[%s15 + $0x30] sm:$0xf]
  %v94 = vld [vmem:[%s15 + $0x34] sm:$0xf]
  %v95 = vld [vmem:[%s15 + $0x38] sm:$0x1]
  %v96 = vld [vmem:[%s15 + $0x3c] sm:$0xf]
  %v97 = vld [vmem:[%s15 + $0x40] sm:$0xf]
  %v98 = vld [vmem:[%s15 + $0x44] sm:$0x1]
  %v99 = vld [vmem:[%s15 + $0x48] sm:$0xf]
  %v100 = vld [vmem:[%s15 + $0x4c] sm:$0xf]
  %v101 = vld [vmem:[%s15 + $0x50] sm:$0x1]
  %v102 = vld [vmem:[%s15 + $0x54] sm:$0xf]
  %v103 = vld [vmem:[%s15 + $0x58] sm:$0xf]
  %v104 = vld [vmem:[%s15 + $0x5c] sm:$0x1]
  %v105 = vld [vmem:[%s15 + $0x60] sm:$0xf]
  %v106 = vld [vmem:[%s15 + $0x64] sm:$0xf]
  %v107 = vld [vmem:[%s15 + $0x68] sm:$0x1]
  %v108 = vld [vmem:[%s15 + $0x6c] sm:$0xf]
  %v109 = vld [vmem:[%s15 + $0x70] sm:$0xf]
  %v110 = vld [vmem:[%s15 + $0x74] sm:$0x1]
  %v111 = vld [vmem:[%s15 + $0x78] sm:$0xf]
  %v112 = vld [vmem:[%s15 + $0x7c] sm:$0xf]
  %v113 = vld [vmem:[%s15 + $0x80] sm:$0x1]
  %v114 = vld [vmem:[%s15 + $0x84] sm:$0xf]
  %v115 = vld [vmem:[%s15 + $0x88] sm:$0xf]
  %v116 = vld [vmem:[%s15 + $0x8c] sm:$0x1]
  %v117 = vld [vmem:[%s15 + $0x90] sm:$0xf]
  %v118 = vld [vmem:[%s15 + $0x94] sm:$0xf]
  %v119 = vld [vmem:[%s15 + $0x98] sm:$0x1]
  %v120 = vld [vmem:[%s15 + $0x9c] sm:$0xf]
  %v121 = vld [vmem:[%s15 + $0xa0] sm:$0xf]
  %v122 = vld [vmem:[%s15 + $0xa4] sm:$0x1]
  %v123 = vld [vmem:[%s15 + $0xa8] sm:$0xf]
  %v124 = vld [vmem:[%s15 + $0xac] sm:$0xf]
  %v125 = vld [vmem:[%s15 + $0xb0] sm:$0x1]
  %v126 = vld [vmem:[%s15 + $0xb4] sm:$0xf]
  %v127 = vld [vmem:[%s15 + $0xb8] sm:$0xf]
  %v128 = vld [vmem:[%s15 + $0xbc] sm:$0x1]
  %vm129 = vsmask.f32 3328
  %vm130 = vsmask.f32 7440
  %vm131 = vmor %vm129, %vm130
  %v133 = vshrl.u32 %v81, 16
  %v135 = vrot.slane %v133, 4
  %v136 = vshll.u32 %v81, 16
  %v138 = vrot.slane %v136, 5
  %v139 = vor.u32 %v135, %v138
  %v140 = vrot.slane %v139, 4
  %v142 = vshll.u32 %v82, 16
  %v144 = vrot.slane %v142, 5
  %v145 = vsel %vm131, %v140, %v144
  %v146 = vshrl.u32 %v82, 16
  %v148 = vrot.slane %v146, 4
  %v149 = vor.u32 %v148, %v144
  %v150 = vrot.slane %v149, 4
  %v152 = vshll.u32 %v83, 16
  %v154 = vrot.slane %v152, 5
  %v155 = vsel %vm131, %v150, %v154
  %v157 = vshrl.u32 %v84, 16
  %v159 = vrot.slane %v157, 4
  %v160 = vshll.u32 %v84, 16
  %v162 = vrot.slane %v160, 5
  %v163 = vor.u32 %v159, %v162
  %v164 = vrot.slane %v163, 4
  %v166 = vshll.u32 %v85, 16
  %v168 = vrot.slane %v166, 5
  %v169 = vsel %vm131, %v164, %v168
  %v170 = vshrl.u32 %v85, 16
  %v172 = vrot.slane %v170, 4
  %v173 = vor.u32 %v172, %v168
  %v174 = vrot.slane %v173, 4
  %v176 = vshll.u32 %v86, 16
  %v178 = vrot.slane %v176, 5
  %v179 = vsel %vm131, %v174, %v178
  %v181 = vshrl.u32 %v87, 16
  %v183 = vrot.slane %v181, 4
  %v184 = vshll.u32 %v87, 16
  %v186 = vrot.slane %v184, 5
  %v187 = vor.u32 %v183, %v186
  %v188 = vrot.slane %v187, 4
  %v190 = vshll.u32 %v88, 16
  %v192 = vrot.slane %v190, 5
  %v193 = vsel %vm131, %v188, %v192
  %v194 = vshrl.u32 %v88, 16
  %v196 = vrot.slane %v194, 4
  %v197 = vor.u32 %v196, %v192
  %v198 = vrot.slane %v197, 4
  %v200 = vshll.u32 %v89, 16
  %v202 = vrot.slane %v200, 5
  %v203 = vsel %vm131, %v198, %v202
  %v205 = vshrl.u32 %v90, 16
  %v207 = vrot.slane %v205, 4
  %v208 = vshll.u32 %v90, 16
  %v210 = vrot.slane %v208, 5
  %v211 = vor.u32 %v207, %v210
  %v212 = vrot.slane %v211, 4
  %v214 = vshll.u32 %v91, 16
  %v216 = vrot.slane %v214, 5
  %v217 = vsel %vm131, %v212, %v216
  %v218 = vshrl.u32 %v91, 16
  %v220 = vrot.slane %v218, 4
  %v221 = vor.u32 %v220, %v216
  %v222 = vrot.slane %v221, 4
  %v224 = vshll.u32 %v92, 16
  %v226 = vrot.slane %v224, 5
  %v227 = vsel %vm131, %v222, %v226
  %v229 = vshrl.u32 %v93, 16
  %v231 = vrot.slane %v229, 4
  %v232 = vshll.u32 %v93, 16
  %v234 = vrot.slane %v232, 5
  %v235 = vor.u32 %v231, %v234
  %v236 = vrot.slane %v235, 4
  %v238 = vshll.u32 %v94, 16
  %v240 = vrot.slane %v238, 5
  %v241 = vsel %vm131, %v236, %v240
  %v242 = vshrl.u32 %v94, 16
  %v244 = vrot.slane %v242, 4
  %v245 = vor.u32 %v244, %v240
  %v246 = vrot.slane %v245, 4
  %v248 = vshll.u32 %v95, 16
  %v250 = vrot.slane %v248, 5
  %v251 = vsel %vm131, %v246, %v250
  %v253 = vshrl.u32 %v96, 16
  %v255 = vrot.slane %v253, 4
  %v256 = vshll.u32 %v96, 16
  %v258 = vrot.slane %v256, 5
  %v259 = vor.u32 %v255, %v258
  %v260 = vrot.slane %v259, 4
  %v262 = vshll.u32 %v97, 16
  %v264 = vrot.slane %v262, 5
  %v265 = vsel %vm131, %v260, %v264
  %v266 = vshrl.u32 %v97, 16
  %v268 = vrot.slane %v266, 4
  %v269 = vor.u32 %v268, %v264
  %v270 = vrot.slane %v269, 4
  %v272 = vshll.u32 %v98, 16
  %v274 = vrot.slane %v272, 5
  %v275 = vsel %vm131, %v270, %v274
  %v277 = vshrl.u32 %v99, 16
  %v279 = vrot.slane %v277, 4
  %v280 = vshll.u32 %v99, 16
  %v282 = vrot.slane %v280, 5
  %v283 = vor.u32 %v279, %v282
  %v284 = vrot.slane %v283, 4
  %v286 = vshll.u32 %v100, 16
  %v288 = vrot.slane %v286, 5
  %v289 = vsel %vm131, %v284, %v288
  %v290 = vshrl.u32 %v100, 16
  %v292 = vrot.slane %v290, 4
  %v293 = vor.u32 %v292, %v288
  %v294 = vrot.slane %v293, 4
  %v296 = vshll.u32 %v101, 16
  %v298 = vrot.slane %v296, 5
  %v299 = vsel %vm131, %v294, %v298
  %v301 = vshrl.u32 %v102, 16
  %v303 = vrot.slane %v301, 4
  %v304 = vshll.u32 %v102, 16
  %v306 = vrot.slane %v304, 5
  %v307 = vor.u32 %v303, %v306
  %v308 = vrot.slane %v307, 4
  %v310 = vshll.u32 %v103, 16
  %v312 = vrot.slane %v310, 5
  %v313 = vsel %vm131, %v308, %v312
  %v314 = vshrl.u32 %v103, 16
  %v316 = vrot.slane %v314, 4
  %v317 = vor.u32 %v316, %v312
  %v318 = vrot.slane %v317, 4
  %v320 = vshll.u32 %v104, 16
  %v322 = vrot.slane %v320, 5
  %v323 = vsel %vm131, %v318, %v322
  %v325 = vshrl.u32 %v105, 16
  %v327 = vrot.slane %v325, 4
  %v328 = vshll.u32 %v105, 16
  %v330 = vrot.slane %v328, 5
  %v331 = vor.u32 %v327, %v330
  %v332 = vrot.slane %v331, 4
  %v334 = vshll.u32 %v106, 16
  %v336 = vrot.slane %v334, 5
  %v337 = vsel %vm131, %v332, %v336
  %v338 = vshrl.u32 %v106, 16
  %v340 = vrot.slane %v338, 4
  %v341 = vor.u32 %v340, %v336
  %v342 = vrot.slane %v341, 4
  %v344 = vshll.u32 %v107, 16
  %v346 = vrot.slane %v344, 5
  %v347 = vsel %vm131, %v342, %v346
  %v349 = vshrl.u32 %v108, 16
  %v351 = vrot.slane %v349, 4
  %v352 = vshll.u32 %v108, 16
  %v354 = vrot.slane %v352, 5
  %v355 = vor.u32 %v351, %v354
  %v356 = vrot.slane %v355, 4
  %v358 = vshll.u32 %v109, 16
  %v360 = vrot.slane %v358, 5
  %v361 = vsel %vm131, %v356, %v360
  %v362 = vshrl.u32 %v109, 16
  %v364 = vrot.slane %v362, 4
  %v365 = vor.u32 %v364, %v360
  %v366 = vrot.slane %v365, 4
  %v368 = vshll.u32 %v110, 16
  %v370 = vrot.slane %v368, 5
  %v371 = vsel %vm131, %v366, %v370
  %v373 = vshrl.u32 %v111, 16
  %v375 = vrot.slane %v373, 4
  %v376 = vshll.u32 %v111, 16
  %v378 = vrot.slane %v376, 5
  %v379 = vor.u32 %v375, %v378
  %v380 = vrot.slane %v379, 4
  %v382 = vshll.u32 %v112, 16
  %v384 = vrot.slane %v382, 5
  %v385 = vsel %vm131, %v380, %v384
  %v386 = vshrl.u32 %v112, 16
  %v388 = vrot.slane %v386, 4
  %v389 = vor.u32 %v388, %v384
  %v390 = vrot.slane %v389, 4
  %v392 = vshll.u32 %v113, 16
  %v394 = vrot.slane %v392, 5
  %v395 = vsel %vm131, %v390, %v394
  %v397 = vshrl.u32 %v114, 16
  %v399 = vrot.slane %v397, 4
  %v400 = vshll.u32 %v114, 16
  %v402 = vrot.slane %v400, 5
  %v403 = vor.u32 %v399, %v402
  %v404 = vrot.slane %v403, 4
  %v406 = vshll.u32 %v115, 16
  %v408 = vrot.slane %v406, 5
  %v409 = vsel %vm131, %v404, %v408
  %v410 = vshrl.u32 %v115, 16
  %v412 = vrot.slane %v410, 4
  %v413 = vor.u32 %v412, %v408
  %v414 = vrot.slane %v413, 4
  %v416 = vshll.u32 %v116, 16
  %v418 = vrot.slane %v416, 5
  %v419 = vsel %vm131, %v414, %v418
  %v421 = vshrl.u32 %v117, 16
  %v423 = vrot.slane %v421, 4
  %v424 = vshll.u32 %v117, 16
  %v426 = vrot.slane %v424, 5
  %v427 = vor.u32 %v423, %v426
  %v428 = vrot.slane %v427, 4
  %v430 = vshll.u32 %v118, 16
  %v432 = vrot.slane %v430, 5
  %v433 = vsel %vm131, %v428, %v432
  %v434 = vshrl.u32 %v118, 16
  %v436 = vrot.slane %v434, 4
  %v437 = vor.u32 %v436, %v432
  %v438 = vrot.slane %v437, 4
  %v440 = vshll.u32 %v119, 16
  %v442 = vrot.slane %v440, 5
  %v443 = vsel %vm131, %v438, %v442
  %v445 = vshrl.u32 %v120, 16
  %v447 = vrot.slane %v445, 4
  %v448 = vshll.u32 %v120, 16
  %v450 = vrot.slane %v448, 5
  %v451 = vor.u32 %v447, %v450
  %v452 = vrot.slane %v451, 4
  %v454 = vshll.u32 %v121, 16
  %v456 = vrot.slane %v454, 5
  %v457 = vsel %vm131, %v452, %v456
  %v458 = vshrl.u32 %v121, 16
  %v460 = vrot.slane %v458, 4
  %v461 = vor.u32 %v460, %v456
  %v462 = vrot.slane %v461, 4
  %v464 = vshll.u32 %v122, 16
  %v466 = vrot.slane %v464, 5
  %v467 = vsel %vm131, %v462, %v466
  %v469 = vshrl.u32 %v123, 16
  %v471 = vrot.slane %v469, 4
  %v472 = vshll.u32 %v123, 16
  %v474 = vrot.slane %v472, 5
  %v475 = vor.u32 %v471, %v474
  %v476 = vrot.slane %v475, 4
  %v478 = vshll.u32 %v124, 16
  %v480 = vrot.slane %v478, 5
  %v481 = vsel %vm131, %v476, %v480
  %v482 = vshrl.u32 %v124, 16
  %v484 = vrot.slane %v482, 4
  %v485 = vor.u32 %v484, %v480
  %v486 = vrot.slane %v485, 4
  %v488 = vshll.u32 %v125, 16
  %v490 = vrot.slane %v488, 5
  %v491 = vsel %vm131, %v486, %v490
  %v493 = vshrl.u32 %v126, 16
  %v495 = vrot.slane %v493, 4
  %v496 = vshll.u32 %v126, 16
  %v498 = vrot.slane %v496, 5
  %v499 = vor.u32 %v495, %v498
  %v500 = vrot.slane %v499, 4
  %v502 = vshll.u32 %v127, 16
  %v504 = vrot.slane %v502, 5
  %v505 = vsel %vm131, %v500, %v504
  %v506 = vshrl.u32 %v127, 16
  %v508 = vrot.slane %v506, 4
  %v509 = vor.u32 %v508, %v504
  %v510 = vrot.slane %v509, 4
  %v512 = vshll.u32 %v128, 16
  %v514 = vrot.slane %v512, 5
  %v515 = vsel %vm131, %v510, %v514
  %516 = vrot.lane.b32.xlu0 %v145, 4
  %v517 = vpop.permute.xlu0 %516
  %518 = vrot.lane.b32.xlu0 %v155, 4
  %v519 = vpop.permute.xlu0 %518
  %520 = vrot.lane.b32.xlu0 %v169, 4
  %v521 = vpop.permute.xlu0 %520
  %522 = vrot.lane.b32.xlu0 %v179, 4
  %v523 = vpop.permute.xlu0 %522
  %524 = vrot.lane.b32.xlu0 %v193, 4
  %v525 = vpop.permute.xlu0 %524
  %526 = vrot.lane.b32.xlu0 %v203, 4
  %v527 = vpop.permute.xlu0 %526
  %528 = vrot.lane.b32.xlu0 %v217, 4
  %v529 = vpop.permute.xlu0 %528
  %530 = vrot.lane.b32.xlu0 %v227, 4
  %v531 = vpop.permute.xlu0 %530
  %532 = vrot.lane.b32.xlu0 %v241, 4
  %v533 = vpop.permute.xlu0 %532
  %534 = vrot.lane.b32.xlu0 %v251, 4
  %v535 = vpop.permute.xlu0 %534
  %536 = vrot.lane.b32.xlu0 %v265, 4
  %v537 = vpop.permute.xlu0 %536
  %538 = vrot.lane.b32.xlu0 %v275, 4
  %v539 = vpop.permute.xlu0 %538
  %540 = vrot.lane.b32.xlu0 %v289, 4
  %v541 = vpop.permute.xlu0 %540
  %542 = vrot.lane.b32.xlu0 %v299, 4
  %v543 = vpop.permute.xlu0 %542
  %544 = vrot.lane.b32.xlu0 %v313, 4
  %v545 = vpop.permute.xlu0 %544
  %546 = vrot.lane.b32.xlu0 %v323, 4
  %v547 = vpop.permute.xlu0 %546
  %548 = vrot.lane.b32.xlu0 %v337, 4
  %v549 = vpop.permute.xlu0 %548
  %550 = vrot.lane.b32.xlu0 %v347, 4
  %v551 = vpop.permute.xlu0 %550
  %552 = vrot.lane.b32.xlu0 %v361, 4
  %v553 = vpop.permute.xlu0 %552
  %554 = vrot.lane.b32.xlu0 %v371, 4
  %v555 = vpop.permute.xlu0 %554
  %556 = vrot.lane.b32.xlu0 %v385, 4
  %v557 = vpop.permute.xlu0 %556
  %558 = vrot.lane.b32.xlu0 %v395, 4
  %v559 = vpop.permute.xlu0 %558
  %560 = vrot.lane.b32.xlu0 %v409, 4
  %v561 = vpop.permute.xlu0 %560
  %562 = vrot.lane.b32.xlu0 %v419, 4
  %v563 = vpop.permute.xlu0 %562
  %564 = vrot.lane.b32.xlu0 %v433, 4
  %v565 = vpop.permute.xlu0 %564
  %566 = vrot.lane.b32.xlu0 %v443, 4
  %v567 = vpop.permute.xlu0 %566
  %568 = vrot.lane.b32.xlu0 %v457, 4
  %v569 = vpop.permute.xlu0 %568
  %570 = vrot.lane.b32.xlu0 %v467, 4
  %v571 = vpop.permute.xlu0 %570
  %572 = vrot.lane.b32.xlu0 %v481, 4
  %v573 = vpop.permute.xlu0 %572
  %574 = vrot.lane.b32.xlu0 %v491, 4
  %v575 = vpop.permute.xlu0 %574
  %576 = vrot.lane.b32.xlu0 %v505, 4
  %v577 = vpop.permute.xlu0 %576
  %578 = vrot.lane.b32.xlu0 %v515, 4
  %v579 = vpop.permute.xlu0 %578
  %vm612 = vcmask 60448
  %613 = vst.msk [vmem:[#allocation2] sm:$0xf] %vm612, %v517
  %614 = vst.msk [vmem:[#allocation2 + $0x4] sm:$0xf] %vm612, %v519
  %615 = vst.msk [vmem:[#allocation2 + $0x8] sm:$0xf] %vm612, %v521
  %616 = vst.msk [vmem:[#allocation2 + $0xc] sm:$0xf] %vm612, %v523
  %617 = vst.msk [vmem:[#allocation2 + $0x10] sm:$0xf] %vm612, %v525
  %618 = vst.msk [vmem:[#allocation2 + $0x14] sm:$0xf] %vm612, %v527
  %619 = vst.msk [vmem:[#allocation2 + $0x18] sm:$0xf] %vm612, %v529
  %620 = vst.msk [vmem:[#allocation2 + $0x1c] sm:$0xf] %vm612, %v531
  %621 = vst.msk [vmem:[#allocation2 + $0x20] sm:$0xf] %vm612, %v533
  %622 = vst.msk [vmem:[#allocation2 + $0x24] sm:$0xf] %vm612, %v535
  %623 = vst.msk [vmem:[#allocation2 + $0x28] sm:$0xf] %vm612, %v537
  %624 = vst.msk [vmem:[#allocation2 + $0x2c] sm:$0xf] %vm612, %v539
  %625 = vst.msk [vmem:[#allocation2 + $0x30] sm:$0xf] %vm612, %v541
  %626 = vst.msk [vmem:[#allocation2 + $0x34] sm:$0xf] %vm612, %v543
  %627 = vst.msk [vmem:[#allocation2 + $0x38] sm:$0xf] %vm612, %v545
  %628 = vst.msk [vmem:[#allocation2 + $0x3c] sm:$0xf] %vm612, %v547
  %629 = vst.msk [vmem:[#allocation2 + $0x40] sm:$0xf] %vm612, %v549
  %630 = vst.msk [vmem:[#allocation2 + $0x44] sm:$0xf] %vm612, %v551
  %631 = vst.msk [vmem:[#allocation2 + $0x48] sm:$0xf] %vm612, %v553
  %632 = vst.msk [vmem:[#allocation2 + $0x4c] sm:$0xf] %vm612, %v555
  %633 = vst.msk [vmem:[#allocation2 + $0x50] sm:$0xf] %vm612, %v557
  %634 = vst.msk [vmem:[#allocation2 + $0x54] sm:$0xf] %vm612, %v559
  %635 = vst.msk [vmem:[#allocation2 + $0x58] sm:$0xf] %vm612, %v561
  %636 = vst.msk [vmem:[#allocation2 + $0x5c] sm:$0xf] %vm612, %v563
  %637 = vst.msk [vmem:[#allocation2 + $0x60] sm:$0xf] %vm612, %v565
  %638 = vst.msk [vmem:[#allocation2 + $0x64] sm:$0xf] %vm612, %v567
  %639 = vst.msk [vmem:[#allocation2 + $0x68] sm:$0xf] %vm612, %v569
  %640 = vst.msk [vmem:[#allocation2 + $0x6c] sm:$0xf] %vm612, %v571
  %641 = vst.msk [vmem:[#allocation2 + $0x70] sm:$0xf] %vm612, %v573
  %642 = vst.msk [vmem:[#allocation2 + $0x74] sm:$0xf] %vm612, %v575
  %643 = vst.msk [vmem:[#allocation2 + $0x78] sm:$0xf] %vm612, %v577
  %644 = vst.msk [vmem:[#allocation2 + $0x7c] sm:$0xf] %vm612, %v579
  %v645 = vld [vmem:[%s15] sm:$0xe]
  %v646 = vld [vmem:[%s15 + $0x4] sm:$0xf]
  %v647 = vld [vmem:[%s15 + $0x8] sm:$0x1]
  %v648 = vld [vmem:[%s15 + $0xc] sm:$0xe]
  %v649 = vld [vmem:[%s15 + $0x10] sm:$0xf]
  %v650 = vld [vmem:[%s15 + $0x14] sm:$0x1]
  %v651 = vld [vmem:[%s15 + $0x18] sm:$0xe]
  %v652 = vld [vmem:[%s15 + $0x1c] sm:$0xf]
  %v653 = vld [vmem:[%s15 + $0x20] sm:$0x1]
  %v654 = vld [vmem:[%s15 + $0x24] sm:$0xe]
  %v655 = vld [vmem:[%s15 + $0x28] sm:$0xf]
  %v656 = vld [vmem:[%s15 + $0x2c] sm:$0x1]
  %v657 = vld [vmem:[%s15 + $0x30] sm:$0xe]
  %v658 = vld [vmem:[%s15 + $0x34] sm:$0xf]
  %v659 = vld [vmem:[%s15 + $0x38] sm:$0x1]
  %v660 = vld [vmem:[%s15 + $0x3c] sm:$0xe]
  %v661 = vld [vmem:[%s15 + $0x40] sm:$0xf]
  %v662 = vld [vmem:[%s15 + $0x44] sm:$0x1]
  %v663 = vld [vmem:[%s15 + $0x48] sm:$0xe]
  %v664 = vld [vmem:[%s15 + $0x4c] sm:$0xf]
  %v665 = vld [vmem:[%s15 + $0x50] sm:$0x1]
  %v666 = vld [vmem:[%s15 + $0x54] sm:$0xe]
  %v667 = vld [vmem:[%s15 + $0x58] sm:$0xf]
  %v668 = vld [vmem:[%s15 + $0x5c] sm:$0x1]
  %v669 = vld [vmem:[%s15 + $0x60] sm:$0xe]
  %v670 = vld [vmem:[%s15 + $0x64] sm:$0xf]
  %v671 = vld [vmem:[%s15 + $0x68] sm:$0x1]
  %v672 = vld [vmem:[%s15 + $0x6c] sm:$0xe]
  %v673 = vld [vmem:[%s15 + $0x70] sm:$0xf]
  %v674 = vld [vmem:[%s15 + $0x74] sm:$0x1]
  %v675 = vld [vmem:[%s15 + $0x78] sm:$0xe]
  %v676 = vld [vmem:[%s15 + $0x7c] sm:$0xf]
  %v677 = vld [vmem:[%s15 + $0x80] sm:$0x1]
  %v678 = vld [vmem:[%s15 + $0x84] sm:$0xe]
  %v679 = vld [vmem:[%s15 + $0x88] sm:$0xf]
  %v680 = vld [vmem:[%s15 + $0x8c] sm:$0x1]
  %v681 = vld [vmem:[%s15 + $0x90] sm:$0xe]
  %v682 = vld [vmem:[%s15 + $0x94] sm:$0xf]
  %v683 = vld [vmem:[%s15 + $0x98] sm:$0x1]
  %v684 = vld [vmem:[%s15 + $0x9c] sm:$0xe]
  %v685 = vld [vmem:[%s15 + $0xa0] sm:$0xf]
  %v686 = vld [vmem:[%s15 + $0xa4] sm:$0x1]
  %v687 = vld [vmem:[%s15 + $0xa8] sm:$0xe]
  %v688 = vld [vmem:[%s15 + $0xac] sm:$0xf]
  %v689 = vld [vmem:[%s15 + $0xb0] sm:$0x1]
  %v690 = vld [vmem:[%s15 + $0xb4] sm:$0xe]
  %v691 = vld [vmem:[%s15 + $0xb8] sm:$0xf]
  %v692 = vld [vmem:[%s15 + $0xbc] sm:$0x1]
  %vm741 = vcmask 1042432
  %vm742 = vcmask 1046532
  %vm743 = vmor %vm741, %vm742
  %v744 = vrot.slane %v645, 5
  %v745 = vrot.slane %v744, 4
  %v746 = vrot.slane %v646, 5
  %v747 = vsel %vm743, %v745, %v746
  %v748 = vrot.slane %v746, 4
  %v749 = vrot.slane %v647, 5
  %v750 = vsel %vm743, %v748, %v749
  %v751 = vrot.slane %v648, 5
  %v752 = vrot.slane %v751, 4
  %v753 = vrot.slane %v649, 5
  %v754 = vsel %vm743, %v752, %v753
  %v755 = vrot.slane %v753, 4
  %v756 = vrot.slane %v650, 5
  %v757 = vsel %vm743, %v755, %v756
  %v758 = vrot.slane %v651, 5
  %v759 = vrot.slane %v758, 4
  %v760 = vrot.slane %v652, 5
  %v761 = vsel %vm743, %v759, %v760
  %v762 = vrot.slane %v760, 4
  %v763 = vrot.slane %v653, 5
  %v764 = vsel %vm743, %v762, %v763
  %v765 = vrot.slane %v654, 5
  %v766 = vrot.slane %v765, 4
  %v767 = vrot.slane %v655, 5
  %v768 = vsel %vm743, %v766, %v767
  %v769 = vrot.slane %v767, 4
  %v770 = vrot.slane %v656, 5
  %v771 = vsel %vm743, %v769, %v770
  %v772 = vrot.slane %v657, 5
  %v773 = vrot.slane %v772, 4
  %v774 = vrot.slane %v658, 5
  %v775 = vsel %vm743, %v773, %v774
  %v776 = vrot.slane %v774, 4
  %v777 = vrot.slane %v659, 5
  %v778 = vsel %vm743, %v776, %v777
  %v779 = vrot.slane %v660, 5
  %v780 = vrot.slane %v779, 4
  %v781 = vrot.slane %v661, 5
  %v782 = vsel %vm743, %v780, %v781
  %v783 = vrot.slane %v781, 4
  %v784 = vrot.slane %v662, 5
  %v785 = vsel %vm743, %v783, %v784
  %v786 = vrot.slane %v663, 5
  %v787 = vrot.slane %v786, 4
  %v788 = vrot.slane %v664, 5
  %v789 = vsel %vm743, %v787, %v788
  %v790 = vrot.slane %v788, 4
  %v791 = vrot.slane %v665, 5
  %v792 = vsel %vm743, %v790, %v791
  %v793 = vrot.slane %v666, 5
  %v794 = vrot.slane %v793, 4
  %v795 = vrot.slane %v667, 5
  %v796 = vsel %vm743, %v794, %v795
  %v797 = vrot.slane %v795, 4
  %v798 = vrot.slane %v668, 5
  %v799 = vsel %vm743, %v797, %v798
  %v800 = vrot.slane %v669, 5
  %v801 = vrot.slane %v800, 4
  %v802 = vrot.slane %v670, 5
  %v803 = vsel %vm743, %v801, %v802
  %v804 = vrot.slane %v802, 4
  %v805 = vrot.slane %v671, 5
  %v806 = vsel %vm743, %v804, %v805
  %v807 = vrot.slane %v672, 5
  %v808 = vrot.slane %v807, 4
  %v809 = vrot.slane %v673, 5
  %v810 = vsel %vm743, %v808, %v809
  %v811 = vrot.slane %v809, 4
  %v812 = vrot.slane %v674, 5
  %v813 = vsel %vm743, %v811, %v812
  %v814 = vrot.slane %v675, 5
  %v815 = vrot.slane %v814, 4
  %v816 = vrot.slane %v676, 5
  %v817 = vsel %vm743, %v815, %v816
  %v818 = vrot.slane %v816, 4
  %v819 = vrot.slane %v677, 5
  %v820 = vsel %vm743, %v818, %v819
  %v821 = vrot.slane %v678, 5
  %v822 = vrot.slane %v821, 4
  %v823 = vrot.slane %v679, 5
  %v824 = vsel %vm743, %v822, %v823
  %v825 = vrot.slane %v823, 4
  %v826 = vrot.slane %v680, 5
  %v827 = vsel %vm743, %v825, %v826
  %v828 = vrot.slane %v681, 5
  %v829 = vrot.slane %v828, 4
  %v830 = vrot.slane %v682, 5
  %v831 = vsel %vm743, %v829, %v830
  %v832 = vrot.slane %v830, 4
  %v833 = vrot.slane %v683, 5
  %v834 = vsel %vm743, %v832, %v833
  %v835 = vrot.slane %v684, 5
  %v836 = vrot.slane %v835, 4
  %v837 = vrot.slane %v685, 5
  %v838 = vsel %vm743, %v836, %v837
  %v839 = vrot.slane %v837, 4
  %v840 = vrot.slane %v686, 5
  %v841 = vsel %vm743, %v839, %v840
  %v842 = vrot.slane %v687, 5
  %v843 = vrot.slane %v842, 4
  %v844 = vrot.slane %v688, 5
  %v845 = vsel %vm743, %v843, %v844
  %v846 = vrot.slane %v844, 4
  %v847 = vrot.slane %v689, 5
  %v848 = vsel %vm743, %v846, %v847
  %v849 = vrot.slane %v690, 5
  %v850 = vrot.slane %v849, 4
  %v851 = vrot.slane %v691, 5
  %v852 = vsel %vm743, %v850, %v851
  %v853 = vrot.slane %v851, 4
  %v854 = vrot.slane %v692, 5
  %v855 = vsel %vm743, %v853, %v854
  %856 = vrot.lane.b32.xlu0 %v747, 8
  %v857 = vpop.permute.xlu0 %856
  %858 = vrot.lane.b32.xlu0 %v750, 8
  %v859 = vpop.permute.xlu0 %858
  %860 = vrot.lane.b32.xlu0 %v754, 8
  %v861 = vpop.permute.xlu0 %860
  %862 = vrot.lane.b32.xlu0 %v757, 8
  %v863 = vpop.permute.xlu0 %862
  %864 = vrot.lane.b32.xlu0 %v761, 8
  %v865 = vpop.permute.xlu0 %864
  %866 = vrot.lane.b32.xlu0 %v764, 8
  %v867 = vpop.permute.xlu0 %866
  %868 = vrot.lane.b32.xlu0 %v768, 8
  %v869 = vpop.permute.xlu0 %868
  %870 = vrot.lane.b32.xlu0 %v771, 8
  %v871 = vpop.permute.xlu0 %870
  %872 = vrot.lane.b32.xlu0 %v775, 8
  %v873 = vpop.permute.xlu0 %872
  %874 = vrot.lane.b32.xlu0 %v778, 8
  %v875 = vpop.permute.xlu0 %874
  %876 = vrot.lane.b32.xlu0 %v782, 8
  %v877 = vpop.permute.xlu0 %876
  %878 = vrot.lane.b32.xlu0 %v785, 8
  %v879 = vpop.permute.xlu0 %878
  %880 = vrot.lane.b32.xlu0 %v789, 8
  %v881 = vpop.permute.xlu0 %880
  %882 = vrot.lane.b32.xlu0 %v792, 8
  %v883 = vpop.permute.xlu0 %882
  %884 = vrot.lane.b32.xlu0 %v796, 8
  %v885 = vpop.permute.xlu0 %884
  %886 = vrot.lane.b32.xlu0 %v799, 8
  %v887 = vpop.permute.xlu0 %886
  %888 = vrot.lane.b32.xlu0 %v803, 8
  %v889 = vpop.permute.xlu0 %888
  %890 = vrot.lane.b32.xlu0 %v806, 8
  %v891 = vpop.permute.xlu0 %890
  %892 = vrot.lane.b32.xlu0 %v810, 8
  %v893 = vpop.permute.xlu0 %892
  %894 = vrot.lane.b32.xlu0 %v813, 8
  %v895 = vpop.permute.xlu0 %894
  %896 = vrot.lane.b32.xlu0 %v817, 8
  %v897 = vpop.permute.xlu0 %896
  %898 = vrot.lane.b32.xlu0 %v820, 8
  %v899 = vpop.permute.xlu0 %898
  %900 = vrot.lane.b32.xlu0 %v824, 8
  %v901 = vpop.permute.xlu0 %900
  %902 = vrot.lane.b32.xlu0 %v827, 8
  %v903 = vpop.permute.xlu0 %902
  %904 = vrot.lane.b32.xlu0 %v831, 8
  %v905 = vpop.permute.xlu0 %904
  %906 = vrot.lane.b32.xlu0 %v834, 8
  %v907 = vpop.permute.xlu0 %906
  %908 = vrot.lane.b32.xlu0 %v838, 8
  %v909 = vpop.permute.xlu0 %908
  %910 = vrot.lane.b32.xlu0 %v841, 8
  %v911 = vpop.permute.xlu0 %910
  %912 = vrot.lane.b32.xlu0 %v845, 8
  %v913 = vpop.permute.xlu0 %912
  %914 = vrot.lane.b32.xlu0 %v848, 8
  %v915 = vpop.permute.xlu0 %914
  %916 = vrot.lane.b32.xlu0 %v852, 8
  %v917 = vpop.permute.xlu0 %916
  %918 = vrot.lane.b32.xlu0 %v855, 8
  %v919 = vpop.permute.xlu0 %918
  %vm952 = vcmask 93248
  %953 = vst.msk [vmem:[#allocation2] sm:$0xf] %vm952, %v857
  %954 = vst.msk [vmem:[#allocation2 + $0x4] sm:$0xf] %vm952, %v859
  %955 = vst.msk [vmem:[#allocation2 + $0x8] sm:$0xf] %vm952, %v861
  %956 = vst.msk [vmem:[#allocation2 + $0xc] sm:$0xf] %vm952, %v863
  %957 = vst.msk [vmem:[#allocation2 + $0x10] sm:$0xf] %vm952, %v865
  %958 = vst.msk [vmem:[#allocation2 + $0x14] sm:$0xf] %vm952, %v867
  %959 = vst.msk [vmem:[#allocation2 + $0x18] sm:$0xf] %vm952, %v869
  %960 = vst.msk [vmem:[#allocation2 + $0x1c] sm:$0xf] %vm952, %v871
  %961 = vst.msk [vmem:[#allocation2 + $0x20] sm:$0xf] %vm952, %v873
  %962 = vst.msk [vmem:[#allocation2 + $0x24] sm:$0xf] %vm952, %v875
  %963 = vst.msk [vmem:[#allocation2 + $0x28] sm:$0xf] %vm952, %v877
  %964 = vst.msk [vmem:[#allocation2 + $0x2c] sm:$0xf] %vm952, %v879
  %965 = vst.msk [vmem:[#allocation2 + $0x30] sm:$0xf] %vm952, %v881
  %966 = vst.msk [vmem:[#allocation2 + $0x34] sm:$0xf] %vm952, %v883
  %967 = vst.msk [vmem:[#allocation2 + $0x38] sm:$0xf] %vm952, %v885
  %968 = vst.msk [vmem:[#allocation2 + $0x3c] sm:$0xf] %vm952, %v887
  %969 = vst.msk [vmem:[#allocation2 + $0x40] sm:$0xf] %vm952, %v889
  %970 = vst.msk [vmem:[#allocation2 + $0x44] sm:$0xf] %vm952, %v891
  %971 = vst.msk [vmem:[#allocation2 + $0x48] sm:$0xf] %vm952, %v893
  %972 = vst.msk [vmem:[#allocation2 + $0x4c] sm:$0xf] %vm952, %v895
  %973 = vst.msk [vmem:[#allocation2 + $0x50] sm:$0xf] %vm952, %v897
  %974 = vst.msk [vmem:[#allocation2 + $0x54] sm:$0xf] %vm952, %v899
  %975 = vst.msk [vmem:[#allocation2 + $0x58] sm:$0xf] %vm952, %v901
  %976 = vst.msk [vmem:[#allocation2 + $0x5c] sm:$0xf] %vm952, %v903
  %977 = vst.msk [vmem:[#allocation2 + $0x60] sm:$0xf] %vm952, %v905
  %978 = vst.msk [vmem:[#allocation2 + $0x64] sm:$0xf] %vm952, %v907
  %979 = vst.msk [vmem:[#allocation2 + $0x68] sm:$0xf] %vm952, %v909
  %980 = vst.msk [vmem:[#allocation2 + $0x6c] sm:$0xf] %vm952, %v911
  %981 = vst.msk [vmem:[#allocation2 + $0x70] sm:$0xf] %vm952, %v913
  %982 = vst.msk [vmem:[#allocation2 + $0x74] sm:$0xf] %vm952, %v915
  %983 = vst.msk [vmem:[#allocation2 + $0x78] sm:$0xf] %vm952, %v917
  %984 = vst.msk [vmem:[#allocation2 + $0x7c] sm:$0xf] %vm952, %v919
  %s985 = sadd.s32 %s12, 1
  %s986 = smul.u32 %s985, 3
  %s987 = smul.addr %s986, 4
  %s988 = scalar_lea.vmem %s0, %s987
  %v989 = vld [vmem:[%s988] sm:$0xf]
  %v990 = vld [vmem:[%s988 + $0x4] sm:$0xf]
  %v991 = vld [vmem:[%s988 + $0xc] sm:$0xf]
  %v992 = vld [vmem:[%s988 + $0x10] sm:$0xf]
  %v993 = vld [vmem:[%s988 + $0x18] sm:$0xf]
  %v994 = vld [vmem:[%s988 + $0x1c] sm:$0xf]
  %v995 = vld [vmem:[%s988 + $0x24] sm:$0xf]
  %v996 = vld [vmem:[%s988 + $0x28] sm:$0xf]
  %v997 = vld [vmem:[%s988 + $0x30] sm:$0xf]
  %v998 = vld [vmem:[%s988 + $0x34] sm:$0xf]
  %v999 = vld [vmem:[%s988 + $0x3c] sm:$0xf]
  %v1000 = vld [vmem:[%s988 + $0x40] sm:$0xf]
  %v1001 = vld [vmem:[%s988 + $0x48] sm:$0xf]
  %v1002 = vld [vmem:[%s988 + $0x4c] sm:$0xf]
  %v1003 = vld [vmem:[%s988 + $0x54] sm:$0xf]
  %v1004 = vld [vmem:[%s988 + $0x58] sm:$0xf]
  %v1005 = vld [vmem:[%s988 + $0x60] sm:$0xf]
  %v1006 = vld [vmem:[%s988 + $0x64] sm:$0xf]
  %v1007 = vld [vmem:[%s988 + $0x6c] sm:$0xf]
  %v1008 = vld [vmem:[%s988 + $0x70] sm:$0xf]
  %v1009 = vld [vmem:[%s988 + $0x78] sm:$0xf]
  %v1010 = vld [vmem:[%s988 + $0x7c] sm:$0xf]
  %v1011 = vld [vmem:[%s988 + $0x84] sm:$0xf]
  %v1012 = vld [vmem:[%s988 + $0x88] sm:$0xf]
  %v1013 = vld [vmem:[%s988 + $0x90] sm:$0xf]
  %v1014 = vld [vmem:[%s988 + $0x94] sm:$0xf]
  %v1015 = vld [vmem:[%s988 + $0x9c] sm:$0xf]
  %v1016 = vld [vmem:[%s988 + $0xa0] sm:$0xf]
  %v1017 = vld [vmem:[%s988 + $0xa8] sm:$0xf]
  %v1018 = vld [vmem:[%s988 + $0xac] sm:$0xf]
  %v1019 = vld [vmem:[%s988 + $0xb4] sm:$0xf]
  %v1020 = vld [vmem:[%s988 + $0xb8] sm:$0xf]
  %1053 = vrot.lane.b32.xlu0 %v989, 12
  %v1054 = vpop.permute.xlu0 %1053
  %1055 = vrot.lane.b32.xlu0 %v990, 12
  %v1056 = vpop.permute.xlu0 %1055
  %1057 = vrot.lane.b32.xlu0 %v991, 12
  %v1058 = vpop.permute.xlu0 %1057
  %1059 = vrot.lane.b32.xlu0 %v992, 12
  %v1060 = vpop.permute.xlu0 %1059
  %1061 = vrot.lane.b32.xlu0 %v993, 12
  %v1062 = vpop.permute.xlu0 %1061
  %1063 = vrot.lane.b32.xlu0 %v994, 12
  %v1064 = vpop.permute.xlu0 %1063
  %1065 = vrot.lane.b32.xlu0 %v995, 12
  %v1066 = vpop.permute.xlu0 %1065
  %1067 = vrot.lane.b32.xlu0 %v996, 12
  %v1068 = vpop.permute.xlu0 %1067
  %1069 = vrot.lane.b32.xlu0 %v997, 12
  %v1070 = vpop.permute.xlu0 %1069
  %1071 = vrot.lane.b32.xlu0 %v998, 12
  %v1072 = vpop.permute.xlu0 %1071
  %1073 = vrot.lane.b32.xlu0 %v999, 12
  %v1074 = vpop.permute.xlu0 %1073
  %1075 = vrot.lane.b32.xlu0 %v1000, 12
  %v1076 = vpop.permute.xlu0 %1075
  %1077 = vrot.lane.b32.xlu0 %v1001, 12
  %v1078 = vpop.permute.xlu0 %1077
  %1079 = vrot.lane.b32.xlu0 %v1002, 12
  %v1080 = vpop.permute.xlu0 %1079
  %1081 = vrot.lane.b32.xlu0 %v1003, 12
  %v1082 = vpop.permute.xlu0 %1081
  %1083 = vrot.lane.b32.xlu0 %v1004, 12
  %v1084 = vpop.permute.xlu0 %1083
  %1085 = vrot.lane.b32.xlu0 %v1005, 12
  %v1086 = vpop.permute.xlu0 %1085
  %1087 = vrot.lane.b32.xlu0 %v1006, 12
  %v1088 = vpop.permute.xlu0 %1087
  %1089 = vrot.lane.b32.xlu0 %v1007, 12
  %v1090 = vpop.permute.xlu0 %1089
  %1091 = vrot.lane.b32.xlu0 %v1008, 12
  %v1092 = vpop.permute.xlu0 %1091
  %1093 = vrot.lane.b32.xlu0 %v1009, 12
  %v1094 = vpop.permute.xlu0 %1093
  %1095 = vrot.lane.b32.xlu0 %v1010, 12
  %v1096 = vpop.permute.xlu0 %1095
  %1097 = vrot.lane.b32.xlu0 %v1011, 12
  %v1098 = vpop.permute.xlu0 %1097
  %1099 = vrot.lane.b32.xlu0 %v1012, 12
  %v1100 = vpop.permute.xlu0 %1099
  %1101 = vrot.lane.b32.xlu0 %v1013, 12
  %v1102 = vpop.permute.xlu0 %1101
  %1103 = vrot.lane.b32.xlu0 %v1014, 12
  %v1104 = vpop.permute.xlu0 %1103
  %1105 = vrot.lane.b32.xlu0 %v1015, 12
  %v1106 = vpop.permute.xlu0 %1105
  %1107 = vrot.lane.b32.xlu0 %v1016, 12
  %v1108 = vpop.permute.xlu0 %1107
  %1109 = vrot.lane.b32.xlu0 %v1017, 12
  %v1110 = vpop.permute.xlu0 %1109
  %1111 = vrot.lane.b32.xlu0 %v1018, 12
  %v1112 = vpop.permute.xlu0 %1111
  %1113 = vrot.lane.b32.xlu0 %v1019, 12
  %v1114 = vpop.permute.xlu0 %1113
  %1115 = vrot.lane.b32.xlu0 %v1020, 12
  %v1116 = vpop.permute.xlu0 %1115
  %vm1149 = vcmask 126048
  %1150 = vst.msk [vmem:[#allocation2] sm:$0xf] %vm1149, %v1054
  %1151 = vst.msk [vmem:[#allocation2 + $0x4] sm:$0xf] %vm1149, %v1056
  %1152 = vst.msk [vmem:[#allocation2 + $0x8] sm:$0xf] %vm1149, %v1058
  %1153 = vst.msk [vmem:[#allocation2 + $0xc] sm:$0xf] %vm1149, %v1060
  %1154 = vst.msk [vmem:[#allocation2 + $0x10] sm:$0xf] %vm1149, %v1062
  %1155 = vst.msk [vmem:[#allocation2 + $0x14] sm:$0xf] %vm1149, %v1064
  %1156 = vst.msk [vmem:[#allocation2 + $0x18] sm:$0xf] %vm1149, %v1066
  %1157 = vst.msk [vmem:[#allocation2 + $0x1c] sm:$0xf] %vm1149, %v1068
  %1158 = vst.msk [vmem:[#allocation2 + $0x20] sm:$0xf] %vm1149, %v1070
  %1159 = vst.msk [vmem:[#allocation2 + $0x24] sm:$0xf] %vm1149, %v1072
  %1160 = vst.msk [vmem:[#allocation2 + $0x28] sm:$0xf] %vm1149, %v1074
  %1161 = vst.msk [vmem:[#allocation2 + $0x2c] sm:$0xf] %vm1149, %v1076
  %1162 = vst.msk [vmem:[#allocation2 + $0x30] sm:$0xf] %vm1149, %v1078
  %1163 = vst.msk [vmem:[#allocation2 + $0x34] sm:$0xf] %vm1149, %v1080
  %1164 = vst.msk [vmem:[#allocation2 + $0x38] sm:$0xf] %vm1149, %v1082
  %1165 = vst.msk [vmem:[#allocation2 + $0x3c] sm:$0xf] %vm1149, %v1084
  %1166 = vst.msk [vmem:[#allocation2 + $0x40] sm:$0xf] %vm1149, %v1086
  %1167 = vst.msk [vmem:[#allocation2 + $0x44] sm:$0xf] %vm1149, %v1088
  %1168 = vst.msk [vmem:[#allocation2 + $0x48] sm:$0xf] %vm1149, %v1090
  %1169 = vst.msk [vmem:[#allocation2 + $0x4c] sm:$0xf] %vm1149, %v1092
  %1170 = vst.msk [vmem:[#allocation2 + $0x50] sm:$0xf] %vm1149, %v1094
  %1171 = vst.msk [vmem:[#allocation2 + $0x54] sm:$0xf] %vm1149, %v1096
  %1172 = vst.msk [vmem:[#allocation2 + $0x58] sm:$0xf] %vm1149, %v1098
  %1173 = vst.msk [vmem:[#allocation2 + $0x5c] sm:$0xf] %vm1149, %v1100
  %1174 = vst.msk [vmem:[#allocation2 + $0x60] sm:$0xf] %vm1149, %v1102
  %1175 = vst.msk [vmem:[#allocation2 + $0x64] sm:$0xf] %vm1149, %v1104
  %1176 = vst.msk [vmem:[#allocation2 + $0x68] sm:$0xf] %vm1149, %v1106
  %1177 = vst.msk [vmem:[#allocation2 + $0x6c] sm:$0xf] %vm1149, %v1108
  %1178 = vst.msk [vmem:[#allocation2 + $0x70] sm:$0xf] %vm1149, %v1110
  %1179 = vst.msk [vmem:[#allocation2 + $0x74] sm:$0xf] %vm1149, %v1112
  %1180 = vst.msk [vmem:[#allocation2 + $0x78] sm:$0xf] %vm1149, %v1114
  %1181 = vst.msk [vmem:[#allocation2 + $0x7c] sm:$0xf] %vm1149, %v1116
  %v1182 = vld [vmem:[%s988] sm:$0xf]
  %v1183 = vld [vmem:[%s988 + $0x4] sm:$0xf]
  %v1184 = vld [vmem:[%s988 + $0x8] sm:$0x1]
  %v1185 = vld [vmem:[%s988 + $0xc] sm:$0xf]
  %v1186 = vld [vmem:[%s988 + $0x10] sm:$0xf]
  %v1187 = vld [vmem:[%s988 + $0x14] sm:$0x1]
  %v1188 = vld [vmem:[%s988 + $0x18] sm:$0xf]
  %v1189 = vld [vmem:[%s988 + $0x1c] sm:$0xf]
  %v1190 = vld [vmem:[%s988 + $0x20] sm:$0x1]
  %v1191 = vld [vmem:[%s988 + $0x24] sm:$0xf]
  %v1192 = vld [vmem:[%s988 + $0x28] sm:$0xf]
  %v1193 = vld [vmem:[%s988 + $0x2c] sm:$0x1]
  %v1194 = vld [vmem:[%s988 + $0x30] sm:$0xf]
  %v1195 = vld [vmem:[%s988 + $0x34] sm:$0xf]
  %v1196 = vld [vmem:[%s988 + $0x38] sm:$0x1]
  %v1197 = vld [vmem:[%s988 + $0x3c] sm:$0xf]
  %v1198 = vld [vmem:[%s988 + $0x40] sm:$0xf]
  %v1199 = vld [vmem:[%s988 + $0x44] sm:$0x1]
  %v1200 = vld [vmem:[%s988 + $0x48] sm:$0xf]
  %v1201 = vld [vmem:[%s988 + $0x4c] sm:$0xf]
  %v1202 = vld [vmem:[%s988 + $0x50] sm:$0x1]
  %v1203 = vld [vmem:[%s988 + $0x54] sm:$0xf]
  %v1204 = vld [vmem:[%s988 + $0x58] sm:$0xf]
  %v1205 = vld [vmem:[%s988 + $0x5c] sm:$0x1]
  %v1206 = vld [vmem:[%s988 + $0x60] sm:$0xf]
  %v1207 = vld [vmem:[%s988 + $0x64] sm:$0xf]
  %v1208 = vld [vmem:[%s988 + $0x68] sm:$0x1]
  %v1209 = vld [vmem:[%s988 + $0x6c] sm:$0xf]
  %v1210 = vld [vmem:[%s988 + $0x70] sm:$0xf]
  %v1211 = vld [vmem:[%s988 + $0x74] sm:$0x1]
  %v1212 = vld [vmem:[%s988 + $0x78] sm:$0xf]
  %v1213 = vld [vmem:[%s988 + $0x7c] sm:$0xf]
  %v1214 = vld [vmem:[%s988 + $0x80] sm:$0x1]
  %v1215 = vld [vmem:[%s988 + $0x84] sm:$0xf]
  %v1216 = vld [vmem:[%s988 + $0x88] sm:$0xf]
  %v1217 = vld [vmem:[%s988 + $0x8c] sm:$0x1]
  %v1218 = vld [vmem:[%s988 + $0x90] sm:$0xf]
  %v1219 = vld [vmem:[%s988 + $0x94] sm:$0xf]
  %v1220 = vld [vmem:[%s988 + $0x98] sm:$0x1]
  %v1221 = vld [vmem:[%s988 + $0x9c] sm:$0xf]
  %v1222 = vld [vmem:[%s988 + $0xa0] sm:$0xf]
  %v1223 = vld [vmem:[%s988 + $0xa4] sm:$0x1]
  %v1224 = vld [vmem:[%s988 + $0xa8] sm:$0xf]
  %v1225 = vld [vmem:[%s988 + $0xac] sm:$0xf]
  %v1226 = vld [vmem:[%s988 + $0xb0] sm:$0x1]
  %v1227 = vld [vmem:[%s988 + $0xb4] sm:$0xf]
  %v1228 = vld [vmem:[%s988 + $0xb8] sm:$0xf]
  %v1229 = vld [vmem:[%s988 + $0xbc] sm:$0x1]
  %v1231 = vshrl.u32 %v1182, 16
  %v1233 = vrot.slane %v1231, 4
  %v1234 = vshll.u32 %v1182, 16
  %v1236 = vrot.slane %v1234, 5
  %v1237 = vor.u32 %v1233, %v1236
  %v1238 = vrot.slane %v1237, 4
  %v1240 = vshll.u32 %v1183, 16
  %v1242 = vrot.slane %v1240, 5
  %v1243 = vsel %vm131, %v1238, %v1242
  %v1244 = vshrl.u32 %v1183, 16
  %v1246 = vrot.slane %v1244, 4
  %v1247 = vor.u32 %v1246, %v1242
  %v1248 = vrot.slane %v1247, 4
  %v1250 = vshll.u32 %v1184, 16
  %v1252 = vrot.slane %v1250, 5
  %v1253 = vsel %vm131, %v1248, %v1252
  %v1255 = vshrl.u32 %v1185, 16
  %v1257 = vrot.slane %v1255, 4
  %v1258 = vshll.u32 %v1185, 16
  %v1260 = vrot.slane %v1258, 5
  %v1261 = vor.u32 %v1257, %v1260
  %v1262 = vrot.slane %v1261, 4
  %v1264 = vshll.u32 %v1186, 16
  %v1266 = vrot.slane %v1264, 5
  %v1267 = vsel %vm131, %v1262, %v1266
  %v1268 = vshrl.u32 %v1186, 16
  %v1270 = vrot.slane %v1268, 4
  %v1271 = vor.u32 %v1270, %v1266
  %v1272 = vrot.slane %v1271, 4
  %v1274 = vshll.u32 %v1187, 16
  %v1276 = vrot.slane %v1274, 5
  %v1277 = vsel %vm131, %v1272, %v1276
  %v1279 = vshrl.u32 %v1188, 16
  %v1281 = vrot.slane %v1279, 4
  %v1282 = vshll.u32 %v1188, 16
  %v1284 = vrot.slane %v1282, 5
  %v1285 = vor.u32 %v1281, %v1284
  %v1286 = vrot.slane %v1285, 4
  %v1288 = vshll.u32 %v1189, 16
  %v1290 = vrot.slane %v1288, 5
  %v1291 = vsel %vm131, %v1286, %v1290
  %v1292 = vshrl.u32 %v1189, 16
  %v1294 = vrot.slane %v1292, 4
  %v1295 = vor.u32 %v1294, %v1290
  %v1296 = vrot.slane %v1295, 4
  %v1298 = vshll.u32 %v1190, 16
  %v1300 = vrot.slane %v1298, 5
  %v1301 = vsel %vm131, %v1296, %v1300
  %v1303 = vshrl.u32 %v1191, 16
  %v1305 = vrot.slane %v1303, 4
  %v1306 = vshll.u32 %v1191, 16
  %v1308 = vrot.slane %v1306, 5
  %v1309 = vor.u32 %v1305, %v1308
  %v1310 = vrot.slane %v1309, 4
  %v1312 = vshll.u32 %v1192, 16
  %v1314 = vrot.slane %v1312, 5
  %v1315 = vsel %vm131, %v1310, %v1314
  %v1316 = vshrl.u32 %v1192, 16
  %v1318 = vrot.slane %v1316, 4
  %v1319 = vor.u32 %v1318, %v1314
  %v1320 = vrot.slane %v1319, 4
  %v1322 = vshll.u32 %v1193, 16
  %v1324 = vrot.slane %v1322, 5
  %v1325 = vsel %vm131, %v1320, %v1324
  %v1327 = vshrl.u32 %v1194, 16
  %v1329 = vrot.slane %v1327, 4
  %v1330 = vshll.u32 %v1194, 16
  %v1332 = vrot.slane %v1330, 5
  %v1333 = vor.u32 %v1329, %v1332
  %v1334 = vrot.slane %v1333, 4
  %v1336 = vshll.u32 %v1195, 16
  %v1338 = vrot.slane %v1336, 5
  %v1339 = vsel %vm131, %v1334, %v1338
  %v1340 = vshrl.u32 %v1195, 16
  %v1342 = vrot.slane %v1340, 4
  %v1343 = vor.u32 %v1342, %v1338
  %v1344 = vrot.slane %v1343, 4
  %v1346 = vshll.u32 %v1196, 16
  %v1348 = vrot.slane %v1346, 5
  %v1349 = vsel %vm131, %v1344, %v1348
  %v1351 = vshrl.u32 %v1197, 16
  %v1353 = vrot.slane %v1351, 4
  %v1354 = vshll.u32 %v1197, 16
  %v1356 = vrot.slane %v1354, 5
  %v1357 = vor.u32 %v1353, %v1356
  %v1358 = vrot.slane %v1357, 4
  %v1360 = vshll.u32 %v1198, 16
  %v1362 = vrot.slane %v1360, 5
  %v1363 = vsel %vm131, %v1358, %v1362
  %v1364 = vshrl.u32 %v1198, 16
  %v1366 = vrot.slane %v1364, 4
  %v1367 = vor.u32 %v1366, %v1362
  %v1368 = vrot.slane %v1367, 4
  %v1370 = vshll.u32 %v1199, 16
  %v1372 = vrot.slane %v1370, 5
  %v1373 = vsel %vm131, %v1368, %v1372
  %v1375 = vshrl.u32 %v1200, 16
  %v1377 = vrot.slane %v1375, 4
  %v1378 = vshll.u32 %v1200, 16
  %v1380 = vrot.slane %v1378, 5
  %v1381 = vor.u32 %v1377, %v1380
  %v1382 = vrot.slane %v1381, 4
  %v1384 = vshll.u32 %v1201, 16
  %v1386 = vrot.slane %v1384, 5
  %v1387 = vsel %vm131, %v1382, %v1386
  %v1388 = vshrl.u32 %v1201, 16
  %v1390 = vrot.slane %v1388, 4
  %v1391 = vor.u32 %v1390, %v1386
  %v1392 = vrot.slane %v1391, 4
  %v1394 = vshll.u32 %v1202, 16
  %v1396 = vrot.slane %v1394, 5
  %v1397 = vsel %vm131, %v1392, %v1396
  %v1399 = vshrl.u32 %v1203, 16
  %v1401 = vrot.slane %v1399, 4
  %v1402 = vshll.u32 %v1203, 16
  %v1404 = vrot.slane %v1402, 5
  %v1405 = vor.u32 %v1401, %v1404
  %v1406 = vrot.slane %v1405, 4
  %v1408 = vshll.u32 %v1204, 16
  %v1410 = vrot.slane %v1408, 5
  %v1411 = vsel %vm131, %v1406, %v1410
  %v1412 = vshrl.u32 %v1204, 16
  %v1414 = vrot.slane %v1412, 4
  %v1415 = vor.u32 %v1414, %v1410
  %v1416 = vrot.slane %v1415, 4
  %v1418 = vshll.u32 %v1205, 16
  %v1420 = vrot.slane %v1418, 5
  %v1421 = vsel %vm131, %v1416, %v1420
  %v1423 = vshrl.u32 %v1206, 16
  %v1425 = vrot.slane %v1423, 4
  %v1426 = vshll.u32 %v1206, 16
  %v1428 = vrot.slane %v1426, 5
  %v1429 = vor.u32 %v1425, %v1428
  %v1430 = vrot.slane %v1429, 4
  %v1432 = vshll.u32 %v1207, 16
  %v1434 = vrot.slane %v1432, 5
  %v1435 = vsel %vm131, %v1430, %v1434
  %v1436 = vshrl.u32 %v1207, 16
  %v1438 = vrot.slane %v1436, 4
  %v1439 = vor.u32 %v1438, %v1434
  %v1440 = vrot.slane %v1439, 4
  %v1442 = vshll.u32 %v1208, 16
  %v1444 = vrot.slane %v1442, 5
  %v1445 = vsel %vm131, %v1440, %v1444
  %v1447 = vshrl.u32 %v1209, 16
  %v1449 = vrot.slane %v1447, 4
  %v1450 = vshll.u32 %v1209, 16
  %v1452 = vrot.slane %v1450, 5
  %v1453 = vor.u32 %v1449, %v1452
  %v1454 = vrot.slane %v1453, 4
  %v1456 = vshll.u32 %v1210, 16
  %v1458 = vrot.slane %v1456, 5
  %v1459 = vsel %vm131, %v1454, %v1458
  %v1460 = vshrl.u32 %v1210, 16
  %v1462 = vrot.slane %v1460, 4
  %v1463 = vor.u32 %v1462, %v1458
  %v1464 = vrot.slane %v1463, 4
  %v1466 = vshll.u32 %v1211, 16
  %v1468 = vrot.slane %v1466, 5
  %v1469 = vsel %vm131, %v1464, %v1468
  %v1471 = vshrl.u32 %v1212, 16
  %v1473 = vrot.slane %v1471, 4
  %v1474 = vshll.u32 %v1212, 16
  %v1476 = vrot.slane %v1474, 5
  %v1477 = vor.u32 %v1473, %v1476
  %v1478 = vrot.slane %v1477, 4
  %v1480 = vshll.u32 %v1213, 16
  %v1482 = vrot.slane %v1480, 5
  %v1483 = vsel %vm131, %v1478, %v1482
  %v1484 = vshrl.u32 %v1213, 16
  %v1486 = vrot.slane %v1484, 4
  %v1487 = vor.u32 %v1486, %v1482
  %v1488 = vrot.slane %v1487, 4
  %v1490 = vshll.u32 %v1214, 16
  %v1492 = vrot.slane %v1490, 5
  %v1493 = vsel %vm131, %v1488, %v1492
  %v1495 = vshrl.u32 %v1215, 16
  %v1497 = vrot.slane %v1495, 4
  %v1498 = vshll.u32 %v1215, 16
  %v1500 = vrot.slane %v1498, 5
  %v1501 = vor.u32 %v1497, %v1500
  %v1502 = vrot.slane %v1501, 4
  %v1504 = vshll.u32 %v1216, 16
  %v1506 = vrot.slane %v1504, 5
  %v1507 = vsel %vm131, %v1502, %v1506
  %v1508 = vshrl.u32 %v1216, 16
  %v1510 = vrot.slane %v1508, 4
  %v1511 = vor.u32 %v1510, %v1506
  %v1512 = vrot.slane %v1511, 4
  %v1514 = vshll.u32 %v1217, 16
  %v1516 = vrot.slane %v1514, 5
  %v1517 = vsel %vm131, %v1512, %v1516
  %v1519 = vshrl.u32 %v1218, 16
  %v1521 = vrot.slane %v1519, 4
  %v1522 = vshll.u32 %v1218, 16
  %v1524 = vrot.slane %v1522, 5
  %v1525 = vor.u32 %v1521, %v1524
  %v1526 = vrot.slane %v1525, 4
  %v1528 = vshll.u32 %v1219, 16
  %v1530 = vrot.slane %v1528, 5
  %v1531 = vsel %vm131, %v1526, %v1530
  %v1532 = vshrl.u32 %v1219, 16
  %v1534 = vrot.slane %v1532, 4
  %v1535 = vor.u32 %v1534, %v1530
  %v1536 = vrot.slane %v1535, 4
  %v1538 = vshll.u32 %v1220, 16
  %v1540 = vrot.slane %v1538, 5
  %v1541 = vsel %vm131, %v1536, %v1540
  %v1543 = vshrl.u32 %v1221, 16
  %v1545 = vrot.slane %v1543, 4
  %v1546 = vshll.u32 %v1221, 16
  %v1548 = vrot.slane %v1546, 5
  %v1549 = vor.u32 %v1545, %v1548
  %v1550 = vrot.slane %v1549, 4
  %v1552 = vshll.u32 %v1222, 16
  %v1554 = vrot.slane %v1552, 5
  %v1555 = vsel %vm131, %v1550, %v1554
  %v1556 = vshrl.u32 %v1222, 16
  %v1558 = vrot.slane %v1556, 4
  %v1559 = vor.u32 %v1558, %v1554
  %v1560 = vrot.slane %v1559, 4
  %v1562 = vshll.u32 %v1223, 16
  %v1564 = vrot.slane %v1562, 5
  %v1565 = vsel %vm131, %v1560, %v1564
  %v1567 = vshrl.u32 %v1224, 16
  %v1569 = vrot.slane %v1567, 4
  %v1570 = vshll.u32 %v1224, 16
  %v1572 = vrot.slane %v1570, 5
  %v1573 = vor.u32 %v1569, %v1572
  %v1574 = vrot.slane %v1573, 4
  %v1576 = vshll.u32 %v1225, 16
  %v1578 = vrot.slane %v1576, 5
  %v1579 = vsel %vm131, %v1574, %v1578
  %v1580 = vshrl.u32 %v1225, 16
  %v1582 = vrot.slane %v1580, 4
  %v1583 = vor.u32 %v1582, %v1578
  %v1584 = vrot.slane %v1583, 4
  %v1586 = vshll.u32 %v1226, 16
  %v1588 = vrot.slane %v1586, 5
  %v1589 = vsel %vm131, %v1584, %v1588
  %v1591 = vshrl.u32 %v1227, 16
  %v1593 = vrot.slane %v1591, 4
  %v1594 = vshll.u32 %v1227, 16
  %v1596 = vrot.slane %v1594, 5
  %v1597 = vor.u32 %v1593, %v1596
  %v1598 = vrot.slane %v1597, 4
  %v1600 = vshll.u32 %v1228, 16
  %v1602 = vrot.slane %v1600, 5
  %v1603 = vsel %vm131, %v1598, %v1602
  %v1604 = vshrl.u32 %v1228, 16
  %v1606 = vrot.slane %v1604, 4
  %v1607 = vor.u32 %v1606, %v1602
  %v1608 = vrot.slane %v1607, 4
  %v1610 = vshll.u32 %v1229, 16
  %v1612 = vrot.slane %v1610, 5
  %v1613 = vsel %vm131, %v1608, %v1612
  %1614 = vrot.lane.b32.xlu0 %v1243, 16
  %v1615 = vpop.permute.xlu0 %1614
  %1616 = vrot.lane.b32.xlu0 %v1253, 16
  %v1617 = vpop.permute.xlu0 %1616
  %1618 = vrot.lane.b32.xlu0 %v1267, 16
  %v1619 = vpop.permute.xlu0 %1618
  %1620 = vrot.lane.b32.xlu0 %v1277, 16
  %v1621 = vpop.permute.xlu0 %1620
  %1622 = vrot.lane.b32.xlu0 %v1291, 16
  %v1623 = vpop.permute.xlu0 %1622
  %1624 = vrot.lane.b32.xlu0 %v1301, 16
  %v1625 = vpop.permute.xlu0 %1624
  %1626 = vrot.lane.b32.xlu0 %v1315, 16
  %v1627 = vpop.permute.xlu0 %1626
  %1628 = vrot.lane.b32.xlu0 %v1325, 16
  %v1629 = vpop.permute.xlu0 %1628
  %1630 = vrot.lane.b32.xlu0 %v1339, 16
  %v1631 = vpop.permute.xlu0 %1630
  %1632 = vrot.lane.b32.xlu0 %v1349, 16
  %v1633 = vpop.permute.xlu0 %1632
  %1634 = vrot.lane.b32.xlu0 %v1363, 16
  %v1635 = vpop.permute.xlu0 %1634
  %1636 = vrot.lane.b32.xlu0 %v1373, 16
  %v1637 = vpop.permute.xlu0 %1636
  %1638 = vrot.lane.b32.xlu0 %v1387, 16
  %v1639 = vpop.permute.xlu0 %1638
  %1640 = vrot.lane.b32.xlu0 %v1397, 16
  %v1641 = vpop.permute.xlu0 %1640
  %1642 = vrot.lane.b32.xlu0 %v1411, 16
  %v1643 = vpop.permute.xlu0 %1642
  %1644 = vrot.lane.b32.xlu0 %v1421, 16
  %v1645 = vpop.permute.xlu0 %1644
  %1646 = vrot.lane.b32.xlu0 %v1435, 16
  %v1647 = vpop.permute.xlu0 %1646
  %1648 = vrot.lane.b32.xlu0 %v1445, 16
  %v1649 = vpop.permute.xlu0 %1648
  %1650 = vrot.lane.b32.xlu0 %v1459, 16
  %v1651 = vpop.permute.xlu0 %1650
  %1652 = vrot.lane.b32.xlu0 %v1469, 16
  %v1653 = vpop.permute.xlu0 %1652
  %1654 = vrot.lane.b32.xlu0 %v1483, 16
  %v1655 = vpop.permute.xlu0 %1654
  %1656 = vrot.lane.b32.xlu0 %v1493, 16
  %v1657 = vpop.permute.xlu0 %1656
  %1658 = vrot.lane.b32.xlu0 %v1507, 16
  %v1659 = vpop.permute.xlu0 %1658
  %1660 = vrot.lane.b32.xlu0 %v1517, 16
  %v1661 = vpop.permute.xlu0 %1660
  %1662 = vrot.lane.b32.xlu0 %v1531, 16
  %v1663 = vpop.permute.xlu0 %1662
  %1664 = vrot.lane.b32.xlu0 %v1541, 16
  %v1665 = vpop.permute.xlu0 %1664
  %1666 = vrot.lane.b32.xlu0 %v1555, 16
  %v1667 = vpop.permute.xlu0 %1666
  %1668 = vrot.lane.b32.xlu0 %v1565, 16
  %v1669 = vpop.permute.xlu0 %1668
  %1670 = vrot.lane.b32.xlu0 %v1579, 16
  %v1671 = vpop.permute.xlu0 %1670
  %1672 = vrot.lane.b32.xlu0 %v1589, 16
  %v1673 = vpop.permute.xlu0 %1672
  %1674 = vrot.lane.b32.xlu0 %v1603, 16
  %v1675 = vpop.permute.xlu0 %1674
  %1676 = vrot.lane.b32.xlu0 %v1613, 16
  %v1677 = vpop.permute.xlu0 %1676
  %vm1710 = vcmask 158848
  %1711 = vst.msk [vmem:[#allocation2] sm:$0xf] %vm1710, %v1615
  %1712 = vst.msk [vmem:[#allocation2 + $0x4] sm:$0xf] %vm1710, %v1617
  %1713 = vst.msk [vmem:[#allocation2 + $0x8] sm:$0xf] %vm1710, %v1619
  %1714 = vst.msk [vmem:[#allocation2 + $0xc] sm:$0xf] %vm1710, %v1621
  %1715 = vst.msk [vmem:[#allocation2 + $0x10] sm:$0xf] %vm1710, %v1623
  %1716 = vst.msk [vmem:[#allocation2 + $0x14] sm:$0xf] %vm1710, %v1625
  %1717 = vst.msk [vmem:[#allocation2 + $0x18] sm:$0xf] %vm1710, %v1627
  %1718 = vst.msk [vmem:[#allocation2 + $0x1c] sm:$0xf] %vm1710, %v1629
  %1719 = vst.msk [vmem:[#allocation2 + $0x20] sm:$0xf] %vm1710, %v1631
  %1720 = vst.msk [vmem:[#allocation2 + $0x24] sm:$0xf] %vm1710, %v1633
  %1721 = vst.msk [vmem:[#allocation2 + $0x28] sm:$0xf] %vm1710, %v1635
  %1722 = vst.msk [vmem:[#allocation2 + $0x2c] sm:$0xf] %vm1710, %v1637
  %1723 = vst.msk [vmem:[#allocation2 + $0x30] sm:$0xf] %vm1710, %v1639
  %1724 = vst.msk [vmem:[#allocation2 + $0x34] sm:$0xf] %vm1710, %v1641
  %1725 = vst.msk [vmem:[#allocation2 + $0x38] sm:$0xf] %vm1710, %v1643
  %1726 = vst.msk [vmem:[#allocation2 + $0x3c] sm:$0xf] %vm1710, %v1645
  %1727 = vst.msk [vmem:[#allocation2 + $0x40] sm:$0xf] %vm1710, %v1647
  %1728 = vst.msk [vmem:[#allocation2 + $0x44] sm:$0xf] %vm1710, %v1649
  %1729 = vst.msk [vmem:[#allocation2 + $0x48] sm:$0xf] %vm1710, %v1651
  %1730 = vst.msk [vmem:[#allocation2 + $0x4c] sm:$0xf] %vm1710, %v1653
  %1731 = vst.msk [vmem:[#allocation2 + $0x50] sm:$0xf] %vm1710, %v1655
  %1732 = vst.msk [vmem:[#allocation2 + $0x54] sm:$0xf] %vm1710, %v1657
  %1733 = vst.msk [vmem:[#allocation2 + $0x58] sm:$0xf] %vm1710, %v1659
  %1734 = vst.msk [vmem:[#allocation2 + $0x5c] sm:$0xf] %vm1710, %v1661
  %1735 = vst.msk [vmem:[#allocation2 + $0x60] sm:$0xf] %vm1710, %v1663
  %1736 = vst.msk [vmem:[#allocation2 + $0x64] sm:$0xf] %vm1710, %v1665
  %1737 = vst.msk [vmem:[#allocation2 + $0x68] sm:$0xf] %vm1710, %v1667
  %1738 = vst.msk [vmem:[#allocation2 + $0x6c] sm:$0xf] %vm1710, %v1669
  %1739 = vst.msk [vmem:[#allocation2 + $0x70] sm:$0xf] %vm1710, %v1671
  %1740 = vst.msk [vmem:[#allocation2 + $0x74] sm:$0xf] %vm1710, %v1673
  %1741 = vst.msk [vmem:[#allocation2 + $0x78] sm:$0xf] %vm1710, %v1675
  %1742 = vst.msk [vmem:[#allocation2 + $0x7c] sm:$0xf] %vm1710, %v1677
  %v1743 = vld [vmem:[%s988] sm:$0xe]
  %v1744 = vld [vmem:[%s988 + $0x4] sm:$0xf]
  %v1745 = vld [vmem:[%s988 + $0x8] sm:$0x1]
  %v1746 = vld [vmem:[%s988 + $0xc] sm:$0xe]
  %v1747 = vld [vmem:[%s988 + $0x10] sm:$0xf]
  %v1748 = vld [vmem:[%s988 + $0x14] sm:$0x1]
  %v1749 = vld [vmem:[%s988 + $0x18] sm:$0xe]
  %v1750 = vld [vmem:[%s988 + $0x1c] sm:$0xf]
  %v1751 = vld [vmem:[%s988 + $0x20] sm:$0x1]
  %v1752 = vld [vmem:[%s988 + $0x24] sm:$0xe]
  %v1753 = vld [vmem:[%s988 + $0x28] sm:$0xf]
  %v1754 = vld [vmem:[%s988 + $0x2c] sm:$0x1]
  %v1755 = vld [vmem:[%s988 + $0x30] sm:$0xe]
  %v1756 = vld [vmem:[%s988 + $0x34] sm:$0xf]
  %v1757 = vld [vmem:[%s988 + $0x38] sm:$0x1]
  %v1758 = vld [vmem:[%s988 + $0x3c] sm:$0xe]
  %v1759 = vld [vmem:[%s988 + $0x40] sm:$0xf]
  %v1760 = vld [vmem:[%s988 + $0x44] sm:$0x1]
  %v1761 = vld [vmem:[%s988 + $0x48] sm:$0xe]
  %v1762 = vld [vmem:[%s988 + $0x4c] sm:$0xf]
  %v1763 = vld [vmem:[%s988 + $0x50] sm:$0x1]
  %v1764 = vld [vmem:[%s988 + $0x54] sm:$0xe]
  %v1765 = vld [vmem:[%s988 + $0x58] sm:$0xf]
  %v1766 = vld [vmem:[%s988 + $0x5c] sm:$0x1]
  %v1767 = vld [vmem:[%s988 + $0x60] sm:$0xe]
  %v1768 = vld [vmem:[%s988 + $0x64] sm:$0xf]
  %v1769 = vld [vmem:[%s988 + $0x68] sm:$0x1]
  %v1770 = vld [vmem:[%s988 + $0x6c] sm:$0xe]
  %v1771 = vld [vmem:[%s988 + $0x70] sm:$0xf]
  %v1772 = vld [vmem:[%s988 + $0x74] sm:$0x1]
  %v1773 = vld [vmem:[%s988 + $0x78] sm:$0xe]
  %v1774 = vld [vmem:[%s988 + $0x7c] sm:$0xf]
  %v1775 = vld [vmem:[%s988 + $0x80] sm:$0x1]
  %v1776 = vld [vmem:[%s988 + $0x84] sm:$0xe]
  %v1777 = vld [vmem:[%s988 + $0x88] sm:$0xf]
  %v1778 = vld [vmem:[%s988 + $0x8c] sm:$0x1]
  %v1779 = vld [vmem:[%s988 + $0x90] sm:$0xe]
  %v1780 = vld [vmem:[%s988 + $0x94] sm:$0xf]
  %v1781 = vld [vmem:[%s988 + $0x98] sm:$0x1]
  %v1782 = vld [vmem:[%s988 + $0x9c] sm:$0xe]
  %v1783 = vld [vmem:[%s988 + $0xa0] sm:$0xf]
  %v1784 = vld [vmem:[%s988 + $0xa4] sm:$0x1]
  %v1785 = vld [vmem:[%s988 + $0xa8] sm:$0xe]
  %v1786 = vld [vmem:[%s988 + $0xac] sm:$0xf]
  %v1787 = vld [vmem:[%s988 + $0xb0] sm:$0x1]
  %v1788 = vld [vmem:[%s988 + $0xb4] sm:$0xe]
  %v1789 = vld [vmem:[%s988 + $0xb8] sm:$0xf]
  %v1790 = vld [vmem:[%s988 + $0xbc] sm:$0x1]
  %v1839 = vrot.slane %v1743, 5
  %v1840 = vrot.slane %v1839, 4
  %v1841 = vrot.slane %v1744, 5
  %v1842 = vsel %vm743, %v1840, %v1841
  %v1843 = vrot.slane %v1841, 4
  %v1844 = vrot.slane %v1745, 5
  %v1845 = vsel %vm743, %v1843, %v1844
  %v1846 = vrot.slane %v1746, 5
  %v1847 = vrot.slane %v1846, 4
  %v1848 = vrot.slane %v1747, 5
  %v1849 = vsel %vm743, %v1847, %v1848
  %v1850 = vrot.slane %v1848, 4
  %v1851 = vrot.slane %v1748, 5
  %v1852 = vsel %vm743, %v1850, %v1851
  %v1853 = vrot.slane %v1749, 5
  %v1854 = vrot.slane %v1853, 4
  %v1855 = vrot.slane %v1750, 5
  %v1856 = vsel %vm743, %v1854, %v1855
  %v1857 = vrot.slane %v1855, 4
  %v1858 = vrot.slane %v1751, 5
  %v1859 = vsel %vm743, %v1857, %v1858
  %v1860 = vrot.slane %v1752, 5
  %v1861 = vrot.slane %v1860, 4
  %v1862 = vrot.slane %v1753, 5
  %v1863 = vsel %vm743, %v1861, %v1862
  %v1864 = vrot.slane %v1862, 4
  %v1865 = vrot.slane %v1754, 5
  %v1866 = vsel %vm743, %v1864, %v1865
  %v1867 = vrot.slane %v1755, 5
  %v1868 = vrot.slane %v1867, 4
  %v1869 = vrot.slane %v1756, 5
  %v1870 = vsel %vm743, %v1868, %v1869
  %v1871 = vrot.slane %v1869, 4
  %v1872 = vrot.slane %v1757, 5
  %v1873 = vsel %vm743, %v1871, %v1872
  %v1874 = vrot.slane %v1758, 5
  %v1875 = vrot.slane %v1874, 4
  %v1876 = vrot.slane %v1759, 5
  %v1877 = vsel %vm743, %v1875, %v1876
  %v1878 = vrot.slane %v1876, 4
  %v1879 = vrot.slane %v1760, 5
  %v1880 = vsel %vm743, %v1878, %v1879
  %v1881 = vrot.slane %v1761, 5
  %v1882 = vrot.slane %v1881, 4
  %v1883 = vrot.slane %v1762, 5
  %v1884 = vsel %vm743, %v1882, %v1883
  %v1885 = vrot.slane %v1883, 4
  %v1886 = vrot.slane %v1763, 5
  %v1887 = vsel %vm743, %v1885, %v1886
  %v1888 = vrot.slane %v1764, 5
  %v1889 = vrot.slane %v1888, 4
  %v1890 = vrot.slane %v1765, 5
  %v1891 = vsel %vm743, %v1889, %v1890
  %v1892 = vrot.slane %v1890, 4
  %v1893 = vrot.slane %v1766, 5
  %v1894 = vsel %vm743, %v1892, %v1893
  %v1895 = vrot.slane %v1767, 5
  %v1896 = vrot.slane %v1895, 4
  %v1897 = vrot.slane %v1768, 5
  %v1898 = vsel %vm743, %v1896, %v1897
  %v1899 = vrot.slane %v1897, 4
  %v1900 = vrot.slane %v1769, 5
  %v1901 = vsel %vm743, %v1899, %v1900
  %v1902 = vrot.slane %v1770, 5
  %v1903 = vrot.slane %v1902, 4
  %v1904 = vrot.slane %v1771, 5
  %v1905 = vsel %vm743, %v1903, %v1904
  %v1906 = vrot.slane %v1904, 4
  %v1907 = vrot.slane %v1772, 5
  %v1908 = vsel %vm743, %v1906, %v1907
  %v1909 = vrot.slane %v1773, 5
  %v1910 = vrot.slane %v1909, 4
  %v1911 = vrot.slane %v1774, 5
  %v1912 = vsel %vm743, %v1910, %v1911
  %v1913 = vrot.slane %v1911, 4
  %v1914 = vrot.slane %v1775, 5
  %v1915 = vsel %vm743, %v1913, %v1914
  %v1916 = vrot.slane %v1776, 5
  %v1917 = vrot.slane %v1916, 4
  %v1918 = vrot.slane %v1777, 5
  %v1919 = vsel %vm743, %v1917, %v1918
  %v1920 = vrot.slane %v1918, 4
  %v1921 = vrot.slane %v1778, 5
  %v1922 = vsel %vm743, %v1920, %v1921
  %v1923 = vrot.slane %v1779, 5
  %v1924 = vrot.slane %v1923, 4
  %v1925 = vrot.slane %v1780, 5
  %v1926 = vsel %vm743, %v1924, %v1925
  %v1927 = vrot.slane %v1925, 4
  %v1928 = vrot.slane %v1781, 5
  %v1929 = vsel %vm743, %v1927, %v1928
  %v1930 = vrot.slane %v1782, 5
  %v1931 = vrot.slane %v1930, 4
  %v1932 = vrot.slane %v1783, 5
  %v1933 = vsel %vm743, %v1931, %v1932
  %v1934 = vrot.slane %v1932, 4
  %v1935 = vrot.slane %v1784, 5
  %v1936 = vsel %vm743, %v1934, %v1935
  %v1937 = vrot.slane %v1785, 5
  %v1938 = vrot.slane %v1937, 4
  %v1939 = vrot.slane %v1786, 5
  %v1940 = vsel %vm743, %v1938, %v1939
  %v1941 = vrot.slane %v1939, 4
  %v1942 = vrot.slane %v1787, 5
  %v1943 = vsel %vm743, %v1941, %v1942
  %v1944 = vrot.slane %v1788, 5
  %v1945 = vrot.slane %v1944, 4
  %v1946 = vrot.slane %v1789, 5
  %v1947 = vsel %vm743, %v1945, %v1946
  %v1948 = vrot.slane %v1946, 4
  %v1949 = vrot.slane %v1790, 5
  %v1950 = vsel %vm743, %v1948, %v1949
  %1951 = vrot.lane.b32.xlu0 %v1842, 20
  %v1952 = vpop.permute.xlu0 %1951
  %1953 = vrot.lane.b32.xlu0 %v1845, 20
  %v1954 = vpop.permute.xlu0 %1953
  %1955 = vrot.lane.b32.xlu0 %v1849, 20
  %v1956 = vpop.permute.xlu0 %1955
  %1957 = vrot.lane.b32.xlu0 %v1852, 20
  %v1958 = vpop.permute.xlu0 %1957
  %1959 = vrot.lane.b32.xlu0 %v1856, 20
  %v1960 = vpop.permute.xlu0 %1959
  %1961 = vrot.lane.b32.xlu0 %v1859, 20
  %v1962 = vpop.permute.xlu0 %1961
  %1963 = vrot.lane.b32.xlu0 %v1863, 20
  %v1964 = vpop.permute.xlu0 %1963
  %1965 = vrot.lane.b32.xlu0 %v1866, 20
  %v1966 = vpop.permute.xlu0 %1965
  %1967 = vrot.lane.b32.xlu0 %v1870, 20
  %v1968 = vpop.permute.xlu0 %1967
  %1969 = vrot.lane.b32.xlu0 %v1873, 20
  %v1970 = vpop.permute.xlu0 %1969
  %1971 = vrot.lane.b32.xlu0 %v1877, 20
  %v1972 = vpop.permute.xlu0 %1971
  %1973 = vrot.lane.b32.xlu0 %v1880, 20
  %v1974 = vpop.permute.xlu0 %1973
  %1975 = vrot.lane.b32.xlu0 %v1884, 20
  %v1976 = vpop.permute.xlu0 %1975
  %1977 = vrot.lane.b32.xlu0 %v1887, 20
  %v1978 = vpop.permute.xlu0 %1977
  %1979 = vrot.lane.b32.xlu0 %v1891, 20
  %v1980 = vpop.permute.xlu0 %1979
  %1981 = vrot.lane.b32.xlu0 %v1894, 20
  %v1982 = vpop.permute.xlu0 %1981
  %1983 = vrot.lane.b32.xlu0 %v1898, 20
  %v1984 = vpop.permute.xlu0 %1983
  %1985 = vrot.lane.b32.xlu0 %v1901, 20
  %v1986 = vpop.permute.xlu0 %1985
  %1987 = vrot.lane.b32.xlu0 %v1905, 20
  %v1988 = vpop.permute.xlu0 %1987
  %1989 = vrot.lane.b32.xlu0 %v1908, 20
  %v1990 = vpop.permute.xlu0 %1989
  %1991 = vrot.lane.b32.xlu0 %v1912, 20
  %v1992 = vpop.permute.xlu0 %1991
  %1993 = vrot.lane.b32.xlu0 %v1915, 20
  %v1994 = vpop.permute.xlu0 %1993
  %1995 = vrot.lane.b32.xlu0 %v1919, 20
  %v1996 = vpop.permute.xlu0 %1995
  %1997 = vrot.lane.b32.xlu0 %v1922, 20
  %v1998 = vpop.permute.xlu0 %1997
  %1999 = vrot.lane.b32.xlu0 %v1926, 20
  %v2000 = vpop.permute.xlu0 %1999
  %2001 = vrot.lane.b32.xlu0 %v1929, 20
  %v2002 = vpop.permute.xlu0 %2001
  %2003 = vrot.lane.b32.xlu0 %v1933, 20
  %v2004 = vpop.permute.xlu0 %2003
  %2005 = vrot.lane.b32.xlu0 %v1936, 20
  %v2006 = vpop.permute.xlu0 %2005
  %2007 = vrot.lane.b32.xlu0 %v1940, 20
  %v2008 = vpop.permute.xlu0 %2007
  %2009 = vrot.lane.b32.xlu0 %v1943, 20
  %v2010 = vpop.permute.xlu0 %2009
  %2011 = vrot.lane.b32.xlu0 %v1947, 20
  %v2012 = vpop.permute.xlu0 %2011
  %2013 = vrot.lane.b32.xlu0 %v1950, 20
  %v2014 = vpop.permute.xlu0 %2013
  %vm2047 = vcmask 191648
  %2048 = vst.msk [vmem:[#allocation2] sm:$0xf] %vm2047, %v1952
  %2049 = vst.msk [vmem:[#allocation2 + $0x4] sm:$0xf] %vm2047, %v1954
  %2050 = vst.msk [vmem:[#allocation2 + $0x8] sm:$0xf] %vm2047, %v1956
  %2051 = vst.msk [vmem:[#allocation2 + $0xc] sm:$0xf] %vm2047, %v1958
  %2052 = vst.msk [vmem:[#allocation2 + $0x10] sm:$0xf] %vm2047, %v1960
  %2053 = vst.msk [vmem:[#allocation2 + $0x14] sm:$0xf] %vm2047, %v1962
  %2054 = vst.msk [vmem:[#allocation2 + $0x18] sm:$0xf] %vm2047, %v1964
  %2055 = vst.msk [vmem:[#allocation2 + $0x1c] sm:$0xf] %vm2047, %v1966
  %2056 = vst.msk [vmem:[#allocation2 + $0x20] sm:$0xf] %vm2047, %v1968
  %2057 = vst.msk [vmem:[#allocation2 + $0x24] sm:$0xf] %vm2047, %v1970
  %2058 = vst.msk [vmem:[#allocation2 + $0x28] sm:$0xf] %vm2047, %v1972
  %2059 = vst.msk [vmem:[#allocation2 + $0x2c] sm:$0xf] %vm2047, %v1974
  %2060 = vst.msk [vmem:[#allocation2 + $0x30] sm:$0xf] %vm2047, %v1976
  %2061 = vst.msk [vmem:[#allocation2 + $0x34] sm:$0xf] %vm2047, %v1978
  %2062 = vst.msk [vmem:[#allocation2 + $0x38] sm:$0xf] %vm2047, %v1980
  %2063 = vst.msk [vmem:[#allocation2 + $0x3c] sm:$0xf] %vm2047, %v1982
  %2064 = vst.msk [vmem:[#allocation2 + $0x40] sm:$0xf] %vm2047, %v1984
  %2065 = vst.msk [vmem:[#allocation2 + $0x44] sm:$0xf] %vm2047, %v1986
  %2066 = vst.msk [vmem:[#allocation2 + $0x48] sm:$0xf] %vm2047, %v1988
  %2067 = vst.msk [vmem:[#allocation2 + $0x4c] sm:$0xf] %vm2047, %v1990
  %2068 = vst.msk [vmem:[#allocation2 + $0x50] sm:$0xf] %vm2047, %v1992
  %2069 = vst.msk [vmem:[#allocation2 + $0x54] sm:$0xf] %vm2047, %v1994
  %2070 = vst.msk [vmem:[#allocation2 + $0x58] sm:$0xf] %vm2047, %v1996
  %2071 = vst.msk [vmem:[#allocation2 + $0x5c] sm:$0xf] %vm2047, %v1998
  %2072 = vst.msk [vmem:[#allocation2 + $0x60] sm:$0xf] %vm2047, %v2000
  %2073 = vst.msk [vmem:[#allocation2 + $0x64] sm:$0xf] %vm2047, %v2002
  %2074 = vst.msk [vmem:[#allocation2 + $0x68] sm:$0xf] %vm2047, %v2004
  %2075 = vst.msk [vmem:[#allocation2 + $0x6c] sm:$0xf] %vm2047, %v2006
  %2076 = vst.msk [vmem:[#allocation2 + $0x70] sm:$0xf] %vm2047, %v2008
  %2077 = vst.msk [vmem:[#allocation2 + $0x74] sm:$0xf] %vm2047, %v2010
  %2078 = vst.msk [vmem:[#allocation2 + $0x78] sm:$0xf] %vm2047, %v2012
  %2079 = vst.msk [vmem:[#allocation2 + $0x7c] sm:$0xf] %vm2047, %v2014
  %s2080 = sadd.s32 %s12, 2
  %s2081 = smul.u32 %s2080, 3
  %s2082 = smul.addr %s2081, 4
  %s2083 = scalar_lea.vmem %s0, %s2082
  %v2084 = vld [vmem:[%s2083] sm:$0xf]
  %v2085 = vld [vmem:[%s2083 + $0x4] sm:$0xf]
  %v2086 = vld [vmem:[%s2083 + $0xc] sm:$0xf]
  %v2087 = vld [vmem:[%s2083 + $0x10] sm:$0xf]
  %v2088 = vld [vmem:[%s2083 + $0x18] sm:$0xf]
  %v2089 = vld [vmem:[%s2083 + $0x1c] sm:$0xf]
  %v2090 = vld [vmem:[%s2083 + $0x24] sm:$0xf]
  %v2091 = vld [vmem:[%s2083 + $0x28] sm:$0xf]
  %v2092 = vld [vmem:[%s2083 + $0x30] sm:$0xf]
  %v2093 = vld [vmem:[%s2083 + $0x34] sm:$0xf]
  %v2094 = vld [vmem:[%s2083 + $0x3c] sm:$0xf]
  %v2095 = vld [vmem:[%s2083 + $0x40] sm:$0xf]
  %v2096 = vld [vmem:[%s2083 + $0x48] sm:$0xf]
  %v2097 = vld [vmem:[%s2083 + $0x4c] sm:$0xf]
  %v2098 = vld [vmem:[%s2083 + $0x54] sm:$0xf]
  %v2099 = vld [vmem:[%s2083 + $0x58] sm:$0xf]
  %v2100 = vld [vmem:[%s2083 + $0x60] sm:$0xf]
  %v2101 = vld [vmem:[%s2083 + $0x64] sm:$0xf]
  %v2102 = vld [vmem:[%s2083 + $0x6c] sm:$0xf]
  %v2103 = vld [vmem:[%s2083 + $0x70] sm:$0xf]
  %v2104 = vld [vmem:[%s2083 + $0x78] sm:$0xf]
  %v2105 = vld [vmem:[%s2083 + $0x7c] sm:$0xf]
  %v2106 = vld [vmem:[%s2083 + $0x84] sm:$0xf]
  %v2107 = vld [vmem:[%s2083 + $0x88] sm:$0xf]
  %v2108 = vld [vmem:[%s2083 + $0x90] sm:$0xf]
  %v2109 = vld [vmem:[%s2083 + $0x94] sm:$0xf]
  %v2110 = vld [vmem:[%s2083 + $0x9c] sm:$0xf]
  %v2111 = vld [vmem:[%s2083 + $0xa0] sm:$0xf]
  %v2112 = vld [vmem:[%s2083 + $0xa8] sm:$0xf]
  %v2113 = vld [vmem:[%s2083 + $0xac] sm:$0xf]
  %v2114 = vld [vmem:[%s2083 + $0xb4] sm:$0xf]
  %v2115 = vld [vmem:[%s2083 + $0xb8] sm:$0xf]
  %2148 = vrot.lane.b32.xlu0 %v2084, 24
  %v2149 = vpop.permute.xlu0 %2148
  %2150 = vrot.lane.b32.xlu0 %v2085, 24
  %v2151 = vpop.permute.xlu0 %2150
  %2152 = vrot.lane.b32.xlu0 %v2086, 24
  %v2153 = vpop.permute.xlu0 %2152
  %2154 = vrot.lane.b32.xlu0 %v2087, 24
  %v2155 = vpop.permute.xlu0 %2154
  %2156 = vrot.lane.b32.xlu0 %v2088, 24
  %v2157 = vpop.permute.xlu0 %2156
  %2158 = vrot.lane.b32.xlu0 %v2089, 24
  %v2159 = vpop.permute.xlu0 %2158
  %2160 = vrot.lane.b32.xlu0 %v2090, 24
  %v2161 = vpop.permute.xlu0 %2160
  %2162 = vrot.lane.b32.xlu0 %v2091, 24
  %v2163 = vpop.permute.xlu0 %2162
  %2164 = vrot.lane.b32.xlu0 %v2092, 24
  %v2165 = vpop.permute.xlu0 %2164
  %2166 = vrot.lane.b32.xlu0 %v2093, 24
  %v2167 = vpop.permute.xlu0 %2166
  %2168 = vrot.lane.b32.xlu0 %v2094, 24
  %v2169 = vpop.permute.xlu0 %2168
  %2170 = vrot.lane.b32.xlu0 %v2095, 24
  %v2171 = vpop.permute.xlu0 %2170
  %2172 = vrot.lane.b32.xlu0 %v2096, 24
  %v2173 = vpop.permute.xlu0 %2172
  %2174 = vrot.lane.b32.xlu0 %v2097, 24
  %v2175 = vpop.permute.xlu0 %2174
  %2176 = vrot.lane.b32.xlu0 %v2098, 24
  %v2177 = vpop.permute.xlu0 %2176
  %2178 = vrot.lane.b32.xlu0 %v2099, 24
  %v2179 = vpop.permute.xlu0 %2178
  %2180 = vrot.lane.b32.xlu0 %v2100, 24
  %v2181 = vpop.permute.xlu0 %2180
  %2182 = vrot.lane.b32.xlu0 %v2101, 24
  %v2183 = vpop.permute.xlu0 %2182
  %2184 = vrot.lane.b32.xlu0 %v2102, 24
  %v2185 = vpop.permute.xlu0 %2184
  %2186 = vrot.lane.b32.xlu0 %v2103, 24
  %v2187 = vpop.permute.xlu0 %2186
  %2188 = vrot.lane.b32.xlu0 %v2104, 24
  %v2189 = vpop.permute.xlu0 %2188
  %2190 = vrot.lane.b32.xlu0 %v2105, 24
  %v2191 = vpop.permute.xlu0 %2190
  %2192 = vrot.lane.b32.xlu0 %v2106, 24
  %v2193 = vpop.permute.xlu0 %2192
  %2194 = vrot.lane.b32.xlu0 %v2107, 24
  %v2195 = vpop.permute.xlu0 %2194
  %2196 = vrot.lane.b32.xlu0 %v2108, 24
  %v2197 = vpop.permute.xlu0 %2196
  %2198 = vrot.lane.b32.xlu0 %v2109, 24
  %v2199 = vpop.permute.xlu0 %2198
  %2200 = vrot.lane.b32.xlu0 %v2110, 24
  %v2201 = vpop.permute.xlu0 %2200
  %2202 = vrot.lane.b32.xlu0 %v2111, 24
  %v2203 = vpop.permute.xlu0 %2202
  %2204 = vrot.lane.b32.xlu0 %v2112, 24
  %v2205 = vpop.permute.xlu0 %2204
  %2206 = vrot.lane.b32.xlu0 %v2113, 24
  %v2207 = vpop.permute.xlu0 %2206
  %2208 = vrot.lane.b32.xlu0 %v2114, 24
  %v2209 = vpop.permute.xlu0 %2208
  %2210 = vrot.lane.b32.xlu0 %v2115, 24
  %v2211 = vpop.permute.xlu0 %2210
  %vm2244 = vcmask 224448
  %2245 = vst.msk [vmem:[#allocation2] sm:$0xf] %vm2244, %v2149
  %2246 = vst.msk [vmem:[#allocation2 + $0x4] sm:$0xf] %vm2244, %v2151
  %2247 = vst.msk [vmem:[#allocation2 + $0x8] sm:$0xf] %vm2244, %v2153
  %2248 = vst.msk [vmem:[#allocation2 + $0xc] sm:$0xf] %vm2244, %v2155
  %2249 = vst.msk [vmem:[#allocation2 + $0x10] sm:$0xf] %vm2244, %v2157
  %2250 = vst.msk [vmem:[#allocation2 + $0x14] sm:$0xf] %vm2244, %v2159
  %2251 = vst.msk [vmem:[#allocation2 + $0x18] sm:$0xf] %vm2244, %v2161
  %2252 = vst.msk [vmem:[#allocation2 + $0x1c] sm:$0xf] %vm2244, %v2163
  %2253 = vst.msk [vmem:[#allocation2 + $0x20] sm:$0xf] %vm2244, %v2165
  %2254 = vst.msk [vmem:[#allocation2 + $0x24] sm:$0xf] %vm2244, %v2167
  %2255 = vst.msk [vmem:[#allocation2 + $0x28] sm:$0xf] %vm2244, %v2169
  %2256 = vst.msk [vmem:[#allocation2 + $0x2c] sm:$0xf] %vm2244, %v2171
  %2257 = vst.msk [vmem:[#allocation2 + $0x30] sm:$0xf] %vm2244, %v2173
  %2258 = vst.msk [vmem:[#allocation2 + $0x34] sm:$0xf] %vm2244, %v2175
  %2259 = vst.msk [vmem:[#allocation2 + $0x38] sm:$0xf] %vm2244, %v2177
  %2260 = vst.msk [vmem:[#allocation2 + $0x3c] sm:$0xf] %vm2244, %v2179
  %2261 = vst.msk [vmem:[#allocation2 + $0x40] sm:$0xf] %vm2244, %v2181
  %2262 = vst.msk [vmem:[#allocation2 + $0x44] sm:$0xf] %vm2244, %v2183
  %2263 = vst.msk [vmem:[#allocation2 + $0x48] sm:$0xf] %vm2244, %v2185
  %2264 = vst.msk [vmem:[#allocation2 + $0x4c] sm:$0xf] %vm2244, %v2187
  %2265 = vst.msk [vmem:[#allocation2 + $0x50] sm:$0xf] %vm2244, %v2189
  %2266 = vst.msk [vmem:[#allocation2 + $0x54] sm:$0xf] %vm2244, %v2191
  %2267 = vst.msk [vmem:[#allocation2 + $0x58] sm:$0xf] %vm2244, %v2193
  %2268 = vst.msk [vmem:[#allocation2 + $0x5c] sm:$0xf] %vm2244, %v2195
  %2269 = vst.msk [vmem:[#allocation2 + $0x60] sm:$0xf] %vm2244, %v2197
  %2270 = vst.msk [vmem:[#allocation2 + $0x64] sm:$0xf] %vm2244, %v2199
  %2271 = vst.msk [vmem:[#allocation2 + $0x68] sm:$0xf] %vm2244, %v2201
  %2272 = vst.msk [vmem:[#allocation2 + $0x6c] sm:$0xf] %vm2244, %v2203
  %2273 = vst.msk [vmem:[#allocation2 + $0x70] sm:$0xf] %vm2244, %v2205
  %2274 = vst.msk [vmem:[#allocation2 + $0x74] sm:$0xf] %vm2244, %v2207
  %2275 = vst.msk [vmem:[#allocation2 + $0x78] sm:$0xf] %vm2244, %v2209
  %2276 = vst.msk [vmem:[#allocation2 + $0x7c] sm:$0xf] %vm2244, %v2211
  %v2277 = vld [vmem:[%s2083] sm:$0xf]
  %v2278 = vld [vmem:[%s2083 + $0x4] sm:$0xf]
  %v2279 = vld [vmem:[%s2083 + $0x8] sm:$0x1]
  %v2280 = vld [vmem:[%s2083 + $0xc] sm:$0xf]
  %v2281 = vld [vmem:[%s2083 + $0x10] sm:$0xf]
  %v2282 = vld [vmem:[%s2083 + $0x14] sm:$0x1]
  %v2283 = vld [vmem:[%s2083 + $0x18] sm:$0xf]
  %v2284 = vld [vmem:[%s2083 + $0x1c] sm:$0xf]
  %v2285 = vld [vmem:[%s2083 + $0x20] sm:$0x1]
  %v2286 = vld [vmem:[%s2083 + $0x24] sm:$0xf]
  %v2287 = vld [vmem:[%s2083 + $0x28] sm:$0xf]
  %v2288 = vld [vmem:[%s2083 + $0x2c] sm:$0x1]
  %v2289 = vld [vmem:[%s2083 + $0x30] sm:$0xf]
  %v2290 = vld [vmem:[%s2083 + $0x34] sm:$0xf]
  %v2291 = vld [vmem:[%s2083 + $0x38] sm:$0x1]
  %v2292 = vld [vmem:[%s2083 + $0x3c] sm:$0xf]
  %v2293 = vld [vmem:[%s2083 + $0x40] sm:$0xf]
  %v2294 = vld [vmem:[%s2083 + $0x44] sm:$0x1]
  %v2295 = vld [vmem:[%s2083 + $0x48] sm:$0xf]
  %v2296 = vld [vmem:[%s2083 + $0x4c] sm:$0xf]
  %v2297 = vld [vmem:[%s2083 + $0x50] sm:$0x1]
  %v2298 = vld [vmem:[%s2083 + $0x54] sm:$0xf]
  %v2299 = vld [vmem:[%s2083 + $0x58] sm:$0xf]
  %v2300 = vld [vmem:[%s2083 + $0x5c] sm:$0x1]
  %v2301 = vld [vmem:[%s2083 + $0x60] sm:$0xf]
  %v2302 = vld [vmem:[%s2083 + $0x64] sm:$0xf]
  %v2303 = vld [vmem:[%s2083 + $0x68] sm:$0x1]
  %v2304 = vld [vmem:[%s2083 + $0x6c] sm:$0xf]
  %v2305 = vld [vmem:[%s2083 + $0x70] sm:$0xf]
  %v2306 = vld [vmem:[%s2083 + $0x74] sm:$0x1]
  %v2307 = vld [vmem:[%s2083 + $0x78] sm:$0xf]
  %v2308 = vld [vmem:[%s2083 + $0x7c] sm:$0xf]
  %v2309 = vld [vmem:[%s2083 + $0x80] sm:$0x1]
  %v2310 = vld [vmem:[%s2083 + $0x84] sm:$0xf]
  %v2311 = vld [vmem:[%s2083 + $0x88] sm:$0xf]
  %v2312 = vld [vmem:[%s2083 + $0x8c] sm:$0x1]
  %v2313 = vld [vmem:[%s2083 + $0x90] sm:$0xf]
  %v2314 = vld [vmem:[%s2083 + $0x94] sm:$0xf]
  %v2315 = vld [vmem:[%s2083 + $0x98] sm:$0x1]
  %v2316 = vld [vmem:[%s2083 + $0x9c] sm:$0xf]
  %v2317 = vld [vmem:[%s2083 + $0xa0] sm:$0xf]
  %v2318 = vld [vmem:[%s2083 + $0xa4] sm:$0x1]
  %v2319 = vld [vmem:[%s2083 + $0xa8] sm:$0xf]
  %v2320 = vld [vmem:[%s2083 + $0xac] sm:$0xf]
  %v2321 = vld [vmem:[%s2083 + $0xb0] sm:$0x1]
  %v2322 = vld [vmem:[%s2083 + $0xb4] sm:$0xf]
  %v2323 = vld [vmem:[%s2083 + $0xb8] sm:$0xf]
  %v2324 = vld [vmem:[%s2083 + $0xbc] sm:$0x1]
  %v2326 = vshrl.u32 %v2277, 16
  %v2328 = vrot.slane %v2326, 4
  %v2329 = vshll.u32 %v2277, 16
  %v2331 = vrot.slane %v2329, 5
  %v2332 = vor.u32 %v2328, %v2331
  %v2333 = vrot.slane %v2332, 4
  %v2335 = vshll.u32 %v2278, 16
  %v2337 = vrot.slane %v2335, 5
  %v2338 = vsel %vm131, %v2333, %v2337
  %v2339 = vshrl.u32 %v2278, 16
  %v2341 = vrot.slane %v2339, 4
  %v2342 = vor.u32 %v2341, %v2337
  %v2343 = vrot.slane %v2342, 4
  %v2345 = vshll.u32 %v2279, 16
  %v2347 = vrot.slane %v2345, 5
  %v2348 = vsel %vm131, %v2343, %v2347
  %v2350 = vshrl.u32 %v2280, 16
  %v2352 = vrot.slane %v2350, 4
  %v2353 = vshll.u32 %v2280, 16
  %v2355 = vrot.slane %v2353, 5
  %v2356 = vor.u32 %v2352, %v2355
  %v2357 = vrot.slane %v2356, 4
  %v2359 = vshll.u32 %v2281, 16
  %v2361 = vrot.slane %v2359, 5
  %v2362 = vsel %vm131, %v2357, %v2361
  %v2363 = vshrl.u32 %v2281, 16
  %v2365 = vrot.slane %v2363, 4
  %v2366 = vor.u32 %v2365, %v2361
  %v2367 = vrot.slane %v2366, 4
  %v2369 = vshll.u32 %v2282, 16
  %v2371 = vrot.slane %v2369, 5
  %v2372 = vsel %vm131, %v2367, %v2371
  %v2374 = vshrl.u32 %v2283, 16
  %v2376 = vrot.slane %v2374, 4
  %v2377 = vshll.u32 %v2283, 16
  %v2379 = vrot.slane %v2377, 5
  %v2380 = vor.u32 %v2376, %v2379
  %v2381 = vrot.slane %v2380, 4
  %v2383 = vshll.u32 %v2284, 16
  %v2385 = vrot.slane %v2383, 5
  %v2386 = vsel %vm131, %v2381, %v2385
  %v2387 = vshrl.u32 %v2284, 16
  %v2389 = vrot.slane %v2387, 4
  %v2390 = vor.u32 %v2389, %v2385
  %v2391 = vrot.slane %v2390, 4
  %v2393 = vshll.u32 %v2285, 16
  %v2395 = vrot.slane %v2393, 5
  %v2396 = vsel %vm131, %v2391, %v2395
  %v2398 = vshrl.u32 %v2286, 16
  %v2400 = vrot.slane %v2398, 4
  %v2401 = vshll.u32 %v2286, 16
  %v2403 = vrot.slane %v2401, 5
  %v2404 = vor.u32 %v2400, %v2403
  %v2405 = vrot.slane %v2404, 4
  %v2407 = vshll.u32 %v2287, 16
  %v2409 = vrot.slane %v2407, 5
  %v2410 = vsel %vm131, %v2405, %v2409
  %v2411 = vshrl.u32 %v2287, 16
  %v2413 = vrot.slane %v2411, 4
  %v2414 = vor.u32 %v2413, %v2409
  %v2415 = vrot.slane %v2414, 4
  %v2417 = vshll.u32 %v2288, 16
  %v2419 = vrot.slane %v2417, 5
  %v2420 = vsel %vm131, %v2415, %v2419
  %v2422 = vshrl.u32 %v2289, 16
  %v2424 = vrot.slane %v2422, 4
  %v2425 = vshll.u32 %v2289, 16
  %v2427 = vrot.slane %v2425, 5
  %v2428 = vor.u32 %v2424, %v2427
  %v2429 = vrot.slane %v2428, 4
  %v2431 = vshll.u32 %v2290, 16
  %v2433 = vrot.slane %v2431, 5
  %v2434 = vsel %vm131, %v2429, %v2433
  %v2435 = vshrl.u32 %v2290, 16
  %v2437 = vrot.slane %v2435, 4
  %v2438 = vor.u32 %v2437, %v2433
  %v2439 = vrot.slane %v2438, 4
  %v2441 = vshll.u32 %v2291, 16
  %v2443 = vrot.slane %v2441, 5
  %v2444 = vsel %vm131, %v2439, %v2443
  %v2446 = vshrl.u32 %v2292, 16
  %v2448 = vrot.slane %v2446, 4
  %v2449 = vshll.u32 %v2292, 16
  %v2451 = vrot.slane %v2449, 5
  %v2452 = vor.u32 %v2448, %v2451
  %v2453 = vrot.slane %v2452, 4
  %v2455 = vshll.u32 %v2293, 16
  %v2457 = vrot.slane %v2455, 5
  %v2458 = vsel %vm131, %v2453, %v2457
  %v2459 = vshrl.u32 %v2293, 16
  %v2461 = vrot.slane %v2459, 4
  %v2462 = vor.u32 %v2461, %v2457
  %v2463 = vrot.slane %v2462, 4
  %v2465 = vshll.u32 %v2294, 16
  %v2467 = vrot.slane %v2465, 5
  %v2468 = vsel %vm131, %v2463, %v2467
  %v2470 = vshrl.u32 %v2295, 16
  %v2472 = vrot.slane %v2470, 4
  %v2473 = vshll.u32 %v2295, 16
  %v2475 = vrot.slane %v2473, 5
  %v2476 = vor.u32 %v2472, %v2475
  %v2477 = vrot.slane %v2476, 4
  %v2479 = vshll.u32 %v2296, 16
  %v2481 = vrot.slane %v2479, 5
  %v2482 = vsel %vm131, %v2477, %v2481
  %v2483 = vshrl.u32 %v2296, 16
  %v2485 = vrot.slane %v2483, 4
  %v2486 = vor.u32 %v2485, %v2481
  %v2487 = vrot.slane %v2486, 4
  %v2489 = vshll.u32 %v2297, 16
  %v2491 = vrot.slane %v2489, 5
  %v2492 = vsel %vm131, %v2487, %v2491
  %v2494 = vshrl.u32 %v2298, 16
  %v2496 = vrot.slane %v2494, 4
  %v2497 = vshll.u32 %v2298, 16
  %v2499 = vrot.slane %v2497, 5
  %v2500 = vor.u32 %v2496, %v2499
  %v2501 = vrot.slane %v2500, 4
  %v2503 = vshll.u32 %v2299, 16
  %v2505 = vrot.slane %v2503, 5
  %v2506 = vsel %vm131, %v2501, %v2505
  %v2507 = vshrl.u32 %v2299, 16
  %v2509 = vrot.slane %v2507, 4
  %v2510 = vor.u32 %v2509, %v2505
  %v2511 = vrot.slane %v2510, 4
  %v2513 = vshll.u32 %v2300, 16
  %v2515 = vrot.slane %v2513, 5
  %v2516 = vsel %vm131, %v2511, %v2515
  %v2518 = vshrl.u32 %v2301, 16
  %v2520 = vrot.slane %v2518, 4
  %v2521 = vshll.u32 %v2301, 16
  %v2523 = vrot.slane %v2521, 5
  %v2524 = vor.u32 %v2520, %v2523
  %v2525 = vrot.slane %v2524, 4
  %v2527 = vshll.u32 %v2302, 16
  %v2529 = vrot.slane %v2527, 5
  %v2530 = vsel %vm131, %v2525, %v2529
  %v2531 = vshrl.u32 %v2302, 16
  %v2533 = vrot.slane %v2531, 4
  %v2534 = vor.u32 %v2533, %v2529
  %v2535 = vrot.slane %v2534, 4
  %v2537 = vshll.u32 %v2303, 16
  %v2539 = vrot.slane %v2537, 5
  %v2540 = vsel %vm131, %v2535, %v2539
  %v2542 = vshrl.u32 %v2304, 16
  %v2544 = vrot.slane %v2542, 4
  %v2545 = vshll.u32 %v2304, 16
  %v2547 = vrot.slane %v2545, 5
  %v2548 = vor.u32 %v2544, %v2547
  %v2549 = vrot.slane %v2548, 4
  %v2551 = vshll.u32 %v2305, 16
  %v2553 = vrot.slane %v2551, 5
  %v2554 = vsel %vm131, %v2549, %v2553
  %v2555 = vshrl.u32 %v2305, 16
  %v2557 = vrot.slane %v2555, 4
  %v2558 = vor.u32 %v2557, %v2553
  %v2559 = vrot.slane %v2558, 4
  %v2561 = vshll.u32 %v2306, 16
  %v2563 = vrot.slane %v2561, 5
  %v2564 = vsel %vm131, %v2559, %v2563
  %v2566 = vshrl.u32 %v2307, 16
  %v2568 = vrot.slane %v2566, 4
  %v2569 = vshll.u32 %v2307, 16
  %v2571 = vrot.slane %v2569, 5
  %v2572 = vor.u32 %v2568, %v2571
  %v2573 = vrot.slane %v2572, 4
  %v2575 = vshll.u32 %v2308, 16
  %v2577 = vrot.slane %v2575, 5
  %v2578 = vsel %vm131, %v2573, %v2577
  %v2579 = vshrl.u32 %v2308, 16
  %v2581 = vrot.slane %v2579, 4
  %v2582 = vor.u32 %v2581, %v2577
  %v2583 = vrot.slane %v2582, 4
  %v2585 = vshll.u32 %v2309, 16
  %v2587 = vrot.slane %v2585, 5
  %v2588 = vsel %vm131, %v2583, %v2587
  %v2590 = vshrl.u32 %v2310, 16
  %v2592 = vrot.slane %v2590, 4
  %v2593 = vshll.u32 %v2310, 16
  %v2595 = vrot.slane %v2593, 5
  %v2596 = vor.u32 %v2592, %v2595
  %v2597 = vrot.slane %v2596, 4
  %v2599 = vshll.u32 %v2311, 16
  %v2601 = vrot.slane %v2599, 5
  %v2602 = vsel %vm131, %v2597, %v2601
  %v2603 = vshrl.u32 %v2311, 16
  %v2605 = vrot.slane %v2603, 4
  %v2606 = vor.u32 %v2605, %v2601
  %v2607 = vrot.slane %v2606, 4
  %v2609 = vshll.u32 %v2312, 16
  %v2611 = vrot.slane %v2609, 5
  %v2612 = vsel %vm131, %v2607, %v2611
  %v2614 = vshrl.u32 %v2313, 16
  %v2616 = vrot.slane %v2614, 4
  %v2617 = vshll.u32 %v2313, 16
  %v2619 = vrot.slane %v2617, 5
  %v2620 = vor.u32 %v2616, %v2619
  %v2621 = vrot.slane %v2620, 4
  %v2623 = vshll.u32 %v2314, 16
  %v2625 = vrot.slane %v2623, 5
  %v2626 = vsel %vm131, %v2621, %v2625
  %v2627 = vshrl.u32 %v2314, 16
  %v2629 = vrot.slane %v2627, 4
  %v2630 = vor.u32 %v2629, %v2625
  %v2631 = vrot.slane %v2630, 4
  %v2633 = vshll.u32 %v2315, 16
  %v2635 = vrot.slane %v2633, 5
  %v2636 = vsel %vm131, %v2631, %v2635
  %v2638 = vshrl.u32 %v2316, 16
  %v2640 = vrot.slane %v2638, 4
  %v2641 = vshll.u32 %v2316, 16
  %v2643 = vrot.slane %v2641, 5
  %v2644 = vor.u32 %v2640, %v2643
  %v2645 = vrot.slane %v2644, 4
  %v2647 = vshll.u32 %v2317, 16
  %v2649 = vrot.slane %v2647, 5
  %v2650 = vsel %vm131, %v2645, %v2649
  %v2651 = vshrl.u32 %v2317, 16
  %v2653 = vrot.slane %v2651, 4
  %v2654 = vor.u32 %v2653, %v2649
  %v2655 = vrot.slane %v2654, 4
  %v2657 = vshll.u32 %v2318, 16
  %v2659 = vrot.slane %v2657, 5
  %v2660 = vsel %vm131, %v2655, %v2659
  %v2662 = vshrl.u32 %v2319, 16
  %v2664 = vrot.slane %v2662, 4
  %v2665 = vshll.u32 %v2319, 16
  %v2667 = vrot.slane %v2665, 5
  %v2668 = vor.u32 %v2664, %v2667
  %v2669 = vrot.slane %v2668, 4
  %v2671 = vshll.u32 %v2320, 16
  %v2673 = vrot.slane %v2671, 5
  %v2674 = vsel %vm131, %v2669, %v2673
  %v2675 = vshrl.u32 %v2320, 16
  %v2677 = vrot.slane %v2675, 4
  %v2678 = vor.u32 %v2677, %v2673
  %v2679 = vrot.slane %v2678, 4
  %v2681 = vshll.u32 %v2321, 16
  %v2683 = vrot.slane %v2681, 5
  %v2684 = vsel %vm131, %v2679, %v2683
  %v2686 = vshrl.u32 %v2322, 16
  %v2688 = vrot.slane %v2686, 4
  %v2689 = vshll.u32 %v2322, 16
  %v2691 = vrot.slane %v2689, 5
  %v2692 = vor.u32 %v2688, %v2691
  %v2693 = vrot.slane %v2692, 4
  %v2695 = vshll.u32 %v2323, 16
  %v2697 = vrot.slane %v2695, 5
  %v2698 = vsel %vm131, %v2693, %v2697
  %v2699 = vshrl.u32 %v2323, 16
  %v2701 = vrot.slane %v2699, 4
  %v2702 = vor.u32 %v2701, %v2697
  %v2703 = vrot.slane %v2702, 4
  %v2705 = vshll.u32 %v2324, 16
  %v2707 = vrot.slane %v2705, 5
  %v2708 = vsel %vm131, %v2703, %v2707
  %2709 = vrot.lane.b32.xlu0 %v2338, 28
  %v2710 = vpop.permute.xlu0 %2709
  %2711 = vrot.lane.b32.xlu0 %v2348, 28
  %v2712 = vpop.permute.xlu0 %2711
  %2713 = vrot.lane.b32.xlu0 %v2362, 28
  %v2714 = vpop.permute.xlu0 %2713
  %2715 = vrot.lane.b32.xlu0 %v2372, 28
  %v2716 = vpop.permute.xlu0 %2715
  %2717 = vrot.lane.b32.xlu0 %v2386, 28
  %v2718 = vpop.permute.xlu0 %2717
  %2719 = vrot.lane.b32.xlu0 %v2396, 28
  %v2720 = vpop.permute.xlu0 %2719
  %2721 = vrot.lane.b32.xlu0 %v2410, 28
  %v2722 = vpop.permute.xlu0 %2721
  %2723 = vrot.lane.b32.xlu0 %v2420, 28
  %v2724 = vpop.permute.xlu0 %2723
  %2725 = vrot.lane.b32.xlu0 %v2434, 28
  %v2726 = vpop.permute.xlu0 %2725
  %2727 = vrot.lane.b32.xlu0 %v2444, 28
  %v2728 = vpop.permute.xlu0 %2727
  %2729 = vrot.lane.b32.xlu0 %v2458, 28
  %v2730 = vpop.permute.xlu0 %2729
  %2731 = vrot.lane.b32.xlu0 %v2468, 28
  %v2732 = vpop.permute.xlu0 %2731
  %2733 = vrot.lane.b32.xlu0 %v2482, 28
  %v2734 = vpop.permute.xlu0 %2733
  %2735 = vrot.lane.b32.xlu0 %v2492, 28
  %v2736 = vpop.permute.xlu0 %2735
  %2737 = vrot.lane.b32.xlu0 %v2506, 28
  %v2738 = vpop.permute.xlu0 %2737
  %2739 = vrot.lane.b32.xlu0 %v2516, 28
  %v2740 = vpop.permute.xlu0 %2739
  %2741 = vrot.lane.b32.xlu0 %v2530, 28
  %v2742 = vpop.permute.xlu0 %2741
  %2743 = vrot.lane.b32.xlu0 %v2540, 28
  %v2744 = vpop.permute.xlu0 %2743
  %2745 = vrot.lane.b32.xlu0 %v2554, 28
  %v2746 = vpop.permute.xlu0 %2745
  %2747 = vrot.lane.b32.xlu0 %v2564, 28
  %v2748 = vpop.permute.xlu0 %2747
  %2749 = vrot.lane.b32.xlu0 %v2578, 28
  %v2750 = vpop.permute.xlu0 %2749
  %2751 = vrot.lane.b32.xlu0 %v2588, 28
  %v2752 = vpop.permute.xlu0 %2751
  %2753 = vrot.lane.b32.xlu0 %v2602, 28
  %v2754 = vpop.permute.xlu0 %2753
  %2755 = vrot.lane.b32.xlu0 %v2612, 28
  %v2756 = vpop.permute.xlu0 %2755
  %2757 = vrot.lane.b32.xlu0 %v2626, 28
  %v2758 = vpop.permute.xlu0 %2757
  %2759 = vrot.lane.b32.xlu0 %v2636, 28
  %v2760 = vpop.permute.xlu0 %2759
  %2761 = vrot.lane.b32.xlu0 %v2650, 28
  %v2762 = vpop.permute.xlu0 %2761
  %2763 = vrot.lane.b32.xlu0 %v2660, 28
  %v2764 = vpop.permute.xlu0 %2763
  %2765 = vrot.lane.b32.xlu0 %v2674, 28
  %v2766 = vpop.permute.xlu0 %2765
  %2767 = vrot.lane.b32.xlu0 %v2684, 28
  %v2768 = vpop.permute.xlu0 %2767
  %2769 = vrot.lane.b32.xlu0 %v2698, 28
  %v2770 = vpop.permute.xlu0 %2769
  %2771 = vrot.lane.b32.xlu0 %v2708, 28
  %v2772 = vpop.permute.xlu0 %2771
  %vm2805 = vcmask 257248
  %2806 = vst.msk [vmem:[#allocation2] sm:$0xf] %vm2805, %v2710
  %2807 = vst.msk [vmem:[#allocation2 + $0x4] sm:$0xf] %vm2805, %v2712
  %2808 = vst.msk [vmem:[#allocation2 + $0x8] sm:$0xf] %vm2805, %v2714
  %2809 = vst.msk [vmem:[#allocation2 + $0xc] sm:$0xf] %vm2805, %v2716
  %2810 = vst.msk [vmem:[#allocation2 + $0x10] sm:$0xf] %vm2805, %v2718
  %2811 = vst.msk [vmem:[#allocation2 + $0x14] sm:$0xf] %vm2805, %v2720
  %2812 = vst.msk [vmem:[#allocation2 + $0x18] sm:$0xf] %vm2805, %v2722
  %2813 = vst.msk [vmem:[#allocation2 + $0x1c] sm:$0xf] %vm2805, %v2724
  %2814 = vst.msk [vmem:[#allocation2 + $0x20] sm:$0xf] %vm2805, %v2726
  %2815 = vst.msk [vmem:[#allocation2 + $0x24] sm:$0xf] %vm2805, %v2728
  %2816 = vst.msk [vmem:[#allocation2 + $0x28] sm:$0xf] %vm2805, %v2730
  %2817 = vst.msk [vmem:[#allocation2 + $0x2c] sm:$0xf] %vm2805, %v2732
  %2818 = vst.msk [vmem:[#allocation2 + $0x30] sm:$0xf] %vm2805, %v2734
  %2819 = vst.msk [vmem:[#allocation2 + $0x34] sm:$0xf] %vm2805, %v2736
  %2820 = vst.msk [vmem:[#allocation2 + $0x38] sm:$0xf] %vm2805, %v2738
  %2821 = vst.msk [vmem:[#allocation2 + $0x3c] sm:$0xf] %vm2805, %v2740
  %2822 = vst.msk [vmem:[#allocation2 + $0x40] sm:$0xf] %vm2805, %v2742
  %2823 = vst.msk [vmem:[#allocation2 + $0x44] sm:$0xf] %vm2805, %v2744
  %2824 = vst.msk [vmem:[#allocation2 + $0x48] sm:$0xf] %vm2805, %v2746
  %2825 = vst.msk [vmem:[#allocation2 + $0x4c] sm:$0xf] %vm2805, %v2748
  %2826 = vst.msk [vmem:[#allocation2 + $0x50] sm:$0xf] %vm2805, %v2750
  %2827 = vst.msk [vmem:[#allocation2 + $0x54] sm:$0xf] %vm2805, %v2752
  %2828 = vst.msk [vmem:[#allocation2 + $0x58] sm:$0xf] %vm2805, %v2754
  %2829 = vst.msk [vmem:[#allocation2 + $0x5c] sm:$0xf] %vm2805, %v2756
  %2830 = vst.msk [vmem:[#allocation2 + $0x60] sm:$0xf] %vm2805, %v2758
  %2831 = vst.msk [vmem:[#allocation2 + $0x64] sm:$0xf] %vm2805, %v2760
  %2832 = vst.msk [vmem:[#allocation2 + $0x68] sm:$0xf] %vm2805, %v2762
  %2833 = vst.msk [vmem:[#allocation2 + $0x6c] sm:$0xf] %vm2805, %v2764
  %2834 = vst.msk [vmem:[#allocation2 + $0x70] sm:$0xf] %vm2805, %v2766
  %2835 = vst.msk [vmem:[#allocation2 + $0x74] sm:$0xf] %vm2805, %v2768
  %2836 = vst.msk [vmem:[#allocation2 + $0x78] sm:$0xf] %vm2805, %v2770
  %2837 = vst.msk [vmem:[#allocation2 + $0x7c] sm:$0xf] %vm2805, %v2772
  %v2838 = vld [vmem:[%s2083] sm:$0xe]
  %v2839 = vld [vmem:[%s2083 + $0x4] sm:$0xf]
  %v2840 = vld [vmem:[%s2083 + $0x8] sm:$0x1]
  %v2841 = vld [vmem:[%s2083 + $0xc] sm:$0xe]
  %v2842 = vld [vmem:[%s2083 + $0x10] sm:$0xf]
  %v2843 = vld [vmem:[%s2083 + $0x14] sm:$0x1]
  %v2844 = vld [vmem:[%s2083 + $0x18] sm:$0xe]
  %v2845 = vld [vmem:[%s2083 + $0x1c] sm:$0xf]
  %v2846 = vld [vmem:[%s2083 + $0x20] sm:$0x1]
  %v2847 = vld [vmem:[%s2083 + $0x24] sm:$0xe]
  %v2848 = vld [vmem:[%s2083 + $0x28] sm:$0xf]
  %v2849 = vld [vmem:[%s2083 + $0x2c] sm:$0x1]
  %v2850 = vld [vmem:[%s2083 + $0x30] sm:$0xe]
  %v2851 = vld [vmem:[%s2083 + $0x34] sm:$0xf]
  %v2852 = vld [vmem:[%s2083 + $0x38] sm:$0x1]
  %v2853 = vld [vmem:[%s2083 + $0x3c] sm:$0xe]
  %v2854 = vld [vmem:[%s2083 + $0x40] sm:$0xf]
  %v2855 = vld [vmem:[%s2083 + $0x44] sm:$0x1]
  %v2856 = vld [vmem:[%s2083 + $0x48] sm:$0xe]
  %v2857 = vld [vmem:[%s2083 + $0x4c] sm:$0xf]
  %v2858 = vld [vmem:[%s2083 + $0x50] sm:$0x1]
  %v2859 = vld [vmem:[%s2083 + $0x54] sm:$0xe]
  %v2860 = vld [vmem:[%s2083 + $0x58] sm:$0xf]
  %v2861 = vld [vmem:[%s2083 + $0x5c] sm:$0x1]
  %v2862 = vld [vmem:[%s2083 + $0x60] sm:$0xe]
  %v2863 = vld [vmem:[%s2083 + $0x64] sm:$0xf]
  %v2864 = vld [vmem:[%s2083 + $0x68] sm:$0x1]
  %v2865 = vld [vmem:[%s2083 + $0x6c] sm:$0xe]
  %v2866 = vld [vmem:[%s2083 + $0x70] sm:$0xf]
  %v2867 = vld [vmem:[%s2083 + $0x74] sm:$0x1]
  %v2868 = vld [vmem:[%s2083 + $0x78] sm:$0xe]
  %v2869 = vld [vmem:[%s2083 + $0x7c] sm:$0xf]
  %v2870 = vld [vmem:[%s2083 + $0x80] sm:$0x1]
  %v2871 = vld [vmem:[%s2083 + $0x84] sm:$0xe]
  %v2872 = vld [vmem:[%s2083 + $0x88] sm:$0xf]
  %v2873 = vld [vmem:[%s2083 + $0x8c] sm:$0x1]
  %v2874 = vld [vmem:[%s2083 + $0x90] sm:$0xe]
  %v2875 = vld [vmem:[%s2083 + $0x94] sm:$0xf]
  %v2876 = vld [vmem:[%s2083 + $0x98] sm:$0x1]
  %v2877 = vld [vmem:[%s2083 + $0x9c] sm:$0xe]
  %v2878 = vld [vmem:[%s2083 + $0xa0] sm:$0xf]
  %v2879 = vld [vmem:[%s2083 + $0xa4] sm:$0x1]
  %v2880 = vld [vmem:[%s2083 + $0xa8] sm:$0xe]
  %v2881 = vld [vmem:[%s2083 + $0xac] sm:$0xf]
  %v2882 = vld [vmem:[%s2083 + $0xb0] sm:$0x1]
  %v2883 = vld [vmem:[%s2083 + $0xb4] sm:$0xe]
  %v2884 = vld [vmem:[%s2083 + $0xb8] sm:$0xf]
  %v2885 = vld [vmem:[%s2083 + $0xbc] sm:$0x1]
  %v2934 = vrot.slane %v2838, 5
  %v2935 = vrot.slane %v2934, 4
  %v2936 = vrot.slane %v2839, 5
  %v2937 = vsel %vm743, %v2935, %v2936
  %v2938 = vrot.slane %v2936, 4
  %v2939 = vrot.slane %v2840, 5
  %v2940 = vsel %vm743, %v2938, %v2939
  %v2941 = vrot.slane %v2841, 5
  %v2942 = vrot.slane %v2941, 4
  %v2943 = vrot.slane %v2842, 5
  %v2944 = vsel %vm743, %v2942, %v2943
  %v2945 = vrot.slane %v2943, 4
  %v2946 = vrot.slane %v2843, 5
  %v2947 = vsel %vm743, %v2945, %v2946
  %v2948 = vrot.slane %v2844, 5
  %v2949 = vrot.slane %v2948, 4
  %v2950 = vrot.slane %v2845, 5
  %v2951 = vsel %vm743, %v2949, %v2950
  %v2952 = vrot.slane %v2950, 4
  %v2953 = vrot.slane %v2846, 5
  %v2954 = vsel %vm743, %v2952, %v2953
  %v2955 = vrot.slane %v2847, 5
  %v2956 = vrot.slane %v2955, 4
  %v2957 = vrot.slane %v2848, 5
  %v2958 = vsel %vm743, %v2956, %v2957
  %v2959 = vrot.slane %v2957, 4
  %v2960 = vrot.slane %v2849, 5
  %v2961 = vsel %vm743, %v2959, %v2960
  %v2962 = vrot.slane %v2850, 5
  %v2963 = vrot.slane %v2962, 4
  %v2964 = vrot.slane %v2851, 5
  %v2965 = vsel %vm743, %v2963, %v2964
  %v2966 = vrot.slane %v2964, 4
  %v2967 = vrot.slane %v2852, 5
  %v2968 = vsel %vm743, %v2966, %v2967
  %v2969 = vrot.slane %v2853, 5
  %v2970 = vrot.slane %v2969, 4
  %v2971 = vrot.slane %v2854, 5
  %v2972 = vsel %vm743, %v2970, %v2971
  %v2973 = vrot.slane %v2971, 4
  %v2974 = vrot.slane %v2855, 5
  %v2975 = vsel %vm743, %v2973, %v2974
  %v2976 = vrot.slane %v2856, 5
  %v2977 = vrot.slane %v2976, 4
  %v2978 = vrot.slane %v2857, 5
  %v2979 = vsel %vm743, %v2977, %v2978
  %v2980 = vrot.slane %v2978, 4
  %v2981 = vrot.slane %v2858, 5
  %v2982 = vsel %vm743, %v2980, %v2981
  %v2983 = vrot.slane %v2859, 5
  %v2984 = vrot.slane %v2983, 4
  %v2985 = vrot.slane %v2860, 5
  %v2986 = vsel %vm743, %v2984, %v2985
  %v2987 = vrot.slane %v2985, 4
  %v2988 = vrot.slane %v2861, 5
  %v2989 = vsel %vm743, %v2987, %v2988
  %v2990 = vrot.slane %v2862, 5
  %v2991 = vrot.slane %v2990, 4
  %v2992 = vrot.slane %v2863, 5
  %v2993 = vsel %vm743, %v2991, %v2992
  %v2994 = vrot.slane %v2992, 4
  %v2995 = vrot.slane %v2864, 5
  %v2996 = vsel %vm743, %v2994, %v2995
  %v2997 = vrot.slane %v2865, 5
  %v2998 = vrot.slane %v2997, 4
  %v2999 = vrot.slane %v2866, 5
  %v3000 = vsel %vm743, %v2998, %v2999
  %v3001 = vrot.slane %v2999, 4
  %v3002 = vrot.slane %v2867, 5
  %v3003 = vsel %vm743, %v3001, %v3002
  %v3004 = vrot.slane %v2868, 5
  %v3005 = vrot.slane %v3004, 4
  %v3006 = vrot.slane %v2869, 5
  %v3007 = vsel %vm743, %v3005, %v3006
  %v3008 = vrot.slane %v3006, 4
  %v3009 = vrot.slane %v2870, 5
  %v3010 = vsel %vm743, %v3008, %v3009
  %v3011 = vrot.slane %v2871, 5
  %v3012 = vrot.slane %v3011, 4
  %v3013 = vrot.slane %v2872, 5
  %v3014 = vsel %vm743, %v3012, %v3013
  %v3015 = vrot.slane %v3013, 4
  %v3016 = vrot.slane %v2873, 5
  %v3017 = vsel %vm743, %v3015, %v3016
  %v3018 = vrot.slane %v2874, 5
  %v3019 = vrot.slane %v3018, 4
  %v3020 = vrot.slane %v2875, 5
  %v3021 = vsel %vm743, %v3019, %v3020
  %v3022 = vrot.slane %v3020, 4
  %v3023 = vrot.slane %v2876, 5
  %v3024 = vsel %vm743, %v3022, %v3023
  %v3025 = vrot.slane %v2877, 5
  %v3026 = vrot.slane %v3025, 4
  %v3027 = vrot.slane %v2878, 5
  %v3028 = vsel %vm743, %v3026, %v3027
  %v3029 = vrot.slane %v3027, 4
  %v3030 = vrot.slane %v2879, 5
  %v3031 = vsel %vm743, %v3029, %v3030
  %v3032 = vrot.slane %v2880, 5
  %v3033 = vrot.slane %v3032, 4
  %v3034 = vrot.slane %v2881, 5
  %v3035 = vsel %vm743, %v3033, %v3034
  %v3036 = vrot.slane %v3034, 4
  %v3037 = vrot.slane %v2882, 5
  %v3038 = vsel %vm743, %v3036, %v3037
  %v3039 = vrot.slane %v2883, 5
  %v3040 = vrot.slane %v3039, 4
  %v3041 = vrot.slane %v2884, 5
  %v3042 = vsel %vm743, %v3040, %v3041
  %v3043 = vrot.slane %v3041, 4
  %v3044 = vrot.slane %v2885, 5
  %v3045 = vsel %vm743, %v3043, %v3044
  %3046 = vrot.lane.b32.xlu0 %v2937, 32
  %v3047 = vpop.permute.xlu0 %3046
  %3048 = vrot.lane.b32.xlu0 %v2940, 32
  %v3049 = vpop.permute.xlu0 %3048
  %3050 = vrot.lane.b32.xlu0 %v2944, 32
  %v3051 = vpop.permute.xlu0 %3050
  %3052 = vrot.lane.b32.xlu0 %v2947, 32
  %v3053 = vpop.permute.xlu0 %3052
  %3054 = vrot.lane.b32.xlu0 %v2951, 32
  %v3055 = vpop.permute.xlu0 %3054
  %3056 = vrot.lane.b32.xlu0 %v2954, 32
  %v3057 = vpop.permute.xlu0 %3056
  %3058 = vrot.lane.b32.xlu0 %v2958, 32
  %v3059 = vpop.permute.xlu0 %3058
  %3060 = vrot.lane.b32.xlu0 %v2961, 32
  %v3061 = vpop.permute.xlu0 %3060
  %3062 = vrot.lane.b32.xlu0 %v2965, 32
  %v3063 = vpop.permute.xlu0 %3062
  %3064 = vrot.lane.b32.xlu0 %v2968, 32
  %v3065 = vpop.permute.xlu0 %3064
  %3066 = vrot.lane.b32.xlu0 %v2972, 32
  %v3067 = vpop.permute.xlu0 %3066
  %3068 = vrot.lane.b32.xlu0 %v2975, 32
  %v3069 = vpop.permute.xlu0 %3068
  %3070 = vrot.lane.b32.xlu0 %v2979, 32
  %v3071 = vpop.permute.xlu0 %3070
  %3072 = vrot.lane.b32.xlu0 %v2982, 32
  %v3073 = vpop.permute.xlu0 %3072
  %3074 = vrot.lane.b32.xlu0 %v2986, 32
  %v3075 = vpop.permute.xlu0 %3074
  %3076 = vrot.lane.b32.xlu0 %v2989, 32
  %v3077 = vpop.permute.xlu0 %3076
  %3078 = vrot.lane.b32.xlu0 %v2993, 32
  %v3079 = vpop.permute.xlu0 %3078
  %3080 = vrot.lane.b32.xlu0 %v2996, 32
  %v3081 = vpop.permute.xlu0 %3080
  %3082 = vrot.lane.b32.xlu0 %v3000, 32
  %v3083 = vpop.permute.xlu0 %3082
  %3084 = vrot.lane.b32.xlu0 %v3003, 32
  %v3085 = vpop.permute.xlu0 %3084
  %3086 = vrot.lane.b32.xlu0 %v3007, 32
  %v3087 = vpop.permute.xlu0 %3086
  %3088 = vrot.lane.b32.xlu0 %v3010, 32
  %v3089 = vpop.permute.xlu0 %3088
  %3090 = vrot.lane.b32.xlu0 %v3014, 32
  %v3091 = vpop.permute.xlu0 %3090
  %3092 = vrot.lane.b32.xlu0 %v3017, 32
  %v3093 = vpop.permute.xlu0 %3092
  %3094 = vrot.lane.b32.xlu0 %v3021, 32
  %v3095 = vpop.permute.xlu0 %3094
  %3096 = vrot.lane.b32.xlu0 %v3024, 32
  %v3097 = vpop.permute.xlu0 %3096
  %3098 = vrot.lane.b32.xlu0 %v3028, 32
  %v3099 = vpop.permute.xlu0 %3098
  %3100 = vrot.lane.b32.xlu0 %v3031, 32
  %v3101 = vpop.permute.xlu0 %3100
  %3102 = vrot.lane.b32.xlu0 %v3035, 32
  %v3103 = vpop.permute.xlu0 %3102
  %3104 = vrot.lane.b32.xlu0 %v3038, 32
  %v3105 = vpop.permute.xlu0 %3104
  %3106 = vrot.lane.b32.xlu0 %v3042, 32
  %v3107 = vpop.permute.xlu0 %3106
  %3108 = vrot.lane.b32.xlu0 %v3045, 32
  %v3109 = vpop.permute.xlu0 %3108
  %vm3142 = vcmask 290048
  %3143 = vst.msk [vmem:[#allocation2] sm:$0xf] %vm3142, %v3047
  %3144 = vst.msk [vmem:[#allocation2 + $0x4] sm:$0xf] %vm3142, %v3049
  %3145 = vst.msk [vmem:[#allocation2 + $0x8] sm:$0xf] %vm3142, %v3051
  %3146 = vst.msk [vmem:[#allocation2 + $0xc] sm:$0xf] %vm3142, %v3053
  %3147 = vst.msk [vmem:[#allocation2 + $0x10] sm:$0xf] %vm3142, %v3055
  %3148 = vst.msk [vmem:[#allocation2 + $0x14] sm:$0xf] %vm3142, %v3057
  %3149 = vst.msk [vmem:[#allocation2 + $0x18] sm:$0xf] %vm3142, %v3059
  %3150 = vst.msk [vmem:[#allocation2 + $0x1c] sm:$0xf] %vm3142, %v3061
  %3151 = vst.msk [vmem:[#allocation2 + $0x20] sm:$0xf] %vm3142, %v3063
  %3152 = vst.msk [vmem:[#allocation2 + $0x24] sm:$0xf] %vm3142, %v3065
  %3153 = vst.msk [vmem:[#allocation2 + $0x28] sm:$0xf] %vm3142, %v3067
  %3154 = vst.msk [vmem:[#allocation2 + $0x2c] sm:$0xf] %vm3142, %v3069
  %3155 = vst.msk [vmem:[#allocation2 + $0x30] sm:$0xf] %vm3142, %v3071
  %3156 = vst.msk [vmem:[#allocation2 + $0x34] sm:$0xf] %vm3142, %v3073
  %3157 = vst.msk [vmem:[#allocation2 + $0x38] sm:$0xf] %vm3142, %v3075
  %3158 = vst.msk [vmem:[#allocation2 + $0x3c] sm:$0xf] %vm3142, %v3077
  %3159 = vst.msk [vmem:[#allocation2 + $0x40] sm:$0xf] %vm3142, %v3079
  %3160 = vst.msk [vmem:[#allocation2 + $0x44] sm:$0xf] %vm3142, %v3081
  %3161 = vst.msk [vmem:[#allocation2 + $0x48] sm:$0xf] %vm3142, %v3083
  %3162 = vst.msk [vmem:[#allocation2 + $0x4c] sm:$0xf] %vm3142, %v3085
  %3163 = vst.msk [vmem:[#allocation2 + $0x50] sm:$0xf] %vm3142, %v3087
  %3164 = vst.msk [vmem:[#allocation2 + $0x54] sm:$0xf] %vm3142, %v3089
  %3165 = vst.msk [vmem:[#allocation2 + $0x58] sm:$0xf] %vm3142, %v3091
  %3166 = vst.msk [vmem:[#allocation2 + $0x5c] sm:$0xf] %vm3142, %v3093
  %3167 = vst.msk [vmem:[#allocation2 + $0x60] sm:$0xf] %vm3142, %v3095
  %3168 = vst.msk [vmem:[#allocation2 + $0x64] sm:$0xf] %vm3142, %v3097
  %3169 = vst.msk [vmem:[#allocation2 + $0x68] sm:$0xf] %vm3142, %v3099
  %3170 = vst.msk [vmem:[#allocation2 + $0x6c] sm:$0xf] %vm3142, %v3101
  %3171 = vst.msk [vmem:[#allocation2 + $0x70] sm:$0xf] %vm3142, %v3103
  %3172 = vst.msk [vmem:[#allocation2 + $0x74] sm:$0xf] %vm3142, %v3105
  %3173 = vst.msk [vmem:[#allocation2 + $0x78] sm:$0xf] %vm3142, %v3107
  %3174 = vst.msk [vmem:[#allocation2 + $0x7c] sm:$0xf] %vm3142, %v3109
  %v3175 = vld [vmem:[#allocation2] sm:$0xf]
  %v3176 = vld [vmem:[#allocation2 + $0x4] sm:$0xf]
  %v3177 = vld [vmem:[#allocation2 + $0x8] sm:$0xf]
  %v3178 = vld [vmem:[#allocation2 + $0xc] sm:$0xf]
  %v3179 = vld [vmem:[#allocation2 + $0x10] sm:$0xf]
  %v3180 = vld [vmem:[#allocation2 + $0x14] sm:$0xf]
  %v3181 = vld [vmem:[#allocation2 + $0x18] sm:$0xf]
  %v3182 = vld [vmem:[#allocation2 + $0x1c] sm:$0xf]
  %v3183 = vld [vmem:[#allocation2 + $0x20] sm:$0xf]
  %v3184 = vld [vmem:[#allocation2 + $0x24] sm:$0xf]
  %v3185 = vld [vmem:[#allocation2 + $0x28] sm:$0xf]
  %v3186 = vld [vmem:[#allocation2 + $0x2c] sm:$0xf]
  %v3187 = vld [vmem:[#allocation2 + $0x30] sm:$0xf]
  %v3188 = vld [vmem:[#allocation2 + $0x34] sm:$0xf]
  %v3189 = vld [vmem:[#allocation2 + $0x38] sm:$0xf]
  %v3190 = vld [vmem:[#allocation2 + $0x3c] sm:$0xf]
  %v3191 = vld [vmem:[#allocation2 + $0x40] sm:$0xf]
  %v3192 = vld [vmem:[#allocation2 + $0x44] sm:$0xf]
  %v3193 = vld [vmem:[#allocation2 + $0x48] sm:$0xf]
  %v3194 = vld [vmem:[#allocation2 + $0x4c] sm:$0xf]
  %v3195 = vld [vmem:[#allocation2 + $0x50] sm:$0xf]
  %v3196 = vld [vmem:[#allocation2 + $0x54] sm:$0xf]
  %v3197 = vld [vmem:[#allocation2 + $0x58] sm:$0xf]
  %v3198 = vld [vmem:[#allocation2 + $0x5c] sm:$0xf]
  %v3199 = vld [vmem:[#allocation2 + $0x60] sm:$0xf]
  %v3200 = vld [vmem:[#allocation2 + $0x64] sm:$0xf]
  %v3201 = vld [vmem:[#allocation2 + $0x68] sm:$0xf]
  %v3202 = vld [vmem:[#allocation2 + $0x6c] sm:$0xf]
  %v3203 = vld [vmem:[#allocation2 + $0x70] sm:$0xf]
  %v3204 = vld [vmem:[#allocation2 + $0x74] sm:$0xf]
  %v3205 = vld [vmem:[#allocation2 + $0x78] sm:$0xf]
  %v3206 = vld [vmem:[#allocation2 + $0x7c] sm:$0xf]
  %v3207 = vld [vmem:[%s1] sm:$0xf]
  %v3240 = vunpack.c.l.b16 %v3175
  %v3241 = vunpack.c.l.b16 %v3176
  %v3242 = vunpack.c.l.b16 %v3177
  %v3243 = vunpack.c.l.b16 %v3178
  %v3244 = vunpack.c.l.b16 %v3179
  %v3245 = vunpack.c.l.b16 %v3180
  %v3246 = vunpack.c.l.b16 %v3181
  %v3247 = vunpack.c.l.b16 %v3182
  %v3248 = vunpack.c.l.b16 %v3183
  %v3249 = vunpack.c.l.b16 %v3184
  %v3250 = vunpack.c.l.b16 %v3185
  %v3251 = vunpack.c.l.b16 %v3186
  %v3252 = vunpack.c.l.b16 %v3187
  %v3253 = vunpack.c.l.b16 %v3188
  %v3254 = vunpack.c.l.b16 %v3189
  %v3255 = vunpack.c.l.b16 %v3190
  %v3256 = vunpack.c.l.b16 %v3191
  %v3257 = vunpack.c.l.b16 %v3192
  %v3258 = vunpack.c.l.b16 %v3193
  %v3259 = vunpack.c.l.b16 %v3194
  %v3260 = vunpack.c.l.b16 %v3195
  %v3261 = vunpack.c.l.b16 %v3196
  %v3262 = vunpack.c.l.b16 %v3197
  %v3263 = vunpack.c.l.b16 %v3198
  %v3264 = vunpack.c.l.b16 %v3199
  %v3265 = vunpack.c.l.b16 %v3200
  %v3266 = vunpack.c.l.b16 %v3201
  %v3267 = vunpack.c.l.b16 %v3202
  %v3268 = vunpack.c.l.b16 %v3203
  %v3269 = vunpack.c.l.b16 %v3204
  %v3270 = vunpack.c.l.b16 %v3205
  %v3271 = vunpack.c.l.b16 %v3206
  %v3272 = vpack.c.b16 %v3241, %v3240
  %v3273 = vpack.c.b16 %v3243, %v3242
  %v3274 = vpack.c.b16 %v3245, %v3244
  %v3275 = vpack.c.b16 %v3247, %v3246
  %v3276 = vpack.c.b16 %v3249, %v3248
  %v3277 = vpack.c.b16 %v3251, %v3250
  %v3278 = vpack.c.b16 %v3253, %v3252
  %v3279 = vpack.c.b16 %v3255, %v3254
  %v3280 = vpack.c.b16 %v3257, %v3256
  %v3281 = vpack.c.b16 %v3259, %v3258
  %v3282 = vpack.c.b16 %v3261, %v3260
  %v3283 = vpack.c.b16 %v3263, %v3262
  %v3284 = vpack.c.b16 %v3265, %v3264
  %v3285 = vpack.c.b16 %v3267, %v3266
  %v3286 = vpack.c.b16 %v3269, %v3268
  %v3287 = vpack.c.b16 %v3271, %v3270
  %vm3288 = vcmask 293888
  %v3290 = vsel %vm3288, %v3272, 0
  %v3293 = vsel %vm3288, %v3273, 0
  %v3296 = vsel %vm3288, %v3274, 0
  %v3299 = vsel %vm3288, %v3275, 0
  %v3302 = vsel %vm3288, %v3276, 0
  %v3305 = vsel %vm3288, %v3277, 0
  %v3308 = vsel %vm3288, %v3278, 0
  %v3311 = vsel %vm3288, %v3279, 0
  %v3314 = vsel %vm3288, %v3280, 0
  %v3317 = vsel %vm3288, %v3281, 0
  %v3320 = vsel %vm3288, %v3282, 0
  %v3323 = vsel %vm3288, %v3283, 0
  %v3326 = vsel %vm3288, %v3284, 0
  %v3329 = vsel %vm3288, %v3285, 0
  %v3332 = vsel %vm3288, %v3286, 0
  %v3335 = vsel %vm3288, %v3287, 0
  %v3338 = vsel %vm3288, %v3207, 0
  %3340 = vmatprep.subr.bf16.mxu0 0
  %3341 = vmatpush1.bf16.xpose.msra.mxu0 0
  %3342 = vmatprep.subr.bf16.mxu0 0
  %3343 = vmatpush1.bf16.xpose.msra.mxu0 0
  %3344 = vmatprep.subr.bf16.mxu0 0
  %3345 = vmatpush1.bf16.xpose.msra.mxu0 0
  %3346 = vmatprep.subr.bf16.mxu0 0
  %3347 = vmatpush1.bf16.xpose.msra.mxu0 0
  %3348 = vmatprep.subr.bf16.mxu0 0
  %3349 = vmatpush1.bf16.xpose.msra.mxu0 0
  %3350 = vmatprep.subr.bf16.mxu0 0
  %3351 = vmatpush1.bf16.xpose.msra.mxu0 0
  %3352 = vmatprep.subr.bf16.mxu0 0
  %3353 = vmatpush1.bf16.xpose.msra.mxu0 0
  %3354 = vmatprep.subr.bf16.mxu0 0
  %3355 = vmatpush1.bf16.xpose.msra.mxu0 %v3338
  %3356 = vmatprep.subr.bf16.mxu0 0
  %3357 = vmatpush2.bf16.xpose.msra.mxu0 0
  %3358 = vmatprep.subr.bf16.mxu0 0
  %3359 = vmatpush2.bf16.xpose.msra.mxu0 0
  %3360 = vmatprep.subr.bf16.mxu0 0
  %3361 = vmatpush2.bf16.xpose.msra.mxu0 0
  %3362 = vmatprep.subr.bf16.mxu0 0
  %3363 = vmatpush2.bf16.xpose.msra.mxu0 0
  %3364 = vmatprep.subr.bf16.mxu0 0
  %3365 = vmatpush2.bf16.xpose.msra.mxu0 0
  %3366 = vmatprep.subr.bf16.mxu0 0
  %3367 = vmatpush2.bf16.xpose.msra.mxu0 0
  %3368 = vmatprep.subr.bf16.mxu0 0
  %3369 = vmatpush2.bf16.xpose.msra.mxu0 0
  %3370 = vmatprep.subr.bf16.mxu0 0
  %3371 = vmatpush2.bf16.xpose.msra.mxu0 0
  %3372 = vmatprep.mubr.bf16.mxu0 0
  %3373 = vmatmul.mubr.bf16.gmra.mxu0 %v3290
  %v3374 = vpop.f32.mrf.mxu0
  %v3375 = vadd.f32 0.0, %v3374
  %v3376 = vpop.f32.mrf.mxu0
  %v3377 = vpop.f32.mrf.mxu0
  %v3378 = vadd.f32 0.0, %v3377
  %v3379 = vpop.f32.mrf.mxu0
  %3380 = vmatprep.mubr.bf16.mxu0 0
  %3381 = vmatmul.mubr.bf16.gmra.mxu0 %v3293
  %v3382 = vpop.f32.mrf.mxu0
  %v3383 = vadd.f32 0.0, %v3382
  %v3384 = vpop.f32.mrf.mxu0
  %v3385 = vpop.f32.mrf.mxu0
  %v3386 = vadd.f32 0.0, %v3385
  %v3387 = vpop.f32.mrf.mxu0
  %3388 = vmatprep.mubr.bf16.mxu0 0
  %3389 = vmatmul.mubr.bf16.gmra.mxu0 %v3296
  %v3390 = vpop.f32.mrf.mxu0
  %v3391 = vadd.f32 0.0, %v3390
  %v3392 = vpop.f32.mrf.mxu0
  %v3393 = vpop.f32.mrf.mxu0
  %v3394 = vadd.f32 0.0, %v3393
  %v3395 = vpop.f32.mrf.mxu0
  %3396 = vmatprep.mubr.bf16.mxu0 0
  %3397 = vmatmul.mubr.bf16.gmra.mxu0 %v3299
  %v3398 = vpop.f32.mrf.mxu0
  %v3399 = vadd.f32 0.0, %v3398
  %v3400 = vpop.f32.mrf.mxu0
  %v3401 = vpop.f32.mrf.mxu0
  %v3402 = vadd.f32 0.0, %v3401
  %v3403 = vpop.f32.mrf.mxu0
  %3404 = vmatprep.mubr.bf16.mxu0 0
  %3405 = vmatmul.mubr.bf16.gmra.mxu0 %v3302
  %v3406 = vpop.f32.mrf.mxu0
  %v3407 = vadd.f32 0.0, %v3406
  %v3408 = vpop.f32.mrf.mxu0
  %v3409 = vpop.f32.mrf.mxu0
  %v3410 = vadd.f32 0.0, %v3409
  %v3411 = vpop.f32.mrf.mxu0
  %3412 = vmatprep.mubr.bf16.mxu0 0
  %3413 = vmatmul.mubr.bf16.gmra.mxu0 %v3305
  %v3414 = vpop.f32.mrf.mxu0
  %v3415 = vadd.f32 0.0, %v3414
  %v3416 = vpop.f32.mrf.mxu0
  %v3417 = vpop.f32.mrf.mxu0
  %v3418 = vadd.f32 0.0, %v3417
  %v3419 = vpop.f32.mrf.mxu0
  %3420 = vmatprep.mubr.bf16.mxu0 0
  %3421 = vmatmul.mubr.bf16.gmra.mxu0 %v3308
  %v3422 = vpop.f32.mrf.mxu0
  %v3423 = vadd.f32 0.0, %v3422
  %v3424 = vpop.f32.mrf.mxu0
  %v3425 = vpop.f32.mrf.mxu0
  %v3426 = vadd.f32 0.0, %v3425
  %v3427 = vpop.f32.mrf.mxu0
  %3428 = vmatprep.mubr.bf16.mxu0 0
  %3429 = vmatmul.mubr.bf16.gmra.mxu0 %v3311
  %v3430 = vpop.f32.mrf.mxu0
  %v3431 = vadd.f32 0.0, %v3430
  %v3432 = vpop.f32.mrf.mxu0
  %v3433 = vpop.f32.mrf.mxu0
  %v3434 = vadd.f32 0.0, %v3433
  %v3435 = vpop.f32.mrf.mxu0
  %3436 = vmatprep.mubr.bf16.mxu0 0
  %3437 = vmatmul.mubr.bf16.gmra.mxu0 %v3314
  %v3438 = vpop.f32.mrf.mxu0
  %v3439 = vadd.f32 0.0, %v3438
  %v3440 = vpop.f32.mrf.mxu0
  %v3441 = vpop.f32.mrf.mxu0
  %v3442 = vadd.f32 0.0, %v3441
  %v3443 = vpop.f32.mrf.mxu0
  %3444 = vmatprep.mubr.bf16.mxu0 0
  %3445 = vmatmul.mubr.bf16.gmra.mxu0 %v3317
  %v3446 = vpop.f32.mrf.mxu0
  %v3447 = vadd.f32 0.0, %v3446
  %v3448 = vpop.f32.mrf.mxu0
  %v3449 = vpop.f32.mrf.mxu0
  %v3450 = vadd.f32 0.0, %v3449
  %v3451 = vpop.f32.mrf.mxu0
  %3452 = vmatprep.mubr.bf16.mxu0 0
  %3453 = vmatmul.mubr.bf16.gmra.mxu0 %v3320
  %v3454 = vpop.f32.mrf.mxu0
  %v3455 = vadd.f32 0.0, %v3454
  %v3456 = vpop.f32.mrf.mxu0
  %v3457 = vpop.f32.mrf.mxu0
  %v3458 = vadd.f32 0.0, %v3457
  %v3459 = vpop.f32.mrf.mxu0
  %3460 = vmatprep.mubr.bf16.mxu0 0
  %3461 = vmatmul.mubr.bf16.gmra.mxu0 %v3323
  %v3462 = vpop.f32.mrf.mxu0
  %v3463 = vadd.f32 0.0, %v3462
  %v3464 = vpop.f32.mrf.mxu0
  %v3465 = vpop.f32.mrf.mxu0
  %v3466 = vadd.f32 0.0, %v3465
  %v3467 = vpop.f32.mrf.mxu0
  %3468 = vmatprep.mubr.bf16.mxu0 0
  %3469 = vmatmul.mubr.bf16.gmra.mxu0 %v3326
  %v3470 = vpop.f32.mrf.mxu0
  %v3471 = vadd.f32 0.0, %v3470
  %v3472 = vpop.f32.mrf.mxu0
  %v3473 = vpop.f32.mrf.mxu0
  %v3474 = vadd.f32 0.0, %v3473
  %v3475 = vpop.f32.mrf.mxu0
  %3476 = vmatprep.mubr.bf16.mxu0 0
  %3477 = vmatmul.mubr.bf16.gmra.mxu0 %v3329
  %v3478 = vpop.f32.mrf.mxu0
  %v3479 = vadd.f32 0.0, %v3478
  %v3480 = vpop.f32.mrf.mxu0
  %v3481 = vpop.f32.mrf.mxu0
  %v3482 = vadd.f32 0.0, %v3481
  %v3483 = vpop.f32.mrf.mxu0
  %3484 = vmatprep.mubr.bf16.mxu0 0
  %3485 = vmatmul.mubr.bf16.gmra.mxu0 %v3332
  %v3486 = vpop.f32.mrf.mxu0
  %v3487 = vadd.f32 0.0, %v3486
  %v3488 = vpop.f32.mrf.mxu0
  %v3489 = vpop.f32.mrf.mxu0
  %v3490 = vadd.f32 0.0, %v3489
  %v3491 = vpop.f32.mrf.mxu0
  %3492 = vmatprep.mubr.bf16.mxu0 0
  %3493 = vmatmul.mubr.bf16.gmra.mxu0 %v3335
  %v3494 = vpop.f32.mrf.mxu0
  %v3495 = vadd.f32 0.0, %v3494
  %v3496 = vpop.f32.mrf.mxu0
  %v3497 = vpop.f32.mrf.mxu0
  %v3498 = vadd.f32 0.0, %v3497
  %v3499 = vpop.f32.mrf.mxu0
  %3500 = vdwg.mxu0
  %vm3501 = vcmask 64512
  %v3502 = vsel %vm3501, %v3375, 0.0
  %v3503 = vsel %vm3501, %v3378, 0.0
  %v3504 = vadd.f32 %v3502, %v3503
  %v3505 = vsel %vm3501, %v3383, 0.0
  %v3506 = vadd.f32 %v3504, %v3505
  %v3507 = vsel %vm3501, %v3386, 0.0
  %v3508 = vadd.f32 %v3506, %v3507
  %v3509 = vsel %vm3501, %v3391, 0.0
  %v3510 = vadd.f32 %v3508, %v3509
  %v3511 = vsel %vm3501, %v3394, 0.0
  %v3512 = vadd.f32 %v3510, %v3511
  %v3513 = vsel %vm3501, %v3399, 0.0
  %v3514 = vadd.f32 %v3512, %v3513
  %v3515 = vsel %vm3501, %v3402, 0.0
  %v3516 = vadd.f32 %v3514, %v3515
  %v3517 = vsel %vm3501, %v3407, 0.0
  %v3518 = vadd.f32 %v3516, %v3517
  %v3519 = vsel %vm3501, %v3410, 0.0
  %v3520 = vadd.f32 %v3518, %v3519
  %v3521 = vsel %vm3501, %v3415, 0.0
  %v3522 = vadd.f32 %v3520, %v3521
  %v3523 = vsel %vm3501, %v3418, 0.0
  %v3524 = vadd.f32 %v3522, %v3523
  %v3525 = vsel %vm3501, %v3423, 0.0
  %v3526 = vadd.f32 %v3524, %v3525
  %v3527 = vsel %vm3501, %v3426, 0.0
  %v3528 = vadd.f32 %v3526, %v3527
  %v3529 = vsel %vm3501, %v3431, 0.0
  %v3530 = vadd.f32 %v3528, %v3529
  %v3531 = vsel %vm3501, %v3434, 0.0
  %v3532 = vadd.f32 %v3530, %v3531
  %v3533 = vsel %vm3501, %v3439, 0.0
  %v3534 = vadd.f32 %v3532, %v3533
  %v3535 = vsel %vm3501, %v3442, 0.0
  %v3536 = vadd.f32 %v3534, %v3535
  %v3537 = vsel %vm3501, %v3447, 0.0
  %v3538 = vadd.f32 %v3536, %v3537
  %v3539 = vsel %vm3501, %v3450, 0.0
  %v3540 = vadd.f32 %v3538, %v3539
  %v3541 = vsel %vm3501, %v3455, 0.0
  %v3542 = vadd.f32 %v3540, %v3541
  %v3543 = vsel %vm3501, %v3458, 0.0
  %v3544 = vadd.f32 %v3542, %v3543
  %v3545 = vsel %vm3501, %v3463, 0.0
  %v3546 = vadd.f32 %v3544, %v3545
  %v3547 = vsel %vm3501, %v3466, 0.0
  %v3548 = vadd.f32 %v3546, %v3547
  %v3549 = vsel %vm3501, %v3471, 0.0
  %v3550 = vadd.f32 %v3548, %v3549
  %v3551 = vsel %vm3501, %v3474, 0.0
  %v3552 = vadd.f32 %v3550, %v3551
  %v3553 = vsel %vm3501, %v3479, 0.0
  %v3554 = vadd.f32 %v3552, %v3553
  %v3555 = vsel %vm3501, %v3482, 0.0
  %v3556 = vadd.f32 %v3554, %v3555
  %v3557 = vsel %vm3501, %v3487, 0.0
  %v3558 = vadd.f32 %v3556, %v3557
  %v3559 = vsel %vm3501, %v3490, 0.0
  %v3560 = vadd.f32 %v3558, %v3559
  %v3561 = vsel %vm3501, %v3495, 0.0
  %v3562 = vadd.f32 %v3560, %v3561
  %v3563 = vsel %vm3501, %v3498, 0.0
  %v3564 = vadd.f32 %v3562, %v3563
  %v3565 = vrot.slane %v3564, 4
  %v3566 = vadd.f32 %v3564, %v3565
  %v3567 = vrot.slane %v3566, 2
  %v3568 = vadd.f32 %v3566, %v3567
  %v3569 = vrot.slane %v3568, 1
  %v3570 = vadd.f32 %v3568, %v3569
  %v3571 = vmul.f32 %v3570, 0.00390625
  %v3572 = vsub.f32 %v3375, %v3571
  %v3573 = vsub.f32 %v3378, %v3571
  %v3574 = vsub.f32 %v3383, %v3571
  %v3575 = vsub.f32 %v3386, %v3571
  %v3576 = vsub.f32 %v3391, %v3571
  %v3577 = vsub.f32 %v3394, %v3571
  %v3578 = vsub.f32 %v3399, %v3571
  %v3579 = vsub.f32 %v3402, %v3571
  %v3580 = vsub.f32 %v3407, %v3571
  %v3581 = vsub.f32 %v3410, %v3571
  %v3582 = vsub.f32 %v3415, %v3571
  %v3583 = vsub.f32 %v3418, %v3571
  %v3584 = vsub.f32 %v3423, %v3571
  %v3585 = vsub.f32 %v3426, %v3571
  %v3586 = vsub.f32 %v3431, %v3571
  %v3587 = vsub.f32 %v3434, %v3571
  %v3588 = vsub.f32 %v3439, %v3571
  %v3589 = vsub.f32 %v3442, %v3571
  %v3590 = vsub.f32 %v3447, %v3571
  %v3591 = vsub.f32 %v3450, %v3571
  %v3592 = vsub.f32 %v3455, %v3571
  %v3593 = vsub.f32 %v3458, %v3571
  %v3594 = vsub.f32 %v3463, %v3571
  %v3595 = vsub.f32 %v3466, %v3571
  %v3596 = vsub.f32 %v3471, %v3571
  %v3597 = vsub.f32 %v3474, %v3571
  %v3598 = vsub.f32 %v3479, %v3571
  %v3599 = vsub.f32 %v3482, %v3571
  %v3600 = vsub.f32 %v3487, %v3571
  %v3601 = vsub.f32 %v3490, %v3571
  %v3602 = vsub.f32 %v3495, %v3571
  %v3603 = vsub.f32 %v3498, %v3571
  %v3604 = vmul.f32 %v3572, %v3572
  %v3605 = vmul.f32 %v3573, %v3573
  %v3606 = vmul.f32 %v3574, %v3574
  %v3607 = vmul.f32 %v3575, %v3575
  %v3608 = vmul.f32 %v3576, %v3576
  %v3609 = vmul.f32 %v3577, %v3577
  %v3610 = vmul.f32 %v3578, %v3578
  %v3611 = vmul.f32 %v3579, %v3579
  %v3612 = vmul.f32 %v3580, %v3580
  %v3613 = vmul.f32 %v3581, %v3581
  %v3614 = vmul.f32 %v3582, %v3582
  %v3615 = vmul.f32 %v3583, %v3583
  %v3616 = vmul.f32 %v3584, %v3584
  %v3617 = vmul.f32 %v3585, %v3585
  %v3618 = vmul.f32 %v3586, %v3586
  %v3619 = vmul.f32 %v3587, %v3587
  %v3620 = vmul.f32 %v3588, %v3588
  %v3621 = vmul.f32 %v3589, %v3589
  %v3622 = vmul.f32 %v3590, %v3590
  %v3623 = vmul.f32 %v3591, %v3591
  %v3624 = vmul.f32 %v3592, %v3592
  %v3625 = vmul.f32 %v3593, %v3593
  %v3626 = vmul.f32 %v3594, %v3594
  %v3627 = vmul.f32 %v3595, %v3595
  %v3628 = vmul.f32 %v3596, %v3596
  %v3629 = vmul.f32 %v3597, %v3597
  %v3630 = vmul.f32 %v3598, %v3598
  %v3631 = vmul.f32 %v3599, %v3599
  %v3632 = vmul.f32 %v3600, %v3600
  %v3633 = vmul.f32 %v3601, %v3601
  %v3634 = vmul.f32 %v3602, %v3602
  %v3635 = vmul.f32 %v3603, %v3603
  %v3636 = vsel %vm3501, %v3604, 0.0
  %v3637 = vsel %vm3501, %v3605, 0.0
  %v3638 = vadd.f32 %v3636, %v3637
  %v3639 = vsel %vm3501, %v3606, 0.0
  %v3640 = vadd.f32 %v3638, %v3639
  %v3641 = vsel %vm3501, %v3607, 0.0
  %v3642 = vadd.f32 %v3640, %v3641
  %v3643 = vsel %vm3501, %v3608, 0.0
  %v3644 = vadd.f32 %v3642, %v3643
  %v3645 = vsel %vm3501, %v3609, 0.0
  %v3646 = vadd.f32 %v3644, %v3645
  %v3647 = vsel %vm3501, %v3610, 0.0
  %v3648 = vadd.f32 %v3646, %v3647
  %v3649 = vsel %vm3501, %v3611, 0.0
  %v3650 = vadd.f32 %v3648, %v3649
  %v3651 = vsel %vm3501, %v3612, 0.0
  %v3652 = vadd.f32 %v3650, %v3651
  %v3653 = vsel %vm3501, %v3613, 0.0
  %v3654 = vadd.f32 %v3652, %v3653
  %v3655 = vsel %vm3501, %v3614, 0.0
  %v3656 = vadd.f32 %v3654, %v3655
  %v3657 = vsel %vm3501, %v3615, 0.0
  %v3658 = vadd.f32 %v3656, %v3657
  %v3659 = vsel %vm3501, %v3616, 0.0
  %v3660 = vadd.f32 %v3658, %v3659
  %v3661 = vsel %vm3501, %v3617, 0.0
  %v3662 = vadd.f32 %v3660, %v3661
  %v3663 = vsel %vm3501, %v3618, 0.0
  %v3664 = vadd.f32 %v3662, %v3663
  %v3665 = vsel %vm3501, %v3619, 0.0
  %v3666 = vadd.f32 %v3664, %v3665
  %v3667 = vsel %vm3501, %v3620, 0.0
  %v3668 = vadd.f32 %v3666, %v3667
  %v3669 = vsel %vm3501, %v3621, 0.0
  %v3670 = vadd.f32 %v3668, %v3669
  %v3671 = vsel %vm3501, %v3622, 0.0
  %v3672 = vadd.f32 %v3670, %v3671
  %v3673 = vsel %vm3501, %v3623, 0.0
  %v3674 = vadd.f32 %v3672, %v3673
  %v3675 = vsel %vm3501, %v3624, 0.0
  %v3676 = vadd.f32 %v3674, %v3675
  %v3677 = vsel %vm3501, %v3625, 0.0
  %v3678 = vadd.f32 %v3676, %v3677
  %v3679 = vsel %vm3501, %v3626, 0.0
  %v3680 = vadd.f32 %v3678, %v3679
  %v3681 = vsel %vm3501, %v3627, 0.0
  %v3682 = vadd.f32 %v3680, %v3681
  %v3683 = vsel %vm3501, %v3628, 0.0
  %v3684 = vadd.f32 %v3682, %v3683
  %v3685 = vsel %vm3501, %v3629, 0.0
  %v3686 = vadd.f32 %v3684, %v3685
  %v3687 = vsel %vm3501, %v3630, 0.0
  %v3688 = vadd.f32 %v3686, %v3687
  %v3689 = vsel %vm3501, %v3631, 0.0
  %v3690 = vadd.f32 %v3688, %v3689
  %v3691 = vsel %vm3501, %v3632, 0.0
  %v3692 = vadd.f32 %v3690, %v3691
  %v3693 = vsel %vm3501, %v3633, 0.0
  %v3694 = vadd.f32 %v3692, %v3693
  %v3695 = vsel %vm3501, %v3634, 0.0
  %v3696 = vadd.f32 %v3694, %v3695
  %v3697 = vsel %vm3501, %v3635, 0.0
  %v3698 = vadd.f32 %v3696, %v3697
  %v3699 = vrot.slane %v3698, 4
  %v3700 = vadd.f32 %v3698, %v3699
  %v3701 = vrot.slane %v3700, 2
  %v3702 = vadd.f32 %v3700, %v3701
  %v3703 = vrot.slane %v3702, 1
  %v3704 = vadd.f32 %v3702, %v3703
  %s3705 = sadd.s32 %s13, 54
  %s3706 = smul.addr %s3705, 4
  %s3707 = scalar_lea.vmem %s0, %s3706
  %v3708 = vld [vmem:[%s3707] sm:$0xf]
  %v3709 = vld [vmem:[%s3707 + $0x4] sm:$0xf]
  %v3710 = vld [vmem:[%s3707 + $0xc] sm:$0xf]
  %v3711 = vld [vmem:[%s3707 + $0x10] sm:$0xf]
  %v3712 = vld [vmem:[%s3707 + $0x18] sm:$0xf]
  %v3713 = vld [vmem:[%s3707 + $0x1c] sm:$0xf]
  %v3714 = vld [vmem:[%s3707 + $0x24] sm:$0xf]
  %v3715 = vld [vmem:[%s3707 + $0x28] sm:$0xf]
  %v3716 = vld [vmem:[%s3707 + $0x30] sm:$0xf]
  %v3717 = vld [vmem:[%s3707 + $0x34] sm:$0xf]
  %v3718 = vld [vmem:[%s3707 + $0x3c] sm:$0xf]
  %v3719 = vld [vmem:[%s3707 + $0x40] sm:$0xf]
  %v3720 = vld [vmem:[%s3707 + $0x48] sm:$0xf]
  %v3721 = vld [vmem:[%s3707 + $0x4c] sm:$0xf]
  %v3722 = vld [vmem:[%s3707 + $0x54] sm:$0xf]
  %v3723 = vld [vmem:[%s3707 + $0x58] sm:$0xf]
  %v3724 = vld [vmem:[%s3707 + $0x60] sm:$0xf]
  %v3725 = vld [vmem:[%s3707 + $0x64] sm:$0xf]
  %v3726 = vld [vmem:[%s3707 + $0x6c] sm:$0xf]
  %v3727 = vld [vmem:[%s3707 + $0x70] sm:$0xf]
  %v3728 = vld [vmem:[%s3707 + $0x78] sm:$0xf]
  %v3729 = vld [vmem:[%s3707 + $0x7c] sm:$0xf]
  %v3730 = vld [vmem:[%s3707 + $0x84] sm:$0xf]
  %v3731 = vld [vmem:[%s3707 + $0x88] sm:$0xf]
  %v3732 = vld [vmem:[%s3707 + $0x90] sm:$0xf]
  %v3733 = vld [vmem:[%s3707 + $0x94] sm:$0xf]
  %v3734 = vld [vmem:[%s3707 + $0x9c] sm:$0xf]
  %v3735 = vld [vmem:[%s3707 + $0xa0] sm:$0xf]
  %v3736 = vld [vmem:[%s3707 + $0xa8] sm:$0xf]
  %v3737 = vld [vmem:[%s3707 + $0xac] sm:$0xf]
  %v3738 = vld [vmem:[%s3707 + $0xb4] sm:$0xf]
  %v3739 = vld [vmem:[%s3707 + $0xb8] sm:$0xf]
  %3740 = vst.msk [vmem:[#allocation2] sm:$0xf] %vm48, %v3708
  %3741 = vst.msk [vmem:[#allocation2 + $0x4] sm:$0xf] %vm48, %v3709
  %3742 = vst.msk [vmem:[#allocation2 + $0x8] sm:$0xf] %vm48, %v3710
  %3743 = vst.msk [vmem:[#allocation2 + $0xc] sm:$0xf] %vm48, %v3711
  %3744 = vst.msk [vmem:[#allocation2 + $0x10] sm:$0xf] %vm48, %v3712
  %3745 = vst.msk [vmem:[#allocation2 + $0x14] sm:$0xf] %vm48, %v3713
  %3746 = vst.msk [vmem:[#allocation2 + $0x18] sm:$0xf] %vm48, %v3714
  %3747 = vst.msk [vmem:[#allocation2 + $0x1c] sm:$0xf] %vm48, %v3715
  %3748 = vst.msk [vmem:[#allocation2 + $0x20] sm:$0xf] %vm48, %v3716
  %3749 = vst.msk [vmem:[#allocation2 + $0x24] sm:$0xf] %vm48, %v3717
  %3750 = vst.msk [vmem:[#allocation2 + $0x28] sm:$0xf] %vm48, %v3718
  %3751 = vst.msk [vmem:[#allocation2 + $0x2c] sm:$0xf] %vm48, %v3719
  %3752 = vst.msk [vmem:[#allocation2 + $0x30] sm:$0xf] %vm48, %v3720
  %3753 = vst.msk [vmem:[#allocation2 + $0x34] sm:$0xf] %vm48, %v3721
  %3754 = vst.msk [vmem:[#allocation2 + $0x38] sm:$0xf] %vm48, %v3722
  %3755 = vst.msk [vmem:[#allocation2 + $0x3c] sm:$0xf] %vm48, %v3723
  %3756 = vst.msk [vmem:[#allocation2 + $0x40] sm:$0xf] %vm48, %v3724
  %3757 = vst.msk [vmem:[#allocation2 + $0x44] sm:$0xf] %vm48, %v3725
  %3758 = vst.msk [vmem:[#allocation2 + $0x48] sm:$0xf] %vm48, %v3726
  %3759 = vst.msk [vmem:[#allocation2 + $0x4c] sm:$0xf] %vm48, %v3727
  %3760 = vst.msk [vmem:[#allocation2 + $0x50] sm:$0xf] %vm48, %v3728
  %3761 = vst.msk [vmem:[#allocation2 + $0x54] sm:$0xf] %vm48, %v3729
  %3762 = vst.msk [vmem:[#allocation2 + $0x58] sm:$0xf] %vm48, %v3730
  %3763 = vst.msk [vmem:[#allocation2 + $0x5c] sm:$0xf] %vm48, %v3731
  %3764 = vst.msk [vmem:[#allocation2 + $0x60] sm:$0xf] %vm48, %v3732
  %3765 = vst.msk [vmem:[#allocation2 + $0x64] sm:$0xf] %vm48, %v3733
  %3766 = vst.msk [vmem:[#allocation2 + $0x68] sm:$0xf] %vm48, %v3734
  %3767 = vst.msk [vmem:[#allocation2 + $0x6c] sm:$0xf] %vm48, %v3735
  %3768 = vst.msk [vmem:[#allocation2 + $0x70] sm:$0xf] %vm48, %v3736
  %3769 = vst.msk [vmem:[#allocation2 + $0x74] sm:$0xf] %vm48, %v3737
  %3770 = vst.msk [vmem:[#allocation2 + $0x78] sm:$0xf] %vm48, %v3738
  %3771 = vst.msk [vmem:[#allocation2 + $0x7c] sm:$0xf] %vm48, %v3739
  %v3772 = vld [vmem:[%s3707] sm:$0xf]
  %v3773 = vld [vmem:[%s3707 + $0x4] sm:$0xf]
  %v3774 = vld [vmem:[%s3707 + $0x8] sm:$0x1]
  %v3775 = vld [vmem:[%s3707 + $0xc] sm:$0xf]
  %v3776 = vld [vmem:[%s3707 + $0x10] sm:$0xf]
  %v3777 = vld [vmem:[%s3707 + $0x14] sm:$0x1]
  %v3778 = vld [vmem:[%s3707 + $0x18] sm:$0xf]
  %v3779 = vld [vmem:[%s3707 + $0x1c] sm:$0xf]
  %v3780 = vld [vmem:[%s3707 + $0x20] sm:$0x1]
  %v3781 = vld [vmem:[%s3707 + $0x24] sm:$0xf]
  %v3782 = vld [vmem:[%s3707 + $0x28] sm:$0xf]
  %v3783 = vld [vmem:[%s3707 + $0x2c] sm:$0x1]
  %v3784 = vld [vmem:[%s3707 + $0x30] sm:$0xf]
  %v3785 = vld [vmem:[%s3707 + $0x34] sm:$0xf]
  %v3786 = vld [vmem:[%s3707 + $0x38] sm:$0x1]
  %v3787 = vld [vmem:[%s3707 + $0x3c] sm:$0xf]
  %v3788 = vld [vmem:[%s3707 + $0x40] sm:$0xf]
  %v3789 = vld [vmem:[%s3707 + $0x44] sm:$0x1]
  %v3790 = vld [vmem:[%s3707 + $0x48] sm:$0xf]
  %v3791 = vld [vmem:[%s3707 + $0x4c] sm:$0xf]
  %v3792 = vld [vmem:[%s3707 + $0x50] sm:$0x1]
  %v3793 = vld [vmem:[%s3707 + $0x54] sm:$0xf]
  %v3794 = vld [vmem:[%s3707 + $0x58] sm:$0xf]
  %v3795 = vld [vmem:[%s3707 + $0x5c] sm:$0x1]
  %v3796 = vld [vmem:[%s3707 + $0x60] sm:$0xf]
  %v3797 = vld [vmem:[%s3707 + $0x64] sm:$0xf]
  %v3798 = vld [vmem:[%s3707 + $0x68] sm:$0x1]
  %v3799 = vld [vmem:[%s3707 + $0x6c] sm:$0xf]
  %v3800 = vld [vmem:[%s3707 + $0x70] sm:$0xf]
  %v3801 = vld [vmem:[%s3707 + $0x74] sm:$0x1]
  %v3802 = vld [vmem:[%s3707 + $0x78] sm:$0xf]
  %v3803 = vld [vmem:[%s3707 + $0x7c] sm:$0xf]
  %v3804 = vld [vmem:[%s3707 + $0x80] sm:$0x1]
  %v3805 = vld [vmem:[%s3707 + $0x84] sm:$0xf]
  %v3806 = vld [vmem:[%s3707 + $0x88] sm:$0xf]
  %v3807 = vld [vmem:[%s3707 + $0x8c] sm:$0x1]
  %v3808 = vld [vmem:[%s3707 + $0x90] sm:$0xf]
  %v3809 = vld [vmem:[%s3707 + $0x94] sm:$0xf]
  %v3810 = vld [vmem:[%s3707 + $0x98] sm:$0x1]
  %v3811 = vld [vmem:[%s3707 + $0x9c] sm:$0xf]
  %v3812 = vld [vmem:[%s3707 + $0xa0] sm:$0xf]
  %v3813 = vld [vmem:[%s3707 + $0xa4] sm:$0x1]
  %v3814 = vld [vmem:[%s3707 + $0xa8] sm:$0xf]
  %v3815 = vld [vmem:[%s3707 + $0xac] sm:$0xf]
  %v3816 = vld [vmem:[%s3707 + $0xb0] sm:$0x1]
  %v3817 = vld [vmem:[%s3707 + $0xb4] sm:$0xf]
  %v3818 = vld [vmem:[%s3707 + $0xb8] sm:$0xf]
  %v3819 = vld [vmem:[%s3707 + $0xbc] sm:$0x1]
  %v3821 = vshrl.u32 %v3772, 16
  %v3823 = vrot.slane %v3821, 4
  %v3824 = vshll.u32 %v3772, 16
  %v3826 = vrot.slane %v3824, 5
  %v3827 = vor.u32 %v3823, %v3826
  %v3828 = vrot.slane %v3827, 4
  %v3830 = vshll.u32 %v3773, 16
  %v3832 = vrot.slane %v3830, 5
  %v3833 = vsel %vm131, %v3828, %v3832
  %v3834 = vshrl.u32 %v3773, 16
  %v3836 = vrot.slane %v3834, 4
  %v3837 = vor.u32 %v3836, %v3832
  %v3838 = vrot.slane %v3837, 4
  %v3840 = vshll.u32 %v3774, 16
  %v3842 = vrot.slane %v3840, 5
  %v3843 = vsel %vm131, %v3838, %v3842
  %v3845 = vshrl.u32 %v3775, 16
  %v3847 = vrot.slane %v3845, 4
  %v3848 = vshll.u32 %v3775, 16
  %v3850 = vrot.slane %v3848, 5
  %v3851 = vor.u32 %v3847, %v3850
  %v3852 = vrot.slane %v3851, 4
  %v3854 = vshll.u32 %v3776, 16
  %v3856 = vrot.slane %v3854, 5
  %v3857 = vsel %vm131, %v3852, %v3856
  %v3858 = vshrl.u32 %v3776, 16
  %v3860 = vrot.slane %v3858, 4
  %v3861 = vor.u32 %v3860, %v3856
  %v3862 = vrot.slane %v3861, 4
  %v3864 = vshll.u32 %v3777, 16
  %v3866 = vrot.slane %v3864, 5
  %v3867 = vsel %vm131, %v3862, %v3866
  %v3869 = vshrl.u32 %v3778, 16
  %v3871 = vrot.slane %v3869, 4
  %v3872 = vshll.u32 %v3778, 16
  %v3874 = vrot.slane %v3872, 5
  %v3875 = vor.u32 %v3871, %v3874
  %v3876 = vrot.slane %v3875, 4
  %v3878 = vshll.u32 %v3779, 16
  %v3880 = vrot.slane %v3878, 5
  %v3881 = vsel %vm131, %v3876, %v3880
  %v3882 = vshrl.u32 %v3779, 16
  %v3884 = vrot.slane %v3882, 4
  %v3885 = vor.u32 %v3884, %v3880
  %v3886 = vrot.slane %v3885, 4
  %v3888 = vshll.u32 %v3780, 16
  %v3890 = vrot.slane %v3888, 5
  %v3891 = vsel %vm131, %v3886, %v3890
  %v3893 = vshrl.u32 %v3781, 16
  %v3895 = vrot.slane %v3893, 4
  %v3896 = vshll.u32 %v3781, 16
  %v3898 = vrot.slane %v3896, 5
  %v3899 = vor.u32 %v3895, %v3898
  %v3900 = vrot.slane %v3899, 4
  %v3902 = vshll.u32 %v3782, 16
  %v3904 = vrot.slane %v3902, 5
  %v3905 = vsel %vm131, %v3900, %v3904
  %v3906 = vshrl.u32 %v3782, 16
  %v3908 = vrot.slane %v3906, 4
  %v3909 = vor.u32 %v3908, %v3904
  %v3910 = vrot.slane %v3909, 4
  %v3912 = vshll.u32 %v3783, 16
  %v3914 = vrot.slane %v3912, 5
  %v3915 = vsel %vm131, %v3910, %v3914
  %v3917 = vshrl.u32 %v3784, 16
  %v3919 = vrot.slane %v3917, 4
  %v3920 = vshll.u32 %v3784, 16
  %v3922 = vrot.slane %v3920, 5
  %v3923 = vor.u32 %v3919, %v3922
  %v3924 = vrot.slane %v3923, 4
  %v3926 = vshll.u32 %v3785, 16
  %v3928 = vrot.slane %v3926, 5
  %v3929 = vsel %vm131, %v3924, %v3928
  %v3930 = vshrl.u32 %v3785, 16
  %v3932 = vrot.slane %v3930, 4
  %v3933 = vor.u32 %v3932, %v3928
  %v3934 = vrot.slane %v3933, 4
  %v3936 = vshll.u32 %v3786, 16
  %v3938 = vrot.slane %v3936, 5
  %v3939 = vsel %vm131, %v3934, %v3938
  %v3941 = vshrl.u32 %v3787, 16
  %v3943 = vrot.slane %v3941, 4
  %v3944 = vshll.u32 %v3787, 16
  %v3946 = vrot.slane %v3944, 5
  %v3947 = vor.u32 %v3943, %v3946
  %v3948 = vrot.slane %v3947, 4
  %v3950 = vshll.u32 %v3788, 16
  %v3952 = vrot.slane %v3950, 5
  %v3953 = vsel %vm131, %v3948, %v3952
  %v3954 = vshrl.u32 %v3788, 16
  %v3956 = vrot.slane %v3954, 4
  %v3957 = vor.u32 %v3956, %v3952
  %v3958 = vrot.slane %v3957, 4
  %v3960 = vshll.u32 %v3789, 16
  %v3962 = vrot.slane %v3960, 5
  %v3963 = vsel %vm131, %v3958, %v3962
  %v3965 = vshrl.u32 %v3790, 16
  %v3967 = vrot.slane %v3965, 4
  %v3968 = vshll.u32 %v3790, 16
  %v3970 = vrot.slane %v3968, 5
  %v3971 = vor.u32 %v3967, %v3970
  %v3972 = vrot.slane %v3971, 4
  %v3974 = vshll.u32 %v3791, 16
  %v3976 = vrot.slane %v3974, 5
  %v3977 = vsel %vm131, %v3972, %v3976
  %v3978 = vshrl.u32 %v3791, 16
  %v3980 = vrot.slane %v3978, 4
  %v3981 = vor.u32 %v3980, %v3976
  %v3982 = vrot.slane %v3981, 4
  %v3984 = vshll.u32 %v3792, 16
  %v3986 = vrot.slane %v3984, 5
  %v3987 = vsel %vm131, %v3982, %v3986
  %v3989 = vshrl.u32 %v3793, 16
  %v3991 = vrot.slane %v3989, 4
  %v3992 = vshll.u32 %v3793, 16
  %v3994 = vrot.slane %v3992, 5
  %v3995 = vor.u32 %v3991, %v3994
  %v3996 = vrot.slane %v3995, 4
  %v3998 = vshll.u32 %v3794, 16
  %v4000 = vrot.slane %v3998, 5
  %v4001 = vsel %vm131, %v3996, %v4000
  %v4002 = vshrl.u32 %v3794, 16
  %v4004 = vrot.slane %v4002, 4
  %v4005 = vor.u32 %v4004, %v4000
  %v4006 = vrot.slane %v4005, 4
  %v4008 = vshll.u32 %v3795, 16
  %v4010 = vrot.slane %v4008, 5
  %v4011 = vsel %vm131, %v4006, %v4010
  %v4013 = vshrl.u32 %v3796, 16
  %v4015 = vrot.slane %v4013, 4
  %v4016 = vshll.u32 %v3796, 16
  %v4018 = vrot.slane %v4016, 5
  %v4019 = vor.u32 %v4015, %v4018
  %v4020 = vrot.slane %v4019, 4
  %v4022 = vshll.u32 %v3797, 16
  %v4024 = vrot.slane %v4022, 5
  %v4025 = vsel %vm131, %v4020, %v4024
  %v4026 = vshrl.u32 %v3797, 16
  %v4028 = vrot.slane %v4026, 4
  %v4029 = vor.u32 %v4028, %v4024
  %v4030 = vrot.slane %v4029, 4
  %v4032 = vshll.u32 %v3798, 16
  %v4034 = vrot.slane %v4032, 5
  %v4035 = vsel %vm131, %v4030, %v4034
  %v4037 = vshrl.u32 %v3799, 16
  %v4039 = vrot.slane %v4037, 4
  %v4040 = vshll.u32 %v3799, 16
  %v4042 = vrot.slane %v4040, 5
  %v4043 = vor.u32 %v4039, %v4042
  %v4044 = vrot.slane %v4043, 4
  %v4046 = vshll.u32 %v3800, 16
  %v4048 = vrot.slane %v4046, 5
  %v4049 = vsel %vm131, %v4044, %v4048
  %v4050 = vshrl.u32 %v3800, 16
  %v4052 = vrot.slane %v4050, 4
  %v4053 = vor.u32 %v4052, %v4048
  %v4054 = vrot.slane %v4053, 4
  %v4056 = vshll.u32 %v3801, 16
  %v4058 = vrot.slane %v4056, 5
  %v4059 = vsel %vm131, %v4054, %v4058
  %v4061 = vshrl.u32 %v3802, 16
  %v4063 = vrot.slane %v4061, 4
  %v4064 = vshll.u32 %v3802, 16
  %v4066 = vrot.slane %v4064, 5
  %v4067 = vor.u32 %v4063, %v4066
  %v4068 = vrot.slane %v4067, 4
  %v4070 = vshll.u32 %v3803, 16
  %v4072 = vrot.slane %v4070, 5
  %v4073 = vsel %vm131, %v4068, %v4072
  %v4074 = vshrl.u32 %v3803, 16
  %v4076 = vrot.slane %v4074, 4
  %v4077 = vor.u32 %v4076, %v4072
  %v4078 = vrot.slane %v4077, 4
  %v4080 = vshll.u32 %v3804, 16
  %v4082 = vrot.slane %v4080, 5
  %v4083 = vsel %vm131, %v4078, %v4082
  %v4085 = vshrl.u32 %v3805, 16
  %v4087 = vrot.slane %v4085, 4
  %v4088 = vshll.u32 %v3805, 16
  %v4090 = vrot.slane %v4088, 5
  %v4091 = vor.u32 %v4087, %v4090
  %v4092 = vrot.slane %v4091, 4
  %v4094 = vshll.u32 %v3806, 16
  %v4096 = vrot.slane %v4094, 5
  %v4097 = vsel %vm131, %v4092, %v4096
  %v4098 = vshrl.u32 %v3806, 16
  %v4100 = vrot.slane %v4098, 4
  %v4101 = vor.u32 %v4100, %v4096
  %v4102 = vrot.slane %v4101, 4
  %v4104 = vshll.u32 %v3807, 16
  %v4106 = vrot.slane %v4104, 5
  %v4107 = vsel %vm131, %v4102, %v4106
  %v4109 = vshrl.u32 %v3808, 16
  %v4111 = vrot.slane %v4109, 4
  %v4112 = vshll.u32 %v3808, 16
  %v4114 = vrot.slane %v4112, 5
  %v4115 = vor.u32 %v4111, %v4114
  %v4116 = vrot.slane %v4115, 4
  %v4118 = vshll.u32 %v3809, 16
  %v4120 = vrot.slane %v4118, 5
  %v4121 = vsel %vm131, %v4116, %v4120
  %v4122 = vshrl.u32 %v3809, 16
  %v4124 = vrot.slane %v4122, 4
  %v4125 = vor.u32 %v4124, %v4120
  %v4126 = vrot.slane %v4125, 4
  %v4128 = vshll.u32 %v3810, 16
  %v4130 = vrot.slane %v4128, 5
  %v4131 = vsel %vm131, %v4126, %v4130
  %v4133 = vshrl.u32 %v3811, 16
  %v4135 = vrot.slane %v4133, 4
  %v4136 = vshll.u32 %v3811, 16
  %v4138 = vrot.slane %v4136, 5
  %v4139 = vor.u32 %v4135, %v4138
  %v4140 = vrot.slane %v4139, 4
  %v4142 = vshll.u32 %v3812, 16
  %v4144 = vrot.slane %v4142, 5
  %v4145 = vsel %vm131, %v4140, %v4144
  %v4146 = vshrl.u32 %v3812, 16
  %v4148 = vrot.slane %v4146, 4
  %v4149 = vor.u32 %v4148, %v4144
  %v4150 = vrot.slane %v4149, 4
  %v4152 = vshll.u32 %v3813, 16
  %v4154 = vrot.slane %v4152, 5
  %v4155 = vsel %vm131, %v4150, %v4154
  %v4157 = vshrl.u32 %v3814, 16
  %v4159 = vrot.slane %v4157, 4
  %v4160 = vshll.u32 %v3814, 16
  %v4162 = vrot.slane %v4160, 5
  %v4163 = vor.u32 %v4159, %v4162
  %v4164 = vrot.slane %v4163, 4
  %v4166 = vshll.u32 %v3815, 16
  %v4168 = vrot.slane %v4166, 5
  %v4169 = vsel %vm131, %v4164, %v4168
  %v4170 = vshrl.u32 %v3815, 16
  %v4172 = vrot.slane %v4170, 4
  %v4173 = vor.u32 %v4172, %v4168
  %v4174 = vrot.slane %v4173, 4
  %v4176 = vshll.u32 %v3816, 16
  %v4178 = vrot.slane %v4176, 5
  %v4179 = vsel %vm131, %v4174, %v4178
  %v4181 = vshrl.u32 %v3817, 16
  %v4183 = vrot.slane %v4181, 4
  %v4184 = vshll.u32 %v3817, 16
  %v4186 = vrot.slane %v4184, 5
  %v4187 = vor.u32 %v4183, %v4186
  %v4188 = vrot.slane %v4187, 4
  %v4190 = vshll.u32 %v3818, 16
  %v4192 = vrot.slane %v4190, 5
  %v4193 = vsel %vm131, %v4188, %v4192
  %v4194 = vshrl.u32 %v3818, 16
  %v4196 = vrot.slane %v4194, 4
  %v4197 = vor.u32 %v4196, %v4192
  %v4198 = vrot.slane %v4197, 4
  %v4200 = vshll.u32 %v3819, 16
  %v4202 = vrot.slane %v4200, 5
  %v4203 = vsel %vm131, %v4198, %v4202
  %4204 = vrot.lane.b32.xlu0 %v3833, 4
  %v4205 = vpop.permute.xlu0 %4204
  %4206 = vrot.lane.b32.xlu0 %v3843, 4
  %v4207 = vpop.permute.xlu0 %4206
  %4208 = vrot.lane.b32.xlu0 %v3857, 4
  %v4209 = vpop.permute.xlu0 %4208
  %4210 = vrot.lane.b32.xlu0 %v3867, 4
  %v4211 = vpop.permute.xlu0 %4210
  %4212 = vrot.lane.b32.xlu0 %v3881, 4
  %v4213 = vpop.permute.xlu0 %4212
  %4214 = vrot.lane.b32.xlu0 %v3891, 4
  %v4215 = vpop.permute.xlu0 %4214
  %4216 = vrot.lane.b32.xlu0 %v3905, 4
  %v4217 = vpop.permute.xlu0 %4216
  %4218 = vrot.lane.b32.xlu0 %v3915, 4
  %v4219 = vpop.permute.xlu0 %4218
  %4220 = vrot.lane.b32.xlu0 %v3929, 4
  %v4221 = vpop.permute.xlu0 %4220
  %4222 = vrot.lane.b32.xlu0 %v3939, 4
  %v4223 = vpop.permute.xlu0 %4222
  %4224 = vrot.lane.b32.xlu0 %v3953, 4
  %v4225 = vpop.permute.xlu0 %4224
  %4226 = vrot.lane.b32.xlu0 %v3963, 4
  %v4227 = vpop.permute.xlu0 %4226
  %4228 = vrot.lane.b32.xlu0 %v3977, 4
  %v4229 = vpop.permute.xlu0 %4228
  %4230 = vrot.lane.b32.xlu0 %v3987, 4
  %v4231 = vpop.permute.xlu0 %4230
  %4232 = vrot.lane.b32.xlu0 %v4001, 4
  %v4233 = vpop.permute.xlu0 %4232
  %4234 = vrot.lane.b32.xlu0 %v4011, 4
  %v4235 = vpop.permute.xlu0 %4234
  %4236 = vrot.lane.b32.xlu0 %v4025, 4
  %v4237 = vpop.permute.xlu0 %4236
  %4238 = vrot.lane.b32.xlu0 %v4035, 4
  %v4239 = vpop.permute.xlu0 %4238
  %4240 = vrot.lane.b32.xlu0 %v4049, 4
  %v4241 = vpop.permute.xlu0 %4240
  %4242 = vrot.lane.b32.xlu0 %v4059, 4
  %v4243 = vpop.permute.xlu0 %4242
  %4244 = vrot.lane.b32.xlu0 %v4073, 4
  %v4245 = vpop.permute.xlu0 %4244
  %4246 = vrot.lane.b32.xlu0 %v4083, 4
  %v4247 = vpop.permute.xlu0 %4246
  %4248 = vrot.lane.b32.xlu0 %v4097, 4
  %v4249 = vpop.permute.xlu0 %4248
  %4250 = vrot.lane.b32.xlu0 %v4107, 4
  %v4251 = vpop.permute.xlu0 %4250
  %4252 = vrot.lane.b32.xlu0 %v4121, 4
  %v4253 = vpop.permute.xlu0 %4252
  %4254 = vrot.lane.b32.xlu0 %v4131, 4
  %v4255 = vpop.permute.xlu0 %4254
  %4256 = vrot.lane.b32.xlu0 %v4145, 4
  %v4257 = vpop.permute.xlu0 %4256
  %4258 = vrot.lane.b32.xlu0 %v4155, 4
  %v4259 = vpop.permute.xlu0 %4258
  %4260 = vrot.lane.b32.xlu0 %v4169, 4
  %v4261 = vpop.permute.xlu0 %4260
  %4262 = vrot.lane.b32.xlu0 %v4179, 4
  %v4263 = vpop.permute.xlu0 %4262
  %4264 = vrot.lane.b32.xlu0 %v4193, 4
  %v4265 = vpop.permute.xlu0 %4264
  %4266 = vrot.lane.b32.xlu0 %v4203, 4
  %v4267 = vpop.permute.xlu0 %4266
  %4300 = vst.msk [vmem:[#allocation2] sm:$0xf] %vm612, %v4205
  %4301 = vst.msk [vmem:[#allocation2 + $0x4] sm:$0xf] %vm612, %v4207
  %4302 = vst.msk [vmem:[#allocation2 + $0x8] sm:$0xf] %vm612, %v4209
  %4303 = vst.msk [vmem:[#allocation2 + $0xc] sm:$0xf] %vm612, %v4211
  %4304 = vst.msk [vmem:[#allocation2 + $0x10] sm:$0xf] %vm612, %v4213
  %4305 = vst.msk [vmem:[#allocation2 + $0x14] sm:$0xf] %vm612, %v4215
  %4306 = vst.msk [vmem:[#allocation2 + $0x18] sm:$0xf] %vm612, %v4217
  %4307 = vst.msk [vmem:[#allocation2 + $0x1c] sm:$0xf] %vm612, %v4219
  %4308 = vst.msk [vmem:[#allocation2 + $0x20] sm:$0xf] %vm612, %v4221
  %4309 = vst.msk [vmem:[#allocation2 + $0x24] sm:$0xf] %vm612, %v4223
  %4310 = vst.msk [vmem:[#allocation2 + $0x28] sm:$0xf] %vm612, %v4225
  %4311 = vst.msk [vmem:[#allocation2 + $0x2c] sm:$0xf] %vm612, %v4227
  %4312 = vst.msk [vmem:[#allocation2 + $0x30] sm:$0xf] %vm612, %v4229
  %4313 = vst.msk [vmem:[#allocation2 + $0x34] sm:$0xf] %vm612, %v4231
  %4314 = vst.msk [vmem:[#allocation2 + $0x38] sm:$0xf] %vm612, %v4233
  %4315 = vst.msk [vmem:[#allocation2 + $0x3c] sm:$0xf] %vm612, %v4235
  %4316 = vst.msk [vmem:[#allocation2 + $0x40] sm:$0xf] %vm612, %v4237
  %4317 = vst.msk [vmem:[#allocation2 + $0x44] sm:$0xf] %vm612, %v4239
  %4318 = vst.msk [vmem:[#allocation2 + $0x48] sm:$0xf] %vm612, %v4241
  %4319 = vst.msk [vmem:[#allocation2 + $0x4c] sm:$0xf] %vm612, %v4243
  %4320 = vst.msk [vmem:[#allocation2 + $0x50] sm:$0xf] %vm612, %v4245
  %4321 = vst.msk [vmem:[#allocation2 + $0x54] sm:$0xf] %vm612, %v4247
  %4322 = vst.msk [vmem:[#allocation2 + $0x58] sm:$0xf] %vm612, %v4249
  %4323 = vst.msk [vmem:[#allocation2 + $0x5c] sm:$0xf] %vm612, %v4251
  %4324 = vst.msk [vmem:[#allocation2 + $0x60] sm:$0xf] %vm612, %v4253
  %4325 = vst.msk [vmem:[#allocation2 + $0x64] sm:$0xf] %vm612, %v4255
  %4326 = vst.msk [vmem:[#allocation2 + $0x68] sm:$0xf] %vm612, %v4257
  %4327 = vst.msk [vmem:[#allocation2 + $0x6c] sm:$0xf] %vm612, %v4259
  %4328 = vst.msk [vmem:[#allocation2 + $0x70] sm:$0xf] %vm612, %v4261
  %4329 = vst.msk [vmem:[#allocation2 + $0x74] sm:$0xf] %vm612, %v4263
  %4330 = vst.msk [vmem:[#allocation2 + $0x78] sm:$0xf] %vm612, %v4265
  %4331 = vst.msk [vmem:[#allocation2 + $0x7c] sm:$0xf] %vm612, %v4267
  %v4332 = vld [vmem:[%s3707] sm:$0xe]
  %v4333 = vld [vmem:[%s3707 + $0x4] sm:$0xf]
  %v4334 = vld [vmem:[%s3707 + $0x8] sm:$0x1]
  %v4335 = vld [vmem:[%s3707 + $0xc] sm:$0xe]
  %v4336 = vld [vmem:[%s3707 + $0x10] sm:$0xf]
  %v4337 = vld [vmem:[%s3707 + $0x14] sm:$0x1]
  %v4338 = vld [vmem:[%s3707 + $0x18] sm:$0xe]
  %v4339 = vld [vmem:[%s3707 + $0x1c] sm:$0xf]
  %v4340 = vld [vmem:[%s3707 + $0x20] sm:$0x1]
  %v4341 = vld [vmem:[%s3707 + $0x24] sm:$0xe]
  %v4342 = vld [vmem:[%s3707 + $0x28] sm:$0xf]
  %v4343 = vld [vmem:[%s3707 + $0x2c] sm:$0x1]
  %v4344 = vld [vmem:[%s3707 + $0x30] sm:$0xe]
  %v4345 = vld [vmem:[%s3707 + $0x34] sm:$0xf]
  %v4346 = vld [vmem:[%s3707 + $0x38] sm:$0x1]
  %v4347 = vld [vmem:[%s3707 + $0x3c] sm:$0xe]
  %v4348 = vld [vmem:[%s3707 + $0x40] sm:$0xf]
  %v4349 = vld [vmem:[%s3707 + $0x44] sm:$0x1]
  %v4350 = vld [vmem:[%s3707 + $0x48] sm:$0xe]
  %v4351 = vld [vmem:[%s3707 + $0x4c] sm:$0xf]
  %v4352 = vld [vmem:[%s3707 + $0x50] sm:$0x1]
  %v4353 = vld [vmem:[%s3707 + $0x54] sm:$0xe]
  %v4354 = vld [vmem:[%s3707 + $0x58] sm:$0xf]
  %v4355 = vld [vmem:[%s3707 + $0x5c] sm:$0x1]
  %v4356 = vld [vmem:[%s3707 + $0x60] sm:$0xe]
  %v4357 = vld [vmem:[%s3707 + $0x64] sm:$0xf]
  %v4358 = vld [vmem:[%s3707 + $0x68] sm:$0x1]
  %v4359 = vld [vmem:[%s3707 + $0x6c] sm:$0xe]
  %v4360 = vld [vmem:[%s3707 + $0x70] sm:$0xf]
  %v4361 = vld [vmem:[%s3707 + $0x74] sm:$0x1]
  %v4362 = vld [vmem:[%s3707 + $0x78] sm:$0xe]
  %v4363 = vld [vmem:[%s3707 + $0x7c] sm:$0xf]
  %v4364 = vld [vmem:[%s3707 + $0x80] sm:$0x1]
  %v4365 = vld [vmem:[%s3707 + $0x84] sm:$0xe]
  %v4366 = vld [vmem:[%s3707 + $0x88] sm:$0xf]
  %v4367 = vld [vmem:[%s3707 + $0x8c] sm:$0x1]
  %v4368 = vld [vmem:[%s3707 + $0x90] sm:$0xe]
  %v4369 = vld [vmem:[%s3707 + $0x94] sm:$0xf]
  %v4370 = vld [vmem:[%s3707 + $0x98] sm:$0x1]
  %v4371 = vld [vmem:[%s3707 + $0x9c] sm:$0xe]
  %v4372 = vld [vmem:[%s3707 + $0xa0] sm:$0xf]
  %v4373 = vld [vmem:[%s3707 + $0xa4] sm:$0x1]
  %v4374 = vld [vmem:[%s3707 + $0xa8] sm:$0xe]
  %v4375 = vld [vmem:[%s3707 + $0xac] sm:$0xf]
  %v4376 = vld [vmem:[%s3707 + $0xb0] sm:$0x1]
  %v4377 = vld [vmem:[%s3707 + $0xb4] sm:$0xe]
  %v4378 = vld [vmem:[%s3707 + $0xb8] sm:$0xf]
  %v4379 = vld [vmem:[%s3707 + $0xbc] sm:$0x1]
  %v4428 = vrot.slane %v4332, 5
  %v4429 = vrot.slane %v4428, 4
  %v4430 = vrot.slane %v4333, 5
  %v4431 = vsel %vm743, %v4429, %v4430
  %v4432 = vrot.slane %v4430, 4
  %v4433 = vrot.slane %v4334, 5
  %v4434 = vsel %vm743, %v4432, %v4433
  %v4435 = vrot.slane %v4335, 5
  %v4436 = vrot.slane %v4435, 4
  %v4437 = vrot.slane %v4336, 5
  %v4438 = vsel %vm743, %v4436, %v4437
  %v4439 = vrot.slane %v4437, 4
  %v4440 = vrot.slane %v4337, 5
  %v4441 = vsel %vm743, %v4439, %v4440
  %v4442 = vrot.slane %v4338, 5
  %v4443 = vrot.slane %v4442, 4
  %v4444 = vrot.slane %v4339, 5
  %v4445 = vsel %vm743, %v4443, %v4444
  %v4446 = vrot.slane %v4444, 4
  %v4447 = vrot.slane %v4340, 5
  %v4448 = vsel %vm743, %v4446, %v4447
  %v4449 = vrot.slane %v4341, 5
  %v4450 = vrot.slane %v4449, 4
  %v4451 = vrot.slane %v4342, 5
  %v4452 = vsel %vm743, %v4450, %v4451
  %v4453 = vrot.slane %v4451, 4
  %v4454 = vrot.slane %v4343, 5
  %v4455 = vsel %vm743, %v4453, %v4454
  %v4456 = vrot.slane %v4344, 5
  %v4457 = vrot.slane %v4456, 4
  %v4458 = vrot.slane %v4345, 5
  %v4459 = vsel %vm743, %v4457, %v4458
  %v4460 = vrot.slane %v4458, 4
  %v4461 = vrot.slane %v4346, 5
  %v4462 = vsel %vm743, %v4460, %v4461
  %v4463 = vrot.slane %v4347, 5
  %v4464 = vrot.slane %v4463, 4
  %v4465 = vrot.slane %v4348, 5
  %v4466 = vsel %vm743, %v4464, %v4465
  %v4467 = vrot.slane %v4465, 4
  %v4468 = vrot.slane %v4349, 5
  %v4469 = vsel %vm743, %v4467, %v4468
  %v4470 = vrot.slane %v4350, 5
  %v4471 = vrot.slane %v4470, 4
  %v4472 = vrot.slane %v4351, 5
  %v4473 = vsel %vm743, %v4471, %v4472
  %v4474 = vrot.slane %v4472, 4
  %v4475 = vrot.slane %v4352, 5
  %v4476 = vsel %vm743, %v4474, %v4475
  %v4477 = vrot.slane %v4353, 5
  %v4478 = vrot.slane %v4477, 4
  %v4479 = vrot.slane %v4354, 5
  %v4480 = vsel %vm743, %v4478, %v4479
  %v4481 = vrot.slane %v4479, 4
  %v4482 = vrot.slane %v4355, 5
  %v4483 = vsel %vm743, %v4481, %v4482
  %v4484 = vrot.slane %v4356, 5
  %v4485 = vrot.slane %v4484, 4
  %v4486 = vrot.slane %v4357, 5
  %v4487 = vsel %vm743, %v4485, %v4486
  %v4488 = vrot.slane %v4486, 4
  %v4489 = vrot.slane %v4358, 5
  %v4490 = vsel %vm743, %v4488, %v4489
  %v4491 = vrot.slane %v4359, 5
  %v4492 = vrot.slane %v4491, 4
  %v4493 = vrot.slane %v4360, 5
  %v4494 = vsel %vm743, %v4492, %v4493
  %v4495 = vrot.slane %v4493, 4
  %v4496 = vrot.slane %v4361, 5
  %v4497 = vsel %vm743, %v4495, %v4496
  %v4498 = vrot.slane %v4362, 5
  %v4499 = vrot.slane %v4498, 4
  %v4500 = vrot.slane %v4363, 5
  %v4501 = vsel %vm743, %v4499, %v4500
  %v4502 = vrot.slane %v4500, 4
  %v4503 = vrot.slane %v4364, 5
  %v4504 = vsel %vm743, %v4502, %v4503
  %v4505 = vrot.slane %v4365, 5
  %v4506 = vrot.slane %v4505, 4
  %v4507 = vrot.slane %v4366, 5
  %v4508 = vsel %vm743, %v4506, %v4507
  %v4509 = vrot.slane %v4507, 4
  %v4510 = vrot.slane %v4367, 5
  %v4511 = vsel %vm743, %v4509, %v4510
  %v4512 = vrot.slane %v4368, 5
  %v4513 = vrot.slane %v4512, 4
  %v4514 = vrot.slane %v4369, 5
  %v4515 = vsel %vm743, %v4513, %v4514
  %v4516 = vrot.slane %v4514, 4
  %v4517 = vrot.slane %v4370, 5
  %v4518 = vsel %vm743, %v4516, %v4517
  %v4519 = vrot.slane %v4371, 5
  %v4520 = vrot.slane %v4519, 4
  %v4521 = vrot.slane %v4372, 5
  %v4522 = vsel %vm743, %v4520, %v4521
  %v4523 = vrot.slane %v4521, 4
  %v4524 = vrot.slane %v4373, 5
  %v4525 = vsel %vm743, %v4523, %v4524
  %v4526 = vrot.slane %v4374, 5
  %v4527 = vrot.slane %v4526, 4
  %v4528 = vrot.slane %v4375, 5
  %v4529 = vsel %vm743, %v4527, %v4528
  %v4530 = vrot.slane %v4528, 4
  %v4531 = vrot.slane %v4376, 5
  %v4532 = vsel %vm743, %v4530, %v4531
  %v4533 = vrot.slane %v4377, 5
  %v4534 = vrot.slane %v4533, 4
  %v4535 = vrot.slane %v4378, 5
  %v4536 = vsel %vm743, %v4534, %v4535
  %v4537 = vrot.slane %v4535, 4
  %v4538 = vrot.slane %v4379, 5
  %v4539 = vsel %vm743, %v4537, %v4538
  %4540 = vrot.lane.b32.xlu0 %v4431, 8
  %v4541 = vpop.permute.xlu0 %4540
  %4542 = vrot.lane.b32.xlu0 %v4434, 8
  %v4543 = vpop.permute.xlu0 %4542
  %4544 = vrot.lane.b32.xlu0 %v4438, 8
  %v4545 = vpop.permute.xlu0 %4544
  %4546 = vrot.lane.b32.xlu0 %v4441, 8
  %v4547 = vpop.permute.xlu0 %4546
  %4548 = vrot.lane.b32.xlu0 %v4445, 8
  %v4549 = vpop.permute.xlu0 %4548
  %4550 = vrot.lane.b32.xlu0 %v4448, 8
  %v4551 = vpop.permute.xlu0 %4550
  %4552 = vrot.lane.b32.xlu0 %v4452, 8
  %v4553 = vpop.permute.xlu0 %4552
  %4554 = vrot.lane.b32.xlu0 %v4455, 8
  %v4555 = vpop.permute.xlu0 %4554
  %4556 = vrot.lane.b32.xlu0 %v4459, 8
  %v4557 = vpop.permute.xlu0 %4556
  %4558 = vrot.lane.b32.xlu0 %v4462, 8
  %v4559 = vpop.permute.xlu0 %4558
  %4560 = vrot.lane.b32.xlu0 %v4466, 8
  %v4561 = vpop.permute.xlu0 %4560
  %4562 = vrot.lane.b32.xlu0 %v4469, 8
  %v4563 = vpop.permute.xlu0 %4562
  %4564 = vrot.lane.b32.xlu0 %v4473, 8
  %v4565 = vpop.permute.xlu0 %4564
  %4566 = vrot.lane.b32.xlu0 %v4476, 8
  %v4567 = vpop.permute.xlu0 %4566
  %4568 = vrot.lane.b32.xlu0 %v4480, 8
  %v4569 = vpop.permute.xlu0 %4568
  %4570 = vrot.lane.b32.xlu0 %v4483, 8
  %v4571 = vpop.permute.xlu0 %4570
  %4572 = vrot.lane.b32.xlu0 %v4487, 8
  %v4573 = vpop.permute.xlu0 %4572
  %4574 = vrot.lane.b32.xlu0 %v4490, 8
  %v4575 = vpop.permute.xlu0 %4574
  %4576 = vrot.lane.b32.xlu0 %v4494, 8
  %v4577 = vpop.permute.xlu0 %4576
  %4578 = vrot.lane.b32.xlu0 %v4497, 8
  %v4579 = vpop.permute.xlu0 %4578
  %4580 = vrot.lane.b32.xlu0 %v4501, 8
  %v4581 = vpop.permute.xlu0 %4580
  %4582 = vrot.lane.b32.xlu0 %v4504, 8
  %v4583 = vpop.permute.xlu0 %4582
  %4584 = vrot.lane.b32.xlu0 %v4508, 8
  %v4585 = vpop.permute.xlu0 %4584
  %4586 = vrot.lane.b32.xlu0 %v4511, 8
  %v4587 = vpop.permute.xlu0 %4586
  %4588 = vrot.lane.b32.xlu0 %v4515, 8
  %v4589 = vpop.permute.xlu0 %4588
  %4590 = vrot.lane.b32.xlu0 %v4518, 8
  %v4591 = vpop.permute.xlu0 %4590
  %4592 = vrot.lane.b32.xlu0 %v4522, 8
  %v4593 = vpop.permute.xlu0 %4592
  %4594 = vrot.lane.b32.xlu0 %v4525, 8
  %v4595 = vpop.permute.xlu0 %4594
  %4596 = vrot.lane.b32.xlu0 %v4529, 8
  %v4597 = vpop.permute.xlu0 %4596
  %4598 = vrot.lane.b32.xlu0 %v4532, 8
  %v4599 = vpop.permute.xlu0 %4598
  %4600 = vrot.lane.b32.xlu0 %v4536, 8
  %v4601 = vpop.permute.xlu0 %4600
  %4602 = vrot.lane.b32.xlu0 %v4539, 8
  %v4603 = vpop.permute.xlu0 %4602
  %4636 = vst.msk [vmem:[#allocation2] sm:$0xf] %vm952, %v4541
  %4637 = vst.msk [vmem:[#allocation2 + $0x4] sm:$0xf] %vm952, %v4543
  %4638 = vst.msk [vmem:[#allocation2 + $0x8] sm:$0xf] %vm952, %v4545
  %4639 = vst.msk [vmem:[#allocation2 + $0xc] sm:$0xf] %vm952, %v4547
  %4640 = vst.msk [vmem:[#allocation2 + $0x10] sm:$0xf] %vm952, %v4549
  %4641 = vst.msk [vmem:[#allocation2 + $0x14] sm:$0xf] %vm952, %v4551
  %4642 = vst.msk [vmem:[#allocation2 + $0x18] sm:$0xf] %vm952, %v4553
  %4643 = vst.msk [vmem:[#allocation2 + $0x1c] sm:$0xf] %vm952, %v4555
  %4644 = vst.msk [vmem:[#allocation2 + $0x20] sm:$0xf] %vm952, %v4557
  %4645 = vst.msk [vmem:[#allocation2 + $0x24] sm:$0xf] %vm952, %v4559
  %4646 = vst.msk [vmem:[#allocation2 + $0x28] sm:$0xf] %vm952, %v4561
  %4647 = vst.msk [vmem:[#allocation2 + $0x2c] sm:$0xf] %vm952, %v4563
  %4648 = vst.msk [vmem:[#allocation2 + $0x30] sm:$0xf] %vm952, %v4565
  %4649 = vst.msk [vmem:[#allocation2 + $0x34] sm:$0xf] %vm952, %v4567
  %4650 = vst.msk [vmem:[#allocation2 + $0x38] sm:$0xf] %vm952, %v4569
  %4651 = vst.msk [vmem:[#allocation2 + $0x3c] sm:$0xf] %vm952, %v4571
  %4652 = vst.msk [vmem:[#allocation2 + $0x40] sm:$0xf] %vm952, %v4573
  %4653 = vst.msk [vmem:[#allocation2 + $0x44] sm:$0xf] %vm952, %v4575
  %4654 = vst.msk [vmem:[#allocation2 + $0x48] sm:$0xf] %vm952, %v4577
  %4655 = vst.msk [vmem:[#allocation2 + $0x4c] sm:$0xf] %vm952, %v4579
  %4656 = vst.msk [vmem:[#allocation2 + $0x50] sm:$0xf] %vm952, %v4581
  %4657 = vst.msk [vmem:[#allocation2 + $0x54] sm:$0xf] %vm952, %v4583
  %4658 = vst.msk [vmem:[#allocation2 + $0x58] sm:$0xf] %vm952, %v4585
  %4659 = vst.msk [vmem:[#allocation2 + $0x5c] sm:$0xf] %vm952, %v4587
  %4660 = vst.msk [vmem:[#allocation2 + $0x60] sm:$0xf] %vm952, %v4589
  %4661 = vst.msk [vmem:[#allocation2 + $0x64] sm:$0xf] %vm952, %v4591
  %4662 = vst.msk [vmem:[#allocation2 + $0x68] sm:$0xf] %vm952, %v4593
  %4663 = vst.msk [vmem:[#allocation2 + $0x6c] sm:$0xf] %vm952, %v4595
  %4664 = vst.msk [vmem:[#allocation2 + $0x70] sm:$0xf] %vm952, %v4597
  %4665 = vst.msk [vmem:[#allocation2 + $0x74] sm:$0xf] %vm952, %v4599
  %4666 = vst.msk [vmem:[#allocation2 + $0x78] sm:$0xf] %vm952, %v4601
  %4667 = vst.msk [vmem:[#allocation2 + $0x7c] sm:$0xf] %vm952, %v4603
  %s4668 = sadd.s32 %s986, 54
  %s4669 = smul.addr %s4668, 4
  %s4670 = scalar_lea.vmem %s0, %s4669
  %v4671 = vld [vmem:[%s4670] sm:$0xf]
  %v4672 = vld [vmem:[%s4670 + $0x4] sm:$0xf]
  %v4673 = vld [vmem:[%s4670 + $0xc] sm:$0xf]
  %v4674 = vld [vmem:[%s4670 + $0x10] sm:$0xf]
  %v4675 = vld [vmem:[%s4670 + $0x18] sm:$0xf]
  %v4676 = vld [vmem:[%s4670 + $0x1c] sm:$0xf]
  %v4677 = vld [vmem:[%s4670 + $0x24] sm:$0xf]
  %v4678 = vld [vmem:[%s4670 + $0x28] sm:$0xf]
  %v4679 = vld [vmem:[%s4670 + $0x30] sm:$0xf]
  %v4680 = vld [vmem:[%s4670 + $0x34] sm:$0xf]
  %v4681 = vld [vmem:[%s4670 + $0x3c] sm:$0xf]
  %v4682 = vld [vmem:[%s4670 + $0x40] sm:$0xf]
  %v4683 = vld [vmem:[%s4670 + $0x48] sm:$0xf]
  %v4684 = vld [vmem:[%s4670 + $0x4c] sm:$0xf]
  %v4685 = vld [vmem:[%s4670 + $0x54] sm:$0xf]
  %v4686 = vld [vmem:[%s4670 + $0x58] sm:$0xf]
  %v4687 = vld [vmem:[%s4670 + $0x60] sm:$0xf]
  %v4688 = vld [vmem:[%s4670 + $0x64] sm:$0xf]
  %v4689 = vld [vmem:[%s4670 + $0x6c] sm:$0xf]
  %v4690 = vld [vmem:[%s4670 + $0x70] sm:$0xf]
  %v4691 = vld [vmem:[%s4670 + $0x78] sm:$0xf]
  %v4692 = vld [vmem:[%s4670 + $0x7c] sm:$0xf]
  %v4693 = vld [vmem:[%s4670 + $0x84] sm:$0xf]
  %v4694 = vld [vmem:[%s4670 + $0x88] sm:$0xf]
  %v4695 = vld [vmem:[%s4670 + $0x90] sm:$0xf]
  %v4696 = vld [vmem:[%s4670 + $0x94] sm:$0xf]
  %v4697 = vld [vmem:[%s4670 + $0x9c] sm:$0xf]
  %v4698 = vld [vmem:[%s4670 + $0xa0] sm:$0xf]
  %v4699 = vld [vmem:[%s4670 + $0xa8] sm:$0xf]
  %v4700 = vld [vmem:[%s4670 + $0xac] sm:$0xf]
  %v4701 = vld [vmem:[%s4670 + $0xb4] sm:$0xf]
  %v4702 = vld [vmem:[%s4670 + $0xb8] sm:$0xf]
  %4735 = vrot.lane.b32.xlu0 %v4671, 12
  %v4736 = vpop.permute.xlu0 %4735
  %4737 = vrot.lane.b32.xlu0 %v4672, 12
  %v4738 = vpop.permute.xlu0 %4737
  %4739 = vrot.lane.b32.xlu0 %v4673, 12
  %v4740 = vpop.permute.xlu0 %4739
  %4741 = vrot.lane.b32.xlu0 %v4674, 12
  %v4742 = vpop.permute.xlu0 %4741
  %4743 = vrot.lane.b32.xlu0 %v4675, 12
  %v4744 = vpop.permute.xlu0 %4743
  %4745 = vrot.lane.b32.xlu0 %v4676, 12
  %v4746 = vpop.permute.xlu0 %4745
  %4747 = vrot.lane.b32.xlu0 %v4677, 12
  %v4748 = vpop.permute.xlu0 %4747
  %4749 = vrot.lane.b32.xlu0 %v4678, 12
  %v4750 = vpop.permute.xlu0 %4749
  %4751 = vrot.lane.b32.xlu0 %v4679, 12
  %v4752 = vpop.permute.xlu0 %4751
  %4753 = vrot.lane.b32.xlu0 %v4680, 12
  %v4754 = vpop.permute.xlu0 %4753
  %4755 = vrot.lane.b32.xlu0 %v4681, 12
  %v4756 = vpop.permute.xlu0 %4755
  %4757 = vrot.lane.b32.xlu0 %v4682, 12
  %v4758 = vpop.permute.xlu0 %4757
  %4759 = vrot.lane.b32.xlu0 %v4683, 12
  %v4760 = vpop.permute.xlu0 %4759
  %4761 = vrot.lane.b32.xlu0 %v4684, 12
  %v4762 = vpop.permute.xlu0 %4761
  %4763 = vrot.lane.b32.xlu0 %v4685, 12
  %v4764 = vpop.permute.xlu0 %4763
  %4765 = vrot.lane.b32.xlu0 %v4686, 12
  %v4766 = vpop.permute.xlu0 %4765
  %4767 = vrot.lane.b32.xlu0 %v4687, 12
  %v4768 = vpop.permute.xlu0 %4767
  %4769 = vrot.lane.b32.xlu0 %v4688, 12
  %v4770 = vpop.permute.xlu0 %4769
  %4771 = vrot.lane.b32.xlu0 %v4689, 12
  %v4772 = vpop.permute.xlu0 %4771
  %4773 = vrot.lane.b32.xlu0 %v4690, 12
  %v4774 = vpop.permute.xlu0 %4773
  %4775 = vrot.lane.b32.xlu0 %v4691, 12
  %v4776 = vpop.permute.xlu0 %4775
  %4777 = vrot.lane.b32.xlu0 %v4692, 12
  %v4778 = vpop.permute.xlu0 %4777
  %4779 = vrot.lane.b32.xlu0 %v4693, 12
  %v4780 = vpop.permute.xlu0 %4779
  %4781 = vrot.lane.b32.xlu0 %v4694, 12
  %v4782 = vpop.permute.xlu0 %4781
  %4783 = vrot.lane.b32.xlu0 %v4695, 12
  %v4784 = vpop.permute.xlu0 %4783
  %4785 = vrot.lane.b32.xlu0 %v4696, 12
  %v4786 = vpop.permute.xlu0 %4785
  %4787 = vrot.lane.b32.xlu0 %v4697, 12
  %v4788 = vpop.permute.xlu0 %4787
  %4789 = vrot.lane.b32.xlu0 %v4698, 12
  %v4790 = vpop.permute.xlu0 %4789
  %4791 = vrot.lane.b32.xlu0 %v4699, 12
  %v4792 = vpop.permute.xlu0 %4791
  %4793 = vrot.lane.b32.xlu0 %v4700, 12
  %v4794 = vpop.permute.xlu0 %4793
  %4795 = vrot.lane.b32.xlu0 %v4701, 12
  %v4796 = vpop.permute.xlu0 %4795
  %4797 = vrot.lane.b32.xlu0 %v4702, 12
  %v4798 = vpop.permute.xlu0 %4797
  %4831 = vst.msk [vmem:[#allocation2] sm:$0xf] %vm1149, %v4736
  %4832 = vst.msk [vmem:[#allocation2 + $0x4] sm:$0xf] %vm1149, %v4738
  %4833 = vst.msk [vmem:[#allocation2 + $0x8] sm:$0xf] %vm1149, %v4740
  %4834 = vst.msk [vmem:[#allocation2 + $0xc] sm:$0xf] %vm1149, %v4742
  %4835 = vst.msk [vmem:[#allocation2 + $0x10] sm:$0xf] %vm1149, %v4744
  %4836 = vst.msk [vmem:[#allocation2 + $0x14] sm:$0xf] %vm1149, %v4746
  %4837 = vst.msk [vmem:[#allocation2 + $0x18] sm:$0xf] %vm1149, %v4748
  %4838 = vst.msk [vmem:[#allocation2 + $0x1c] sm:$0xf] %vm1149, %v4750
  %4839 = vst.msk [vmem:[#allocation2 + $0x20] sm:$0xf] %vm1149, %v4752
  %4840 = vst.msk [vmem:[#allocation2 + $0x24] sm:$0xf] %vm1149, %v4754
  %4841 = vst.msk [vmem:[#allocation2 + $0x28] sm:$0xf] %vm1149, %v4756
  %4842 = vst.msk [vmem:[#allocation2 + $0x2c] sm:$0xf] %vm1149, %v4758
  %4843 = vst.msk [vmem:[#allocation2 + $0x30] sm:$0xf] %vm1149, %v4760
  %4844 = vst.msk [vmem:[#allocation2 + $0x34] sm:$0xf] %vm1149, %v4762
  %4845 = vst.msk [vmem:[#allocation2 + $0x38] sm:$0xf] %vm1149, %v4764
  %4846 = vst.msk [vmem:[#allocation2 + $0x3c] sm:$0xf] %vm1149, %v4766
  %4847 = vst.msk [vmem:[#allocation2 + $0x40] sm:$0xf] %vm1149, %v4768
  %4848 = vst.msk [vmem:[#allocation2 + $0x44] sm:$0xf] %vm1149, %v4770
  %4849 = vst.msk [vmem:[#allocation2 + $0x48] sm:$0xf] %vm1149, %v4772
  %4850 = vst.msk [vmem:[#allocation2 + $0x4c] sm:$0xf] %vm1149, %v4774
  %4851 = vst.msk [vmem:[#allocation2 + $0x50] sm:$0xf] %vm1149, %v4776
  %4852 = vst.msk [vmem:[#allocation2 + $0x54] sm:$0xf] %vm1149, %v4778
  %4853 = vst.msk [vmem:[#allocation2 + $0x58] sm:$0xf] %vm1149, %v4780
  %4854 = vst.msk [vmem:[#allocation2 + $0x5c] sm:$0xf] %vm1149, %v4782
  %4855 = vst.msk [vmem:[#allocation2 + $0x60] sm:$0xf] %vm1149, %v4784
  %4856 = vst.msk [vmem:[#allocation2 + $0x64] sm:$0xf] %vm1149, %v4786
  %4857 = vst.msk [vmem:[#allocation2 + $0x68] sm:$0xf] %vm1149, %v4788
  %4858 = vst.msk [vmem:[#allocation2 + $0x6c] sm:$0xf] %vm1149, %v4790
  %4859 = vst.msk [vmem:[#allocation2 + $0x70] sm:$0xf] %vm1149, %v4792
  %4860 = vst.msk [vmem:[#allocation2 + $0x74] sm:$0xf] %vm1149, %v4794
  %4861 = vst.msk [vmem:[#allocation2 + $0x78] sm:$0xf] %vm1149, %v4796
  %4862 = vst.msk [vmem:[#allocation2 + $0x7c] sm:$0xf] %vm1149, %v4798
  %v4863 = vld [vmem:[%s4670] sm:$0xf]
  %v4864 = vld [vmem:[%s4670 + $0x4] sm:$0xf]
  %v4865 = vld [vmem:[%s4670 + $0x8] sm:$0x1]
  %v4866 = vld [vmem:[%s4670 + $0xc] sm:$0xf]
  %v4867 = vld [vmem:[%s4670 + $0x10] sm:$0xf]
  %v4868 = vld [vmem:[%s4670 + $0x14] sm:$0x1]
  %v4869 = vld [vmem:[%s4670 + $0x18] sm:$0xf]
  %v4870 = vld [vmem:[%s4670 + $0x1c] sm:$0xf]
  %v4871 = vld [vmem:[%s4670 + $0x20] sm:$0x1]
  %v4872 = vld [vmem:[%s4670 + $0x24] sm:$0xf]
  %v4873 = vld [vmem:[%s4670 + $0x28] sm:$0xf]
  %v4874 = vld [vmem:[%s4670 + $0x2c] sm:$0x1]
  %v4875 = vld [vmem:[%s4670 + $0x30] sm:$0xf]
  %v4876 = vld [vmem:[%s4670 + $0x34] sm:$0xf]
  %v4877 = vld [vmem:[%s4670 + $0x38] sm:$0x1]
  %v4878 = vld [vmem:[%s4670 + $0x3c] sm:$0xf]
  %v4879 = vld [vmem:[%s4670 + $0x40] sm:$0xf]
  %v4880 = vld [vmem:[%s4670 + $0x44] sm:$0x1]
  %v4881 = vld [vmem:[%s4670 + $0x48] sm:$0xf]
  %v4882 = vld [vmem:[%s4670 + $0x4c] sm:$0xf]
  %v4883 = vld [vmem:[%s4670 + $0x50] sm:$0x1]
  %v4884 = vld [vmem:[%s4670 + $0x54] sm:$0xf]
  %v4885 = vld [vmem:[%s4670 + $0x58] sm:$0xf]
  %v4886 = vld [vmem:[%s4670 + $0x5c] sm:$0x1]
  %v4887 = vld [vmem:[%s4670 + $0x60] sm:$0xf]
  %v4888 = vld [vmem:[%s4670 + $0x64] sm:$0xf]
  %v4889 = vld [vmem:[%s4670 + $0x68] sm:$0x1]
  %v4890 = vld [vmem:[%s4670 + $0x6c] sm:$0xf]
  %v4891 = vld [vmem:[%s4670 + $0x70] sm:$0xf]
  %v4892 = vld [vmem:[%s4670 + $0x74] sm:$0x1]
  %v4893 = vld [vmem:[%s4670 + $0x78] sm:$0xf]
  %v4894 = vld [vmem:[%s4670 + $0x7c] sm:$0xf]
  %v4895 = vld [vmem:[%s4670 + $0x80] sm:$0x1]
  %v4896 = vld [vmem:[%s4670 + $0x84] sm:$0xf]
  %v4897 = vld [vmem:[%s4670 + $0x88] sm:$0xf]
  %v4898 = vld [vmem:[%s4670 + $0x8c] sm:$0x1]
  %v4899 = vld [vmem:[%s4670 + $0x90] sm:$0xf]
  %v4900 = vld [vmem:[%s4670 + $0x94] sm:$0xf]
  %v4901 = vld [vmem:[%s4670 + $0x98] sm:$0x1]
  %v4902 = vld [vmem:[%s4670 + $0x9c] sm:$0xf]
  %v4903 = vld [vmem:[%s4670 + $0xa0] sm:$0xf]
  %v4904 = vld [vmem:[%s4670 + $0xa4] sm:$0x1]
  %v4905 = vld [vmem:[%s4670 + $0xa8] sm:$0xf]
  %v4906 = vld [vmem:[%s4670 + $0xac] sm:$0xf]
  %v4907 = vld [vmem:[%s4670 + $0xb0] sm:$0x1]
  %v4908 = vld [vmem:[%s4670 + $0xb4] sm:$0xf]
  %v4909 = vld [vmem:[%s4670 + $0xb8] sm:$0xf]
  %v4910 = vld [vmem:[%s4670 + $0xbc] sm:$0x1]
  %v4912 = vshrl.u32 %v4863, 16
  %v4914 = vrot.slane %v4912, 4
  %v4915 = vshll.u32 %v4863, 16
  %v4917 = vrot.slane %v4915, 5
  %v4918 = vor.u32 %v4914, %v4917
  %v4919 = vrot.slane %v4918, 4
  %v4921 = vshll.u32 %v4864, 16
  %v4923 = vrot.slane %v4921, 5
  %v4924 = vsel %vm131, %v4919, %v4923
  %v4925 = vshrl.u32 %v4864, 16
  %v4927 = vrot.slane %v4925, 4
  %v4928 = vor.u32 %v4927, %v4923
  %v4929 = vrot.slane %v4928, 4
  %v4931 = vshll.u32 %v4865, 16
  %v4933 = vrot.slane %v4931, 5
  %v4934 = vsel %vm131, %v4929, %v4933
  %v4936 = vshrl.u32 %v4866, 16
  %v4938 = vrot.slane %v4936, 4
  %v4939 = vshll.u32 %v4866, 16
  %v4941 = vrot.slane %v4939, 5
  %v4942 = vor.u32 %v4938, %v4941
  %v4943 = vrot.slane %v4942, 4
  %v4945 = vshll.u32 %v4867, 16
  %v4947 = vrot.slane %v4945, 5
  %v4948 = vsel %vm131, %v4943, %v4947
  %v4949 = vshrl.u32 %v4867, 16
  %v4951 = vrot.slane %v4949, 4
  %v4952 = vor.u32 %v4951, %v4947
  %v4953 = vrot.slane %v4952, 4
  %v4955 = vshll.u32 %v4868, 16
  %v4957 = vrot.slane %v4955, 5
  %v4958 = vsel %vm131, %v4953, %v4957
  %v4960 = vshrl.u32 %v4869, 16
  %v4962 = vrot.slane %v4960, 4
  %v4963 = vshll.u32 %v4869, 16
  %v4965 = vrot.slane %v4963, 5
  %v4966 = vor.u32 %v4962, %v4965
  %v4967 = vrot.slane %v4966, 4
  %v4969 = vshll.u32 %v4870, 16
  %v4971 = vrot.slane %v4969, 5
  %v4972 = vsel %vm131, %v4967, %v4971
  %v4973 = vshrl.u32 %v4870, 16
  %v4975 = vrot.slane %v4973, 4
  %v4976 = vor.u32 %v4975, %v4971
  %v4977 = vrot.slane %v4976, 4
  %v4979 = vshll.u32 %v4871, 16
  %v4981 = vrot.slane %v4979, 5
  %v4982 = vsel %vm131, %v4977, %v4981
  %v4984 = vshrl.u32 %v4872, 16
  %v4986 = vrot.slane %v4984, 4
  %v4987 = vshll.u32 %v4872, 16
  %v4989 = vrot.slane %v4987, 5
  %v4990 = vor.u32 %v4986, %v4989
  %v4991 = vrot.slane %v4990, 4
  %v4993 = vshll.u32 %v4873, 16
  %v4995 = vrot.slane %v4993, 5
  %v4996 = vsel %vm131, %v4991, %v4995
  %v4997 = vshrl.u32 %v4873, 16
  %v4999 = vrot.slane %v4997, 4
  %v5000 = vor.u32 %v4999, %v4995
  %v5001 = vrot.slane %v5000, 4
  %v5003 = vshll.u32 %v4874, 16
  %v5005 = vrot.slane %v5003, 5
  %v5006 = vsel %vm131, %v5001, %v5005
  %v5008 = vshrl.u32 %v4875, 16
  %v5010 = vrot.slane %v5008, 4
  %v5011 = vshll.u32 %v4875, 16
  %v5013 = vrot.slane %v5011, 5
  %v5014 = vor.u32 %v5010, %v5013
  %v5015 = vrot.slane %v5014, 4
  %v5017 = vshll.u32 %v4876, 16
  %v5019 = vrot.slane %v5017, 5
  %v5020 = vsel %vm131, %v5015, %v5019
  %v5021 = vshrl.u32 %v4876, 16
  %v5023 = vrot.slane %v5021, 4
  %v5024 = vor.u32 %v5023, %v5019
  %v5025 = vrot.slane %v5024, 4
  %v5027 = vshll.u32 %v4877, 16
  %v5029 = vrot.slane %v5027, 5
  %v5030 = vsel %vm131, %v5025, %v5029
  %v5032 = vshrl.u32 %v4878, 16
  %v5034 = vrot.slane %v5032, 4
  %v5035 = vshll.u32 %v4878, 16
  %v5037 = vrot.slane %v5035, 5
  %v5038 = vor.u32 %v5034, %v5037
  %v5039 = vrot.slane %v5038, 4
  %v5041 = vshll.u32 %v4879, 16
  %v5043 = vrot.slane %v5041, 5
  %v5044 = vsel %vm131, %v5039, %v5043
  %v5045 = vshrl.u32 %v4879, 16
  %v5047 = vrot.slane %v5045, 4
  %v5048 = vor.u32 %v5047, %v5043
  %v5049 = vrot.slane %v5048, 4
  %v5051 = vshll.u32 %v4880, 16
  %v5053 = vrot.slane %v5051, 5
  %v5054 = vsel %vm131, %v5049, %v5053
  %v5056 = vshrl.u32 %v4881, 16
  %v5058 = vrot.slane %v5056, 4
  %v5059 = vshll.u32 %v4881, 16
  %v5061 = vrot.slane %v5059, 5
  %v5062 = vor.u32 %v5058, %v5061
  %v5063 = vrot.slane %v5062, 4
  %v5065 = vshll.u32 %v4882, 16
  %v5067 = vrot.slane %v5065, 5
  %v5068 = vsel %vm131, %v5063, %v5067
  %v5069 = vshrl.u32 %v4882, 16
  %v5071 = vrot.slane %v5069, 4
  %v5072 = vor.u32 %v5071, %v5067
  %v5073 = vrot.slane %v5072, 4
  %v5075 = vshll.u32 %v4883, 16
  %v5077 = vrot.slane %v5075, 5
  %v5078 = vsel %vm131, %v5073, %v5077
  %v5080 = vshrl.u32 %v4884, 16
  %v5082 = vrot.slane %v5080, 4
  %v5083 = vshll.u32 %v4884, 16
  %v5085 = vrot.slane %v5083, 5
  %v5086 = vor.u32 %v5082, %v5085
  %v5087 = vrot.slane %v5086, 4
  %v5089 = vshll.u32 %v4885, 16
  %v5091 = vrot.slane %v5089, 5
  %v5092 = vsel %vm131, %v5087, %v5091
  %v5093 = vshrl.u32 %v4885, 16
  %v5095 = vrot.slane %v5093, 4
  %v5096 = vor.u32 %v5095, %v5091
  %v5097 = vrot.slane %v5096, 4
  %v5099 = vshll.u32 %v4886, 16
  %v5101 = vrot.slane %v5099, 5
  %v5102 = vsel %vm131, %v5097, %v5101
  %v5104 = vshrl.u32 %v4887, 16
  %v5106 = vrot.slane %v5104, 4
  %v5107 = vshll.u32 %v4887, 16
  %v5109 = vrot.slane %v5107, 5
  %v5110 = vor.u32 %v5106, %v5109
  %v5111 = vrot.slane %v5110, 4
  %v5113 = vshll.u32 %v4888, 16
  %v5115 = vrot.slane %v5113, 5
  %v5116 = vsel %vm131, %v5111, %v5115
  %v5117 = vshrl.u32 %v4888, 16
  %v5119 = vrot.slane %v5117, 4
  %v5120 = vor.u32 %v5119, %v5115
  %v5121 = vrot.slane %v5120, 4
  %v5123 = vshll.u32 %v4889, 16
  %v5125 = vrot.slane %v5123, 5
  %v5126 = vsel %vm131, %v5121, %v5125
  %v5128 = vshrl.u32 %v4890, 16
  %v5130 = vrot.slane %v5128, 4
  %v5131 = vshll.u32 %v4890, 16
  %v5133 = vrot.slane %v5131, 5
  %v5134 = vor.u32 %v5130, %v5133
  %v5135 = vrot.slane %v5134, 4
  %v5137 = vshll.u32 %v4891, 16
  %v5139 = vrot.slane %v5137, 5
  %v5140 = vsel %vm131, %v5135, %v5139
  %v5141 = vshrl.u32 %v4891, 16
  %v5143 = vrot.slane %v5141, 4
  %v5144 = vor.u32 %v5143, %v5139
  %v5145 = vrot.slane %v5144, 4
  %v5147 = vshll.u32 %v4892, 16
  %v5149 = vrot.slane %v5147, 5
  %v5150 = vsel %vm131, %v5145, %v5149
  %v5152 = vshrl.u32 %v4893, 16
  %v5154 = vrot.slane %v5152, 4
  %v5155 = vshll.u32 %v4893, 16
  %v5157 = vrot.slane %v5155, 5
  %v5158 = vor.u32 %v5154, %v5157
  %v5159 = vrot.slane %v5158, 4
  %v5161 = vshll.u32 %v4894, 16
  %v5163 = vrot.slane %v5161, 5
  %v5164 = vsel %vm131, %v5159, %v5163
  %v5165 = vshrl.u32 %v4894, 16
  %v5167 = vrot.slane %v5165, 4
  %v5168 = vor.u32 %v5167, %v5163
  %v5169 = vrot.slane %v5168, 4
  %v5171 = vshll.u32 %v4895, 16
  %v5173 = vrot.slane %v5171, 5
  %v5174 = vsel %vm131, %v5169, %v5173
  %v5176 = vshrl.u32 %v4896, 16
  %v5178 = vrot.slane %v5176, 4
  %v5179 = vshll.u32 %v4896, 16
  %v5181 = vrot.slane %v5179, 5
  %v5182 = vor.u32 %v5178, %v5181
  %v5183 = vrot.slane %v5182, 4
  %v5185 = vshll.u32 %v4897, 16
  %v5187 = vrot.slane %v5185, 5
  %v5188 = vsel %vm131, %v5183, %v5187
  %v5189 = vshrl.u32 %v4897, 16
  %v5191 = vrot.slane %v5189, 4
  %v5192 = vor.u32 %v5191, %v5187
  %v5193 = vrot.slane %v5192, 4
  %v5195 = vshll.u32 %v4898, 16
  %v5197 = vrot.slane %v5195, 5
  %v5198 = vsel %vm131, %v5193, %v5197
  %v5200 = vshrl.u32 %v4899, 16
  %v5202 = vrot.slane %v5200, 4
  %v5203 = vshll.u32 %v4899, 16
  %v5205 = vrot.slane %v5203, 5
  %v5206 = vor.u32 %v5202, %v5205
  %v5207 = vrot.slane %v5206, 4
  %v5209 = vshll.u32 %v4900, 16
  %v5211 = vrot.slane %v5209, 5
  %v5212 = vsel %vm131, %v5207, %v5211
  %v5213 = vshrl.u32 %v4900, 16
  %v5215 = vrot.slane %v5213, 4
  %v5216 = vor.u32 %v5215, %v5211
  %v5217 = vrot.slane %v5216, 4
  %v5219 = vshll.u32 %v4901, 16
  %v5221 = vrot.slane %v5219, 5
  %v5222 = vsel %vm131, %v5217, %v5221
  %v5224 = vshrl.u32 %v4902, 16
  %v5226 = vrot.slane %v5224, 4
  %v5227 = vshll.u32 %v4902, 16
  %v5229 = vrot.slane %v5227, 5
  %v5230 = vor.u32 %v5226, %v5229
  %v5231 = vrot.slane %v5230, 4
  %v5233 = vshll.u32 %v4903, 16
  %v5235 = vrot.slane %v5233, 5
  %v5236 = vsel %vm131, %v5231, %v5235
  %v5237 = vshrl.u32 %v4903, 16
  %v5239 = vrot.slane %v5237, 4
  %v5240 = vor.u32 %v5239, %v5235
  %v5241 = vrot.slane %v5240, 4
  %v5243 = vshll.u32 %v4904, 16
  %v5245 = vrot.slane %v5243, 5
  %v5246 = vsel %vm131, %v5241, %v5245
  %v5248 = vshrl.u32 %v4905, 16
  %v5250 = vrot.slane %v5248, 4
  %v5251 = vshll.u32 %v4905, 16
  %v5253 = vrot.slane %v5251, 5
  %v5254 = vor.u32 %v5250, %v5253
  %v5255 = vrot.slane %v5254, 4
  %v5257 = vshll.u32 %v4906, 16
  %v5259 = vrot.slane %v5257, 5
  %v5260 = vsel %vm131, %v5255, %v5259
  %v5261 = vshrl.u32 %v4906, 16
  %v5263 = vrot.slane %v5261, 4
  %v5264 = vor.u32 %v5263, %v5259
  %v5265 = vrot.slane %v5264, 4
  %v5267 = vshll.u32 %v4907, 16
  %v5269 = vrot.slane %v5267, 5
  %v5270 = vsel %vm131, %v5265, %v5269
  %v5272 = vshrl.u32 %v4908, 16
  %v5274 = vrot.slane %v5272, 4
  %v5275 = vshll.u32 %v4908, 16
  %v5277 = vrot.slane %v5275, 5
  %v5278 = vor.u32 %v5274, %v5277
  %v5279 = vrot.slane %v5278, 4
  %v5281 = vshll.u32 %v4909, 16
  %v5283 = vrot.slane %v5281, 5
  %v5284 = vsel %vm131, %v5279, %v5283
  %v5285 = vshrl.u32 %v4909, 16
  %v5287 = vrot.slane %v5285, 4
  %v5288 = vor.u32 %v5287, %v5283
  %v5289 = vrot.slane %v5288, 4
  %v5291 = vshll.u32 %v4910, 16
  %v5293 = vrot.slane %v5291, 5
  %v5294 = vsel %vm131, %v5289, %v5293
  %5295 = vrot.lane.b32.xlu0 %v4924, 16
  %v5296 = vpop.permute.xlu0 %5295
  %5297 = vrot.lane.b32.xlu0 %v4934, 16
  %v5298 = vpop.permute.xlu0 %5297
  %5299 = vrot.lane.b32.xlu0 %v4948, 16
  %v5300 = vpop.permute.xlu0 %5299
  %5301 = vrot.lane.b32.xlu0 %v4958, 16
  %v5302 = vpop.permute.xlu0 %5301
  %5303 = vrot.lane.b32.xlu0 %v4972, 16
  %v5304 = vpop.permute.xlu0 %5303
  %5305 = vrot.lane.b32.xlu0 %v4982, 16
  %v5306 = vpop.permute.xlu0 %5305
  %5307 = vrot.lane.b32.xlu0 %v4996, 16
  %v5308 = vpop.permute.xlu0 %5307
  %5309 = vrot.lane.b32.xlu0 %v5006, 16
  %v5310 = vpop.permute.xlu0 %5309
  %5311 = vrot.lane.b32.xlu0 %v5020, 16
  %v5312 = vpop.permute.xlu0 %5311
  %5313 = vrot.lane.b32.xlu0 %v5030, 16
  %v5314 = vpop.permute.xlu0 %5313
  %5315 = vrot.lane.b32.xlu0 %v5044, 16
  %v5316 = vpop.permute.xlu0 %5315
  %5317 = vrot.lane.b32.xlu0 %v5054, 16
  %v5318 = vpop.permute.xlu0 %5317
  %5319 = vrot.lane.b32.xlu0 %v5068, 16
  %v5320 = vpop.permute.xlu0 %5319
  %5321 = vrot.lane.b32.xlu0 %v5078, 16
  %v5322 = vpop.permute.xlu0 %5321
  %5323 = vrot.lane.b32.xlu0 %v5092, 16
  %v5324 = vpop.permute.xlu0 %5323
  %5325 = vrot.lane.b32.xlu0 %v5102, 16
  %v5326 = vpop.permute.xlu0 %5325
  %5327 = vrot.lane.b32.xlu0 %v5116, 16
  %v5328 = vpop.permute.xlu0 %5327
  %5329 = vrot.lane.b32.xlu0 %v5126, 16
  %v5330 = vpop.permute.xlu0 %5329
  %5331 = vrot.lane.b32.xlu0 %v5140, 16
  %v5332 = vpop.permute.xlu0 %5331
  %5333 = vrot.lane.b32.xlu0 %v5150, 16
  %v5334 = vpop.permute.xlu0 %5333
  %5335 = vrot.lane.b32.xlu0 %v5164, 16
  %v5336 = vpop.permute.xlu0 %5335
  %5337 = vrot.lane.b32.xlu0 %v5174, 16
  %v5338 = vpop.permute.xlu0 %5337
  %5339 = vrot.lane.b32.xlu0 %v5188, 16
  %v5340 = vpop.permute.xlu0 %5339
  %5341 = vrot.lane.b32.xlu0 %v5198, 16
  %v5342 = vpop.permute.xlu0 %5341
  %5343 = vrot.lane.b32.xlu0 %v5212, 16
  %v5344 = vpop.permute.xlu0 %5343
  %5345 = vrot.lane.b32.xlu0 %v5222, 16
  %v5346 = vpop.permute.xlu0 %5345
  %5347 = vrot.lane.b32.xlu0 %v5236, 16
  %v5348 = vpop.permute.xlu0 %5347
  %5349 = vrot.lane.b32.xlu0 %v5246, 16
  %v5350 = vpop.permute.xlu0 %5349
  %5351 = vrot.lane.b32.xlu0 %v5260, 16
  %v5352 = vpop.permute.xlu0 %5351
  %5353 = vrot.lane.b32.xlu0 %v5270, 16
  %v5354 = vpop.permute.xlu0 %5353
  %5355 = vrot.lane.b32.xlu0 %v5284, 16
  %v5356 = vpop.permute.xlu0 %5355
  %5357 = vrot.lane.b32.xlu0 %v5294, 16
  %v5358 = vpop.permute.xlu0 %5357
  %5391 = vst.msk [vmem:[#allocation2] sm:$0xf] %vm1710, %v5296
  %5392 = vst.msk [vmem:[#allocation2 + $0x4] sm:$0xf] %vm1710, %v5298
  %5393 = vst.msk [vmem:[#allocation2 + $0x8] sm:$0xf] %vm1710, %v5300
  %5394 = vst.msk [vmem:[#allocation2 + $0xc] sm:$0xf] %vm1710, %v5302
  %5395 = vst.msk [vmem:[#allocation2 + $0x10] sm:$0xf] %vm1710, %v5304
  %5396 = vst.msk [vmem:[#allocation2 + $0x14] sm:$0xf] %vm1710, %v5306
  %5397 = vst.msk [vmem:[#allocation2 + $0x18] sm:$0xf] %vm1710, %v5308
  %5398 = vst.msk [vmem:[#allocation2 + $0x1c] sm:$0xf] %vm1710, %v5310
  %5399 = vst.msk [vmem:[#allocation2 + $0x20] sm:$0xf] %vm1710, %v5312
  %5400 = vst.msk [vmem:[#allocation2 + $0x24] sm:$0xf] %vm1710, %v5314
  %5401 = vst.msk [vmem:[#allocation2 + $0x28] sm:$0xf] %vm1710, %v5316
  %5402 = vst.msk [vmem:[#allocation2 + $0x2c] sm:$0xf] %vm1710, %v5318
  %5403 = vst.msk [vmem:[#allocation2 + $0x30] sm:$0xf] %vm1710, %v5320
  %5404 = vst.msk [vmem:[#allocation2 + $0x34] sm:$0xf] %vm1710, %v5322
  %5405 = vst.msk [vmem:[#allocation2 + $0x38] sm:$0xf] %vm1710, %v5324
  %5406 = vst.msk [vmem:[#allocation2 + $0x3c] sm:$0xf] %vm1710, %v5326
  %5407 = vst.msk [vmem:[#allocation2 + $0x40] sm:$0xf] %vm1710, %v5328
  %5408 = vst.msk [vmem:[#allocation2 + $0x44] sm:$0xf] %vm1710, %v5330
  %5409 = vst.msk [vmem:[#allocation2 + $0x48] sm:$0xf] %vm1710, %v5332
  %5410 = vst.msk [vmem:[#allocation2 + $0x4c] sm:$0xf] %vm1710, %v5334
  %5411 = vst.msk [vmem:[#allocation2 + $0x50] sm:$0xf] %vm1710, %v5336
  %5412 = vst.msk [vmem:[#allocation2 + $0x54] sm:$0xf] %vm1710, %v5338
  %5413 = vst.msk [vmem:[#allocation2 + $0x58] sm:$0xf] %vm1710, %v5340
  %5414 = vst.msk [vmem:[#allocation2 + $0x5c] sm:$0xf] %vm1710, %v5342
  %5415 = vst.msk [vmem:[#allocation2 + $0x60] sm:$0xf] %vm1710, %v5344
  %5416 = vst.msk [vmem:[#allocation2 + $0x64] sm:$0xf] %vm1710, %v5346
  %5417 = vst.msk [vmem:[#allocation2 + $0x68] sm:$0xf] %vm1710, %v5348
  %5418 = vst.msk [vmem:[#allocation2 + $0x6c] sm:$0xf] %vm1710, %v5350
  %5419 = vst.msk [vmem:[#allocation2 + $0x70] sm:$0xf] %vm1710, %v5352
  %5420 = vst.msk [vmem:[#allocation2 + $0x74] sm:$0xf] %vm1710, %v5354
  %5421 = vst.msk [vmem:[#allocation2 + $0x78] sm:$0xf] %vm1710, %v5356
  %5422 = vst.msk [vmem:[#allocation2 + $0x7c] sm:$0xf] %vm1710, %v5358
  %v5423 = vld [vmem:[%s4670] sm:$0xe]
  %v5424 = vld [vmem:[%s4670 + $0x4] sm:$0xf]
  %v5425 = vld [vmem:[%s4670 + $0x8] sm:$0x1]
  %v5426 = vld [vmem:[%s4670 + $0xc] sm:$0xe]
  %v5427 = vld [vmem:[%s4670 + $0x10] sm:$0xf]
  %v5428 = vld [vmem:[%s4670 + $0x14] sm:$0x1]
  %v5429 = vld [vmem:[%s4670 + $0x18] sm:$0xe]
  %v5430 = vld [vmem:[%s4670 + $0x1c] sm:$0xf]
  %v5431 = vld [vmem:[%s4670 + $0x20] sm:$0x1]
  %v5432 = vld [vmem:[%s4670 + $0x24] sm:$0xe]
  %v5433 = vld [vmem:[%s4670 + $0x28] sm:$0xf]
  %v5434 = vld [vmem:[%s4670 + $0x2c] sm:$0x1]
  %v5435 = vld [vmem:[%s4670 + $0x30] sm:$0xe]
  %v5436 = vld [vmem:[%s4670 + $0x34] sm:$0xf]
  %v5437 = vld [vmem:[%s4670 + $0x38] sm:$0x1]
  %v5438 = vld [vmem:[%s4670 + $0x3c] sm:$0xe]
  %v5439 = vld [vmem:[%s4670 + $0x40] sm:$0xf]
  %v5440 = vld [vmem:[%s4670 + $0x44] sm:$0x1]
  %v5441 = vld [vmem:[%s4670 + $0x48] sm:$0xe]
  %v5442 = vld [vmem:[%s4670 + $0x4c] sm:$0xf]
  %v5443 = vld [vmem:[%s4670 + $0x50] sm:$0x1]
  %v5444 = vld [vmem:[%s4670 + $0x54] sm:$0xe]
  %v5445 = vld [vmem:[%s4670 + $0x58] sm:$0xf]
  %v5446 = vld [vmem:[%s4670 + $0x5c] sm:$0x1]
  %v5447 = vld [vmem:[%s4670 + $0x60] sm:$0xe]
  %v5448 = vld [vmem:[%s4670 + $0x64] sm:$0xf]
  %v5449 = vld [vmem:[%s4670 + $0x68] sm:$0x1]
  %v5450 = vld [vmem:[%s4670 + $0x6c] sm:$0xe]
  %v5451 = vld [vmem:[%s4670 + $0x70] sm:$0xf]
  %v5452 = vld [vmem:[%s4670 + $0x74] sm:$0x1]
  %v5453 = vld [vmem:[%s4670 + $0x78] sm:$0xe]
  %v5454 = vld [vmem:[%s4670 + $0x7c] sm:$0xf]
  %v5455 = vld [vmem:[%s4670 + $0x80] sm:$0x1]
  %v5456 = vld [vmem:[%s4670 + $0x84] sm:$0xe]
  %v5457 = vld [vmem:[%s4670 + $0x88] sm:$0xf]
  %v5458 = vld [vmem:[%s4670 + $0x8c] sm:$0x1]
  %v5459 = vld [vmem:[%s4670 + $0x90] sm:$0xe]
  %v5460 = vld [vmem:[%s4670 + $0x94] sm:$0xf]
  %v5461 = vld [vmem:[%s4670 + $0x98] sm:$0x1]
  %v5462 = vld [vmem:[%s4670 + $0x9c] sm:$0xe]
  %v5463 = vld [vmem:[%s4670 + $0xa0] sm:$0xf]
  %v5464 = vld [vmem:[%s4670 + $0xa4] sm:$0x1]
  %v5465 = vld [vmem:[%s4670 + $0xa8] sm:$0xe]
  %v5466 = vld [vmem:[%s4670 + $0xac] sm:$0xf]
  %v5467 = vld [vmem:[%s4670 + $0xb0] sm:$0x1]
  %v5468 = vld [vmem:[%s4670 + $0xb4] sm:$0xe]
  %v5469 = vld [vmem:[%s4670 + $0xb8] sm:$0xf]
  %v5470 = vld [vmem:[%s4670 + $0xbc] sm:$0x1]
  %v5519 = vrot.slane %v5423, 5
  %v5520 = vrot.slane %v5519, 4
  %v5521 = vrot.slane %v5424, 5
  %v5522 = vsel %vm743, %v5520, %v5521
  %v5523 = vrot.slane %v5521, 4
  %v5524 = vrot.slane %v5425, 5
  %v5525 = vsel %vm743, %v5523, %v5524
  %v5526 = vrot.slane %v5426, 5
  %v5527 = vrot.slane %v5526, 4
  %v5528 = vrot.slane %v5427, 5
  %v5529 = vsel %vm743, %v5527, %v5528
  %v5530 = vrot.slane %v5528, 4
  %v5531 = vrot.slane %v5428, 5
  %v5532 = vsel %vm743, %v5530, %v5531
  %v5533 = vrot.slane %v5429, 5
  %v5534 = vrot.slane %v5533, 4
  %v5535 = vrot.slane %v5430, 5
  %v5536 = vsel %vm743, %v5534, %v5535
  %v5537 = vrot.slane %v5535, 4
  %v5538 = vrot.slane %v5431, 5
  %v5539 = vsel %vm743, %v5537, %v5538
  %v5540 = vrot.slane %v5432, 5
  %v5541 = vrot.slane %v5540, 4
  %v5542 = vrot.slane %v5433, 5
  %v5543 = vsel %vm743, %v5541, %v5542
  %v5544 = vrot.slane %v5542, 4
  %v5545 = vrot.slane %v5434, 5
  %v5546 = vsel %vm743, %v5544, %v5545
  %v5547 = vrot.slane %v5435, 5
  %v5548 = vrot.slane %v5547, 4
  %v5549 = vrot.slane %v5436, 5
  %v5550 = vsel %vm743, %v5548, %v5549
  %v5551 = vrot.slane %v5549, 4
  %v5552 = vrot.slane %v5437, 5
  %v5553 = vsel %vm743, %v5551, %v5552
  %v5554 = vrot.slane %v5438, 5
  %v5555 = vrot.slane %v5554, 4
  %v5556 = vrot.slane %v5439, 5
  %v5557 = vsel %vm743, %v5555, %v5556
  %v5558 = vrot.slane %v5556, 4
  %v5559 = vrot.slane %v5440, 5
  %v5560 = vsel %vm743, %v5558, %v5559
  %v5561 = vrot.slane %v5441, 5
  %v5562 = vrot.slane %v5561, 4
  %v5563 = vrot.slane %v5442, 5
  %v5564 = vsel %vm743, %v5562, %v5563
  %v5565 = vrot.slane %v5563, 4
  %v5566 = vrot.slane %v5443, 5
  %v5567 = vsel %vm743, %v5565, %v5566
  %v5568 = vrot.slane %v5444, 5
  %v5569 = vrot.slane %v5568, 4
  %v5570 = vrot.slane %v5445, 5
  %v5571 = vsel %vm743, %v5569, %v5570
  %v5572 = vrot.slane %v5570, 4
  %v5573 = vrot.slane %v5446, 5
  %v5574 = vsel %vm743, %v5572, %v5573
  %v5575 = vrot.slane %v5447, 5
  %v5576 = vrot.slane %v5575, 4
  %v5577 = vrot.slane %v5448, 5
  %v5578 = vsel %vm743, %v5576, %v5577
  %v5579 = vrot.slane %v5577, 4
  %v5580 = vrot.slane %v5449, 5
  %v5581 = vsel %vm743, %v5579, %v5580
  %v5582 = vrot.slane %v5450, 5
  %v5583 = vrot.slane %v5582, 4
  %v5584 = vrot.slane %v5451, 5
  %v5585 = vsel %vm743, %v5583, %v5584
  %v5586 = vrot.slane %v5584, 4
  %v5587 = vrot.slane %v5452, 5
  %v5588 = vsel %vm743, %v5586, %v5587
  %v5589 = vrot.slane %v5453, 5
  %v5590 = vrot.slane %v5589, 4
  %v5591 = vrot.slane %v5454, 5
  %v5592 = vsel %vm743, %v5590, %v5591
  %v5593 = vrot.slane %v5591, 4
  %v5594 = vrot.slane %v5455, 5
  %v5595 = vsel %vm743, %v5593, %v5594
  %v5596 = vrot.slane %v5456, 5
  %v5597 = vrot.slane %v5596, 4
  %v5598 = vrot.slane %v5457, 5
  %v5599 = vsel %vm743, %v5597, %v5598
  %v5600 = vrot.slane %v5598, 4
  %v5601 = vrot.slane %v5458, 5
  %v5602 = vsel %vm743, %v5600, %v5601
  %v5603 = vrot.slane %v5459, 5
  %v5604 = vrot.slane %v5603, 4
  %v5605 = vrot.slane %v5460, 5
  %v5606 = vsel %vm743, %v5604, %v5605
  %v5607 = vrot.slane %v5605, 4
  %v5608 = vrot.slane %v5461, 5
  %v5609 = vsel %vm743, %v5607, %v5608
  %v5610 = vrot.slane %v5462, 5
  %v5611 = vrot.slane %v5610, 4
  %v5612 = vrot.slane %v5463, 5
  %v5613 = vsel %vm743, %v5611, %v5612
  %v5614 = vrot.slane %v5612, 4
  %v5615 = vrot.slane %v5464, 5
  %v5616 = vsel %vm743, %v5614, %v5615
  %v5617 = vrot.slane %v5465, 5
  %v5618 = vrot.slane %v5617, 4
  %v5619 = vrot.slane %v5466, 5
  %v5620 = vsel %vm743, %v5618, %v5619
  %v5621 = vrot.slane %v5619, 4
  %v5622 = vrot.slane %v5467, 5
  %v5623 = vsel %vm743, %v5621, %v5622
  %v5624 = vrot.slane %v5468, 5
  %v5625 = vrot.slane %v5624, 4
  %v5626 = vrot.slane %v5469, 5
  %v5627 = vsel %vm743, %v5625, %v5626
  %v5628 = vrot.slane %v5626, 4
  %v5629 = vrot.slane %v5470, 5
  %v5630 = vsel %vm743, %v5628, %v5629
  %5631 = vrot.lane.b32.xlu0 %v5522, 20
  %v5632 = vpop.permute.xlu0 %5631
  %5633 = vrot.lane.b32.xlu0 %v5525, 20
  %v5634 = vpop.permute.xlu0 %5633
  %5635 = vrot.lane.b32.xlu0 %v5529, 20
  %v5636 = vpop.permute.xlu0 %5635
  %5637 = vrot.lane.b32.xlu0 %v5532, 20
  %v5638 = vpop.permute.xlu0 %5637
  %5639 = vrot.lane.b32.xlu0 %v5536, 20
  %v5640 = vpop.permute.xlu0 %5639
  %5641 = vrot.lane.b32.xlu0 %v5539, 20
  %v5642 = vpop.permute.xlu0 %5641
  %5643 = vrot.lane.b32.xlu0 %v5543, 20
  %v5644 = vpop.permute.xlu0 %5643
  %5645 = vrot.lane.b32.xlu0 %v5546, 20
  %v5646 = vpop.permute.xlu0 %5645
  %5647 = vrot.lane.b32.xlu0 %v5550, 20
  %v5648 = vpop.permute.xlu0 %5647
  %5649 = vrot.lane.b32.xlu0 %v5553, 20
  %v5650 = vpop.permute.xlu0 %5649
  %5651 = vrot.lane.b32.xlu0 %v5557, 20
  %v5652 = vpop.permute.xlu0 %5651
  %5653 = vrot.lane.b32.xlu0 %v5560, 20
  %v5654 = vpop.permute.xlu0 %5653
  %5655 = vrot.lane.b32.xlu0 %v5564, 20
  %v5656 = vpop.permute.xlu0 %5655
  %5657 = vrot.lane.b32.xlu0 %v5567, 20
  %v5658 = vpop.permute.xlu0 %5657
  %5659 = vrot.lane.b32.xlu0 %v5571, 20
  %v5660 = vpop.permute.xlu0 %5659
  %5661 = vrot.lane.b32.xlu0 %v5574, 20
  %v5662 = vpop.permute.xlu0 %5661
  %5663 = vrot.lane.b32.xlu0 %v5578, 20
  %v5664 = vpop.permute.xlu0 %5663
  %5665 = vrot.lane.b32.xlu0 %v5581, 20
  %v5666 = vpop.permute.xlu0 %5665
  %5667 = vrot.lane.b32.xlu0 %v5585, 20
  %v5668 = vpop.permute.xlu0 %5667
  %5669 = vrot.lane.b32.xlu0 %v5588, 20
  %v5670 = vpop.permute.xlu0 %5669
  %5671 = vrot.lane.b32.xlu0 %v5592, 20
  %v5672 = vpop.permute.xlu0 %5671
  %5673 = vrot.lane.b32.xlu0 %v5595, 20
  %v5674 = vpop.permute.xlu0 %5673
  %5675 = vrot.lane.b32.xlu0 %v5599, 20
  %v5676 = vpop.permute.xlu0 %5675
  %5677 = vrot.lane.b32.xlu0 %v5602, 20
  %v5678 = vpop.permute.xlu0 %5677
  %5679 = vrot.lane.b32.xlu0 %v5606, 20
  %v5680 = vpop.permute.xlu0 %5679
  %5681 = vrot.lane.b32.xlu0 %v5609, 20
  %v5682 = vpop.permute.xlu0 %5681
  %5683 = vrot.lane.b32.xlu0 %v5613, 20
  %v5684 = vpop.permute.xlu0 %5683
  %5685 = vrot.lane.b32.xlu0 %v5616, 20
  %v5686 = vpop.permute.xlu0 %5685
  %5687 = vrot.lane.b32.xlu0 %v5620, 20
  %v5688 = vpop.permute.xlu0 %5687
  %5689 = vrot.lane.b32.xlu0 %v5623, 20
  %v5690 = vpop.permute.xlu0 %5689
  %5691 = vrot.lane.b32.xlu0 %v5627, 20
  %v5692 = vpop.permute.xlu0 %5691
  %5693 = vrot.lane.b32.xlu0 %v5630, 20
  %v5694 = vpop.permute.xlu0 %5693
  %5727 = vst.msk [vmem:[#allocation2] sm:$0xf] %vm2047, %v5632
  %5728 = vst.msk [vmem:[#allocation2 + $0x4] sm:$0xf] %vm2047, %v5634
  %5729 = vst.msk [vmem:[#allocation2 + $0x8] sm:$0xf] %vm2047, %v5636
  %5730 = vst.msk [vmem:[#allocation2 + $0xc] sm:$0xf] %vm2047, %v5638
  %5731 = vst.msk [vmem:[#allocation2 + $0x10] sm:$0xf] %vm2047, %v5640
  %5732 = vst.msk [vmem:[#allocation2 + $0x14] sm:$0xf] %vm2047, %v5642
  %5733 = vst.msk [vmem:[#allocation2 + $0x18] sm:$0xf] %vm2047, %v5644
  %5734 = vst.msk [vmem:[#allocation2 + $0x1c] sm:$0xf] %vm2047, %v5646
  %5735 = vst.msk [vmem:[#allocation2 + $0x20] sm:$0xf] %vm2047, %v5648
  %5736 = vst.msk [vmem:[#allocation2 + $0x24] sm:$0xf] %vm2047, %v5650
  %5737 = vst.msk [vmem:[#allocation2 + $0x28] sm:$0xf] %vm2047, %v5652
  %5738 = vst.msk [vmem:[#allocation2 + $0x2c] sm:$0xf] %vm2047, %v5654
  %5739 = vst.msk [vmem:[#allocation2 + $0x30] sm:$0xf] %vm2047, %v5656
  %5740 = vst.msk [vmem:[#allocation2 + $0x34] sm:$0xf] %vm2047, %v5658
  %5741 = vst.msk [vmem:[#allocation2 + $0x38] sm:$0xf] %vm2047, %v5660
  %5742 = vst.msk [vmem:[#allocation2 + $0x3c] sm:$0xf] %vm2047, %v5662
  %5743 = vst.msk [vmem:[#allocation2 + $0x40] sm:$0xf] %vm2047, %v5664
  %5744 = vst.msk [vmem:[#allocation2 + $0x44] sm:$0xf] %vm2047, %v5666
  %5745 = vst.msk [vmem:[#allocation2 + $0x48] sm:$0xf] %vm2047, %v5668
  %5746 = vst.msk [vmem:[#allocation2 + $0x4c] sm:$0xf] %vm2047, %v5670
  %5747 = vst.msk [vmem:[#allocation2 + $0x50] sm:$0xf] %vm2047, %v5672
  %5748 = vst.msk [vmem:[#allocation2 + $0x54] sm:$0xf] %vm2047, %v5674
  %5749 = vst.msk [vmem:[#allocation2 + $0x58] sm:$0xf] %vm2047, %v5676
  %5750 = vst.msk [vmem:[#allocation2 + $0x5c] sm:$0xf] %vm2047, %v5678
  %5751 = vst.msk [vmem:[#allocation2 + $0x60] sm:$0xf] %vm2047, %v5680
  %5752 = vst.msk [vmem:[#allocation2 + $0x64] sm:$0xf] %vm2047, %v5682
  %5753 = vst.msk [vmem:[#allocation2 + $0x68] sm:$0xf] %vm2047, %v5684
  %5754 = vst.msk [vmem:[#allocation2 + $0x6c] sm:$0xf] %vm2047, %v5686
  %5755 = vst.msk [vmem:[#allocation2 + $0x70] sm:$0xf] %vm2047, %v5688
  %5756 = vst.msk [vmem:[#allocation2 + $0x74] sm:$0xf] %vm2047, %v5690
  %5757 = vst.msk [vmem:[#allocation2 + $0x78] sm:$0xf] %vm2047, %v5692
  %5758 = vst.msk [vmem:[#allocation2 + $0x7c] sm:$0xf] %vm2047, %v5694
  %s5759 = sadd.s32 %s2081, 54
  %s5760 = smul.addr %s5759, 4
  %s5761 = scalar_lea.vmem %s0, %s5760
  %v5762 = vld [vmem:[%s5761] sm:$0xf]
  %v5763 = vld [vmem:[%s5761 + $0x4] sm:$0xf]
  %v5764 = vld [vmem:[%s5761 + $0xc] sm:$0xf]
  %v5765 = vld [vmem:[%s5761 + $0x10] sm:$0xf]
  %v5766 = vld [vmem:[%s5761 + $0x18] sm:$0xf]
  %v5767 = vld [vmem:[%s5761 + $0x1c] sm:$0xf]
  %v5768 = vld [vmem:[%s5761 + $0x24] sm:$0xf]
  %v5769 = vld [vmem:[%s5761 + $0x28] sm:$0xf]
  %v5770 = vld [vmem:[%s5761 + $0x30] sm:$0xf]
  %v5771 = vld [vmem:[%s5761 + $0x34] sm:$0xf]
  %v5772 = vld [vmem:[%s5761 + $0x3c] sm:$0xf]
  %v5773 = vld [vmem:[%s5761 + $0x40] sm:$0xf]
  %v5774 = vld [vmem:[%s5761 + $0x48] sm:$0xf]
  %v5775 = vld [vmem:[%s5761 + $0x4c] sm:$0xf]
  %v5776 = vld [vmem:[%s5761 + $0x54] sm:$0xf]
  %v5777 = vld [vmem:[%s5761 + $0x58] sm:$0xf]
  %v5778 = vld [vmem:[%s5761 + $0x60] sm:$0xf]
  %v5779 = vld [vmem:[%s5761 + $0x64] sm:$0xf]
  %v5780 = vld [vmem:[%s5761 + $0x6c] sm:$0xf]
  %v5781 = vld [vmem:[%s5761 + $0x70] sm:$0xf]
  %v5782 = vld [vmem:[%s5761 + $0x78] sm:$0xf]
  %v5783 = vld [vmem:[%s5761 + $0x7c] sm:$0xf]
  %v5784 = vld [vmem:[%s5761 + $0x84] sm:$0xf]
  %v5785 = vld [vmem:[%s5761 + $0x88] sm:$0xf]
  %v5786 = vld [vmem:[%s5761 + $0x90] sm:$0xf]
  %v5787 = vld [vmem:[%s5761 + $0x94] sm:$0xf]
  %v5788 = vld [vmem:[%s5761 + $0x9c] sm:$0xf]
  %v5789 = vld [vmem:[%s5761 + $0xa0] sm:$0xf]
  %v5790 = vld [vmem:[%s5761 + $0xa8] sm:$0xf]
  %v5791 = vld [vmem:[%s5761 + $0xac] sm:$0xf]
  %v5792 = vld [vmem:[%s5761 + $0xb4] sm:$0xf]
  %v5793 = vld [vmem:[%s5761 + $0xb8] sm:$0xf]
  %5826 = vrot.lane.b32.xlu0 %v5762, 24
  %v5827 = vpop.permute.xlu0 %5826
  %5828 = vrot.lane.b32.xlu0 %v5763, 24
  %v5829 = vpop.permute.xlu0 %5828
  %5830 = vrot.lane.b32.xlu0 %v5764, 24
  %v5831 = vpop.permute.xlu0 %5830
  %5832 = vrot.lane.b32.xlu0 %v5765, 24
  %v5833 = vpop.permute.xlu0 %5832
  %5834 = vrot.lane.b32.xlu0 %v5766, 24
  %v5835 = vpop.permute.xlu0 %5834
  %5836 = vrot.lane.b32.xlu0 %v5767, 24
  %v5837 = vpop.permute.xlu0 %5836
  %5838 = vrot.lane.b32.xlu0 %v5768, 24
  %v5839 = vpop.permute.xlu0 %5838
  %5840 = vrot.lane.b32.xlu0 %v5769, 24
  %v5841 = vpop.permute.xlu0 %5840
  %5842 = vrot.lane.b32.xlu0 %v5770, 24
  %v5843 = vpop.permute.xlu0 %5842
  %5844 = vrot.lane.b32.xlu0 %v5771, 24
  %v5845 = vpop.permute.xlu0 %5844
  %5846 = vrot.lane.b32.xlu0 %v5772, 24
  %v5847 = vpop.permute.xlu0 %5846
  %5848 = vrot.lane.b32.xlu0 %v5773, 24
  %v5849 = vpop.permute.xlu0 %5848
  %5850 = vrot.lane.b32.xlu0 %v5774, 24
  %v5851 = vpop.permute.xlu0 %5850
  %5852 = vrot.lane.b32.xlu0 %v5775, 24
  %v5853 = vpop.permute.xlu0 %5852
  %5854 = vrot.lane.b32.xlu0 %v5776, 24
  %v5855 = vpop.permute.xlu0 %5854
  %5856 = vrot.lane.b32.xlu0 %v5777, 24
  %v5857 = vpop.permute.xlu0 %5856
  %5858 = vrot.lane.b32.xlu0 %v5778, 24
  %v5859 = vpop.permute.xlu0 %5858
  %5860 = vrot.lane.b32.xlu0 %v5779, 24
  %v5861 = vpop.permute.xlu0 %5860
  %5862 = vrot.lane.b32.xlu0 %v5780, 24
  %v5863 = vpop.permute.xlu0 %5862
  %5864 = vrot.lane.b32.xlu0 %v5781, 24
  %v5865 = vpop.permute.xlu0 %5864
  %5866 = vrot.lane.b32.xlu0 %v5782, 24
  %v5867 = vpop.permute.xlu0 %5866
  %5868 = vrot.lane.b32.xlu0 %v5783, 24
  %v5869 = vpop.permute.xlu0 %5868
  %5870 = vrot.lane.b32.xlu0 %v5784, 24
  %v5871 = vpop.permute.xlu0 %5870
  %5872 = vrot.lane.b32.xlu0 %v5785, 24
  %v5873 = vpop.permute.xlu0 %5872
  %5874 = vrot.lane.b32.xlu0 %v5786, 24
  %v5875 = vpop.permute.xlu0 %5874
  %5876 = vrot.lane.b32.xlu0 %v5787, 24
  %v5877 = vpop.permute.xlu0 %5876
  %5878 = vrot.lane.b32.xlu0 %v5788, 24
  %v5879 = vpop.permute.xlu0 %5878
  %5880 = vrot.lane.b32.xlu0 %v5789, 24
  %v5881 = vpop.permute.xlu0 %5880
  %5882 = vrot.lane.b32.xlu0 %v5790, 24
  %v5883 = vpop.permute.xlu0 %5882
  %5884 = vrot.lane.b32.xlu0 %v5791, 24
  %v5885 = vpop.permute.xlu0 %5884
  %5886 = vrot.lane.b32.xlu0 %v5792, 24
  %v5887 = vpop.permute.xlu0 %5886
  %5888 = vrot.lane.b32.xlu0 %v5793, 24
  %v5889 = vpop.permute.xlu0 %5888
  %5922 = vst.msk [vmem:[#allocation2] sm:$0xf] %vm2244, %v5827
  %5923 = vst.msk [vmem:[#allocation2 + $0x4] sm:$0xf] %vm2244, %v5829
  %5924 = vst.msk [vmem:[#allocation2 + $0x8] sm:$0xf] %vm2244, %v5831
  %5925 = vst.msk [vmem:[#allocation2 + $0xc] sm:$0xf] %vm2244, %v5833
  %5926 = vst.msk [vmem:[#allocation2 + $0x10] sm:$0xf] %vm2244, %v5835
  %5927 = vst.msk [vmem:[#allocation2 + $0x14] sm:$0xf] %vm2244, %v5837
  %5928 = vst.msk [vmem:[#allocation2 + $0x18] sm:$0xf] %vm2244, %v5839
  %5929 = vst.msk [vmem:[#allocation2 + $0x1c] sm:$0xf] %vm2244, %v5841
  %5930 = vst.msk [vmem:[#allocation2 + $0x20] sm:$0xf] %vm2244, %v5843
  %5931 = vst.msk [vmem:[#allocation2 + $0x24] sm:$0xf] %vm2244, %v5845
  %5932 = vst.msk [vmem:[#allocation2 + $0x28] sm:$0xf] %vm2244, %v5847
  %5933 = vst.msk [vmem:[#allocation2 + $0x2c] sm:$0xf] %vm2244, %v5849
  %5934 = vst.msk [vmem:[#allocation2 + $0x30] sm:$0xf] %vm2244, %v5851
  %5935 = vst.msk [vmem:[#allocation2 + $0x34] sm:$0xf] %vm2244, %v5853
  %5936 = vst.msk [vmem:[#allocation2 + $0x38] sm:$0xf] %vm2244, %v5855
  %5937 = vst.msk [vmem:[#allocation2 + $0x3c] sm:$0xf] %vm2244, %v5857
  %5938 = vst.msk [vmem:[#allocation2 + $0x40] sm:$0xf] %vm2244, %v5859
  %5939 = vst.msk [vmem:[#allocation2 + $0x44] sm:$0xf] %vm2244, %v5861
  %5940 = vst.msk [vmem:[#allocation2 + $0x48] sm:$0xf] %vm2244, %v5863
  %5941 = vst.msk [vmem:[#allocation2 + $0x4c] sm:$0xf] %vm2244, %v5865
  %5942 = vst.msk [vmem:[#allocation2 + $0x50] sm:$0xf] %vm2244, %v5867
  %5943 = vst.msk [vmem:[#allocation2 + $0x54] sm:$0xf] %vm2244, %v5869
  %5944 = vst.msk [vmem:[#allocation2 + $0x58] sm:$0xf] %vm2244, %v5871
  %5945 = vst.msk [vmem:[#allocation2 + $0x5c] sm:$0xf] %vm2244, %v5873
  %5946 = vst.msk [vmem:[#allocation2 + $0x60] sm:$0xf] %vm2244, %v5875
  %5947 = vst.msk [vmem:[#allocation2 + $0x64] sm:$0xf] %vm2244, %v5877
  %5948 = vst.msk [vmem:[#allocation2 + $0x68] sm:$0xf] %vm2244, %v5879
  %5949 = vst.msk [vmem:[#allocation2 + $0x6c] sm:$0xf] %vm2244, %v5881
  %5950 = vst.msk [vmem:[#allocation2 + $0x70] sm:$0xf] %vm2244, %v5883
  %5951 = vst.msk [vmem:[#allocation2 + $0x74] sm:$0xf] %vm2244, %v5885
  %5952 = vst.msk [vmem:[#allocation2 + $0x78] sm:$0xf] %vm2244, %v5887
  %5953 = vst.msk [vmem:[#allocation2 + $0x7c] sm:$0xf] %vm2244, %v5889
  %v5954 = vld [vmem:[%s5761] sm:$0xf]
  %v5955 = vld [vmem:[%s5761 + $0x4] sm:$0xf]
  %v5956 = vld [vmem:[%s5761 + $0x8] sm:$0x1]
  %v5957 = vld [vmem:[%s5761 + $0xc] sm:$0xf]
  %v5958 = vld [vmem:[%s5761 + $0x10] sm:$0xf]
  %v5959 = vld [vmem:[%s5761 + $0x14] sm:$0x1]
  %v5960 = vld [vmem:[%s5761 + $0x18] sm:$0xf]
  %v5961 = vld [vmem:[%s5761 + $0x1c] sm:$0xf]
  %v5962 = vld [vmem:[%s5761 + $0x20] sm:$0x1]
  %v5963 = vld [vmem:[%s5761 + $0x24] sm:$0xf]
  %v5964 = vld [vmem:[%s5761 + $0x28] sm:$0xf]
  %v5965 = vld [vmem:[%s5761 + $0x2c] sm:$0x1]
  %v5966 = vld [vmem:[%s5761 + $0x30] sm:$0xf]
  %v5967 = vld [vmem:[%s5761 + $0x34] sm:$0xf]
  %v5968 = vld [vmem:[%s5761 + $0x38] sm:$0x1]
  %v5969 = vld [vmem:[%s5761 + $0x3c] sm:$0xf]
  %v5970 = vld [vmem:[%s5761 + $0x40] sm:$0xf]
  %v5971 = vld [vmem:[%s5761 + $0x44] sm:$0x1]
  %v5972 = vld [vmem:[%s5761 + $0x48] sm:$0xf]
  %v5973 = vld [vmem:[%s5761 + $0x4c] sm:$0xf]
  %v5974 = vld [vmem:[%s5761 + $0x50] sm:$0x1]
  %v5975 = vld [vmem:[%s5761 + $0x54] sm:$0xf]
  %v5976 = vld [vmem:[%s5761 + $0x58] sm:$0xf]
  %v5977 = vld [vmem:[%s5761 + $0x5c] sm:$0x1]
  %v5978 = vld [vmem:[%s5761 + $0x60] sm:$0xf]
  %v5979 = vld [vmem:[%s5761 + $0x64] sm:$0xf]
  %v5980 = vld [vmem:[%s5761 + $0x68] sm:$0x1]
  %v5981 = vld [vmem:[%s5761 + $0x6c] sm:$0xf]
  %v5982 = vld [vmem:[%s5761 + $0x70] sm:$0xf]
  %v5983 = vld [vmem:[%s5761 + $0x74] sm:$0x1]
  %v5984 = vld [vmem:[%s5761 + $0x78] sm:$0xf]
  %v5985 = vld [vmem:[%s5761 + $0x7c] sm:$0xf]
  %v5986 = vld [vmem:[%s5761 + $0x80] sm:$0x1]
  %v5987 = vld [vmem:[%s5761 + $0x84] sm:$0xf]
  %v5988 = vld [vmem:[%s5761 + $0x88] sm:$0xf]
  %v5989 = vld [vmem:[%s5761 + $0x8c] sm:$0x1]
  %v5990 = vld [vmem:[%s5761 + $0x90] sm:$0xf]
  %v5991 = vld [vmem:[%s5761 + $0x94] sm:$0xf]
  %v5992 = vld [vmem:[%s5761 + $0x98] sm:$0x1]
  %v5993 = vld [vmem:[%s5761 + $0x9c] sm:$0xf]
  %v5994 = vld [vmem:[%s5761 + $0xa0] sm:$0xf]
  %v5995 = vld [vmem:[%s5761 + $0xa4] sm:$0x1]
  %v5996 = vld [vmem:[%s5761 + $0xa8] sm:$0xf]
  %v5997 = vld [vmem:[%s5761 + $0xac] sm:$0xf]
  %v5998 = vld [vmem:[%s5761 + $0xb0] sm:$0x1]
  %v5999 = vld [vmem:[%s5761 + $0xb4] sm:$0xf]
  %v6000 = vld [vmem:[%s5761 + $0xb8] sm:$0xf]
  %v6001 = vld [vmem:[%s5761 + $0xbc] sm:$0x1]
  %v6003 = vshrl.u32 %v5954, 16
  %v6005 = vrot.slane %v6003, 4
  %v6006 = vshll.u32 %v5954, 16
  %v6008 = vrot.slane %v6006, 5
  %v6009 = vor.u32 %v6005, %v6008
  %v6010 = vrot.slane %v6009, 4
  %v6012 = vshll.u32 %v5955, 16
  %v6014 = vrot.slane %v6012, 5
  %v6015 = vsel %vm131, %v6010, %v6014
  %v6016 = vshrl.u32 %v5955, 16
  %v6018 = vrot.slane %v6016, 4
  %v6019 = vor.u32 %v6018, %v6014
  %v6020 = vrot.slane %v6019, 4
  %v6022 = vshll.u32 %v5956, 16
  %v6024 = vrot.slane %v6022, 5
  %v6025 = vsel %vm131, %v6020, %v6024
  %v6027 = vshrl.u32 %v5957, 16
  %v6029 = vrot.slane %v6027, 4
  %v6030 = vshll.u32 %v5957, 16
  %v6032 = vrot.slane %v6030, 5
  %v6033 = vor.u32 %v6029, %v6032
  %v6034 = vrot.slane %v6033, 4
  %v6036 = vshll.u32 %v5958, 16
  %v6038 = vrot.slane %v6036, 5
  %v6039 = vsel %vm131, %v6034, %v6038
  %v6040 = vshrl.u32 %v5958, 16
  %v6042 = vrot.slane %v6040, 4
  %v6043 = vor.u32 %v6042, %v6038
  %v6044 = vrot.slane %v6043, 4
  %v6046 = vshll.u32 %v5959, 16
  %v6048 = vrot.slane %v6046, 5
  %v6049 = vsel %vm131, %v6044, %v6048
  %v6051 = vshrl.u32 %v5960, 16
  %v6053 = vrot.slane %v6051, 4
  %v6054 = vshll.u32 %v5960, 16
  %v6056 = vrot.slane %v6054, 5
  %v6057 = vor.u32 %v6053, %v6056
  %v6058 = vrot.slane %v6057, 4
  %v6060 = vshll.u32 %v5961, 16
  %v6062 = vrot.slane %v6060, 5
  %v6063 = vsel %vm131, %v6058, %v6062
  %v6064 = vshrl.u32 %v5961, 16
  %v6066 = vrot.slane %v6064, 4
  %v6067 = vor.u32 %v6066, %v6062
  %v6068 = vrot.slane %v6067, 4
  %v6070 = vshll.u32 %v5962, 16
  %v6072 = vrot.slane %v6070, 5
  %v6073 = vsel %vm131, %v6068, %v6072
  %v6075 = vshrl.u32 %v5963, 16
  %v6077 = vrot.slane %v6075, 4
  %v6078 = vshll.u32 %v5963, 16
  %v6080 = vrot.slane %v6078, 5
  %v6081 = vor.u32 %v6077, %v6080
  %v6082 = vrot.slane %v6081, 4
  %v6084 = vshll.u32 %v5964, 16
  %v6086 = vrot.slane %v6084, 5
  %v6087 = vsel %vm131, %v6082, %v6086
  %v6088 = vshrl.u32 %v5964, 16
  %v6090 = vrot.slane %v6088, 4
  %v6091 = vor.u32 %v6090, %v6086
  %v6092 = vrot.slane %v6091, 4
  %v6094 = vshll.u32 %v5965, 16
  %v6096 = vrot.slane %v6094, 5
  %v6097 = vsel %vm131, %v6092, %v6096
  %v6099 = vshrl.u32 %v5966, 16
  %v6101 = vrot.slane %v6099, 4
  %v6102 = vshll.u32 %v5966, 16
  %v6104 = vrot.slane %v6102, 5
  %v6105 = vor.u32 %v6101, %v6104
  %v6106 = vrot.slane %v6105, 4
  %v6108 = vshll.u32 %v5967, 16
  %v6110 = vrot.slane %v6108, 5
  %v6111 = vsel %vm131, %v6106, %v6110
  %v6112 = vshrl.u32 %v5967, 16
  %v6114 = vrot.slane %v6112, 4
  %v6115 = vor.u32 %v6114, %v6110
  %v6116 = vrot.slane %v6115, 4
  %v6118 = vshll.u32 %v5968, 16
  %v6120 = vrot.slane %v6118, 5
  %v6121 = vsel %vm131, %v6116, %v6120
  %v6123 = vshrl.u32 %v5969, 16
  %v6125 = vrot.slane %v6123, 4
  %v6126 = vshll.u32 %v5969, 16
  %v6128 = vrot.slane %v6126, 5
  %v6129 = vor.u32 %v6125, %v6128
  %v6130 = vrot.slane %v6129, 4
  %v6132 = vshll.u32 %v5970, 16
  %v6134 = vrot.slane %v6132, 5
  %v6135 = vsel %vm131, %v6130, %v6134
  %v6136 = vshrl.u32 %v5970, 16
  %v6138 = vrot.slane %v6136, 4
  %v6139 = vor.u32 %v6138, %v6134
  %v6140 = vrot.slane %v6139, 4
  %v6142 = vshll.u32 %v5971, 16
  %v6144 = vrot.slane %v6142, 5
  %v6145 = vsel %vm131, %v6140, %v6144
  %v6147 = vshrl.u32 %v5972, 16
  %v6149 = vrot.slane %v6147, 4
  %v6150 = vshll.u32 %v5972, 16
  %v6152 = vrot.slane %v6150, 5
  %v6153 = vor.u32 %v6149, %v6152
  %v6154 = vrot.slane %v6153, 4
  %v6156 = vshll.u32 %v5973, 16
  %v6158 = vrot.slane %v6156, 5
  %v6159 = vsel %vm131, %v6154, %v6158
  %v6160 = vshrl.u32 %v5973, 16
  %v6162 = vrot.slane %v6160, 4
  %v6163 = vor.u32 %v6162, %v6158
  %v6164 = vrot.slane %v6163, 4
  %v6166 = vshll.u32 %v5974, 16
  %v6168 = vrot.slane %v6166, 5
  %v6169 = vsel %vm131, %v6164, %v6168
  %v6171 = vshrl.u32 %v5975, 16
  %v6173 = vrot.slane %v6171, 4
  %v6174 = vshll.u32 %v5975, 16
  %v6176 = vrot.slane %v6174, 5
  %v6177 = vor.u32 %v6173, %v6176
  %v6178 = vrot.slane %v6177, 4
  %v6180 = vshll.u32 %v5976, 16
  %v6182 = vrot.slane %v6180, 5
  %v6183 = vsel %vm131, %v6178, %v6182
  %v6184 = vshrl.u32 %v5976, 16
  %v6186 = vrot.slane %v6184, 4
  %v6187 = vor.u32 %v6186, %v6182
  %v6188 = vrot.slane %v6187, 4
  %v6190 = vshll.u32 %v5977, 16
  %v6192 = vrot.slane %v6190, 5
  %v6193 = vsel %vm131, %v6188, %v6192
  %v6195 = vshrl.u32 %v5978, 16
  %v6197 = vrot.slane %v6195, 4
  %v6198 = vshll.u32 %v5978, 16
  %v6200 = vrot.slane %v6198, 5
  %v6201 = vor.u32 %v6197, %v6200
  %v6202 = vrot.slane %v6201, 4
  %v6204 = vshll.u32 %v5979, 16
  %v6206 = vrot.slane %v6204, 5
  %v6207 = vsel %vm131, %v6202, %v6206
  %v6208 = vshrl.u32 %v5979, 16
  %v6210 = vrot.slane %v6208, 4
  %v6211 = vor.u32 %v6210, %v6206
  %v6212 = vrot.slane %v6211, 4
  %v6214 = vshll.u32 %v5980, 16
  %v6216 = vrot.slane %v6214, 5
  %v6217 = vsel %vm131, %v6212, %v6216
  %v6219 = vshrl.u32 %v5981, 16
  %v6221 = vrot.slane %v6219, 4
  %v6222 = vshll.u32 %v5981, 16
  %v6224 = vrot.slane %v6222, 5
  %v6225 = vor.u32 %v6221, %v6224
  %v6226 = vrot.slane %v6225, 4
  %v6228 = vshll.u32 %v5982, 16
  %v6230 = vrot.slane %v6228, 5
  %v6231 = vsel %vm131, %v6226, %v6230
  %v6232 = vshrl.u32 %v5982, 16
  %v6234 = vrot.slane %v6232, 4
  %v6235 = vor.u32 %v6234, %v6230
  %v6236 = vrot.slane %v6235, 4
  %v6238 = vshll.u32 %v5983, 16
  %v6240 = vrot.slane %v6238, 5
  %v6241 = vsel %vm131, %v6236, %v6240
  %v6243 = vshrl.u32 %v5984, 16
  %v6245 = vrot.slane %v6243, 4
  %v6246 = vshll.u32 %v5984, 16
  %v6248 = vrot.slane %v6246, 5
  %v6249 = vor.u32 %v6245, %v6248
  %v6250 = vrot.slane %v6249, 4
  %v6252 = vshll.u32 %v5985, 16
  %v6254 = vrot.slane %v6252, 5
  %v6255 = vsel %vm131, %v6250, %v6254
  %v6256 = vshrl.u32 %v5985, 16
  %v6258 = vrot.slane %v6256, 4
  %v6259 = vor.u32 %v6258, %v6254
  %v6260 = vrot.slane %v6259, 4
  %v6262 = vshll.u32 %v5986, 16
  %v6264 = vrot.slane %v6262, 5
  %v6265 = vsel %vm131, %v6260, %v6264
  %v6267 = vshrl.u32 %v5987, 16
  %v6269 = vrot.slane %v6267, 4
  %v6270 = vshll.u32 %v5987, 16
  %v6272 = vrot.slane %v6270, 5
  %v6273 = vor.u32 %v6269, %v6272
  %v6274 = vrot.slane %v6273, 4
  %v6276 = vshll.u32 %v5988, 16
  %v6278 = vrot.slane %v6276, 5
  %v6279 = vsel %vm131, %v6274, %v6278
  %v6280 = vshrl.u32 %v5988, 16
  %v6282 = vrot.slane %v6280, 4
  %v6283 = vor.u32 %v6282, %v6278
  %v6284 = vrot.slane %v6283, 4
  %v6286 = vshll.u32 %v5989, 16
  %v6288 = vrot.slane %v6286, 5
  %v6289 = vsel %vm131, %v6284, %v6288
  %v6291 = vshrl.u32 %v5990, 16
  %v6293 = vrot.slane %v6291, 4
  %v6294 = vshll.u32 %v5990, 16
  %v6296 = vrot.slane %v6294, 5
  %v6297 = vor.u32 %v6293, %v6296
  %v6298 = vrot.slane %v6297, 4
  %v6300 = vshll.u32 %v5991, 16
  %v6302 = vrot.slane %v6300, 5
  %v6303 = vsel %vm131, %v6298, %v6302
  %v6304 = vshrl.u32 %v5991, 16
  %v6306 = vrot.slane %v6304, 4
  %v6307 = vor.u32 %v6306, %v6302
  %v6308 = vrot.slane %v6307, 4
  %v6310 = vshll.u32 %v5992, 16
  %v6312 = vrot.slane %v6310, 5
  %v6313 = vsel %vm131, %v6308, %v6312
  %v6315 = vshrl.u32 %v5993, 16
  %v6317 = vrot.slane %v6315, 4
  %v6318 = vshll.u32 %v5993, 16
  %v6320 = vrot.slane %v6318, 5
  %v6321 = vor.u32 %v6317, %v6320
  %v6322 = vrot.slane %v6321, 4
  %v6324 = vshll.u32 %v5994, 16
  %v6326 = vrot.slane %v6324, 5
  %v6327 = vsel %vm131, %v6322, %v6326
  %v6328 = vshrl.u32 %v5994, 16
  %v6330 = vrot.slane %v6328, 4
  %v6331 = vor.u32 %v6330, %v6326
  %v6332 = vrot.slane %v6331, 4
  %v6334 = vshll.u32 %v5995, 16
  %v6336 = vrot.slane %v6334, 5
  %v6337 = vsel %vm131, %v6332, %v6336
  %v6339 = vshrl.u32 %v5996, 16
  %v6341 = vrot.slane %v6339, 4
  %v6342 = vshll.u32 %v5996, 16
  %v6344 = vrot.slane %v6342, 5
  %v6345 = vor.u32 %v6341, %v6344
  %v6346 = vrot.slane %v6345, 4
  %v6348 = vshll.u32 %v5997, 16
  %v6350 = vrot.slane %v6348, 5
  %v6351 = vsel %vm131, %v6346, %v6350
  %v6352 = vshrl.u32 %v5997, 16
  %v6354 = vrot.slane %v6352, 4
  %v6355 = vor.u32 %v6354, %v6350
  %v6356 = vrot.slane %v6355, 4
  %v6358 = vshll.u32 %v5998, 16
  %v6360 = vrot.slane %v6358, 5
  %v6361 = vsel %vm131, %v6356, %v6360
  %v6363 = vshrl.u32 %v5999, 16
  %v6365 = vrot.slane %v6363, 4
  %v6366 = vshll.u32 %v5999, 16
  %v6368 = vrot.slane %v6366, 5
  %v6369 = vor.u32 %v6365, %v6368
  %v6370 = vrot.slane %v6369, 4
  %v6372 = vshll.u32 %v6000, 16
  %v6374 = vrot.slane %v6372, 5
  %v6375 = vsel %vm131, %v6370, %v6374
  %v6376 = vshrl.u32 %v6000, 16
  %v6378 = vrot.slane %v6376, 4
  %v6379 = vor.u32 %v6378, %v6374
  %v6380 = vrot.slane %v6379, 4
  %v6382 = vshll.u32 %v6001, 16
  %v6384 = vrot.slane %v6382, 5
  %v6385 = vsel %vm131, %v6380, %v6384
  %6386 = vrot.lane.b32.xlu0 %v6015, 28
  %v6387 = vpop.permute.xlu0 %6386
  %6388 = vrot.lane.b32.xlu0 %v6025, 28
  %v6389 = vpop.permute.xlu0 %6388
  %6390 = vrot.lane.b32.xlu0 %v6039, 28
  %v6391 = vpop.permute.xlu0 %6390
  %6392 = vrot.lane.b32.xlu0 %v6049, 28
  %v6393 = vpop.permute.xlu0 %6392
  %6394 = vrot.lane.b32.xlu0 %v6063, 28
  %v6395 = vpop.permute.xlu0 %6394
  %6396 = vrot.lane.b32.xlu0 %v6073, 28
  %v6397 = vpop.permute.xlu0 %6396
  %6398 = vrot.lane.b32.xlu0 %v6087, 28
  %v6399 = vpop.permute.xlu0 %6398
  %6400 = vrot.lane.b32.xlu0 %v6097, 28
  %v6401 = vpop.permute.xlu0 %6400
  %6402 = vrot.lane.b32.xlu0 %v6111, 28
  %v6403 = vpop.permute.xlu0 %6402
  %6404 = vrot.lane.b32.xlu0 %v6121, 28
  %v6405 = vpop.permute.xlu0 %6404
  %6406 = vrot.lane.b32.xlu0 %v6135, 28
  %v6407 = vpop.permute.xlu0 %6406
  %6408 = vrot.lane.b32.xlu0 %v6145, 28
  %v6409 = vpop.permute.xlu0 %6408
  %6410 = vrot.lane.b32.xlu0 %v6159, 28
  %v6411 = vpop.permute.xlu0 %6410
  %6412 = vrot.lane.b32.xlu0 %v6169, 28
  %v6413 = vpop.permute.xlu0 %6412
  %6414 = vrot.lane.b32.xlu0 %v6183, 28
  %v6415 = vpop.permute.xlu0 %6414
  %6416 = vrot.lane.b32.xlu0 %v6193, 28
  %v6417 = vpop.permute.xlu0 %6416
  %6418 = vrot.lane.b32.xlu0 %v6207, 28
  %v6419 = vpop.permute.xlu0 %6418
  %6420 = vrot.lane.b32.xlu0 %v6217, 28
  %v6421 = vpop.permute.xlu0 %6420
  %6422 = vrot.lane.b32.xlu0 %v6231, 28
  %v6423 = vpop.permute.xlu0 %6422
  %6424 = vrot.lane.b32.xlu0 %v6241, 28
  %v6425 = vpop.permute.xlu0 %6424
  %6426 = vrot.lane.b32.xlu0 %v6255, 28
  %v6427 = vpop.permute.xlu0 %6426
  %6428 = vrot.lane.b32.xlu0 %v6265, 28
  %v6429 = vpop.permute.xlu0 %6428
  %6430 = vrot.lane.b32.xlu0 %v6279, 28
  %v6431 = vpop.permute.xlu0 %6430
  %6432 = vrot.lane.b32.xlu0 %v6289, 28
  %v6433 = vpop.permute.xlu0 %6432
  %6434 = vrot.lane.b32.xlu0 %v6303, 28
  %v6435 = vpop.permute.xlu0 %6434
  %6436 = vrot.lane.b32.xlu0 %v6313, 28
  %v6437 = vpop.permute.xlu0 %6436
  %6438 = vrot.lane.b32.xlu0 %v6327, 28
  %v6439 = vpop.permute.xlu0 %6438
  %6440 = vrot.lane.b32.xlu0 %v6337, 28
  %v6441 = vpop.permute.xlu0 %6440
  %6442 = vrot.lane.b32.xlu0 %v6351, 28
  %v6443 = vpop.permute.xlu0 %6442
  %6444 = vrot.lane.b32.xlu0 %v6361, 28
  %v6445 = vpop.permute.xlu0 %6444
  %6446 = vrot.lane.b32.xlu0 %v6375, 28
  %v6447 = vpop.permute.xlu0 %6446
  %6448 = vrot.lane.b32.xlu0 %v6385, 28
  %v6449 = vpop.permute.xlu0 %6448
  %6482 = vst.msk [vmem:[#allocation2] sm:$0xf] %vm2805, %v6387
  %6483 = vst.msk [vmem:[#allocation2 + $0x4] sm:$0xf] %vm2805, %v6389
  %6484 = vst.msk [vmem:[#allocation2 + $0x8] sm:$0xf] %vm2805, %v6391
  %6485 = vst.msk [vmem:[#allocation2 + $0xc] sm:$0xf] %vm2805, %v6393
  %6486 = vst.msk [vmem:[#allocation2 + $0x10] sm:$0xf] %vm2805, %v6395
  %6487 = vst.msk [vmem:[#allocation2 + $0x14] sm:$0xf] %vm2805, %v6397
  %6488 = vst.msk [vmem:[#allocation2 + $0x18] sm:$0xf] %vm2805, %v6399
  %6489 = vst.msk [vmem:[#allocation2 + $0x1c] sm:$0xf] %vm2805, %v6401
  %6490 = vst.msk [vmem:[#allocation2 + $0x20] sm:$0xf] %vm2805, %v6403
  %6491 = vst.msk [vmem:[#allocation2 + $0x24] sm:$0xf] %vm2805, %v6405
  %6492 = vst.msk [vmem:[#allocation2 + $0x28] sm:$0xf] %vm2805, %v6407
  %6493 = vst.msk [vmem:[#allocation2 + $0x2c] sm:$0xf] %vm2805, %v6409
  %6494 = vst.msk [vmem:[#allocation2 + $0x30] sm:$0xf] %vm2805, %v6411
  %6495 = vst.msk [vmem:[#allocation2 + $0x34] sm:$0xf] %vm2805, %v6413
  %6496 = vst.msk [vmem:[#allocation2 + $0x38] sm:$0xf] %vm2805, %v6415
  %6497 = vst.msk [vmem:[#allocation2 + $0x3c] sm:$0xf] %vm2805, %v6417
  %6498 = vst.msk [vmem:[#allocation2 + $0x40] sm:$0xf] %vm2805, %v6419
  %6499 = vst.msk [vmem:[#allocation2 + $0x44] sm:$0xf] %vm2805, %v6421
  %6500 = vst.msk [vmem:[#allocation2 + $0x48] sm:$0xf] %vm2805, %v6423
  %6501 = vst.msk [vmem:[#allocation2 + $0x4c] sm:$0xf] %vm2805, %v6425
  %6502 = vst.msk [vmem:[#allocation2 + $0x50] sm:$0xf] %vm2805, %v6427
  %6503 = vst.msk [vmem:[#allocation2 + $0x54] sm:$0xf] %vm2805, %v6429
  %6504 = vst.msk [vmem:[#allocation2 + $0x58] sm:$0xf] %vm2805, %v6431
  %6505 = vst.msk [vmem:[#allocation2 + $0x5c] sm:$0xf] %vm2805, %v6433
  %6506 = vst.msk [vmem:[#allocation2 + $0x60] sm:$0xf] %vm2805, %v6435
  %6507 = vst.msk [vmem:[#allocation2 + $0x64] sm:$0xf] %vm2805, %v6437
  %6508 = vst.msk [vmem:[#allocation2 + $0x68] sm:$0xf] %vm2805, %v6439
  %6509 = vst.msk [vmem:[#allocation2 + $0x6c] sm:$0xf] %vm2805, %v6441
  %6510 = vst.msk [vmem:[#allocation2 + $0x70] sm:$0xf] %vm2805, %v6443
  %6511 = vst.msk [vmem:[#allocation2 + $0x74] sm:$0xf] %vm2805, %v6445
  %6512 = vst.msk [vmem:[#allocation2 + $0x78] sm:$0xf] %vm2805, %v6447
  %6513 = vst.msk [vmem:[#allocation2 + $0x7c] sm:$0xf] %vm2805, %v6449
  %v6514 = vld [vmem:[%s5761] sm:$0xe]
  %v6515 = vld [vmem:[%s5761 + $0x4] sm:$0xf]
  %v6516 = vld [vmem:[%s5761 + $0x8] sm:$0x1]
  %v6517 = vld [vmem:[%s5761 + $0xc] sm:$0xe]
  %v6518 = vld [vmem:[%s5761 + $0x10] sm:$0xf]
  %v6519 = vld [vmem:[%s5761 + $0x14] sm:$0x1]
  %v6520 = vld [vmem:[%s5761 + $0x18] sm:$0xe]
  %v6521 = vld [vmem:[%s5761 + $0x1c] sm:$0xf]
  %v6522 = vld [vmem:[%s5761 + $0x20] sm:$0x1]
  %v6523 = vld [vmem:[%s5761 + $0x24] sm:$0xe]
  %v6524 = vld [vmem:[%s5761 + $0x28] sm:$0xf]
  %v6525 = vld [vmem:[%s5761 + $0x2c] sm:$0x1]
  %v6526 = vld [vmem:[%s5761 + $0x30] sm:$0xe]
  %v6527 = vld [vmem:[%s5761 + $0x34] sm:$0xf]
  %v6528 = vld [vmem:[%s5761 + $0x38] sm:$0x1]
  %v6529 = vld [vmem:[%s5761 + $0x3c] sm:$0xe]
  %v6530 = vld [vmem:[%s5761 + $0x40] sm:$0xf]
  %v6531 = vld [vmem:[%s5761 + $0x44] sm:$0x1]
  %v6532 = vld [vmem:[%s5761 + $0x48] sm:$0xe]
  %v6533 = vld [vmem:[%s5761 + $0x4c] sm:$0xf]
  %v6534 = vld [vmem:[%s5761 + $0x50] sm:$0x1]
  %v6535 = vld [vmem:[%s5761 + $0x54] sm:$0xe]
  %v6536 = vld [vmem:[%s5761 + $0x58] sm:$0xf]
  %v6537 = vld [vmem:[%s5761 + $0x5c] sm:$0x1]
  %v6538 = vld [vmem:[%s5761 + $0x60] sm:$0xe]
  %v6539 = vld [vmem:[%s5761 + $0x64] sm:$0xf]
  %v6540 = vld [vmem:[%s5761 + $0x68] sm:$0x1]
  %v6541 = vld [vmem:[%s5761 + $0x6c] sm:$0xe]
  %v6542 = vld [vmem:[%s5761 + $0x70] sm:$0xf]
  %v6543 = vld [vmem:[%s5761 + $0x74] sm:$0x1]
  %v6544 = vld [vmem:[%s5761 + $0x78] sm:$0xe]
  %v6545 = vld [vmem:[%s5761 + $0x7c] sm:$0xf]
  %v6546 = vld [vmem:[%s5761 + $0x80] sm:$0x1]
  %v6547 = vld [vmem:[%s5761 + $0x84] sm:$0xe]
  %v6548 = vld [vmem:[%s5761 + $0x88] sm:$0xf]
  %v6549 = vld [vmem:[%s5761 + $0x8c] sm:$0x1]
  %v6550 = vld [vmem:[%s5761 + $0x90] sm:$0xe]
  %v6551 = vld [vmem:[%s5761 + $0x94] sm:$0xf]
  %v6552 = vld [vmem:[%s5761 + $0x98] sm:$0x1]
  %v6553 = vld [vmem:[%s5761 + $0x9c] sm:$0xe]
  %v6554 = vld [vmem:[%s5761 + $0xa0] sm:$0xf]
  %v6555 = vld [vmem:[%s5761 + $0xa4] sm:$0x1]
  %v6556 = vld [vmem:[%s5761 + $0xa8] sm:$0xe]
  %v6557 = vld [vmem:[%s5761 + $0xac] sm:$0xf]
  %v6558 = vld [vmem:[%s5761 + $0xb0] sm:$0x1]
  %v6559 = vld [vmem:[%s5761 + $0xb4] sm:$0xe]
  %v6560 = vld [vmem:[%s5761 + $0xb8] sm:$0xf]
  %v6561 = vld [vmem:[%s5761 + $0xbc] sm:$0x1]
  %v6610 = vrot.slane %v6514, 5
  %v6611 = vrot.slane %v6610, 4
  %v6612 = vrot.slane %v6515, 5
  %v6613 = vsel %vm743, %v6611, %v6612
  %v6614 = vrot.slane %v6612, 4
  %v6615 = vrot.slane %v6516, 5
  %v6616 = vsel %vm743, %v6614, %v6615
  %v6617 = vrot.slane %v6517, 5
  %v6618 = vrot.slane %v6617, 4
  %v6619 = vrot.slane %v6518, 5
  %v6620 = vsel %vm743, %v6618, %v6619
  %v6621 = vrot.slane %v6619, 4
  %v6622 = vrot.slane %v6519, 5
  %v6623 = vsel %vm743, %v6621, %v6622
  %v6624 = vrot.slane %v6520, 5
  %v6625 = vrot.slane %v6624, 4
  %v6626 = vrot.slane %v6521, 5
  %v6627 = vsel %vm743, %v6625, %v6626
  %v6628 = vrot.slane %v6626, 4
  %v6629 = vrot.slane %v6522, 5
  %v6630 = vsel %vm743, %v6628, %v6629
  %v6631 = vrot.slane %v6523, 5
  %v6632 = vrot.slane %v6631, 4
  %v6633 = vrot.slane %v6524, 5
  %v6634 = vsel %vm743, %v6632, %v6633
  %v6635 = vrot.slane %v6633, 4
  %v6636 = vrot.slane %v6525, 5
  %v6637 = vsel %vm743, %v6635, %v6636
  %v6638 = vrot.slane %v6526, 5
  %v6639 = vrot.slane %v6638, 4
  %v6640 = vrot.slane %v6527, 5
  %v6641 = vsel %vm743, %v6639, %v6640
  %v6642 = vrot.slane %v6640, 4
  %v6643 = vrot.slane %v6528, 5
  %v6644 = vsel %vm743, %v6642, %v6643
  %v6645 = vrot.slane %v6529, 5
  %v6646 = vrot.slane %v6645, 4
  %v6647 = vrot.slane %v6530, 5
  %v6648 = vsel %vm743, %v6646, %v6647
  %v6649 = vrot.slane %v6647, 4
  %v6650 = vrot.slane %v6531, 5
  %v6651 = vsel %vm743, %v6649, %v6650
  %v6652 = vrot.slane %v6532, 5
  %v6653 = vrot.slane %v6652, 4
  %v6654 = vrot.slane %v6533, 5
  %v6655 = vsel %vm743, %v6653, %v6654
  %v6656 = vrot.slane %v6654, 4
  %v6657 = vrot.slane %v6534, 5
  %v6658 = vsel %vm743, %v6656, %v6657
  %v6659 = vrot.slane %v6535, 5
  %v6660 = vrot.slane %v6659, 4
  %v6661 = vrot.slane %v6536, 5
  %v6662 = vsel %vm743, %v6660, %v6661
  %v6663 = vrot.slane %v6661, 4
  %v6664 = vrot.slane %v6537, 5
  %v6665 = vsel %vm743, %v6663, %v6664
  %v6666 = vrot.slane %v6538, 5
  %v6667 = vrot.slane %v6666, 4
  %v6668 = vrot.slane %v6539, 5
  %v6669 = vsel %vm743, %v6667, %v6668
  %v6670 = vrot.slane %v6668, 4
  %v6671 = vrot.slane %v6540, 5
  %v6672 = vsel %vm743, %v6670, %v6671
  %v6673 = vrot.slane %v6541, 5
  %v6674 = vrot.slane %v6673, 4
  %v6675 = vrot.slane %v6542, 5
  %v6676 = vsel %vm743, %v6674, %v6675
  %v6677 = vrot.slane %v6675, 4
  %v6678 = vrot.slane %v6543, 5
  %v6679 = vsel %vm743, %v6677, %v6678
  %v6680 = vrot.slane %v6544, 5
  %v6681 = vrot.slane %v6680, 4
  %v6682 = vrot.slane %v6545, 5
  %v6683 = vsel %vm743, %v6681, %v6682
  %v6684 = vrot.slane %v6682, 4
  %v6685 = vrot.slane %v6546, 5
  %v6686 = vsel %vm743, %v6684, %v6685
  %v6687 = vrot.slane %v6547, 5
  %v6688 = vrot.slane %v6687, 4
  %v6689 = vrot.slane %v6548, 5
  %v6690 = vsel %vm743, %v6688, %v6689
  %v6691 = vrot.slane %v6689, 4
  %v6692 = vrot.slane %v6549, 5
  %v6693 = vsel %vm743, %v6691, %v6692
  %v6694 = vrot.slane %v6550, 5
  %v6695 = vrot.slane %v6694, 4
  %v6696 = vrot.slane %v6551, 5
  %v6697 = vsel %vm743, %v6695, %v6696
  %v6698 = vrot.slane %v6696, 4
  %v6699 = vrot.slane %v6552, 5
  %v6700 = vsel %vm743, %v6698, %v6699
  %v6701 = vrot.slane %v6553, 5
  %v6702 = vrot.slane %v6701, 4
  %v6703 = vrot.slane %v6554, 5
  %v6704 = vsel %vm743, %v6702, %v6703
  %v6705 = vrot.slane %v6703, 4
  %v6706 = vrot.slane %v6555, 5
  %v6707 = vsel %vm743, %v6705, %v6706
  %v6708 = vrot.slane %v6556, 5
  %v6709 = vrot.slane %v6708, 4
  %v6710 = vrot.slane %v6557, 5
  %v6711 = vsel %vm743, %v6709, %v6710
  %v6712 = vrot.slane %v6710, 4
  %v6713 = vrot.slane %v6558, 5
  %v6714 = vsel %vm743, %v6712, %v6713
  %v6715 = vrot.slane %v6559, 5
  %v6716 = vrot.slane %v6715, 4
  %v6717 = vrot.slane %v6560, 5
  %v6718 = vsel %vm743, %v6716, %v6717
  %v6719 = vrot.slane %v6717, 4
  %v6720 = vrot.slane %v6561, 5
  %v6721 = vsel %vm743, %v6719, %v6720
  %6722 = vrot.lane.b32.xlu0 %v6613, 32
  %v6723 = vpop.permute.xlu0 %6722
  %6724 = vrot.lane.b32.xlu0 %v6616, 32
  %v6725 = vpop.permute.xlu0 %6724
  %6726 = vrot.lane.b32.xlu0 %v6620, 32
  %v6727 = vpop.permute.xlu0 %6726
  %6728 = vrot.lane.b32.xlu0 %v6623, 32
  %v6729 = vpop.permute.xlu0 %6728
  %6730 = vrot.lane.b32.xlu0 %v6627, 32
  %v6731 = vpop.permute.xlu0 %6730
  %6732 = vrot.lane.b32.xlu0 %v6630, 32
  %v6733 = vpop.permute.xlu0 %6732
  %6734 = vrot.lane.b32.xlu0 %v6634, 32
  %v6735 = vpop.permute.xlu0 %6734
  %6736 = vrot.lane.b32.xlu0 %v6637, 32
  %v6737 = vpop.permute.xlu0 %6736
  %6738 = vrot.lane.b32.xlu0 %v6641, 32
  %v6739 = vpop.permute.xlu0 %6738
  %6740 = vrot.lane.b32.xlu0 %v6644, 32
  %v6741 = vpop.permute.xlu0 %6740
  %6742 = vrot.lane.b32.xlu0 %v6648, 32
  %v6743 = vpop.permute.xlu0 %6742
  %6744 = vrot.lane.b32.xlu0 %v6651, 32
  %v6745 = vpop.permute.xlu0 %6744
  %6746 = vrot.lane.b32.xlu0 %v6655, 32
  %v6747 = vpop.permute.xlu0 %6746
  %6748 = vrot.lane.b32.xlu0 %v6658, 32
  %v6749 = vpop.permute.xlu0 %6748
  %6750 = vrot.lane.b32.xlu0 %v6662, 32
  %v6751 = vpop.permute.xlu0 %6750
  %6752 = vrot.lane.b32.xlu0 %v6665, 32
  %v6753 = vpop.permute.xlu0 %6752
  %6754 = vrot.lane.b32.xlu0 %v6669, 32
  %v6755 = vpop.permute.xlu0 %6754
  %6756 = vrot.lane.b32.xlu0 %v6672, 32
  %v6757 = vpop.permute.xlu0 %6756
  %6758 = vrot.lane.b32.xlu0 %v6676, 32
  %v6759 = vpop.permute.xlu0 %6758
  %6760 = vrot.lane.b32.xlu0 %v6679, 32
  %v6761 = vpop.permute.xlu0 %6760
  %6762 = vrot.lane.b32.xlu0 %v6683, 32
  %v6763 = vpop.permute.xlu0 %6762
  %6764 = vrot.lane.b32.xlu0 %v6686, 32
  %v6765 = vpop.permute.xlu0 %6764
  %6766 = vrot.lane.b32.xlu0 %v6690, 32
  %v6767 = vpop.permute.xlu0 %6766
  %6768 = vrot.lane.b32.xlu0 %v6693, 32
  %v6769 = vpop.permute.xlu0 %6768
  %6770 = vrot.lane.b32.xlu0 %v6697, 32
  %v6771 = vpop.permute.xlu0 %6770
  %6772 = vrot.lane.b32.xlu0 %v6700, 32
  %v6773 = vpop.permute.xlu0 %6772
  %6774 = vrot.lane.b32.xlu0 %v6704, 32
  %v6775 = vpop.permute.xlu0 %6774
  %6776 = vrot.lane.b32.xlu0 %v6707, 32
  %v6777 = vpop.permute.xlu0 %6776
  %6778 = vrot.lane.b32.xlu0 %v6711, 32
  %v6779 = vpop.permute.xlu0 %6778
  %6780 = vrot.lane.b32.xlu0 %v6714, 32
  %v6781 = vpop.permute.xlu0 %6780
  %6782 = vrot.lane.b32.xlu0 %v6718, 32
  %v6783 = vpop.permute.xlu0 %6782
  %6784 = vrot.lane.b32.xlu0 %v6721, 32
  %v6785 = vpop.permute.xlu0 %6784
  %6818 = vst.msk [vmem:[#allocation2] sm:$0xf] %vm3142, %v6723
  %6819 = vst.msk [vmem:[#allocation2 + $0x4] sm:$0xf] %vm3142, %v6725
  %6820 = vst.msk [vmem:[#allocation2 + $0x8] sm:$0xf] %vm3142, %v6727
  %6821 = vst.msk [vmem:[#allocation2 + $0xc] sm:$0xf] %vm3142, %v6729
  %6822 = vst.msk [vmem:[#allocation2 + $0x10] sm:$0xf] %vm3142, %v6731
  %6823 = vst.msk [vmem:[#allocation2 + $0x14] sm:$0xf] %vm3142, %v6733
  %6824 = vst.msk [vmem:[#allocation2 + $0x18] sm:$0xf] %vm3142, %v6735
  %6825 = vst.msk [vmem:[#allocation2 + $0x1c] sm:$0xf] %vm3142, %v6737
  %6826 = vst.msk [vmem:[#allocation2 + $0x20] sm:$0xf] %vm3142, %v6739
  %6827 = vst.msk [vmem:[#allocation2 + $0x24] sm:$0xf] %vm3142, %v6741
  %6828 = vst.msk [vmem:[#allocation2 + $0x28] sm:$0xf] %vm3142, %v6743
  %6829 = vst.msk [vmem:[#allocation2 + $0x2c] sm:$0xf] %vm3142, %v6745
  %6830 = vst.msk [vmem:[#allocation2 + $0x30] sm:$0xf] %vm3142, %v6747
  %6831 = vst.msk [vmem:[#allocation2 + $0x34] sm:$0xf] %vm3142, %v6749
  %6832 = vst.msk [vmem:[#allocation2 + $0x38] sm:$0xf] %vm3142, %v6751
  %6833 = vst.msk [vmem:[#allocation2 + $0x3c] sm:$0xf] %vm3142, %v6753
  %6834 = vst.msk [vmem:[#allocation2 + $0x40] sm:$0xf] %vm3142, %v6755
  %6835 = vst.msk [vmem:[#allocation2 + $0x44] sm:$0xf] %vm3142, %v6757
  %6836 = vst.msk [vmem:[#allocation2 + $0x48] sm:$0xf] %vm3142, %v6759
  %6837 = vst.msk [vmem:[#allocation2 + $0x4c] sm:$0xf] %vm3142, %v6761
  %6838 = vst.msk [vmem:[#allocation2 + $0x50] sm:$0xf] %vm3142, %v6763
  %6839 = vst.msk [vmem:[#allocation2 + $0x54] sm:$0xf] %vm3142, %v6765
  %6840 = vst.msk [vmem:[#allocation2 + $0x58] sm:$0xf] %vm3142, %v6767
  %6841 = vst.msk [vmem:[#allocation2 + $0x5c] sm:$0xf] %vm3142, %v6769
  %6842 = vst.msk [vmem:[#allocation2 + $0x60] sm:$0xf] %vm3142, %v6771
  %6843 = vst.msk [vmem:[#allocation2 + $0x64] sm:$0xf] %vm3142, %v6773
  %6844 = vst.msk [vmem:[#allocation2 + $0x68] sm:$0xf] %vm3142, %v6775
  %6845 = vst.msk [vmem:[#allocation2 + $0x6c] sm:$0xf] %vm3142, %v6777
  %6846 = vst.msk [vmem:[#allocation2 + $0x70] sm:$0xf] %vm3142, %v6779
  %6847 = vst.msk [vmem:[#allocation2 + $0x74] sm:$0xf] %vm3142, %v6781
  %6848 = vst.msk [vmem:[#allocation2 + $0x78] sm:$0xf] %vm3142, %v6783
  %6849 = vst.msk [vmem:[#allocation2 + $0x7c] sm:$0xf] %vm3142, %v6785
  %v6850 = vld [vmem:[#allocation2] sm:$0xf]
  %v6851 = vld [vmem:[#allocation2 + $0x4] sm:$0xf]
  %v6852 = vld [vmem:[#allocation2 + $0x8] sm:$0xf]
  %v6853 = vld [vmem:[#allocation2 + $0xc] sm:$0xf]
  %v6854 = vld [vmem:[#allocation2 + $0x10] sm:$0xf]
  %v6855 = vld [vmem:[#allocation2 + $0x14] sm:$0xf]
  %v6856 = vld [vmem:[#allocation2 + $0x18] sm:$0xf]
  %v6857 = vld [vmem:[#allocation2 + $0x1c] sm:$0xf]
  %v6858 = vld [vmem:[#allocation2 + $0x20] sm:$0xf]
  %v6859 = vld [vmem:[#allocation2 + $0x24] sm:$0xf]
  %v6860 = vld [vmem:[#allocation2 + $0x28] sm:$0xf]
  %v6861 = vld [vmem:[#allocation2 + $0x2c] sm:$0xf]
  %v6862 = vld [vmem:[#allocation2 + $0x30] sm:$0xf]
  %v6863 = vld [vmem:[#allocation2 + $0x34] sm:$0xf]
  %v6864 = vld [vmem:[#allocation2 + $0x38] sm:$0xf]
  %v6865 = vld [vmem:[#allocation2 + $0x3c] sm:$0xf]
  %v6866 = vld [vmem:[#allocation2 + $0x40] sm:$0xf]
  %v6867 = vld [vmem:[#allocation2 + $0x44] sm:$0xf]
  %v6868 = vld [vmem:[#allocation2 + $0x48] sm:$0xf]
  %v6869 = vld [vmem:[#allocation2 + $0x4c] sm:$0xf]
  %v6870 = vld [vmem:[#allocation2 + $0x50] sm:$0xf]
  %v6871 = vld [vmem:[#allocation2 + $0x54] sm:$0xf]
  %v6872 = vld [vmem:[#allocation2 + $0x58] sm:$0xf]
  %v6873 = vld [vmem:[#allocation2 + $0x5c] sm:$0xf]
  %v6874 = vld [vmem:[#allocation2 + $0x60] sm:$0xf]
  %v6875 = vld [vmem:[#allocation2 + $0x64] sm:$0xf]
  %v6876 = vld [vmem:[#allocation2 + $0x68] sm:$0xf]
  %v6877 = vld [vmem:[#allocation2 + $0x6c] sm:$0xf]
  %v6878 = vld [vmem:[#allocation2 + $0x70] sm:$0xf]
  %v6879 = vld [vmem:[#allocation2 + $0x74] sm:$0xf]
  %v6880 = vld [vmem:[#allocation2 + $0x78] sm:$0xf]
  %v6881 = vld [vmem:[#allocation2 + $0x7c] sm:$0xf]
  %v6882 = vld [vmem:[%s1] sm:$0xf]
  %v6915 = vunpack.c.l.b16 %v6850
  %v6916 = vunpack.c.l.b16 %v6851
  %v6917 = vunpack.c.l.b16 %v6852
  %v6918 = vunpack.c.l.b16 %v6853
  %v6919 = vunpack.c.l.b16 %v6854
  %v6920 = vunpack.c.l.b16 %v6855
  %v6921 = vunpack.c.l.b16 %v6856
  %v6922 = vunpack.c.l.b16 %v6857
  %v6923 = vunpack.c.l.b16 %v6858
  %v6924 = vunpack.c.l.b16 %v6859
  %v6925 = vunpack.c.l.b16 %v6860
  %v6926 = vunpack.c.l.b16 %v6861
  %v6927 = vunpack.c.l.b16 %v6862
  %v6928 = vunpack.c.l.b16 %v6863
  %v6929 = vunpack.c.l.b16 %v6864
  %v6930 = vunpack.c.l.b16 %v6865
  %v6931 = vunpack.c.l.b16 %v6866
  %v6932 = vunpack.c.l.b16 %v6867
  %v6933 = vunpack.c.l.b16 %v6868
  %v6934 = vunpack.c.l.b16 %v6869
  %v6935 = vunpack.c.l.b16 %v6870
  %v6936 = vunpack.c.l.b16 %v6871
  %v6937 = vunpack.c.l.b16 %v6872
  %v6938 = vunpack.c.l.b16 %v6873
  %v6939 = vunpack.c.l.b16 %v6874
  %v6940 = vunpack.c.l.b16 %v6875
  %v6941 = vunpack.c.l.b16 %v6876
  %v6942 = vunpack.c.l.b16 %v6877
  %v6943 = vunpack.c.l.b16 %v6878
  %v6944 = vunpack.c.l.b16 %v6879
  %v6945 = vunpack.c.l.b16 %v6880
  %v6946 = vunpack.c.l.b16 %v6881
  %v6947 = vpack.c.b16 %v6916, %v6915
  %v6948 = vpack.c.b16 %v6918, %v6917
  %v6949 = vpack.c.b16 %v6920, %v6919
  %v6950 = vpack.c.b16 %v6922, %v6921
  %v6951 = vpack.c.b16 %v6924, %v6923
  %v6952 = vpack.c.b16 %v6926, %v6925
  %v6953 = vpack.c.b16 %v6928, %v6927
  %v6954 = vpack.c.b16 %v6930, %v6929
  %v6955 = vpack.c.b16 %v6932, %v6931
  %v6956 = vpack.c.b16 %v6934, %v6933
  %v6957 = vpack.c.b16 %v6936, %v6935
  %v6958 = vpack.c.b16 %v6938, %v6937
  %v6959 = vpack.c.b16 %v6940, %v6939
  %v6960 = vpack.c.b16 %v6942, %v6941
  %v6961 = vpack.c.b16 %v6944, %v6943
  %v6962 = vpack.c.b16 %v6946, %v6945
  %v6964 = vsel %vm3288, %v6947, 0
  %v6967 = vsel %vm3288, %v6948, 0
  %v6970 = vsel %vm3288, %v6949, 0
  %v6973 = vsel %vm3288, %v6950, 0
  %v6976 = vsel %vm3288, %v6951, 0
  %v6979 = vsel %vm3288, %v6952, 0
  %v6982 = vsel %vm3288, %v6953, 0
  %v6985 = vsel %vm3288, %v6954, 0
  %v6988 = vsel %vm3288, %v6955, 0
  %v6991 = vsel %vm3288, %v6956, 0
  %v6994 = vsel %vm3288, %v6957, 0
  %v6997 = vsel %vm3288, %v6958, 0
  %v7000 = vsel %vm3288, %v6959, 0
  %v7003 = vsel %vm3288, %v6960, 0
  %v7006 = vsel %vm3288, %v6961, 0
  %v7009 = vsel %vm3288, %v6962, 0
  %v7012 = vsel %vm3288, %v6882, 0
  %7014 = vmatprep.subr.bf16.mxu0 0
  %7015 = vmatpush1.bf16.xpose.msra.mxu0 0
  %7016 = vmatprep.subr.bf16.mxu0 0
  %7017 = vmatpush1.bf16.xpose.msra.mxu0 0
  %7018 = vmatprep.subr.bf16.mxu0 0
  %7019 = vmatpush1.bf16.xpose.msra.mxu0 0
  %7020 = vmatprep.subr.bf16.mxu0 0
  %7021 = vmatpush1.bf16.xpose.msra.mxu0 0
  %7022 = vmatprep.subr.bf16.mxu0 0
  %7023 = vmatpush1.bf16.xpose.msra.mxu0 0
  %7024 = vmatprep.subr.bf16.mxu0 0
  %7025 = vmatpush1.bf16.xpose.msra.mxu0 0
  %7026 = vmatprep.subr.bf16.mxu0 0
  %7027 = vmatpush1.bf16.xpose.msra.mxu0 0
  %7028 = vmatprep.subr.bf16.mxu0 0
  %7029 = vmatpush1.bf16.xpose.msra.mxu0 %v7012
  %7030 = vmatprep.subr.bf16.mxu0 0
  %7031 = vmatpush2.bf16.xpose.msra.mxu0 0
  %7032 = vmatprep.subr.bf16.mxu0 0
  %7033 = vmatpush2.bf16.xpose.msra.mxu0 0
  %7034 = vmatprep.subr.bf16.mxu0 0
  %7035 = vmatpush2.bf16.xpose.msra.mxu0 0
  %7036 = vmatprep.subr.bf16.mxu0 0
  %7037 = vmatpush2.bf16.xpose.msra.mxu0 0
  %7038 = vmatprep.subr.bf16.mxu0 0
  %7039 = vmatpush2.bf16.xpose.msra.mxu0 0
  %7040 = vmatprep.subr.bf16.mxu0 0
  %7041 = vmatpush2.bf16.xpose.msra.mxu0 0
  %7042 = vmatprep.subr.bf16.mxu0 0
  %7043 = vmatpush2.bf16.xpose.msra.mxu0 0
  %7044 = vmatprep.subr.bf16.mxu0 0
  %7045 = vmatpush2.bf16.xpose.msra.mxu0 0
  %7046 = vmatprep.mubr.bf16.mxu0 0
  %7047 = vmatmul.mubr.bf16.gmra.mxu0 %v6964
  %v7048 = vpop.f32.mrf.mxu0
  %v7049 = vadd.f32 0.0, %v7048
  %v7050 = vpop.f32.mrf.mxu0
  %v7051 = vpop.f32.mrf.mxu0
  %v7052 = vadd.f32 0.0, %v7051
  %v7053 = vpop.f32.mrf.mxu0
  %7054 = vmatprep.mubr.bf16.mxu0 0
  %7055 = vmatmul.mubr.bf16.gmra.mxu0 %v6967
  %v7056 = vpop.f32.mrf.mxu0
  %v7057 = vadd.f32 0.0, %v7056
  %v7058 = vpop.f32.mrf.mxu0
  %v7059 = vpop.f32.mrf.mxu0
  %v7060 = vadd.f32 0.0, %v7059
  %v7061 = vpop.f32.mrf.mxu0
  %7062 = vmatprep.mubr.bf16.mxu0 0
  %7063 = vmatmul.mubr.bf16.gmra.mxu0 %v6970
  %v7064 = vpop.f32.mrf.mxu0
  %v7065 = vadd.f32 0.0, %v7064
  %v7066 = vpop.f32.mrf.mxu0
  %v7067 = vpop.f32.mrf.mxu0
  %v7068 = vadd.f32 0.0, %v7067
  %v7069 = vpop.f32.mrf.mxu0
  %7070 = vmatprep.mubr.bf16.mxu0 0
  %7071 = vmatmul.mubr.bf16.gmra.mxu0 %v6973
  %v7072 = vpop.f32.mrf.mxu0
  %v7073 = vadd.f32 0.0, %v7072
  %v7074 = vpop.f32.mrf.mxu0
  %v7075 = vpop.f32.mrf.mxu0
  %v7076 = vadd.f32 0.0, %v7075
  %v7077 = vpop.f32.mrf.mxu0
  %7078 = vmatprep.mubr.bf16.mxu0 0
  %7079 = vmatmul.mubr.bf16.gmra.mxu0 %v6976
  %v7080 = vpop.f32.mrf.mxu0
  %v7081 = vadd.f32 0.0, %v7080
  %v7082 = vpop.f32.mrf.mxu0
  %v7083 = vpop.f32.mrf.mxu0
  %v7084 = vadd.f32 0.0, %v7083
  %v7085 = vpop.f32.mrf.mxu0
  %7086 = vmatprep.mubr.bf16.mxu0 0
  %7087 = vmatmul.mubr.bf16.gmra.mxu0 %v6979
  %v7088 = vpop.f32.mrf.mxu0
  %v7089 = vadd.f32 0.0, %v7088
  %v7090 = vpop.f32.mrf.mxu0
  %v7091 = vpop.f32.mrf.mxu0
  %v7092 = vadd.f32 0.0, %v7091
  %v7093 = vpop.f32.mrf.mxu0
  %7094 = vmatprep.mubr.bf16.mxu0 0
  %7095 = vmatmul.mubr.bf16.gmra.mxu0 %v6982
  %v7096 = vpop.f32.mrf.mxu0
  %v7097 = vadd.f32 0.0, %v7096
  %v7098 = vpop.f32.mrf.mxu0
  %v7099 = vpop.f32.mrf.mxu0
  %v7100 = vadd.f32 0.0, %v7099
  %v7101 = vpop.f32.mrf.mxu0
  %7102 = vmatprep.mubr.bf16.mxu0 0
  %7103 = vmatmul.mubr.bf16.gmra.mxu0 %v6985
  %v7104 = vpop.f32.mrf.mxu0
  %v7105 = vadd.f32 0.0, %v7104
  %v7106 = vpop.f32.mrf.mxu0
  %v7107 = vpop.f32.mrf.mxu0
  %v7108 = vadd.f32 0.0, %v7107
  %v7109 = vpop.f32.mrf.mxu0
  %7110 = vmatprep.mubr.bf16.mxu0 0
  %7111 = vmatmul.mubr.bf16.gmra.mxu0 %v6988
  %v7112 = vpop.f32.mrf.mxu0
  %v7113 = vadd.f32 0.0, %v7112
  %v7114 = vpop.f32.mrf.mxu0
  %v7115 = vpop.f32.mrf.mxu0
  %v7116 = vadd.f32 0.0, %v7115
  %v7117 = vpop.f32.mrf.mxu0
  %7118 = vmatprep.mubr.bf16.mxu0 0
  %7119 = vmatmul.mubr.bf16.gmra.mxu0 %v6991
  %v7120 = vpop.f32.mrf.mxu0
  %v7121 = vadd.f32 0.0, %v7120
  %v7122 = vpop.f32.mrf.mxu0
  %v7123 = vpop.f32.mrf.mxu0
  %v7124 = vadd.f32 0.0, %v7123
  %v7125 = vpop.f32.mrf.mxu0
  %7126 = vmatprep.mubr.bf16.mxu0 0
  %7127 = vmatmul.mubr.bf16.gmra.mxu0 %v6994
  %v7128 = vpop.f32.mrf.mxu0
  %v7129 = vadd.f32 0.0, %v7128
  %v7130 = vpop.f32.mrf.mxu0
  %v7131 = vpop.f32.mrf.mxu0
  %v7132 = vadd.f32 0.0, %v7131
  %v7133 = vpop.f32.mrf.mxu0
  %7134 = vmatprep.mubr.bf16.mxu0 0
  %7135 = vmatmul.mubr.bf16.gmra.mxu0 %v6997
  %v7136 = vpop.f32.mrf.mxu0
  %v7137 = vadd.f32 0.0, %v7136
  %v7138 = vpop.f32.mrf.mxu0
  %v7139 = vpop.f32.mrf.mxu0
  %v7140 = vadd.f32 0.0, %v7139
  %v7141 = vpop.f32.mrf.mxu0
  %7142 = vmatprep.mubr.bf16.mxu0 0
  %7143 = vmatmul.mubr.bf16.gmra.mxu0 %v7000
  %v7144 = vpop.f32.mrf.mxu0
  %v7145 = vadd.f32 0.0, %v7144
  %v7146 = vpop.f32.mrf.mxu0
  %v7147 = vpop.f32.mrf.mxu0
  %v7148 = vadd.f32 0.0, %v7147
  %v7149 = vpop.f32.mrf.mxu0
  %7150 = vmatprep.mubr.bf16.mxu0 0
  %7151 = vmatmul.mubr.bf16.gmra.mxu0 %v7003
  %v7152 = vpop.f32.mrf.mxu0
  %v7153 = vadd.f32 0.0, %v7152
  %v7154 = vpop.f32.mrf.mxu0
  %v7155 = vpop.f32.mrf.mxu0
  %v7156 = vadd.f32 0.0, %v7155
  %v7157 = vpop.f32.mrf.mxu0
  %7158 = vmatprep.mubr.bf16.mxu0 0
  %7159 = vmatmul.mubr.bf16.gmra.mxu0 %v7006
  %v7160 = vpop.f32.mrf.mxu0
  %v7161 = vadd.f32 0.0, %v7160
  %v7162 = vpop.f32.mrf.mxu0
  %v7163 = vpop.f32.mrf.mxu0
  %v7164 = vadd.f32 0.0, %v7163
  %v7165 = vpop.f32.mrf.mxu0
  %7166 = vmatprep.mubr.bf16.mxu0 0
  %7167 = vmatmul.mubr.bf16.gmra.mxu0 %v7009
  %v7168 = vpop.f32.mrf.mxu0
  %v7169 = vadd.f32 0.0, %v7168
  %v7170 = vpop.f32.mrf.mxu0
  %v7171 = vpop.f32.mrf.mxu0
  %v7172 = vadd.f32 0.0, %v7171
  %v7173 = vpop.f32.mrf.mxu0
  %7174 = vdwg.mxu0
  %v7175 = vsel %vm3501, %v7049, 0.0
  %v7176 = vsel %vm3501, %v7052, 0.0
  %v7177 = vadd.f32 %v7175, %v7176
  %v7178 = vsel %vm3501, %v7057, 0.0
  %v7179 = vadd.f32 %v7177, %v7178
  %v7180 = vsel %vm3501, %v7060, 0.0
  %v7181 = vadd.f32 %v7179, %v7180
  %v7182 = vsel %vm3501, %v7065, 0.0
  %v7183 = vadd.f32 %v7181, %v7182
  %v7184 = vsel %vm3501, %v7068, 0.0
  %v7185 = vadd.f32 %v7183, %v7184
  %v7186 = vsel %vm3501, %v7073, 0.0
  %v7187 = vadd.f32 %v7185, %v7186
  %v7188 = vsel %vm3501, %v7076, 0.0
  %v7189 = vadd.f32 %v7187, %v7188
  %v7190 = vsel %vm3501, %v7081, 0.0
  %v7191 = vadd.f32 %v7189, %v7190
  %v7192 = vsel %vm3501, %v7084, 0.0
  %v7193 = vadd.f32 %v7191, %v7192
  %v7194 = vsel %vm3501, %v7089, 0.0
  %v7195 = vadd.f32 %v7193, %v7194
  %v7196 = vsel %vm3501, %v7092, 0.0
  %v7197 = vadd.f32 %v7195, %v7196
  %v7198 = vsel %vm3501, %v7097, 0.0
  %v7199 = vadd.f32 %v7197, %v7198
  %v7200 = vsel %vm3501, %v7100, 0.0
  %v7201 = vadd.f32 %v7199, %v7200
  %v7202 = vsel %vm3501, %v7105, 0.0
  %v7203 = vadd.f32 %v7201, %v7202
  %v7204 = vsel %vm3501, %v7108, 0.0
  %v7205 = vadd.f32 %v7203, %v7204
  %v7206 = vsel %vm3501, %v7113, 0.0
  %v7207 = vadd.f32 %v7205, %v7206
  %v7208 = vsel %vm3501, %v7116, 0.0
  %v7209 = vadd.f32 %v7207, %v7208
  %v7210 = vsel %vm3501, %v7121, 0.0
  %v7211 = vadd.f32 %v7209, %v7210
  %v7212 = vsel %vm3501, %v7124, 0.0
  %v7213 = vadd.f32 %v7211, %v7212
  %v7214 = vsel %vm3501, %v7129, 0.0
  %v7215 = vadd.f32 %v7213, %v7214
  %v7216 = vsel %vm3501, %v7132, 0.0
  %v7217 = vadd.f32 %v7215, %v7216
  %v7218 = vsel %vm3501, %v7137, 0.0
  %v7219 = vadd.f32 %v7217, %v7218
  %v7220 = vsel %vm3501, %v7140, 0.0
  %v7221 = vadd.f32 %v7219, %v7220
  %v7222 = vsel %vm3501, %v7145, 0.0
  %v7223 = vadd.f32 %v7221, %v7222
  %v7224 = vsel %vm3501, %v7148, 0.0
  %v7225 = vadd.f32 %v7223, %v7224
  %v7226 = vsel %vm3501, %v7153, 0.0
  %v7227 = vadd.f32 %v7225, %v7226
  %v7228 = vsel %vm3501, %v7156, 0.0
  %v7229 = vadd.f32 %v7227, %v7228
  %v7230 = vsel %vm3501, %v7161, 0.0
  %v7231 = vadd.f32 %v7229, %v7230
  %v7232 = vsel %vm3501, %v7164, 0.0
  %v7233 = vadd.f32 %v7231, %v7232
  %v7234 = vsel %vm3501, %v7169, 0.0
  %v7235 = vadd.f32 %v7233, %v7234
  %v7236 = vsel %vm3501, %v7172, 0.0
  %v7237 = vadd.f32 %v7235, %v7236
  %v7238 = vrot.slane %v7237, 4
  %v7239 = vadd.f32 %v7237, %v7238
  %v7240 = vrot.slane %v7239, 2
  %v7241 = vadd.f32 %v7239, %v7240
  %v7242 = vrot.slane %v7241, 1
  %v7243 = vadd.f32 %v7241, %v7242
  %v7244 = vmul.f32 %v7243, 0.00390625
  %v7245 = vsub.f32 %v7049, %v7244
  %v7246 = vsub.f32 %v7052, %v7244
  %v7247 = vsub.f32 %v7057, %v7244
  %v7248 = vsub.f32 %v7060, %v7244
  %v7249 = vsub.f32 %v7065, %v7244
  %v7250 = vsub.f32 %v7068, %v7244
  %v7251 = vsub.f32 %v7073, %v7244
  %v7252 = vsub.f32 %v7076, %v7244
  %v7253 = vsub.f32 %v7081, %v7244
  %v7254 = vsub.f32 %v7084, %v7244
  %v7255 = vsub.f32 %v7089, %v7244
  %v7256 = vsub.f32 %v7092, %v7244
  %v7257 = vsub.f32 %v7097, %v7244
  %v7258 = vsub.f32 %v7100, %v7244
  %v7259 = vsub.f32 %v7105, %v7244
  %v7260 = vsub.f32 %v7108, %v7244
  %v7261 = vsub.f32 %v7113, %v7244
  %v7262 = vsub.f32 %v7116, %v7244
  %v7263 = vsub.f32 %v7121, %v7244
  %v7264 = vsub.f32 %v7124, %v7244
  %v7265 = vsub.f32 %v7129, %v7244
  %v7266 = vsub.f32 %v7132, %v7244
  %v7267 = vsub.f32 %v7137, %v7244
  %v7268 = vsub.f32 %v7140, %v7244
  %v7269 = vsub.f32 %v7145, %v7244
  %v7270 = vsub.f32 %v7148, %v7244
  %v7271 = vsub.f32 %v7153, %v7244
  %v7272 = vsub.f32 %v7156, %v7244
  %v7273 = vsub.f32 %v7161, %v7244
  %v7274 = vsub.f32 %v7164, %v7244
  %v7275 = vsub.f32 %v7169, %v7244
  %v7276 = vsub.f32 %v7172, %v7244
  %v7277 = vmul.f32 %v7245, %v7245
  %v7278 = vmul.f32 %v7246, %v7246
  %v7279 = vmul.f32 %v7247, %v7247
  %v7280 = vmul.f32 %v7248, %v7248
  %v7281 = vmul.f32 %v7249, %v7249
  %v7282 = vmul.f32 %v7250, %v7250
  %v7283 = vmul.f32 %v7251, %v7251
  %v7284 = vmul.f32 %v7252, %v7252
  %v7285 = vmul.f32 %v7253, %v7253
  %v7286 = vmul.f32 %v7254, %v7254
  %v7287 = vmul.f32 %v7255, %v7255
  %v7288 = vmul.f32 %v7256, %v7256
  %v7289 = vmul.f32 %v7257, %v7257
  %v7290 = vmul.f32 %v7258, %v7258
  %v7291 = vmul.f32 %v7259, %v7259
  %v7292 = vmul.f32 %v7260, %v7260
  %v7293 = vmul.f32 %v7261, %v7261
  %v7294 = vmul.f32 %v7262, %v7262
  %v7295 = vmul.f32 %v7263, %v7263
  %v7296 = vmul.f32 %v7264, %v7264
  %v7297 = vmul.f32 %v7265, %v7265
  %v7298 = vmul.f32 %v7266, %v7266
  %v7299 = vmul.f32 %v7267, %v7267
  %v7300 = vmul.f32 %v7268, %v7268
  %v7301 = vmul.f32 %v7269, %v7269
  %v7302 = vmul.f32 %v7270, %v7270
  %v7303 = vmul.f32 %v7271, %v7271
  %v7304 = vmul.f32 %v7272, %v7272
  %v7305 = vmul.f32 %v7273, %v7273
  %v7306 = vmul.f32 %v7274, %v7274
  %v7307 = vmul.f32 %v7275, %v7275
  %v7308 = vmul.f32 %v7276, %v7276
  %v7309 = vsel %vm3501, %v7277, 0.0
  %v7310 = vsel %vm3501, %v7278, 0.0
  %v7311 = vadd.f32 %v7309, %v7310
  %v7312 = vsel %vm3501, %v7279, 0.0
  %v7313 = vadd.f32 %v7311, %v7312
  %v7314 = vsel %vm3501, %v7280, 0.0
  %v7315 = vadd.f32 %v7313, %v7314
  %v7316 = vsel %vm3501, %v7281, 0.0
  %v7317 = vadd.f32 %v7315, %v7316
  %v7318 = vsel %vm3501, %v7282, 0.0
  %v7319 = vadd.f32 %v7317, %v7318
  %v7320 = vsel %vm3501, %v7283, 0.0
  %v7321 = vadd.f32 %v7319, %v7320
  %v7322 = vsel %vm3501, %v7284, 0.0
  %v7323 = vadd.f32 %v7321, %v7322
  %v7324 = vsel %vm3501, %v7285, 0.0
  %v7325 = vadd.f32 %v7323, %v7324
  %v7326 = vsel %vm3501, %v7286, 0.0
  %v7327 = vadd.f32 %v7325, %v7326
  %v7328 = vsel %vm3501, %v7287, 0.0
  %v7329 = vadd.f32 %v7327, %v7328
  %v7330 = vsel %vm3501, %v7288, 0.0
  %v7331 = vadd.f32 %v7329, %v7330
  %v7332 = vsel %vm3501, %v7289, 0.0
  %v7333 = vadd.f32 %v7331, %v7332
  %v7334 = vsel %vm3501, %v7290, 0.0
  %v7335 = vadd.f32 %v7333, %v7334
  %v7336 = vsel %vm3501, %v7291, 0.0
  %v7337 = vadd.f32 %v7335, %v7336
  %v7338 = vsel %vm3501, %v7292, 0.0
  %v7339 = vadd.f32 %v7337, %v7338
  %v7340 = vsel %vm3501, %v7293, 0.0
  %v7341 = vadd.f32 %v7339, %v7340
  %v7342 = vsel %vm3501, %v7294, 0.0
  %v7343 = vadd.f32 %v7341, %v7342
  %v7344 = vsel %vm3501, %v7295, 0.0
  %v7345 = vadd.f32 %v7343, %v7344
  %v7346 = vsel %vm3501, %v7296, 0.0
  %v7347 = vadd.f32 %v7345, %v7346
  %v7348 = vsel %vm3501, %v7297, 0.0
  %v7349 = vadd.f32 %v7347, %v7348
  %v7350 = vsel %vm3501, %v7298, 0.0
  %v7351 = vadd.f32 %v7349, %v7350
  %v7352 = vsel %vm3501, %v7299, 0.0
  %v7353 = vadd.f32 %v7351, %v7352
  %v7354 = vsel %vm3501, %v7300, 0.0
  %v7355 = vadd.f32 %v7353, %v7354
  %v7356 = vsel %vm3501, %v7301, 0.0
  %v7357 = vadd.f32 %v7355, %v7356
  %v7358 = vsel %vm3501, %v7302, 0.0
  %v7359 = vadd.f32 %v7357, %v7358
  %v7360 = vsel %vm3501, %v7303, 0.0
  %v7361 = vadd.f32 %v7359, %v7360
  %v7362 = vsel %vm3501, %v7304, 0.0
  %v7363 = vadd.f32 %v7361, %v7362
  %v7364 = vsel %vm3501, %v7305, 0.0
  %v7365 = vadd.f32 %v7363, %v7364
  %v7366 = vsel %vm3501, %v7306, 0.0
  %v7367 = vadd.f32 %v7365, %v7366
  %v7368 = vsel %vm3501, %v7307, 0.0
  %v7369 = vadd.f32 %v7367, %v7368
  %v7370 = vsel %vm3501, %v7308, 0.0
  %v7371 = vadd.f32 %v7369, %v7370
  %v7372 = vrot.slane %v7371, 4
  %v7373 = vadd.f32 %v7371, %v7372
  %v7374 = vrot.slane %v7373, 2
  %v7375 = vadd.f32 %v7373, %v7374
  %v7376 = vrot.slane %v7375, 1
  %v7377 = vadd.f32 %v7375, %v7376
  %v7378 = vsub.f32 %v7244, %v3571
  %v7379 = vmul.f32 %v7378, 0.5
  %v7380 = vadd.f32 %v3571, %v7379
  %v7381 = vadd.f32 %v3704, %v7377
  %v7382 = vmul.f32 %v7378, %v7378
  %v7383 = vmul.f32 %v7382, 128.0
  %v7384 = vadd.f32 %v7381, %v7383
  %vm7385 = vcmask 57344
  %7386 = vst.msk [vmem:[%s2] sm:$0x1] %vm7385, %v7380
  %7387 = vst.msk [vmem:[%s2 + $0x1] sm:$0x1] %vm7385, %v7384
  // Predicated region
  $region10: #{cnn_block_forward.2} parent=0 // pred_check
    _
  $region11: #{cnn_block_forward.2} parent=0 // pred_check_branch
    %7389 = sbr.rel (0) target = $region13
  $region12: #{cnn_block_forward.2} parent=0 // pred_region
    _
  $region13: #{cnn_block_forward.2} parent=0 // pred_fallthru
    _
  // Predicated region
  $region14: #{cnn_block_forward.2} parent=0 // pred_check
    _
  $region15: #{cnn_block_forward.2} parent=0 // pred_check_branch
    %7391 = sbr.rel (0) target = $region17
  $region16: #{cnn_block_forward.2} parent=0 // pred_region
    _
  $region17: #{cnn_block_forward.2} parent=0 // pred_fallthru
    _

</llo_original>
